<compile_context>
chip_gen: v5e
topology: v5e:2x2
jax: 0.10.0
libtpu: 0.0.40
codegen_flags: <defaults>
</compile_context>

<pallas_src>
import functools

import numpy as np
import jax
import jax.numpy as jnp
from jax.experimental import pallas as pl
from jax.experimental.pallas import tpu as pltpu


# ----------------------------------------------------------------------------
# Fused kernel. Gate order everywhere matches PyTorch: i, f, g, o.
# ----------------------------------------------------------------------------
def channelwise_lstm_kernel(
    x_ref,       # (T*B, F)        bf16, time-major rows: t*B + b
    wch_ref,     # (F, 8*F*H)      bf16, [fwd | bwd] per-channel input weights
    bch_ref,     # (1, 8*F*H)      f32,  combined b_ih + b_hh, [fwd | bwd]
    whh_f_ref,   # (F*H, 4*F*H)    bf16, per-channel fwd hidden weights
    wm_blk_ref,  # (F*H, H*4*H)    bf16, block-diag merge input weights
    whm_f_ref,   # (H, 4*H)        bf16, merge fwd hidden weights
    bm_f_ref,    # (1, 4*H)        f32
    wim_b_ref,   # (F, 4*H)        bf16, merge bwd input weights
    bm_b_ref,    # (1, 4*H)        f32
    wfc_f_ref,   # (H, C)          bf16
    wfc_b_ref,   # (H, C)          bf16
    bfc_ref,     # (1, C)          f32
    out_ref,     # (B, C)          f32
    gxm_ref,     # scratch VMEM (B, 2*H*4*H) f32: hoisted merge input gates
    *, T, B, n_feats, H,
):
    f32, bf16 = jnp.float32, jnp.bfloat16
    F = n_feats
    FH = F * H
    G = 4 * H  # merge per-step gate width (= 128 = one vreg)

    # ---- hoisted per-channel input projection (fwd: all T steps; bwd: the
    #      single step at t = T-1) in ONE matmul -------------------------------
    x = x_ref[...]                                                    # (T*B, F)
    gx_all = jnp.dot(x, wch_ref[...], preferred_element_type=f32) + bch_ref[...]
    gx_f = gx_all[:, :4 * FH]                                         # fwd gates
    gx_b_last = gx_all[(T - 1) * B:T * B, 4 * FH:]                    # bwd @ t=T-1

    def ch_gates(gates):
        # Narrowed EUP work: sigmoid over [i|f] (2*FH lanes) and [o] (FH),
        # tanh over [g] (FH).  All slice boundaries are multiples of 128.
        sif = jax.nn.sigmoid(gates[:, :2 * FH])
        g_g = jnp.tanh(gates[:, 2 * FH:3 * FH])
        o_g = jax.nn.sigmoid(gates[:, 3 * FH:])
        return sif[:, :FH], sif[:, FH:], g_g, o_g

    # ---- per-channel LSTMs, forward recurrence (all F channels fused into a
    #      block-diagonal LSTM on the combined state h[b, s*F + c]) -----------
    whh_f = whh_f_ref[...]
    h = jnp.zeros((B, FH), f32)
    c = jnp.zeros((B, FH), f32)
    for t in range(T):
        gates = gx_f[t * B:(t + 1) * B, :] + jnp.dot(
            h.astype(bf16), whh_f, preferred_element_type=f32)
        i_g, f_g, g_g, o_g = ch_gates(gates)
        c = f_g * c + i_g * g_g
        h = o_g * jnp.tanh(c)
    h_fwd = h                                     # (B, FH), layout h[b, s*F + c]

    # ---- per-channel LSTMs, backward direction: single step (h0 = c0 = 0) ---
    i_g, _, g_g, o_g = ch_gates(gx_b_last)
    h_bwd = o_g * jnp.tanh(i_g * g_g)

    # ---- merge LSTM: hoist ALL 2H per-step input projections ----------------
    # Block-diagonal weight maps h[b, s*F + c] -> per-step gates at lane block
    # [s*4H : (s+1)*4H]; two matmuls cover the whole 2H-long "sequence".
    wm_blk = wm_blk_ref[...]
    gxm_ref[:, :H * G] = jnp.dot(h_fwd.astype(bf16), wm_blk,
                                 preferred_element_type=f32)
    gxm_ref[:, H * G:] = jnp.dot(h_bwd.astype(bf16), wm_blk,
                                 preferred_element_type=f32)

    whm_f = whm_f_ref[...]
    bm_f = bm_f_ref[...]
    hm = jnp.zeros((B, H), f32)
    cm = jnp.zeros((B, H), f32)
    for s in range(2 * H):
        # Static 128-lane-aligned slice of the VMEM-resident hoisted gates.
        gates = (gxm_ref[:, s * G:(s + 1) * G]
                 + jnp.dot(hm.astype(bf16), whm_f, preferred_element_type=f32)
                 + bm_f)
        sig = jax.nn.sigmoid(gates)       # 4H = 128 lanes = one vreg: keep
        tah = jnp.tanh(gates)             # full-width transcendentals here.
        i_g, f_g = sig[:, :H], sig[:, H:2 * H]
        g_g, o_g = tah[:, 2 * H:3 * H], sig[:, 3 * H:]
        cm = f_g * cm + i_g * g_g
        hm = o_g * jnp.tanh(cm)
    hm_fwd = hm

    # ---- merge LSTM, backward direction: single step at position 2H-1 -------
    xin = h_bwd[:, (H - 1) * F:]                                      # (B, F)
    gates = jnp.dot(xin.astype(bf16), wim_b_ref[...],
                    preferred_element_type=f32) + bm_b_ref[...]
    sig = jax.nn.sigmoid(gates)
    tah = jnp.tanh(gates)
    hm_bwd = sig[:, 3 * H:] * jnp.tanh(sig[:, :H] * tah[:, 2 * H:3 * H])

    # ---- fc + sigmoid epilogue (no lane concat: split-weight double dot) ----
    logits = (jnp.dot(hm_fwd.astype(bf16), wfc_f_ref[...],
                      preferred_element_type=f32)
              + jnp.dot(hm_bwd.astype(bf16), wfc_b_ref[...],
                        preferred_element_type=f32)
              + bfc_ref[...])
    out_ref[...] = jax.nn.sigmoid(logits).astype(out_ref.dtype)


# ----------------------------------------------------------------------------
# Wrapper: one fused pallas_call; everything lives in VMEM.
# ----------------------------------------------------------------------------
@jax.jit
def channelwise_lstm_forward(x, kparams):
    B, T, F = x.shape
    H = kparams["whm_f"].shape[0]
    C = kparams["bfc"].shape[1]
    x_tm = jnp.transpose(x, (1, 0, 2)).reshape(T * B, F).astype(jnp.bfloat16)

    kernel = functools.partial(channelwise_lstm_kernel, T=T, B=B, n_feats=F, H=H)
    vmem = pl.BlockSpec(memory_space=pltpu.MemorySpace.VMEM)
    return pl.pallas_call(
        kernel,
        out_shape=jax.ShapeDtypeStruct((B, C), jnp.float32),
        in_specs=[vmem] * 12,
        out_specs=vmem,
        scratch_shapes=[pltpu.VMEM((B, 2 * H * 4 * H), jnp.float32)],
    )(x_tm,
      kparams["wch"], kparams["bch"], kparams["whh_f"],
      kparams["wm_blk"], kparams["whm_f"], kparams["bm_f"],
      kparams["wim_b"], kparams["bm_b"],
      kparams["wfc_f"], kparams["wfc_b"], kparams["bfc"])


# ----------------------------------------------------------------------------
# Parameter construction.  Logical weights follow PyTorch LSTM/Linear shapes;
# kernel weights are interleaved block matrices acting on the combined state
# h[b, s*F + c] with per-channel gate layout gates[b, g*F*H + s*F + c], and a
# block-diagonal merge input-projection weight.  Matmul weights stored bf16.
# ----------------------------------------------------------------------------
def init_params(key, n_feats, n_classes, hidden_size):
    H, F, C = hidden_size, n_feats, n_classes
    FH = F * H
    bound = 1.0 / np.sqrt(H)
    keys = iter(jax.random.split(key, F * 8 + 8 + 2))

    def uni(shape, b=bound):
        return np.asarray(jax.random.uniform(next(keys), shape, jnp.float32, -b, b))

    logical = {"ch": [], "merge": {}, "fc": None}
    kp = {}

    # per-channel bidirectional LSTMs (input_size=1, hidden=H, 1 layer)
    for c in range(F):
        d = {}
        for dname in ("fwd", "bwd"):
            d[dname] = (uni((4 * H, 1)), uni((4 * H, H)),
                        uni((4 * H,)), uni((4 * H,)))
        logical["ch"].append(d)

    s_idx = np.arange(H)
    wih, bias, whh_f_big = {}, {}, None
    for dname, tag in (("fwd", "f"), ("bwd", "b")):
        wih_big = np.zeros((F, 4 * FH), np.float32)
        whh_big = np.zeros((FH, 4 * FH), np.float32)
        b_big = np.zeros((4 * FH,), np.float32)
        for c in range(F):
            w_ih, w_hh, b_ih, b_hh = logical["ch"][c][dname]
            rows = c + F * s_idx
            for g in range(4):
                cols = g * FH + c + F * s_idx
                wih_big[c, cols] = w_ih[g * H + s_idx, 0]
                whh_big[np.ix_(rows, cols)] = w_hh[g * H:(g + 1) * H, :].T
                b_big[cols] = b_ih[g * H + s_idx] + b_hh[g * H + s_idx]
        wih[tag], bias[tag] = wih_big, b_big
        if tag == "f":
            whh_f_big = whh_big
        # Backward direction: only its first step (zero state) ever reaches
        # z[:, -1, :], so its W_hh never influences this forward().

    kp["wch"] = jnp.asarray(np.concatenate([wih["f"], wih["b"]], axis=1),
                            jnp.bfloat16)
    kp["bch"] = jnp.asarray(np.concatenate([bias["f"], bias["b"]])[None, :],
                            jnp.float32)
    kp["whh_f"] = jnp.asarray(whh_f_big, jnp.bfloat16)

    # merge LSTM (input_size=F, hidden=H, bidirectional)
    for dname, tag in (("fwd", "f"), ("bwd", "b")):
        w_ih, w_hh, b_ih, b_hh = (uni((4 * H, F)), uni((4 * H, H)),
                                  uni((4 * H,)), uni((4 * H,)))
        logical["merge"][dname] = (w_ih, w_hh, b_ih, b_hh)
        if tag == "f":
            # Block-diagonal hoisted input projection: combined hidden state
            # h[b, s*F + c] -> step-s gates at columns [s*4H : (s+1)*4H].
            wm_blk = np.zeros((FH, H * 4 * H), np.float32)
            for s in range(H):
                wm_blk[s * F:(s + 1) * F, s * 4 * H:(s + 1) * 4 * H] = w_ih.T
            kp["wm_blk"] = jnp.asarray(wm_blk, jnp.bfloat16)
            kp["whm_f"] = jnp.asarray(np.ascontiguousarray(w_hh.T), jnp.bfloat16)
            kp["bm_f"] = jnp.asarray((b_ih + b_hh)[None, :], jnp.float32)
        else:
            kp["wim_b"] = jnp.asarray(np.ascontiguousarray(w_ih.T), jnp.bfloat16)
            kp["bm_b"] = jnp.asarray((b_ih + b_hh)[None, :], jnp.float32)

    fc_bound = 1.0 / np.sqrt(2 * H)
    w_fc = uni((C, 2 * H), fc_bound)
    b_fc = uni((C,), fc_bound)
    logical["fc"] = (w_fc, b_fc)
    kp["wfc_f"] = jnp.asarray(np.ascontiguousarray(w_fc[:, :H].T), jnp.bfloat16)
    kp["wfc_b"] = jnp.asarray(np.ascontiguousarray(w_fc[:, H:].T), jnp.bfloat16)
    kp["bfc"] = jnp.asarray(b_fc[None, :], jnp.float32)
    return kp, logical


# ----------------------------------------------------------------------------
# Plain-JAX f32 reference of the PyTorch forward (full bidirectional
# recurrences), used only to cross-check the fused bf16-matmul kernel.
# ----------------------------------------------------------------------------
def _lstm_cell_ref(x_t, h, c, w_ih, w_hh, b_ih, b_hh):
    hp = jax.lax.Precision.HIGHEST
    gates = (jnp.dot(x_t, w_ih.T, precision=hp)
             + jnp.dot(h, w_hh.T, precision=hp) + b_ih + b_hh)
    H = h.shape[-1]
    i = jax.nn.sigmoid(gates[:, 0 * H:1 * H])
    f = jax.nn.sigmoid(gates[:, 1 * H:2 * H])
    g = jnp.tanh(gates[:, 2 * H:3 * H])
    o = jax.nn.sigmoid(gates[:, 3 * H:4 * H])
    c = f * c + i * g
    return o * jnp.tanh(c), c


def _bilstm_last_ref(x_seq, p_fwd, p_bwd, H):
    """z[:, -1, :] of a 1-layer bidirectional LSTM over (B, T, D), batch_first."""
    B, T, _ = x_seq.shape
    h = jnp.zeros((B, H), jnp.float32)
    c = jnp.zeros((B, H), jnp.float32)
    for t in range(T):
        h, c = _lstm_cell_ref(x_seq[:, t, :], h, c, *p_fwd)
    h_fwd_last = h
    hb = jnp.zeros((B, H), jnp.float32)
    cb = jnp.zeros((B, H), jnp.float32)
    hb_at_last = None
    for t in range(T - 1, -1, -1):                 # backward direction
        hb, cb = _lstm_cell_ref(x_seq[:, t, :], hb, cb, *p_bwd)
        if t == T - 1:
            hb_at_last = hb                        # output at position T-1
    return jnp.concatenate([h_fwd_last, hb_at_last], axis=-1)


def reference_forward(x, logical, hidden_size):
    B, T, F = x.shape
    H = hidden_size
    per_ch = []
    for c in range(F):
        per_ch.append(_bilstm_last_ref(x[:, :, c:c + 1],
                                       logical["ch"][c]["fwd"],
                                       logical["ch"][c]["bwd"], H))
    full = jnp.stack(per_ch, axis=-1)                                # (B, 2H, F)
    z_last = _bilstm_last_ref(full, logical["merge"]["fwd"],
                              logical["merge"]["bwd"], H)            # (B, 2H)
    w_fc, b_fc = logical["fc"]
    logits = jnp.dot(z_last, w_fc.T, precision=jax.lax.Precision.HIGHEST) + b_fc
    return jax.nn.sigmoid(logits)


if __name__ == "__main__":
    B, T, N_FEATS = 2, 8, 4
    HIDDEN, N_CLASSES = 32, 10

    key = jax.random.PRNGKey(0)
    key, kx = jax.random.split(key)
    x = jax.random.normal(kx, (B, T, N_FEATS), jnp.float32)

    kparams, logical = init_params(key, N_FEATS, N_CLASSES, HIDDEN)

    out = channelwise_lstm_forward(x, kparams)
    out = jax.block_until_ready(out)
    assert out.shape == (B, N_CLASSES)
    assert bool(jnp.all(jnp.isfinite(out)))

    # Cross-check against the plain-JAX f32 PyTorch-equivalent.  Tolerance is
    # relaxed slightly vs. the pure-f32 kernel because matmuls now run with
    # bf16 operands (f32 accumulation); outputs are post-sigmoid in [0, 1].
    ref = reference_forward(x, logical, HIDDEN)
    np.testing.assert_allclose(np.asarray(out), np.asarray(ref),
                               rtol=2e-2, atol=2e-2)

    print("KERNEL_OK")
</pallas_src>

<mosaic_0001>
module attributes {stable_mosaic.version = 11 : i64} {
  func.func @channelwise_lstm_kernel(%arg0: memref<16x4xbf16, #tpu.memory_space<vmem>>, %arg1: memref<4x1024xbf16, #tpu.memory_space<vmem>>, %arg2: memref<1x1024xf32, #tpu.memory_space<vmem>>, %arg3: memref<128x512xbf16, #tpu.memory_space<vmem>>, %arg4: memref<128x4096xbf16, #tpu.memory_space<vmem>>, %arg5: memref<32x128xbf16, #tpu.memory_space<vmem>>, %arg6: memref<1x128xf32, #tpu.memory_space<vmem>>, %arg7: memref<4x128xbf16, #tpu.memory_space<vmem>>, %arg8: memref<1x128xf32, #tpu.memory_space<vmem>>, %arg9: memref<32x10xbf16, #tpu.memory_space<vmem>>, %arg10: memref<32x10xbf16, #tpu.memory_space<vmem>>, %arg11: memref<1x10xf32, #tpu.memory_space<vmem>>, %arg12: memref<2x10xf32, #tpu.memory_space<vmem>>, %arg13: memref<2x8192xf32, #tpu.memory_space<vmem>>) attributes {dimension_semantics = [], scalar_prefetch = 0 : i64, scratch_operands = 1 : i64, tpu.core_type = #tpu.core_type<tc>} {
    %c0 = arith.constant 0 : index
    %c0_0 = arith.constant 0 : index
    %0 = vector.load %arg0[%c0, %c0_0] : memref<16x4xbf16, #tpu.memory_space<vmem>>, vector<16x4xbf16>
    %c0_1 = arith.constant 0 : index
    %c0_2 = arith.constant 0 : index
    %1 = vector.load %arg1[%c0_1, %c0_2] : memref<4x1024xbf16, #tpu.memory_space<vmem>>, vector<4x1024xbf16>
    %cst = arith.constant dense<0.000000e+00> : vector<16x1024xf32>
    %2 = tpu.matmul %0, %1, %cst {dimension_numbers = #tpu.dot_dimension_numbers<[1], [0], [0], [1], [0, 0, 1, 1], [], []>} : vector<16x4xbf16>, vector<4x1024xbf16>, vector<16x1024xf32> -> vector<16x1024xf32>
    %c0_3 = arith.constant 0 : index
    %c0_4 = arith.constant 0 : index
    %3 = vector.load %arg2[%c0_3, %c0_4] : memref<1x1024xf32, #tpu.memory_space<vmem>>, vector<1x1024xf32>
    %4 = vector.broadcast %3 : vector<1x1024xf32> to vector<16x1024xf32>
    %5 = arith.addf %2, %4 : vector<16x1024xf32>
    %6 = vector.extract_strided_slice %5 {offsets = [0, 0], sizes = [16, 512], strides = [1, 1]} : vector<16x1024xf32> to vector<16x512xf32>
    %7 = vector.extract_strided_slice %5 {offsets = [14, 512], sizes = [2, 512], strides = [1, 1]} : vector<16x1024xf32> to vector<2x512xf32>
    %c0_5 = arith.constant 0 : index
    %c0_6 = arith.constant 0 : index
    %8 = vector.load %arg3[%c0_5, %c0_6] : memref<128x512xbf16, #tpu.memory_space<vmem>>, vector<128x512xbf16>
    %cst_7 = arith.constant 0.000000e+00 : f32
    %9 = vector.broadcast %cst_7 : f32 to vector<2x128xf32>
    %cst_8 = arith.constant 0.000000e+00 : f32
    %10 = vector.broadcast %cst_8 : f32 to vector<2x128xf32>
    %11 = vector.extract_strided_slice %6 {offsets = [0, 0], sizes = [2, 512], strides = [1, 1]} : vector<16x512xf32> to vector<2x512xf32>
    %12 = arith.truncf %9 : vector<2x128xf32> to vector<2x128xbf16>
    %cst_9 = arith.constant dense<0.000000e+00> : vector<2x512xf32>
    %13 = tpu.matmul %12, %8, %cst_9 {dimension_numbers = #tpu.dot_dimension_numbers<[1], [0], [0], [1], [0, 0, 1, 1], [], []>} : vector<2x128xbf16>, vector<128x512xbf16>, vector<2x512xf32> -> vector<2x512xf32>
    %14 = arith.addf %11, %13 : vector<2x512xf32>
    %15 = vector.extract_strided_slice %14 {offsets = [0, 0], sizes = [2, 256], strides = [1, 1]} : vector<2x512xf32> to vector<2x256xf32>
    %16 = arith.negf %15 : vector<2x256xf32>
    %17 = math.exp %16 : vector<2x256xf32>
    %cst_10 = arith.constant 1.000000e+00 : f32
    %18 = vector.broadcast %cst_10 : f32 to vector<2x256xf32>
    %19 = arith.addf %18, %17 : vector<2x256xf32>
    %20 = arith.divf %18, %19 : vector<2x256xf32>
    %21 = vector.extract_strided_slice %14 {offsets = [0, 256], sizes = [2, 128], strides = [1, 1]} : vector<2x512xf32> to vector<2x128xf32>
    %22 = math.tanh %21 : vector<2x128xf32>
    %23 = vector.extract_strided_slice %14 {offsets = [0, 384], sizes = [2, 128], strides = [1, 1]} : vector<2x512xf32> to vector<2x128xf32>
    %24 = arith.negf %23 : vector<2x128xf32>
    %25 = math.exp %24 : vector<2x128xf32>
    %cst_11 = arith.constant 1.000000e+00 : f32
    %26 = vector.broadcast %cst_11 : f32 to vector<2x128xf32>
    %27 = arith.addf %26, %25 : vector<2x128xf32>
    %28 = arith.divf %26, %27 : vector<2x128xf32>
    %29 = vector.extract_strided_slice %20 {offsets = [0, 0], sizes = [2, 128], strides = [1, 1]} : vector<2x256xf32> to vector<2x128xf32>
    %30 = vector.extract_strided_slice %20 {offsets = [0, 128], sizes = [2, 128], strides = [1, 1]} : vector<2x256xf32> to vector<2x128xf32>
    %31 = arith.mulf %30, %10 : vector<2x128xf32>
    %32 = arith.mulf %29, %22 : vector<2x128xf32>
    %33 = arith.addf %31, %32 : vector<2x128xf32>
    %34 = math.tanh %33 : vector<2x128xf32>
    %35 = arith.mulf %28, %34 : vector<2x128xf32>
    %36 = vector.extract_strided_slice %6 {offsets = [2, 0], sizes = [2, 512], strides = [1, 1]} : vector<16x512xf32> to vector<2x512xf32>
    %37 = arith.truncf %35 : vector<2x128xf32> to vector<2x128xbf16>
    %cst_12 = arith.constant dense<0.000000e+00> : vector<2x512xf32>
    %38 = tpu.matmul %37, %8, %cst_12 {dimension_numbers = #tpu.dot_dimension_numbers<[1], [0], [0], [1], [0, 0, 1, 1], [], []>} : vector<2x128xbf16>, vector<128x512xbf16>, vector<2x512xf32> -> vector<2x512xf32>
    %39 = arith.addf %36, %38 : vector<2x512xf32>
    %40 = vector.extract_strided_slice %39 {offsets = [0, 0], sizes = [2, 256], strides = [1, 1]} : vector<2x512xf32> to vector<2x256xf32>
    %41 = arith.negf %40 : vector<2x256xf32>
    %42 = math.exp %41 : vector<2x256xf32>
    %cst_13 = arith.constant 1.000000e+00 : f32
    %43 = vector.broadcast %cst_13 : f32 to vector<2x256xf32>
    %44 = arith.addf %43, %42 : vector<2x256xf32>
    %45 = arith.divf %43, %44 : vector<2x256xf32>
    %46 = vector.extract_strided_slice %39 {offsets = [0, 256], sizes = [2, 128], strides = [1, 1]} : vector<2x512xf32> to vector<2x128xf32>
    %47 = math.tanh %46 : vector<2x128xf32>
    %48 = vector.extract_strided_slice %39 {offsets = [0, 384], sizes = [2, 128], strides = [1, 1]} : vector<2x512xf32> to vector<2x128xf32>
    %49 = arith.negf %48 : vector<2x128xf32>
    %50 = math.exp %49 : vector<2x128xf32>
    %cst_14 = arith.constant 1.000000e+00 : f32
    %51 = vector.broadcast %cst_14 : f32 to vector<2x128xf32>
    %52 = arith.addf %51, %50 : vector<2x128xf32>
    %53 = arith.divf %51, %52 : vector<2x128xf32>
    %54 = vector.extract_strided_slice %45 {offsets = [0, 0], sizes = [2, 128], strides = [1, 1]} : vector<2x256xf32> to vector<2x128xf32>
    %55 = vector.extract_strided_slice %45 {offsets = [0, 128], sizes = [2, 128], strides = [1, 1]} : vector<2x256xf32> to vector<2x128xf32>
    %56 = arith.mulf %55, %33 : vector<2x128xf32>
    %57 = arith.mulf %54, %47 : vector<2x128xf32>
    %58 = arith.addf %56, %57 : vector<2x128xf32>
    %59 = math.tanh %58 : vector<2x128xf32>
    %60 = arith.mulf %53, %59 : vector<2x128xf32>
    %61 = vector.extract_strided_slice %6 {offsets = [4, 0], sizes = [2, 512], strides = [1, 1]} : vector<16x512xf32> to vector<2x512xf32>
    %62 = arith.truncf %60 : vector<2x128xf32> to vector<2x128xbf16>
    %cst_15 = arith.constant dense<0.000000e+00> : vector<2x512xf32>
    %63 = tpu.matmul %62, %8, %cst_15 {dimension_numbers = #tpu.dot_dimension_numbers<[1], [0], [0], [1], [0, 0, 1, 1], [], []>} : vector<2x128xbf16>, vector<128x512xbf16>, vector<2x512xf32> -> vector<2x512xf32>
    %64 = arith.addf %61, %63 : vector<2x512xf32>
    %65 = vector.extract_strided_slice %64 {offsets = [0, 0], sizes = [2, 256], strides = [1, 1]} : vector<2x512xf32> to vector<2x256xf32>
    %66 = arith.negf %65 : vector<2x256xf32>
    %67 = math.exp %66 : vector<2x256xf32>
    %cst_16 = arith.constant 1.000000e+00 : f32
    %68 = vector.broadcast %cst_16 : f32 to vector<2x256xf32>
    %69 = arith.addf %68, %67 : vector<2x256xf32>
    %70 = arith.divf %68, %69 : vector<2x256xf32>
    %71 = vector.extract_strided_slice %64 {offsets = [0, 256], sizes = [2, 128], strides = [1, 1]} : vector<2x512xf32> to vector<2x128xf32>
    %72 = math.tanh %71 : vector<2x128xf32>
    %73 = vector.extract_strided_slice %64 {offsets = [0, 384], sizes = [2, 128], strides = [1, 1]} : vector<2x512xf32> to vector<2x128xf32>
    %74 = arith.negf %73 : vector<2x128xf32>
    %75 = math.exp %74 : vector<2x128xf32>
    %cst_17 = arith.constant 1.000000e+00 : f32
    %76 = vector.broadcast %cst_17 : f32 to vector<2x128xf32>
    %77 = arith.addf %76, %75 : vector<2x128xf32>
    %78 = arith.divf %76, %77 : vector<2x128xf32>
    %79 = vector.extract_strided_slice %70 {offsets = [0, 0], sizes = [2, 128], strides = [1, 1]} : vector<2x256xf32> to vector<2x128xf32>
    %80 = vector.extract_strided_slice %70 {offsets = [0, 128], sizes = [2, 128], strides = [1, 1]} : vector<2x256xf32> to vector<2x128xf32>
    %81 = arith.mulf %80, %58 : vector<2x128xf32>
    %82 = arith.mulf %79, %72 : vector<2x128xf32>
    %83 = arith.addf %81, %82 : vector<2x128xf32>
    %84 = math.tanh %83 : vector<2x128xf32>
    %85 = arith.mulf %78, %84 : vector<2x128xf32>
    %86 = vector.extract_strided_slice %6 {offsets = [6, 0], sizes = [2, 512], strides = [1, 1]} : vector<16x512xf32> to vector<2x512xf32>
    %87 = arith.truncf %85 : vector<2x128xf32> to vector<2x128xbf16>
    %cst_18 = arith.constant dense<0.000000e+00> : vector<2x512xf32>
    %88 = tpu.matmul %87, %8, %cst_18 {dimension_numbers = #tpu.dot_dimension_numbers<[1], [0], [0], [1], [0, 0, 1, 1], [], []>} : vector<2x128xbf16>, vector<128x512xbf16>, vector<2x512xf32> -> vector<2x512xf32>
    %89 = arith.addf %86, %88 : vector<2x512xf32>
    %90 = vector.extract_strided_slice %89 {offsets = [0, 0], sizes = [2, 256], strides = [1, 1]} : vector<2x512xf32> to vector<2x256xf32>
    %91 = arith.negf %90 : vector<2x256xf32>
    %92 = math.exp %91 : vector<2x256xf32>
    %cst_19 = arith.constant 1.000000e+00 : f32
    %93 = vector.broadcast %cst_19 : f32 to vector<2x256xf32>
    %94 = arith.addf %93, %92 : vector<2x256xf32>
    %95 = arith.divf %93, %94 : vector<2x256xf32>
    %96 = vector.extract_strided_slice %89 {offsets = [0, 256], sizes = [2, 128], strides = [1, 1]} : vector<2x512xf32> to vector<2x128xf32>
    %97 = math.tanh %96 : vector<2x128xf32>
    %98 = vector.extract_strided_slice %89 {offsets = [0, 384], sizes = [2, 128], strides = [1, 1]} : vector<2x512xf32> to vector<2x128xf32>
    %99 = arith.negf %98 : vector<2x128xf32>
    %100 = math.exp %99 : vector<2x128xf32>
    %cst_20 = arith.constant 1.000000e+00 : f32
    %101 = vector.broadcast %cst_20 : f32 to vector<2x128xf32>
    %102 = arith.addf %101, %100 : vector<2x128xf32>
    %103 = arith.divf %101, %102 : vector<2x128xf32>
    %104 = vector.extract_strided_slice %95 {offsets = [0, 0], sizes = [2, 128], strides = [1, 1]} : vector<2x256xf32> to vector<2x128xf32>
    %105 = vector.extract_strided_slice %95 {offsets = [0, 128], sizes = [2, 128], strides = [1, 1]} : vector<2x256xf32> to vector<2x128xf32>
    %106 = arith.mulf %105, %83 : vector<2x128xf32>
    %107 = arith.mulf %104, %97 : vector<2x128xf32>
    %108 = arith.addf %106, %107 : vector<2x128xf32>
    %109 = math.tanh %108 : vector<2x128xf32>
    %110 = arith.mulf %103, %109 : vector<2x128xf32>
    %111 = vector.extract_strided_slice %6 {offsets = [8, 0], sizes = [2, 512], strides = [1, 1]} : vector<16x512xf32> to vector<2x512xf32>
    %112 = arith.truncf %110 : vector<2x128xf32> to vector<2x128xbf16>
    %cst_21 = arith.constant dense<0.000000e+00> : vector<2x512xf32>
    %113 = tpu.matmul %112, %8, %cst_21 {dimension_numbers = #tpu.dot_dimension_numbers<[1], [0], [0], [1], [0, 0, 1, 1], [], []>} : vector<2x128xbf16>, vector<128x512xbf16>, vector<2x512xf32> -> vector<2x512xf32>
    %114 = arith.addf %111, %113 : vector<2x512xf32>
    %115 = vector.extract_strided_slice %114 {offsets = [0, 0], sizes = [2, 256], strides = [1, 1]} : vector<2x512xf32> to vector<2x256xf32>
    %116 = arith.negf %115 : vector<2x256xf32>
    %117 = math.exp %116 : vector<2x256xf32>
    %cst_22 = arith.constant 1.000000e+00 : f32
    %118 = vector.broadcast %cst_22 : f32 to vector<2x256xf32>
    %119 = arith.addf %118, %117 : vector<2x256xf32>
    %120 = arith.divf %118, %119 : vector<2x256xf32>
    %121 = vector.extract_strided_slice %114 {offsets = [0, 256], sizes = [2, 128], strides = [1, 1]} : vector<2x512xf32> to vector<2x128xf32>
    %122 = math.tanh %121 : vector<2x128xf32>
    %123 = vector.extract_strided_slice %114 {offsets = [0, 384], sizes = [2, 128], strides = [1, 1]} : vector<2x512xf32> to vector<2x128xf32>
    %124 = arith.negf %123 : vector<2x128xf32>
    %125 = math.exp %124 : vector<2x128xf32>
    %cst_23 = arith.constant 1.000000e+00 : f32
    %126 = vector.broadcast %cst_23 : f32 to vector<2x128xf32>
    %127 = arith.addf %126, %125 : vector<2x128xf32>
    %128 = arith.divf %126, %127 : vector<2x128xf32>
    %129 = vector.extract_strided_slice %120 {offsets = [0, 0], sizes = [2, 128], strides = [1, 1]} : vector<2x256xf32> to vector<2x128xf32>
    %130 = vector.extract_strided_slice %120 {offsets = [0, 128], sizes = [2, 128], strides = [1, 1]} : vector<2x256xf32> to vector<2x128xf32>
    %131 = arith.mulf %130, %108 : vector<2x128xf32>
    %132 = arith.mulf %129, %122 : vector<2x128xf32>
    %133 = arith.addf %131, %132 : vector<2x128xf32>
    %134 = math.tanh %133 : vector<2x128xf32>
    %135 = arith.mulf %128, %134 : vector<2x128xf32>
    %136 = vector.extract_strided_slice %6 {offsets = [10, 0], sizes = [2, 512], strides = [1, 1]} : vector<16x512xf32> to vector<2x512xf32>
    %137 = arith.truncf %135 : vector<2x128xf32> to vector<2x128xbf16>
    %cst_24 = arith.constant dense<0.000000e+00> : vector<2x512xf32>
    %138 = tpu.matmul %137, %8, %cst_24 {dimension_numbers = #tpu.dot_dimension_numbers<[1], [0], [0], [1], [0, 0, 1, 1], [], []>} : vector<2x128xbf16>, vector<128x512xbf16>, vector<2x512xf32> -> vector<2x512xf32>
    %139 = arith.addf %136, %138 : vector<2x512xf32>
    %140 = vector.extract_strided_slice %139 {offsets = [0, 0], sizes = [2, 256], strides = [1, 1]} : vector<2x512xf32> to vector<2x256xf32>
    %141 = arith.negf %140 : vector<2x256xf32>
    %142 = math.exp %141 : vector<2x256xf32>
    %cst_25 = arith.constant 1.000000e+00 : f32
    %143 = vector.broadcast %cst_25 : f32 to vector<2x256xf32>
    %144 = arith.addf %143, %142 : vector<2x256xf32>
    %145 = arith.divf %143, %144 : vector<2x256xf32>
    %146 = vector.extract_strided_slice %139 {offsets = [0, 256], sizes = [2, 128], strides = [1, 1]} : vector<2x512xf32> to vector<2x128xf32>
    %147 = math.tanh %146 : vector<2x128xf32>
    %148 = vector.extract_strided_slice %139 {offsets = [0, 384], sizes = [2, 128], strides = [1, 1]} : vector<2x512xf32> to vector<2x128xf32>
    %149 = arith.negf %148 : vector<2x128xf32>
    %150 = math.exp %149 : vector<2x128xf32>
    %cst_26 = arith.constant 1.000000e+00 : f32
    %151 = vector.broadcast %cst_26 : f32 to vector<2x128xf32>
    %152 = arith.addf %151, %150 : vector<2x128xf32>
    %153 = arith.divf %151, %152 : vector<2x128xf32>
    %154 = vector.extract_strided_slice %145 {offsets = [0, 0], sizes = [2, 128], strides = [1, 1]} : vector<2x256xf32> to vector<2x128xf32>
    %155 = vector.extract_strided_slice %145 {offsets = [0, 128], sizes = [2, 128], strides = [1, 1]} : vector<2x256xf32> to vector<2x128xf32>
    %156 = arith.mulf %155, %133 : vector<2x128xf32>
    %157 = arith.mulf %154, %147 : vector<2x128xf32>
    %158 = arith.addf %156, %157 : vector<2x128xf32>
    %159 = math.tanh %158 : vector<2x128xf32>
    %160 = arith.mulf %153, %159 : vector<2x128xf32>
    %161 = vector.extract_strided_slice %6 {offsets = [12, 0], sizes = [2, 512], strides = [1, 1]} : vector<16x512xf32> to vector<2x512xf32>
    %162 = arith.truncf %160 : vector<2x128xf32> to vector<2x128xbf16>
    %cst_27 = arith.constant dense<0.000000e+00> : vector<2x512xf32>
    %163 = tpu.matmul %162, %8, %cst_27 {dimension_numbers = #tpu.dot_dimension_numbers<[1], [0], [0], [1], [0, 0, 1, 1], [], []>} : vector<2x128xbf16>, vector<128x512xbf16>, vector<2x512xf32> -> vector<2x512xf32>
    %164 = arith.addf %161, %163 : vector<2x512xf32>
    %165 = vector.extract_strided_slice %164 {offsets = [0, 0], sizes = [2, 256], strides = [1, 1]} : vector<2x512xf32> to vector<2x256xf32>
    %166 = arith.negf %165 : vector<2x256xf32>
    %167 = math.exp %166 : vector<2x256xf32>
    %cst_28 = arith.constant 1.000000e+00 : f32
    %168 = vector.broadcast %cst_28 : f32 to vector<2x256xf32>
    %169 = arith.addf %168, %167 : vector<2x256xf32>
    %170 = arith.divf %168, %169 : vector<2x256xf32>
    %171 = vector.extract_strided_slice %164 {offsets = [0, 256], sizes = [2, 128], strides = [1, 1]} : vector<2x512xf32> to vector<2x128xf32>
    %172 = math.tanh %171 : vector<2x128xf32>
    %173 = vector.extract_strided_slice %164 {offsets = [0, 384], sizes = [2, 128], strides = [1, 1]} : vector<2x512xf32> to vector<2x128xf32>
    %174 = arith.negf %173 : vector<2x128xf32>
    %175 = math.exp %174 : vector<2x128xf32>
    %cst_29 = arith.constant 1.000000e+00 : f32
    %176 = vector.broadcast %cst_29 : f32 to vector<2x128xf32>
    %177 = arith.addf %176, %175 : vector<2x128xf32>
    %178 = arith.divf %176, %177 : vector<2x128xf32>
    %179 = vector.extract_strided_slice %170 {offsets = [0, 0], sizes = [2, 128], strides = [1, 1]} : vector<2x256xf32> to vector<2x128xf32>
    %180 = vector.extract_strided_slice %170 {offsets = [0, 128], sizes = [2, 128], strides = [1, 1]} : vector<2x256xf32> to vector<2x128xf32>
    %181 = arith.mulf %180, %158 : vector<2x128xf32>
    %182 = arith.mulf %179, %172 : vector<2x128xf32>
    %183 = arith.addf %181, %182 : vector<2x128xf32>
    %184 = math.tanh %183 : vector<2x128xf32>
    %185 = arith.mulf %178, %184 : vector<2x128xf32>
    %186 = vector.extract_strided_slice %6 {offsets = [14, 0], sizes = [2, 512], strides = [1, 1]} : vector<16x512xf32> to vector<2x512xf32>
    %187 = arith.truncf %185 : vector<2x128xf32> to vector<2x128xbf16>
    %cst_30 = arith.constant dense<0.000000e+00> : vector<2x512xf32>
    %188 = tpu.matmul %187, %8, %cst_30 {dimension_numbers = #tpu.dot_dimension_numbers<[1], [0], [0], [1], [0, 0, 1, 1], [], []>} : vector<2x128xbf16>, vector<128x512xbf16>, vector<2x512xf32> -> vector<2x512xf32>
    %189 = arith.addf %186, %188 : vector<2x512xf32>
    %190 = vector.extract_strided_slice %189 {offsets = [0, 0], sizes = [2, 256], strides = [1, 1]} : vector<2x512xf32> to vector<2x256xf32>
    %191 = arith.negf %190 : vector<2x256xf32>
    %192 = math.exp %191 : vector<2x256xf32>
    %cst_31 = arith.constant 1.000000e+00 : f32
    %193 = vector.broadcast %cst_31 : f32 to vector<2x256xf32>
    %194 = arith.addf %193, %192 : vector<2x256xf32>
    %195 = arith.divf %193, %194 : vector<2x256xf32>
    %196 = vector.extract_strided_slice %189 {offsets = [0, 256], sizes = [2, 128], strides = [1, 1]} : vector<2x512xf32> to vector<2x128xf32>
    %197 = math.tanh %196 : vector<2x128xf32>
    %198 = vector.extract_strided_slice %189 {offsets = [0, 384], sizes = [2, 128], strides = [1, 1]} : vector<2x512xf32> to vector<2x128xf32>
    %199 = arith.negf %198 : vector<2x128xf32>
    %200 = math.exp %199 : vector<2x128xf32>
    %cst_32 = arith.constant 1.000000e+00 : f32
    %201 = vector.broadcast %cst_32 : f32 to vector<2x128xf32>
    %202 = arith.addf %201, %200 : vector<2x128xf32>
    %203 = arith.divf %201, %202 : vector<2x128xf32>
    %204 = vector.extract_strided_slice %195 {offsets = [0, 0], sizes = [2, 128], strides = [1, 1]} : vector<2x256xf32> to vector<2x128xf32>
    %205 = vector.extract_strided_slice %195 {offsets = [0, 128], sizes = [2, 128], strides = [1, 1]} : vector<2x256xf32> to vector<2x128xf32>
    %206 = arith.mulf %205, %183 : vector<2x128xf32>
    %207 = arith.mulf %204, %197 : vector<2x128xf32>
    %208 = arith.addf %206, %207 : vector<2x128xf32>
    %209 = math.tanh %208 : vector<2x128xf32>
    %210 = arith.mulf %203, %209 : vector<2x128xf32>
    %211 = vector.extract_strided_slice %7 {offsets = [0, 0], sizes = [2, 256], strides = [1, 1]} : vector<2x512xf32> to vector<2x256xf32>
    %212 = arith.negf %211 : vector<2x256xf32>
    %213 = math.exp %212 : vector<2x256xf32>
    %cst_33 = arith.constant 1.000000e+00 : f32
    %214 = vector.broadcast %cst_33 : f32 to vector<2x256xf32>
    %215 = arith.addf %214, %213 : vector<2x256xf32>
    %216 = arith.divf %214, %215 : vector<2x256xf32>
    %217 = vector.extract_strided_slice %7 {offsets = [0, 256], sizes = [2, 128], strides = [1, 1]} : vector<2x512xf32> to vector<2x128xf32>
    %218 = math.tanh %217 : vector<2x128xf32>
    %219 = vector.extract_strided_slice %7 {offsets = [0, 384], sizes = [2, 128], strides = [1, 1]} : vector<2x512xf32> to vector<2x128xf32>
    %220 = arith.negf %219 : vector<2x128xf32>
    %221 = math.exp %220 : vector<2x128xf32>
    %cst_34 = arith.constant 1.000000e+00 : f32
    %222 = vector.broadcast %cst_34 : f32 to vector<2x128xf32>
    %223 = arith.addf %222, %221 : vector<2x128xf32>
    %224 = arith.divf %222, %223 : vector<2x128xf32>
    %225 = vector.extract_strided_slice %216 {offsets = [0, 0], sizes = [2, 128], strides = [1, 1]} : vector<2x256xf32> to vector<2x128xf32>
    %226 = arith.mulf %225, %218 : vector<2x128xf32>
    %227 = math.tanh %226 : vector<2x128xf32>
    %228 = arith.mulf %224, %227 : vector<2x128xf32>
    %c0_35 = arith.constant 0 : index
    %c0_36 = arith.constant 0 : index
    %229 = vector.load %arg4[%c0_35, %c0_36] : memref<128x4096xbf16, #tpu.memory_space<vmem>>, vector<128x4096xbf16>
    %230 = arith.truncf %210 : vector<2x128xf32> to vector<2x128xbf16>
    %cst_37 = arith.constant dense<0.000000e+00> : vector<2x4096xf32>
    %231 = tpu.matmul %230, %229, %cst_37 {dimension_numbers = #tpu.dot_dimension_numbers<[1], [0], [0], [1], [0, 0, 1, 1], [], []>} : vector<2x128xbf16>, vector<128x4096xbf16>, vector<2x4096xf32> -> vector<2x4096xf32>
    %c0_38 = arith.constant 0 : index
    %c0_39 = arith.constant 0 : index
    %232 = vector.load %arg13[%c0_38, %c0_39] : memref<2x8192xf32, #tpu.memory_space<vmem>>, vector<2x4096xf32>
    tpu.vector_store %arg13[%c0_38, %c0_39], %231 {strides = array<i32>} : memref<2x8192xf32, #tpu.memory_space<vmem>>, vector<2x4096xf32>,
    %233 = arith.truncf %228 : vector<2x128xf32> to vector<2x128xbf16>
    %cst_40 = arith.constant dense<0.000000e+00> : vector<2x4096xf32>
    %234 = tpu.matmul %233, %229, %cst_40 {dimension_numbers = #tpu.dot_dimension_numbers<[1], [0], [0], [1], [0, 0, 1, 1], [], []>} : vector<2x128xbf16>, vector<128x4096xbf16>, vector<2x4096xf32> -> vector<2x4096xf32>
    %c0_41 = arith.constant 0 : index
    %c4096 = arith.constant 4096 : index
    %235 = vector.load %arg13[%c0_41, %c4096] : memref<2x8192xf32, #tpu.memory_space<vmem>>, vector<2x4096xf32>
    tpu.vector_store %arg13[%c0_41, %c4096], %234 {strides = array<i32>} : memref<2x8192xf32, #tpu.memory_space<vmem>>, vector<2x4096xf32>,
    %c0_42 = arith.constant 0 : index
    %c0_43 = arith.constant 0 : index
    %236 = vector.load %arg5[%c0_42, %c0_43] : memref<32x128xbf16, #tpu.memory_space<vmem>>, vector<32x128xbf16>
    %c0_44 = arith.constant 0 : index
    %c0_45 = arith.constant 0 : index
    %237 = vector.load %arg6[%c0_44, %c0_45] : memref<1x128xf32, #tpu.memory_space<vmem>>, vector<1x128xf32>
    %cst_46 = arith.constant 0.000000e+00 : f32
    %238 = vector.broadcast %cst_46 : f32 to vector<2x32xf32>
    %cst_47 = arith.constant 0.000000e+00 : f32
    %239 = vector.broadcast %cst_47 : f32 to vector<2x32xf32>
    %c0_48 = arith.constant 0 : index
    %c0_49 = arith.constant 0 : index
    %240 = vector.load %arg13[%c0_48, %c0_49] : memref<2x8192xf32, #tpu.memory_space<vmem>>, vector<2x128xf32>
    %241 = arith.truncf %238 : vector<2x32xf32> to vector<2x32xbf16>
    %cst_50 = arith.constant dense<0.000000e+00> : vector<2x128xf32>
    %242 = tpu.matmul %241, %236, %cst_50 {dimension_numbers = #tpu.dot_dimension_numbers<[1], [0], [0], [1], [0, 0, 1, 1], [], []>} : vector<2x32xbf16>, vector<32x128xbf16>, vector<2x128xf32> -> vector<2x128xf32>
    %243 = arith.addf %240, %242 : vector<2x128xf32>
    %244 = vector.broadcast %237 : vector<1x128xf32> to vector<2x128xf32>
    %245 = arith.addf %243, %244 : vector<2x128xf32>
    %246 = arith.negf %245 : vector<2x128xf32>
    %247 = math.exp %246 : vector<2x128xf32>
    %cst_51 = arith.constant 1.000000e+00 : f32
    %248 = vector.broadcast %cst_51 : f32 to vector<2x128xf32>
    %249 = arith.addf %248, %247 : vector<2x128xf32>
    %250 = arith.divf %248, %249 : vector<2x128xf32>
    %251 = math.tanh %245 : vector<2x128xf32>
    %252 = vector.extract_strided_slice %250 {offsets = [0, 0], sizes = [2, 32], strides = [1, 1]} : vector<2x128xf32> to vector<2x32xf32>
    %253 = vector.extract_strided_slice %250 {offsets = [0, 32], sizes = [2, 32], strides = [1, 1]} : vector<2x128xf32> to vector<2x32xf32>
    %254 = vector.extract_strided_slice %251 {offsets = [0, 64], sizes = [2, 32], strides = [1, 1]} : vector<2x128xf32> to vector<2x32xf32>
    %255 = vector.extract_strided_slice %250 {offsets = [0, 96], sizes = [2, 32], strides = [1, 1]} : vector<2x128xf32> to vector<2x32xf32>
    %256 = arith.mulf %253, %239 : vector<2x32xf32>
    %257 = arith.mulf %252, %254 : vector<2x32xf32>
    %258 = arith.addf %256, %257 : vector<2x32xf32>
    %259 = math.tanh %258 : vector<2x32xf32>
    %260 = arith.mulf %255, %259 : vector<2x32xf32>
    %c0_52 = arith.constant 0 : index
    %c128 = arith.constant 128 : index
    %261 = vector.load %arg13[%c0_52, %c128] : memref<2x8192xf32, #tpu.memory_space<vmem>>, vector<2x128xf32>
    %262 = arith.truncf %260 : vector<2x32xf32> to vector<2x32xbf16>
    %cst_53 = arith.constant dense<0.000000e+00> : vector<2x128xf32>
    %263 = tpu.matmul %262, %236, %cst_53 {dimension_numbers = #tpu.dot_dimension_numbers<[1], [0], [0], [1], [0, 0, 1, 1], [], []>} : vector<2x32xbf16>, vector<32x128xbf16>, vector<2x128xf32> -> vector<2x128xf32>
    %264 = arith.addf %261, %263 : vector<2x128xf32>
    %265 = vector.broadcast %237 : vector<1x128xf32> to vector<2x128xf32>
    %266 = arith.addf %264, %265 : vector<2x128xf32>
    %267 = arith.negf %266 : vector<2x128xf32>
    %268 = math.exp %267 : vector<2x128xf32>
    %cst_54 = arith.constant 1.000000e+00 : f32
    %269 = vector.broadcast %cst_54 : f32 to vector<2x128xf32>
    %270 = arith.addf %269, %268 : vector<2x128xf32>
    %271 = arith.divf %269, %270 : vector<2x128xf32>
    %272 = math.tanh %266 : vector<2x128xf32>
    %273 = vector.extract_strided_slice %271 {offsets = [0, 0], sizes = [2, 32], strides = [1, 1]} : vector<2x128xf32> to vector<2x32xf32>
    %274 = vector.extract_strided_slice %271 {offsets = [0, 32], sizes = [2, 32], strides = [1, 1]} : vector<2x128xf32> to vector<2x32xf32>
    %275 = vector.extract_strided_slice %272 {offsets = [0, 64], sizes = [2, 32], strides = [1, 1]} : vector<2x128xf32> to vector<2x32xf32>
    %276 = vector.extract_strided_slice %271 {offsets = [0, 96], sizes = [2, 32], strides = [1, 1]} : vector<2x128xf32> to vector<2x32xf32>
    %277 = arith.mulf %274, %258 : vector<2x32xf32>
    %278 = arith.mulf %273, %275 : vector<2x32xf32>
    %279 = arith.addf %277, %278 : vector<2x32xf32>
    %280 = math.tanh %279 : vector<2x32xf32>
    %281 = arith.mulf %276, %280 : vector<2x32xf32>
    %c0_55 = arith.constant 0 : index
    %c256 = arith.constant 256 : index
    %282 = vector.load %arg13[%c0_55, %c256] : memref<2x8192xf32, #tpu.memory_space<vmem>>, vector<2x128xf32>
    %283 = arith.truncf %281 : vector<2x32xf32> to vector<2x32xbf16>
    %cst_56 = arith.constant dense<0.000000e+00> : vector<2x128xf32>
    %284 = tpu.matmul %283, %236, %cst_56 {dimension_numbers = #tpu.dot_dimension_numbers<[1], [0], [0], [1], [0, 0, 1, 1], [], []>} : vector<2x32xbf16>, vector<32x128xbf16>, vector<2x128xf32> -> vector<2x128xf32>
    %285 = arith.addf %282, %284 : vector<2x128xf32>
    %286 = vector.broadcast %237 : vector<1x128xf32> to vector<2x128xf32>
    %287 = arith.addf %285, %286 : vector<2x128xf32>
    %288 = arith.negf %287 : vector<2x128xf32>
    %289 = math.exp %288 : vector<2x128xf32>
    %cst_57 = arith.constant 1.000000e+00 : f32
    %290 = vector.broadcast %cst_57 : f32 to vector<2x128xf32>
    %291 = arith.addf %290, %289 : vector<2x128xf32>
    %292 = arith.divf %290, %291 : vector<2x128xf32>
    %293 = math.tanh %287 : vector<2x128xf32>
    %294 = vector.extract_strided_slice %292 {offsets = [0, 0], sizes = [2, 32], strides = [1, 1]} : vector<2x128xf32> to vector<2x32xf32>
    %295 = vector.extract_strided_slice %292 {offsets = [0, 32], sizes = [2, 32], strides = [1, 1]} : vector<2x128xf32> to vector<2x32xf32>
    %296 = vector.extract_strided_slice %293 {offsets = [0, 64], sizes = [2, 32], strides = [1, 1]} : vector<2x128xf32> to vector<2x32xf32>
    %297 = vector.extract_strided_slice %292 {offsets = [0, 96], sizes = [2, 32], strides = [1, 1]} : vector<2x128xf32> to vector<2x32xf32>
    %298 = arith.mulf %295, %279 : vector<2x32xf32>
    %299 = arith.mulf %294, %296 : vector<2x32xf32>
    %300 = arith.addf %298, %299 : vector<2x32xf32>
    %301 = math.tanh %300 : vector<2x32xf32>
    %302 = arith.mulf %297, %301 : vector<2x32xf32>
    %c0_58 = arith.constant 0 : index
    %c384 = arith.constant 384 : index
    %303 = vector.load %arg13[%c0_58, %c384] : memref<2x8192xf32, #tpu.memory_space<vmem>>, vector<2x128xf32>
    %304 = arith.truncf %302 : vector<2x32xf32> to vector<2x32xbf16>
    %cst_59 = arith.constant dense<0.000000e+00> : vector<2x128xf32>
    %305 = tpu.matmul %304, %236, %cst_59 {dimension_numbers = #tpu.dot_dimension_numbers<[1], [0], [0], [1], [0, 0, 1, 1], [], []>} : vector<2x32xbf16>, vector<32x128xbf16>, vector<2x128xf32> -> vector<2x128xf32>
    %306 = arith.addf %303, %305 : vector<2x128xf32>
    %307 = vector.broadcast %237 : vector<1x128xf32> to vector<2x128xf32>
    %308 = arith.addf %306, %307 : vector<2x128xf32>
    %309 = arith.negf %308 : vector<2x128xf32>
    %310 = math.exp %309 : vector<2x128xf32>
    %cst_60 = arith.constant 1.000000e+00 : f32
    %311 = vector.broadcast %cst_60 : f32 to vector<2x128xf32>
    %312 = arith.addf %311, %310 : vector<2x128xf32>
    %313 = arith.divf %311, %312 : vector<2x128xf32>
    %314 = math.tanh %308 : vector<2x128xf32>
    %315 = vector.extract_strided_slice %313 {offsets = [0, 0], sizes = [2, 32], strides = [1, 1]} : vector<2x128xf32> to vector<2x32xf32>
    %316 = vector.extract_strided_slice %313 {offsets = [0, 32], sizes = [2, 32], strides = [1, 1]} : vector<2x128xf32> to vector<2x32xf32>
    %317 = vector.extract_strided_slice %314 {offsets = [0, 64], sizes = [2, 32], strides = [1, 1]} : vector<2x128xf32> to vector<2x32xf32>
    %318 = vector.extract_strided_slice %313 {offsets = [0, 96], sizes = [2, 32], strides = [1, 1]} : vector<2x128xf32> to vector<2x32xf32>
    %319 = arith.mulf %316, %300 : vector<2x32xf32>
    %320 = arith.mulf %315, %317 : vector<2x32xf32>
    %321 = arith.addf %319, %320 : vector<2x32xf32>
    %322 = math.tanh %321 : vector<2x32xf32>
    %323 = arith.mulf %318, %322 : vector<2x32xf32>
    %c0_61 = arith.constant 0 : index
    %c512 = arith.constant 512 : index
    %324 = vector.load %arg13[%c0_61, %c512] : memref<2x8192xf32, #tpu.memory_space<vmem>>, vector<2x128xf32>
    %325 = arith.truncf %323 : vector<2x32xf32> to vector<2x32xbf16>
    %cst_62 = arith.constant dense<0.000000e+00> : vector<2x128xf32>
    %326 = tpu.matmul %325, %236, %cst_62 {dimension_numbers = #tpu.dot_dimension_numbers<[1], [0], [0], [1], [0, 0, 1, 1], [], []>} : vector<2x32xbf16>, vector<32x128xbf16>, vector<2x128xf32> -> vector<2x128xf32>
    %327 = arith.addf %324, %326 : vector<2x128xf32>
    %328 = vector.broadcast %237 : vector<1x128xf32> to vector<2x128xf32>
    %329 = arith.addf %327, %328 : vector<2x128xf32>
    %330 = arith.negf %329 : vector<2x128xf32>
    %331 = math.exp %330 : vector<2x128xf32>
    %cst_63 = arith.constant 1.000000e+00 : f32
    %332 = vector.broadcast %cst_63 : f32 to vector<2x128xf32>
    %333 = arith.addf %332, %331 : vector<2x128xf32>
    %334 = arith.divf %332, %333 : vector<2x128xf32>
    %335 = math.tanh %329 : vector<2x128xf32>
    %336 = vector.extract_strided_slice %334 {offsets = [0, 0], sizes = [2, 32], strides = [1, 1]} : vector<2x128xf32> to vector<2x32xf32>
    %337 = vector.extract_strided_slice %334 {offsets = [0, 32], sizes = [2, 32], strides = [1, 1]} : vector<2x128xf32> to vector<2x32xf32>
    %338 = vector.extract_strided_slice %335 {offsets = [0, 64], sizes = [2, 32], strides = [1, 1]} : vector<2x128xf32> to vector<2x32xf32>
    %339 = vector.extract_strided_slice %334 {offsets = [0, 96], sizes = [2, 32], strides = [1, 1]} : vector<2x128xf32> to vector<2x32xf32>
    %340 = arith.mulf %337, %321 : vector<2x32xf32>
    %341 = arith.mulf %336, %338 : vector<2x32xf32>
    %342 = arith.addf %340, %341 : vector<2x32xf32>
    %343 = math.tanh %342 : vector<2x32xf32>
    %344 = arith.mulf %339, %343 : vector<2x32xf32>
    %c0_64 = arith.constant 0 : index
    %c640 = arith.constant 640 : index
    %345 = vector.load %arg13[%c0_64, %c640] : memref<2x8192xf32, #tpu.memory_space<vmem>>, vector<2x128xf32>
    %346 = arith.truncf %344 : vector<2x32xf32> to vector<2x32xbf16>
    %cst_65 = arith.constant dense<0.000000e+00> : vector<2x128xf32>
    %347 = tpu.matmul %346, %236, %cst_65 {dimension_numbers = #tpu.dot_dimension_numbers<[1], [0], [0], [1], [0, 0, 1, 1], [], []>} : vector<2x32xbf16>, vector<32x128xbf16>, vector<2x128xf32> -> vector<2x128xf32>
    %348 = arith.addf %345, %347 : vector<2x128xf32>
    %349 = vector.broadcast %237 : vector<1x128xf32> to vector<2x128xf32>
    %350 = arith.addf %348, %349 : vector<2x128xf32>
    %351 = arith.negf %350 : vector<2x128xf32>
    %352 = math.exp %351 : vector<2x128xf32>
    %cst_66 = arith.constant 1.000000e+00 : f32
    %353 = vector.broadcast %cst_66 : f32 to vector<2x128xf32>
    %354 = arith.addf %353, %352 : vector<2x128xf32>
    %355 = arith.divf %353, %354 : vector<2x128xf32>
    %356 = math.tanh %350 : vector<2x128xf32>
    %357 = vector.extract_strided_slice %355 {offsets = [0, 0], sizes = [2, 32], strides = [1, 1]} : vector<2x128xf32> to vector<2x32xf32>
    %358 = vector.extract_strided_slice %355 {offsets = [0, 32], sizes = [2, 32], strides = [1, 1]} : vector<2x128xf32> to vector<2x32xf32>
    %359 = vector.extract_strided_slice %356 {offsets = [0, 64], sizes = [2, 32], strides = [1, 1]} : vector<2x128xf32> to vector<2x32xf32>
    %360 = vector.extract_strided_slice %355 {offsets = [0, 96], sizes = [2, 32], strides = [1, 1]} : vector<2x128xf32> to vector<2x32xf32>
    %361 = arith.mulf %358, %342 : vector<2x32xf32>
    %362 = arith.mulf %357, %359 : vector<2x32xf32>
    %363 = arith.addf %361, %362 : vector<2x32xf32>
    %364 = math.tanh %363 : vector<2x32xf32>
    %365 = arith.mulf %360, %364 : vector<2x32xf32>
    %c0_67 = arith.constant 0 : index
    %c768 = arith.constant 768 : index
    %366 = vector.load %arg13[%c0_67, %c768] : memref<2x8192xf32, #tpu.memory_space<vmem>>, vector<2x128xf32>
    %367 = arith.truncf %365 : vector<2x32xf32> to vector<2x32xbf16>
    %cst_68 = arith.constant dense<0.000000e+00> : vector<2x128xf32>
    %368 = tpu.matmul %367, %236, %cst_68 {dimension_numbers = #tpu.dot_dimension_numbers<[1], [0], [0], [1], [0, 0, 1, 1], [], []>} : vector<2x32xbf16>, vector<32x128xbf16>, vector<2x128xf32> -> vector<2x128xf32>
    %369 = arith.addf %366, %368 : vector<2x128xf32>
    %370 = vector.broadcast %237 : vector<1x128xf32> to vector<2x128xf32>
    %371 = arith.addf %369, %370 : vector<2x128xf32>
    %372 = arith.negf %371 : vector<2x128xf32>
    %373 = math.exp %372 : vector<2x128xf32>
    %cst_69 = arith.constant 1.000000e+00 : f32
    %374 = vector.broadcast %cst_69 : f32 to vector<2x128xf32>
    %375 = arith.addf %374, %373 : vector<2x128xf32>
    %376 = arith.divf %374, %375 : vector<2x128xf32>
    %377 = math.tanh %371 : vector<2x128xf32>
    %378 = vector.extract_strided_slice %376 {offsets = [0, 0], sizes = [2, 32], strides = [1, 1]} : vector<2x128xf32> to vector<2x32xf32>
    %379 = vector.extract_strided_slice %376 {offsets = [0, 32], sizes = [2, 32], strides = [1, 1]} : vector<2x128xf32> to vector<2x32xf32>
    %380 = vector.extract_strided_slice %377 {offsets = [0, 64], sizes = [2, 32], strides = [1, 1]} : vector<2x128xf32> to vector<2x32xf32>
    %381 = vector.extract_strided_slice %376 {offsets = [0, 96], sizes = [2, 32], strides = [1, 1]} : vector<2x128xf32> to vector<2x32xf32>
    %382 = arith.mulf %379, %363 : vector<2x32xf32>
    %383 = arith.mulf %378, %380 : vector<2x32xf32>
    %384 = arith.addf %382, %383 : vector<2x32xf32>
    %385 = math.tanh %384 : vector<2x32xf32>
    %386 = arith.mulf %381, %385 : vector<2x32xf32>
    %c0_70 = arith.constant 0 : index
    %c896 = arith.constant 896 : index
    %387 = vector.load %arg13[%c0_70, %c896] : memref<2x8192xf32, #tpu.memory_space<vmem>>, vector<2x128xf32>
    %388 = arith.truncf %386 : vector<2x32xf32> to vector<2x32xbf16>
    %cst_71 = arith.constant dense<0.000000e+00> : vector<2x128xf32>
    %389 = tpu.matmul %388, %236, %cst_71 {dimension_numbers = #tpu.dot_dimension_numbers<[1], [0], [0], [1], [0, 0, 1, 1], [], []>} : vector<2x32xbf16>, vector<32x128xbf16>, vector<2x128xf32> -> vector<2x128xf32>
    %390 = arith.addf %387, %389 : vector<2x128xf32>
    %391 = vector.broadcast %237 : vector<1x128xf32> to vector<2x128xf32>
    %392 = arith.addf %390, %391 : vector<2x128xf32>
    %393 = arith.negf %392 : vector<2x128xf32>
    %394 = math.exp %393 : vector<2x128xf32>
    %cst_72 = arith.constant 1.000000e+00 : f32
    %395 = vector.broadcast %cst_72 : f32 to vector<2x128xf32>
    %396 = arith.addf %395, %394 : vector<2x128xf32>
    %397 = arith.divf %395, %396 : vector<2x128xf32>
    %398 = math.tanh %392 : vector<2x128xf32>
    %399 = vector.extract_strided_slice %397 {offsets = [0, 0], sizes = [2, 32], strides = [1, 1]} : vector<2x128xf32> to vector<2x32xf32>
    %400 = vector.extract_strided_slice %397 {offsets = [0, 32], sizes = [2, 32], strides = [1, 1]} : vector<2x128xf32> to vector<2x32xf32>
    %401 = vector.extract_strided_slice %398 {offsets = [0, 64], sizes = [2, 32], strides = [1, 1]} : vector<2x128xf32> to vector<2x32xf32>
    %402 = vector.extract_strided_slice %397 {offsets = [0, 96], sizes = [2, 32], strides = [1, 1]} : vector<2x128xf32> to vector<2x32xf32>
    %403 = arith.mulf %400, %384 : vector<2x32xf32>
    %404 = arith.mulf %399, %401 : vector<2x32xf32>
    %405 = arith.addf %403, %404 : vector<2x32xf32>
    %406 = math.tanh %405 : vector<2x32xf32>
    %407 = arith.mulf %402, %406 : vector<2x32xf32>
    %c0_73 = arith.constant 0 : index
    %c1024 = arith.constant 1024 : index
    %408 = vector.load %arg13[%c0_73, %c1024] : memref<2x8192xf32, #tpu.memory_space<vmem>>, vector<2x128xf32>
    %409 = arith.truncf %407 : vector<2x32xf32> to vector<2x32xbf16>
    %cst_74 = arith.constant dense<0.000000e+00> : vector<2x128xf32>
    %410 = tpu.matmul %409, %236, %cst_74 {dimension_numbers = #tpu.dot_dimension_numbers<[1], [0], [0], [1], [0, 0, 1, 1], [], []>} : vector<2x32xbf16>, vector<32x128xbf16>, vector<2x128xf32> -> vector<2x128xf32>
    %411 = arith.addf %408, %410 : vector<2x128xf32>
    %412 = vector.broadcast %237 : vector<1x128xf32> to vector<2x128xf32>
    %413 = arith.addf %411, %412 : vector<2x128xf32>
    %414 = arith.negf %413 : vector<2x128xf32>
    %415 = math.exp %414 : vector<2x128xf32>
    %cst_75 = arith.constant 1.000000e+00 : f32
    %416 = vector.broadcast %cst_75 : f32 to vector<2x128xf32>
    %417 = arith.addf %416, %415 : vector<2x128xf32>
    %418 = arith.divf %416, %417 : vector<2x128xf32>
    %419 = math.tanh %413 : vector<2x128xf32>
    %420 = vector.extract_strided_slice %418 {offsets = [0, 0], sizes = [2, 32], strides = [1, 1]} : vector<2x128xf32> to vector<2x32xf32>
    %421 = vector.extract_strided_slice %418 {offsets = [0, 32], sizes = [2, 32], strides = [1, 1]} : vector<2x128xf32> to vector<2x32xf32>
    %422 = vector.extract_strided_slice %419 {offsets = [0, 64], sizes = [2, 32], strides = [1, 1]} : vector<2x128xf32> to vector<2x32xf32>
    %423 = vector.extract_strided_slice %418 {offsets = [0, 96], sizes = [2, 32], strides = [1, 1]} : vector<2x128xf32> to vector<2x32xf32>
    %424 = arith.mulf %421, %405 : vector<2x32xf32>
    %425 = arith.mulf %420, %422 : vector<2x32xf32>
    %426 = arith.addf %424, %425 : vector<2x32xf32>
    %427 = math.tanh %426 : vector<2x32xf32>
    %428 = arith.mulf %423, %427 : vector<2x32xf32>
    %c0_76 = arith.constant 0 : index
    %c1152 = arith.constant 1152 : index
    %429 = vector.load %arg13[%c0_76, %c1152] : memref<2x8192xf32, #tpu.memory_space<vmem>>, vector<2x128xf32>
    %430 = arith.truncf %428 : vector<2x32xf32> to vector<2x32xbf16>
    %cst_77 = arith.constant dense<0.000000e+00> : vector<2x128xf32>
    %431 = tpu.matmul %430, %236, %cst_77 {dimension_numbers = #tpu.dot_dimension_numbers<[1], [0], [0], [1], [0, 0, 1, 1], [], []>} : vector<2x32xbf16>, vector<32x128xbf16>, vector<2x128xf32> -> vector<2x128xf32>
    %432 = arith.addf %429, %431 : vector<2x128xf32>
    %433 = vector.broadcast %237 : vector<1x128xf32> to vector<2x128xf32>
    %434 = arith.addf %432, %433 : vector<2x128xf32>
    %435 = arith.negf %434 : vector<2x128xf32>
    %436 = math.exp %435 : vector<2x128xf32>
    %cst_78 = arith.constant 1.000000e+00 : f32
    %437 = vector.broadcast %cst_78 : f32 to vector<2x128xf32>
    %438 = arith.addf %437, %436 : vector<2x128xf32>
    %439 = arith.divf %437, %438 : vector<2x128xf32>
    %440 = math.tanh %434 : vector<2x128xf32>
    %441 = vector.extract_strided_slice %439 {offsets = [0, 0], sizes = [2, 32], strides = [1, 1]} : vector<2x128xf32> to vector<2x32xf32>
    %442 = vector.extract_strided_slice %439 {offsets = [0, 32], sizes = [2, 32], strides = [1, 1]} : vector<2x128xf32> to vector<2x32xf32>
    %443 = vector.extract_strided_slice %440 {offsets = [0, 64], sizes = [2, 32], strides = [1, 1]} : vector<2x128xf32> to vector<2x32xf32>
    %444 = vector.extract_strided_slice %439 {offsets = [0, 96], sizes = [2, 32], strides = [1, 1]} : vector<2x128xf32> to vector<2x32xf32>
    %445 = arith.mulf %442, %426 : vector<2x32xf32>
    %446 = arith.mulf %441, %443 : vector<2x32xf32>
    %447 = arith.addf %445, %446 : vector<2x32xf32>
    %448 = math.tanh %447 : vector<2x32xf32>
    %449 = arith.mulf %444, %448 : vector<2x32xf32>
    %c0_79 = arith.constant 0 : index
    %c1280 = arith.constant 1280 : index
    %450 = vector.load %arg13[%c0_79, %c1280] : memref<2x8192xf32, #tpu.memory_space<vmem>>, vector<2x128xf32>
    %451 = arith.truncf %449 : vector<2x32xf32> to vector<2x32xbf16>
    %cst_80 = arith.constant dense<0.000000e+00> : vector<2x128xf32>
    %452 = tpu.matmul %451, %236, %cst_80 {dimension_numbers = #tpu.dot_dimension_numbers<[1], [0], [0], [1], [0, 0, 1, 1], [], []>} : vector<2x32xbf16>, vector<32x128xbf16>, vector<2x128xf32> -> vector<2x128xf32>
    %453 = arith.addf %450, %452 : vector<2x128xf32>
    %454 = vector.broadcast %237 : vector<1x128xf32> to vector<2x128xf32>
    %455 = arith.addf %453, %454 : vector<2x128xf32>
    %456 = arith.negf %455 : vector<2x128xf32>
    %457 = math.exp %456 : vector<2x128xf32>
    %cst_81 = arith.constant 1.000000e+00 : f32
    %458 = vector.broadcast %cst_81 : f32 to vector<2x128xf32>
    %459 = arith.addf %458, %457 : vector<2x128xf32>
    %460 = arith.divf %458, %459 : vector<2x128xf32>
    %461 = math.tanh %455 : vector<2x128xf32>
    %462 = vector.extract_strided_slice %460 {offsets = [0, 0], sizes = [2, 32], strides = [1, 1]} : vector<2x128xf32> to vector<2x32xf32>
    %463 = vector.extract_strided_slice %460 {offsets = [0, 32], sizes = [2, 32], strides = [1, 1]} : vector<2x128xf32> to vector<2x32xf32>
    %464 = vector.extract_strided_slice %461 {offsets = [0, 64], sizes = [2, 32], strides = [1, 1]} : vector<2x128xf32> to vector<2x32xf32>
    %465 = vector.extract_strided_slice %460 {offsets = [0, 96], sizes = [2, 32], strides = [1, 1]} : vector<2x128xf32> to vector<2x32xf32>
    %466 = arith.mulf %463, %447 : vector<2x32xf32>
    %467 = arith.mulf %462, %464 : vector<2x32xf32>
    %468 = arith.addf %466, %467 : vector<2x32xf32>
    %469 = math.tanh %468 : vector<2x32xf32>
    %470 = arith.mulf %465, %469 : vector<2x32xf32>
    %c0_82 = arith.constant 0 : index
    %c1408 = arith.constant 1408 : index
    %471 = vector.load %arg13[%c0_82, %c1408] : memref<2x8192xf32, #tpu.memory_space<vmem>>, vector<2x128xf32>
    %472 = arith.truncf %470 : vector<2x32xf32> to vector<2x32xbf16>
    %cst_83 = arith.constant dense<0.000000e+00> : vector<2x128xf32>
    %473 = tpu.matmul %472, %236, %cst_83 {dimension_numbers = #tpu.dot_dimension_numbers<[1], [0], [0], [1], [0, 0, 1, 1], [], []>} : vector<2x32xbf16>, vector<32x128xbf16>, vector<2x128xf32> -> vector<2x128xf32>
    %474 = arith.addf %471, %473 : vector<2x128xf32>
    %475 = vector.broadcast %237 : vector<1x128xf32> to vector<2x128xf32>
    %476 = arith.addf %474, %475 : vector<2x128xf32>
    %477 = arith.negf %476 : vector<2x128xf32>
    %478 = math.exp %477 : vector<2x128xf32>
    %cst_84 = arith.constant 1.000000e+00 : f32
    %479 = vector.broadcast %cst_84 : f32 to vector<2x128xf32>
    %480 = arith.addf %479, %478 : vector<2x128xf32>
    %481 = arith.divf %479, %480 : vector<2x128xf32>
    %482 = math.tanh %476 : vector<2x128xf32>
    %483 = vector.extract_strided_slice %481 {offsets = [0, 0], sizes = [2, 32], strides = [1, 1]} : vector<2x128xf32> to vector<2x32xf32>
    %484 = vector.extract_strided_slice %481 {offsets = [0, 32], sizes = [2, 32], strides = [1, 1]} : vector<2x128xf32> to vector<2x32xf32>
    %485 = vector.extract_strided_slice %482 {offsets = [0, 64], sizes = [2, 32], strides = [1, 1]} : vector<2x128xf32> to vector<2x32xf32>
    %486 = vector.extract_strided_slice %481 {offsets = [0, 96], sizes = [2, 32], strides = [1, 1]} : vector<2x128xf32> to vector<2x32xf32>
    %487 = arith.mulf %484, %468 : vector<2x32xf32>
    %488 = arith.mulf %483, %485 : vector<2x32xf32>
    %489 = arith.addf %487, %488 : vector<2x32xf32>
    %490 = math.tanh %489 : vector<2x32xf32>
    %491 = arith.mulf %486, %490 : vector<2x32xf32>
    %c0_85 = arith.constant 0 : index
    %c1536 = arith.constant 1536 : index
    %492 = vector.load %arg13[%c0_85, %c1536] : memref<2x8192xf32, #tpu.memory_space<vmem>>, vector<2x128xf32>
    %493 = arith.truncf %491 : vector<2x32xf32> to vector<2x32xbf16>
    %cst_86 = arith.constant dense<0.000000e+00> : vector<2x128xf32>
    %494 = tpu.matmul %493, %236, %cst_86 {dimension_numbers = #tpu.dot_dimension_numbers<[1], [0], [0], [1], [0, 0, 1, 1], [], []>} : vector<2x32xbf16>, vector<32x128xbf16>, vector<2x128xf32> -> vector<2x128xf32>
    %495 = arith.addf %492, %494 : vector<2x128xf32>
    %496 = vector.broadcast %237 : vector<1x128xf32> to vector<2x128xf32>
    %497 = arith.addf %495, %496 : vector<2x128xf32>
    %498 = arith.negf %497 : vector<2x128xf32>
    %499 = math.exp %498 : vector<2x128xf32>
    %cst_87 = arith.constant 1.000000e+00 : f32
    %500 = vector.broadcast %cst_87 : f32 to vector<2x128xf32>
    %501 = arith.addf %500, %499 : vector<2x128xf32>
    %502 = arith.divf %500, %501 : vector<2x128xf32>
    %503 = math.tanh %497 : vector<2x128xf32>
    %504 = vector.extract_strided_slice %502 {offsets = [0, 0], sizes = [2, 32], strides = [1, 1]} : vector<2x128xf32> to vector<2x32xf32>
    %505 = vector.extract_strided_slice %502 {offsets = [0, 32], sizes = [2, 32], strides = [1, 1]} : vector<2x128xf32> to vector<2x32xf32>
    %506 = vector.extract_strided_slice %503 {offsets = [0, 64], sizes = [2, 32], strides = [1, 1]} : vector<2x128xf32> to vector<2x32xf32>
    %507 = vector.extract_strided_slice %502 {offsets = [0, 96], sizes = [2, 32], strides = [1, 1]} : vector<2x128xf32> to vector<2x32xf32>
    %508 = arith.mulf %505, %489 : vector<2x32xf32>
    %509 = arith.mulf %504, %506 : vector<2x32xf32>
    %510 = arith.addf %508, %509 : vector<2x32xf32>
    %511 = math.tanh %510 : vector<2x32xf32>
    %512 = arith.mulf %507, %511 : vector<2x32xf32>
    %c0_88 = arith.constant 0 : index
    %c1664 = arith.constant 1664 : index
    %513 = vector.load %arg13[%c0_88, %c1664] : memref<2x8192xf32, #tpu.memory_space<vmem>>, vector<2x128xf32>
    %514 = arith.truncf %512 : vector<2x32xf32> to vector<2x32xbf16>
    %cst_89 = arith.constant dense<0.000000e+00> : vector<2x128xf32>
    %515 = tpu.matmul %514, %236, %cst_89 {dimension_numbers = #tpu.dot_dimension_numbers<[1], [0], [0], [1], [0, 0, 1, 1], [], []>} : vector<2x32xbf16>, vector<32x128xbf16>, vector<2x128xf32> -> vector<2x128xf32>
    %516 = arith.addf %513, %515 : vector<2x128xf32>
    %517 = vector.broadcast %237 : vector<1x128xf32> to vector<2x128xf32>
    %518 = arith.addf %516, %517 : vector<2x128xf32>
    %519 = arith.negf %518 : vector<2x128xf32>
    %520 = math.exp %519 : vector<2x128xf32>
    %cst_90 = arith.constant 1.000000e+00 : f32
    %521 = vector.broadcast %cst_90 : f32 to vector<2x128xf32>
    %522 = arith.addf %521, %520 : vector<2x128xf32>
    %523 = arith.divf %521, %522 : vector<2x128xf32>
    %524 = math.tanh %518 : vector<2x128xf32>
    %525 = vector.extract_strided_slice %523 {offsets = [0, 0], sizes = [2, 32], strides = [1, 1]} : vector<2x128xf32> to vector<2x32xf32>
    %526 = vector.extract_strided_slice %523 {offsets = [0, 32], sizes = [2, 32], strides = [1, 1]} : vector<2x128xf32> to vector<2x32xf32>
    %527 = vector.extract_strided_slice %524 {offsets = [0, 64], sizes = [2, 32], strides = [1, 1]} : vector<2x128xf32> to vector<2x32xf32>
    %528 = vector.extract_strided_slice %523 {offsets = [0, 96], sizes = [2, 32], strides = [1, 1]} : vector<2x128xf32> to vector<2x32xf32>
    %529 = arith.mulf %526, %510 : vector<2x32xf32>
    %530 = arith.mulf %525, %527 : vector<2x32xf32>
    %531 = arith.addf %529, %530 : vector<2x32xf32>
    %532 = math.tanh %531 : vector<2x32xf32>
    %533 = arith.mulf %528, %532 : vector<2x32xf32>
    %c0_91 = arith.constant 0 : index
    %c1792 = arith.constant 1792 : index
    %534 = vector.load %arg13[%c0_91, %c1792] : memref<2x8192xf32, #tpu.memory_space<vmem>>, vector<2x128xf32>
    %535 = arith.truncf %533 : vector<2x32xf32> to vector<2x32xbf16>
    %cst_92 = arith.constant dense<0.000000e+00> : vector<2x128xf32>
    %536 = tpu.matmul %535, %236, %cst_92 {dimension_numbers = #tpu.dot_dimension_numbers<[1], [0], [0], [1], [0, 0, 1, 1], [], []>} : vector<2x32xbf16>, vector<32x128xbf16>, vector<2x128xf32> -> vector<2x128xf32>
    %537 = arith.addf %534, %536 : vector<2x128xf32>
    %538 = vector.broadcast %237 : vector<1x128xf32> to vector<2x128xf32>
    %539 = arith.addf %537, %538 : vector<2x128xf32>
    %540 = arith.negf %539 : vector<2x128xf32>
    %541 = math.exp %540 : vector<2x128xf32>
    %cst_93 = arith.constant 1.000000e+00 : f32
    %542 = vector.broadcast %cst_93 : f32 to vector<2x128xf32>
    %543 = arith.addf %542, %541 : vector<2x128xf32>
    %544 = arith.divf %542, %543 : vector<2x128xf32>
    %545 = math.tanh %539 : vector<2x128xf32>
    %546 = vector.extract_strided_slice %544 {offsets = [0, 0], sizes = [2, 32], strides = [1, 1]} : vector<2x128xf32> to vector<2x32xf32>
    %547 = vector.extract_strided_slice %544 {offsets = [0, 32], sizes = [2, 32], strides = [1, 1]} : vector<2x128xf32> to vector<2x32xf32>
    %548 = vector.extract_strided_slice %545 {offsets = [0, 64], sizes = [2, 32], strides = [1, 1]} : vector<2x128xf32> to vector<2x32xf32>
    %549 = vector.extract_strided_slice %544 {offsets = [0, 96], sizes = [2, 32], strides = [1, 1]} : vector<2x128xf32> to vector<2x32xf32>
    %550 = arith.mulf %547, %531 : vector<2x32xf32>
    %551 = arith.mulf %546, %548 : vector<2x32xf32>
    %552 = arith.addf %550, %551 : vector<2x32xf32>
    %553 = math.tanh %552 : vector<2x32xf32>
    %554 = arith.mulf %549, %553 : vector<2x32xf32>
    %c0_94 = arith.constant 0 : index
    %c1920 = arith.constant 1920 : index
    %555 = vector.load %arg13[%c0_94, %c1920] : memref<2x8192xf32, #tpu.memory_space<vmem>>, vector<2x128xf32>
    %556 = arith.truncf %554 : vector<2x32xf32> to vector<2x32xbf16>
    %cst_95 = arith.constant dense<0.000000e+00> : vector<2x128xf32>
    %557 = tpu.matmul %556, %236, %cst_95 {dimension_numbers = #tpu.dot_dimension_numbers<[1], [0], [0], [1], [0, 0, 1, 1], [], []>} : vector<2x32xbf16>, vector<32x128xbf16>, vector<2x128xf32> -> vector<2x128xf32>
    %558 = arith.addf %555, %557 : vector<2x128xf32>
    %559 = vector.broadcast %237 : vector<1x128xf32> to vector<2x128xf32>
    %560 = arith.addf %558, %559 : vector<2x128xf32>
    %561 = arith.negf %560 : vector<2x128xf32>
    %562 = math.exp %561 : vector<2x128xf32>
    %cst_96 = arith.constant 1.000000e+00 : f32
    %563 = vector.broadcast %cst_96 : f32 to vector<2x128xf32>
    %564 = arith.addf %563, %562 : vector<2x128xf32>
    %565 = arith.divf %563, %564 : vector<2x128xf32>
    %566 = math.tanh %560 : vector<2x128xf32>
    %567 = vector.extract_strided_slice %565 {offsets = [0, 0], sizes = [2, 32], strides = [1, 1]} : vector<2x128xf32> to vector<2x32xf32>
    %568 = vector.extract_strided_slice %565 {offsets = [0, 32], sizes = [2, 32], strides = [1, 1]} : vector<2x128xf32> to vector<2x32xf32>
    %569 = vector.extract_strided_slice %566 {offsets = [0, 64], sizes = [2, 32], strides = [1, 1]} : vector<2x128xf32> to vector<2x32xf32>
    %570 = vector.extract_strided_slice %565 {offsets = [0, 96], sizes = [2, 32], strides = [1, 1]} : vector<2x128xf32> to vector<2x32xf32>
    %571 = arith.mulf %568, %552 : vector<2x32xf32>
    %572 = arith.mulf %567, %569 : vector<2x32xf32>
    %573 = arith.addf %571, %572 : vector<2x32xf32>
    %574 = math.tanh %573 : vector<2x32xf32>
    %575 = arith.mulf %570, %574 : vector<2x32xf32>
    %c0_97 = arith.constant 0 : index
    %c2048 = arith.constant 2048 : index
    %576 = vector.load %arg13[%c0_97, %c2048] : memref<2x8192xf32, #tpu.memory_space<vmem>>, vector<2x128xf32>
    %577 = arith.truncf %575 : vector<2x32xf32> to vector<2x32xbf16>
    %cst_98 = arith.constant dense<0.000000e+00> : vector<2x128xf32>
    %578 = tpu.matmul %577, %236, %cst_98 {dimension_numbers = #tpu.dot_dimension_numbers<[1], [0], [0], [1], [0, 0, 1, 1], [], []>} : vector<2x32xbf16>, vector<32x128xbf16>, vector<2x128xf32> -> vector<2x128xf32>
    %579 = arith.addf %576, %578 : vector<2x128xf32>
    %580 = vector.broadcast %237 : vector<1x128xf32> to vector<2x128xf32>
    %581 = arith.addf %579, %580 : vector<2x128xf32>
    %582 = arith.negf %581 : vector<2x128xf32>
    %583 = math.exp %582 : vector<2x128xf32>
    %cst_99 = arith.constant 1.000000e+00 : f32
    %584 = vector.broadcast %cst_99 : f32 to vector<2x128xf32>
    %585 = arith.addf %584, %583 : vector<2x128xf32>
    %586 = arith.divf %584, %585 : vector<2x128xf32>
    %587 = math.tanh %581 : vector<2x128xf32>
    %588 = vector.extract_strided_slice %586 {offsets = [0, 0], sizes = [2, 32], strides = [1, 1]} : vector<2x128xf32> to vector<2x32xf32>
    %589 = vector.extract_strided_slice %586 {offsets = [0, 32], sizes = [2, 32], strides = [1, 1]} : vector<2x128xf32> to vector<2x32xf32>
    %590 = vector.extract_strided_slice %587 {offsets = [0, 64], sizes = [2, 32], strides = [1, 1]} : vector<2x128xf32> to vector<2x32xf32>
    %591 = vector.extract_strided_slice %586 {offsets = [0, 96], sizes = [2, 32], strides = [1, 1]} : vector<2x128xf32> to vector<2x32xf32>
    %592 = arith.mulf %589, %573 : vector<2x32xf32>
    %593 = arith.mulf %588, %590 : vector<2x32xf32>
    %594 = arith.addf %592, %593 : vector<2x32xf32>
    %595 = math.tanh %594 : vector<2x32xf32>
    %596 = arith.mulf %591, %595 : vector<2x32xf32>
    %c0_100 = arith.constant 0 : index
    %c2176 = arith.constant 2176 : index
    %597 = vector.load %arg13[%c0_100, %c2176] : memref<2x8192xf32, #tpu.memory_space<vmem>>, vector<2x128xf32>
    %598 = arith.truncf %596 : vector<2x32xf32> to vector<2x32xbf16>
    %cst_101 = arith.constant dense<0.000000e+00> : vector<2x128xf32>
    %599 = tpu.matmul %598, %236, %cst_101 {dimension_numbers = #tpu.dot_dimension_numbers<[1], [0], [0], [1], [0, 0, 1, 1], [], []>} : vector<2x32xbf16>, vector<32x128xbf16>, vector<2x128xf32> -> vector<2x128xf32>
    %600 = arith.addf %597, %599 : vector<2x128xf32>
    %601 = vector.broadcast %237 : vector<1x128xf32> to vector<2x128xf32>
    %602 = arith.addf %600, %601 : vector<2x128xf32>
    %603 = arith.negf %602 : vector<2x128xf32>
    %604 = math.exp %603 : vector<2x128xf32>
    %cst_102 = arith.constant 1.000000e+00 : f32
    %605 = vector.broadcast %cst_102 : f32 to vector<2x128xf32>
    %606 = arith.addf %605, %604 : vector<2x128xf32>
    %607 = arith.divf %605, %606 : vector<2x128xf32>
    %608 = math.tanh %602 : vector<2x128xf32>
    %609 = vector.extract_strided_slice %607 {offsets = [0, 0], sizes = [2, 32], strides = [1, 1]} : vector<2x128xf32> to vector<2x32xf32>
    %610 = vector.extract_strided_slice %607 {offsets = [0, 32], sizes = [2, 32], strides = [1, 1]} : vector<2x128xf32> to vector<2x32xf32>
    %611 = vector.extract_strided_slice %608 {offsets = [0, 64], sizes = [2, 32], strides = [1, 1]} : vector<2x128xf32> to vector<2x32xf32>
    %612 = vector.extract_strided_slice %607 {offsets = [0, 96], sizes = [2, 32], strides = [1, 1]} : vector<2x128xf32> to vector<2x32xf32>
    %613 = arith.mulf %610, %594 : vector<2x32xf32>
    %614 = arith.mulf %609, %611 : vector<2x32xf32>
    %615 = arith.addf %613, %614 : vector<2x32xf32>
    %616 = math.tanh %615 : vector<2x32xf32>
    %617 = arith.mulf %612, %616 : vector<2x32xf32>
    %c0_103 = arith.constant 0 : index
    %c2304 = arith.constant 2304 : index
    %618 = vector.load %arg13[%c0_103, %c2304] : memref<2x8192xf32, #tpu.memory_space<vmem>>, vector<2x128xf32>
    %619 = arith.truncf %617 : vector<2x32xf32> to vector<2x32xbf16>
    %cst_104 = arith.constant dense<0.000000e+00> : vector<2x128xf32>
    %620 = tpu.matmul %619, %236, %cst_104 {dimension_numbers = #tpu.dot_dimension_numbers<[1], [0], [0], [1], [0, 0, 1, 1], [], []>} : vector<2x32xbf16>, vector<32x128xbf16>, vector<2x128xf32> -> vector<2x128xf32>
    %621 = arith.addf %618, %620 : vector<2x128xf32>
    %622 = vector.broadcast %237 : vector<1x128xf32> to vector<2x128xf32>
    %623 = arith.addf %621, %622 : vector<2x128xf32>
    %624 = arith.negf %623 : vector<2x128xf32>
    %625 = math.exp %624 : vector<2x128xf32>
    %cst_105 = arith.constant 1.000000e+00 : f32
    %626 = vector.broadcast %cst_105 : f32 to vector<2x128xf32>
    %627 = arith.addf %626, %625 : vector<2x128xf32>
    %628 = arith.divf %626, %627 : vector<2x128xf32>
    %629 = math.tanh %623 : vector<2x128xf32>
    %630 = vector.extract_strided_slice %628 {offsets = [0, 0], sizes = [2, 32], strides = [1, 1]} : vector<2x128xf32> to vector<2x32xf32>
    %631 = vector.extract_strided_slice %628 {offsets = [0, 32], sizes = [2, 32], strides = [1, 1]} : vector<2x128xf32> to vector<2x32xf32>
    %632 = vector.extract_strided_slice %629 {offsets = [0, 64], sizes = [2, 32], strides = [1, 1]} : vector<2x128xf32> to vector<2x32xf32>
    %633 = vector.extract_strided_slice %628 {offsets = [0, 96], sizes = [2, 32], strides = [1, 1]} : vector<2x128xf32> to vector<2x32xf32>
    %634 = arith.mulf %631, %615 : vector<2x32xf32>
    %635 = arith.mulf %630, %632 : vector<2x32xf32>
    %636 = arith.addf %634, %635 : vector<2x32xf32>
    %637 = math.tanh %636 : vector<2x32xf32>
    %638 = arith.mulf %633, %637 : vector<2x32xf32>
    %c0_106 = arith.constant 0 : index
    %c2432 = arith.constant 2432 : index
    %639 = vector.load %arg13[%c0_106, %c2432] : memref<2x8192xf32, #tpu.memory_space<vmem>>, vector<2x128xf32>
    %640 = arith.truncf %638 : vector<2x32xf32> to vector<2x32xbf16>
    %cst_107 = arith.constant dense<0.000000e+00> : vector<2x128xf32>
    %641 = tpu.matmul %640, %236, %cst_107 {dimension_numbers = #tpu.dot_dimension_numbers<[1], [0], [0], [1], [0, 0, 1, 1], [], []>} : vector<2x32xbf16>, vector<32x128xbf16>, vector<2x128xf32> -> vector<2x128xf32>
    %642 = arith.addf %639, %641 : vector<2x128xf32>
    %643 = vector.broadcast %237 : vector<1x128xf32> to vector<2x128xf32>
    %644 = arith.addf %642, %643 : vector<2x128xf32>
    %645 = arith.negf %644 : vector<2x128xf32>
    %646 = math.exp %645 : vector<2x128xf32>
    %cst_108 = arith.constant 1.000000e+00 : f32
    %647 = vector.broadcast %cst_108 : f32 to vector<2x128xf32>
    %648 = arith.addf %647, %646 : vector<2x128xf32>
    %649 = arith.divf %647, %648 : vector<2x128xf32>
    %650 = math.tanh %644 : vector<2x128xf32>
    %651 = vector.extract_strided_slice %649 {offsets = [0, 0], sizes = [2, 32], strides = [1, 1]} : vector<2x128xf32> to vector<2x32xf32>
    %652 = vector.extract_strided_slice %649 {offsets = [0, 32], sizes = [2, 32], strides = [1, 1]} : vector<2x128xf32> to vector<2x32xf32>
    %653 = vector.extract_strided_slice %650 {offsets = [0, 64], sizes = [2, 32], strides = [1, 1]} : vector<2x128xf32> to vector<2x32xf32>
    %654 = vector.extract_strided_slice %649 {offsets = [0, 96], sizes = [2, 32], strides = [1, 1]} : vector<2x128xf32> to vector<2x32xf32>
    %655 = arith.mulf %652, %636 : vector<2x32xf32>
    %656 = arith.mulf %651, %653 : vector<2x32xf32>
    %657 = arith.addf %655, %656 : vector<2x32xf32>
    %658 = math.tanh %657 : vector<2x32xf32>
    %659 = arith.mulf %654, %658 : vector<2x32xf32>
    %c0_109 = arith.constant 0 : index
    %c2560 = arith.constant 2560 : index
    %660 = vector.load %arg13[%c0_109, %c2560] : memref<2x8192xf32, #tpu.memory_space<vmem>>, vector<2x128xf32>
    %661 = arith.truncf %659 : vector<2x32xf32> to vector<2x32xbf16>
    %cst_110 = arith.constant dense<0.000000e+00> : vector<2x128xf32>
    %662 = tpu.matmul %661, %236, %cst_110 {dimension_numbers = #tpu.dot_dimension_numbers<[1], [0], [0], [1], [0, 0, 1, 1], [], []>} : vector<2x32xbf16>, vector<32x128xbf16>, vector<2x128xf32> -> vector<2x128xf32>
    %663 = arith.addf %660, %662 : vector<2x128xf32>
    %664 = vector.broadcast %237 : vector<1x128xf32> to vector<2x128xf32>
    %665 = arith.addf %663, %664 : vector<2x128xf32>
    %666 = arith.negf %665 : vector<2x128xf32>
    %667 = math.exp %666 : vector<2x128xf32>
    %cst_111 = arith.constant 1.000000e+00 : f32
    %668 = vector.broadcast %cst_111 : f32 to vector<2x128xf32>
    %669 = arith.addf %668, %667 : vector<2x128xf32>
    %670 = arith.divf %668, %669 : vector<2x128xf32>
    %671 = math.tanh %665 : vector<2x128xf32>
    %672 = vector.extract_strided_slice %670 {offsets = [0, 0], sizes = [2, 32], strides = [1, 1]} : vector<2x128xf32> to vector<2x32xf32>
    %673 = vector.extract_strided_slice %670 {offsets = [0, 32], sizes = [2, 32], strides = [1, 1]} : vector<2x128xf32> to vector<2x32xf32>
    %674 = vector.extract_strided_slice %671 {offsets = [0, 64], sizes = [2, 32], strides = [1, 1]} : vector<2x128xf32> to vector<2x32xf32>
    %675 = vector.extract_strided_slice %670 {offsets = [0, 96], sizes = [2, 32], strides = [1, 1]} : vector<2x128xf32> to vector<2x32xf32>
    %676 = arith.mulf %673, %657 : vector<2x32xf32>
    %677 = arith.mulf %672, %674 : vector<2x32xf32>
    %678 = arith.addf %676, %677 : vector<2x32xf32>
    %679 = math.tanh %678 : vector<2x32xf32>
    %680 = arith.mulf %675, %679 : vector<2x32xf32>
    %c0_112 = arith.constant 0 : index
    %c2688 = arith.constant 2688 : index
    %681 = vector.load %arg13[%c0_112, %c2688] : memref<2x8192xf32, #tpu.memory_space<vmem>>, vector<2x128xf32>
    %682 = arith.truncf %680 : vector<2x32xf32> to vector<2x32xbf16>
    %cst_113 = arith.constant dense<0.000000e+00> : vector<2x128xf32>
    %683 = tpu.matmul %682, %236, %cst_113 {dimension_numbers = #tpu.dot_dimension_numbers<[1], [0], [0], [1], [0, 0, 1, 1], [], []>} : vector<2x32xbf16>, vector<32x128xbf16>, vector<2x128xf32> -> vector<2x128xf32>
    %684 = arith.addf %681, %683 : vector<2x128xf32>
    %685 = vector.broadcast %237 : vector<1x128xf32> to vector<2x128xf32>
    %686 = arith.addf %684, %685 : vector<2x128xf32>
    %687 = arith.negf %686 : vector<2x128xf32>
    %688 = math.exp %687 : vector<2x128xf32>
    %cst_114 = arith.constant 1.000000e+00 : f32
    %689 = vector.broadcast %cst_114 : f32 to vector<2x128xf32>
    %690 = arith.addf %689, %688 : vector<2x128xf32>
    %691 = arith.divf %689, %690 : vector<2x128xf32>
    %692 = math.tanh %686 : vector<2x128xf32>
    %693 = vector.extract_strided_slice %691 {offsets = [0, 0], sizes = [2, 32], strides = [1, 1]} : vector<2x128xf32> to vector<2x32xf32>
    %694 = vector.extract_strided_slice %691 {offsets = [0, 32], sizes = [2, 32], strides = [1, 1]} : vector<2x128xf32> to vector<2x32xf32>
    %695 = vector.extract_strided_slice %692 {offsets = [0, 64], sizes = [2, 32], strides = [1, 1]} : vector<2x128xf32> to vector<2x32xf32>
    %696 = vector.extract_strided_slice %691 {offsets = [0, 96], sizes = [2, 32], strides = [1, 1]} : vector<2x128xf32> to vector<2x32xf32>
    %697 = arith.mulf %694, %678 : vector<2x32xf32>
    %698 = arith.mulf %693, %695 : vector<2x32xf32>
    %699 = arith.addf %697, %698 : vector<2x32xf32>
    %700 = math.tanh %699 : vector<2x32xf32>
    %701 = arith.mulf %696, %700 : vector<2x32xf32>
    %c0_115 = arith.constant 0 : index
    %c2816 = arith.constant 2816 : index
    %702 = vector.load %arg13[%c0_115, %c2816] : memref<2x8192xf32, #tpu.memory_space<vmem>>, vector<2x128xf32>
    %703 = arith.truncf %701 : vector<2x32xf32> to vector<2x32xbf16>
    %cst_116 = arith.constant dense<0.000000e+00> : vector<2x128xf32>
    %704 = tpu.matmul %703, %236, %cst_116 {dimension_numbers = #tpu.dot_dimension_numbers<[1], [0], [0], [1], [0, 0, 1, 1], [], []>} : vector<2x32xbf16>, vector<32x128xbf16>, vector<2x128xf32> -> vector<2x128xf32>
    %705 = arith.addf %702, %704 : vector<2x128xf32>
    %706 = vector.broadcast %237 : vector<1x128xf32> to vector<2x128xf32>
    %707 = arith.addf %705, %706 : vector<2x128xf32>
    %708 = arith.negf %707 : vector<2x128xf32>
    %709 = math.exp %708 : vector<2x128xf32>
    %cst_117 = arith.constant 1.000000e+00 : f32
    %710 = vector.broadcast %cst_117 : f32 to vector<2x128xf32>
    %711 = arith.addf %710, %709 : vector<2x128xf32>
    %712 = arith.divf %710, %711 : vector<2x128xf32>
    %713 = math.tanh %707 : vector<2x128xf32>
    %714 = vector.extract_strided_slice %712 {offsets = [0, 0], sizes = [2, 32], strides = [1, 1]} : vector<2x128xf32> to vector<2x32xf32>
    %715 = vector.extract_strided_slice %712 {offsets = [0, 32], sizes = [2, 32], strides = [1, 1]} : vector<2x128xf32> to vector<2x32xf32>
    %716 = vector.extract_strided_slice %713 {offsets = [0, 64], sizes = [2, 32], strides = [1, 1]} : vector<2x128xf32> to vector<2x32xf32>
    %717 = vector.extract_strided_slice %712 {offsets = [0, 96], sizes = [2, 32], strides = [1, 1]} : vector<2x128xf32> to vector<2x32xf32>
    %718 = arith.mulf %715, %699 : vector<2x32xf32>
    %719 = arith.mulf %714, %716 : vector<2x32xf32>
    %720 = arith.addf %718, %719 : vector<2x32xf32>
    %721 = math.tanh %720 : vector<2x32xf32>
    %722 = arith.mulf %717, %721 : vector<2x32xf32>
    %c0_118 = arith.constant 0 : index
    %c2944 = arith.constant 2944 : index
    %723 = vector.load %arg13[%c0_118, %c2944] : memref<2x8192xf32, #tpu.memory_space<vmem>>, vector<2x128xf32>
    %724 = arith.truncf %722 : vector<2x32xf32> to vector<2x32xbf16>
    %cst_119 = arith.constant dense<0.000000e+00> : vector<2x128xf32>
    %725 = tpu.matmul %724, %236, %cst_119 {dimension_numbers = #tpu.dot_dimension_numbers<[1], [0], [0], [1], [0, 0, 1, 1], [], []>} : vector<2x32xbf16>, vector<32x128xbf16>, vector<2x128xf32> -> vector<2x128xf32>
    %726 = arith.addf %723, %725 : vector<2x128xf32>
    %727 = vector.broadcast %237 : vector<1x128xf32> to vector<2x128xf32>
    %728 = arith.addf %726, %727 : vector<2x128xf32>
    %729 = arith.negf %728 : vector<2x128xf32>
    %730 = math.exp %729 : vector<2x128xf32>
    %cst_120 = arith.constant 1.000000e+00 : f32
    %731 = vector.broadcast %cst_120 : f32 to vector<2x128xf32>
    %732 = arith.addf %731, %730 : vector<2x128xf32>
    %733 = arith.divf %731, %732 : vector<2x128xf32>
    %734 = math.tanh %728 : vector<2x128xf32>
    %735 = vector.extract_strided_slice %733 {offsets = [0, 0], sizes = [2, 32], strides = [1, 1]} : vector<2x128xf32> to vector<2x32xf32>
    %736 = vector.extract_strided_slice %733 {offsets = [0, 32], sizes = [2, 32], strides = [1, 1]} : vector<2x128xf32> to vector<2x32xf32>
    %737 = vector.extract_strided_slice %734 {offsets = [0, 64], sizes = [2, 32], strides = [1, 1]} : vector<2x128xf32> to vector<2x32xf32>
    %738 = vector.extract_strided_slice %733 {offsets = [0, 96], sizes = [2, 32], strides = [1, 1]} : vector<2x128xf32> to vector<2x32xf32>
    %739 = arith.mulf %736, %720 : vector<2x32xf32>
    %740 = arith.mulf %735, %737 : vector<2x32xf32>
    %741 = arith.addf %739, %740 : vector<2x32xf32>
    %742 = math.tanh %741 : vector<2x32xf32>
    %743 = arith.mulf %738, %742 : vector<2x32xf32>
    %c0_121 = arith.constant 0 : index
    %c3072 = arith.constant 3072 : index
    %744 = vector.load %arg13[%c0_121, %c3072] : memref<2x8192xf32, #tpu.memory_space<vmem>>, vector<2x128xf32>
    %745 = arith.truncf %743 : vector<2x32xf32> to vector<2x32xbf16>
    %cst_122 = arith.constant dense<0.000000e+00> : vector<2x128xf32>
    %746 = tpu.matmul %745, %236, %cst_122 {dimension_numbers = #tpu.dot_dimension_numbers<[1], [0], [0], [1], [0, 0, 1, 1], [], []>} : vector<2x32xbf16>, vector<32x128xbf16>, vector<2x128xf32> -> vector<2x128xf32>
    %747 = arith.addf %744, %746 : vector<2x128xf32>
    %748 = vector.broadcast %237 : vector<1x128xf32> to vector<2x128xf32>
    %749 = arith.addf %747, %748 : vector<2x128xf32>
    %750 = arith.negf %749 : vector<2x128xf32>
    %751 = math.exp %750 : vector<2x128xf32>
    %cst_123 = arith.constant 1.000000e+00 : f32
    %752 = vector.broadcast %cst_123 : f32 to vector<2x128xf32>
    %753 = arith.addf %752, %751 : vector<2x128xf32>
    %754 = arith.divf %752, %753 : vector<2x128xf32>
    %755 = math.tanh %749 : vector<2x128xf32>
    %756 = vector.extract_strided_slice %754 {offsets = [0, 0], sizes = [2, 32], strides = [1, 1]} : vector<2x128xf32> to vector<2x32xf32>
    %757 = vector.extract_strided_slice %754 {offsets = [0, 32], sizes = [2, 32], strides = [1, 1]} : vector<2x128xf32> to vector<2x32xf32>
    %758 = vector.extract_strided_slice %755 {offsets = [0, 64], sizes = [2, 32], strides = [1, 1]} : vector<2x128xf32> to vector<2x32xf32>
    %759 = vector.extract_strided_slice %754 {offsets = [0, 96], sizes = [2, 32], strides = [1, 1]} : vector<2x128xf32> to vector<2x32xf32>
    %760 = arith.mulf %757, %741 : vector<2x32xf32>
    %761 = arith.mulf %756, %758 : vector<2x32xf32>
    %762 = arith.addf %760, %761 : vector<2x32xf32>
    %763 = math.tanh %762 : vector<2x32xf32>
    %764 = arith.mulf %759, %763 : vector<2x32xf32>
    %c0_124 = arith.constant 0 : index
    %c3200 = arith.constant 3200 : index
    %765 = vector.load %arg13[%c0_124, %c3200] : memref<2x8192xf32, #tpu.memory_space<vmem>>, vector<2x128xf32>
    %766 = arith.truncf %764 : vector<2x32xf32> to vector<2x32xbf16>
    %cst_125 = arith.constant dense<0.000000e+00> : vector<2x128xf32>
    %767 = tpu.matmul %766, %236, %cst_125 {dimension_numbers = #tpu.dot_dimension_numbers<[1], [0], [0], [1], [0, 0, 1, 1], [], []>} : vector<2x32xbf16>, vector<32x128xbf16>, vector<2x128xf32> -> vector<2x128xf32>
    %768 = arith.addf %765, %767 : vector<2x128xf32>
    %769 = vector.broadcast %237 : vector<1x128xf32> to vector<2x128xf32>
    %770 = arith.addf %768, %769 : vector<2x128xf32>
    %771 = arith.negf %770 : vector<2x128xf32>
    %772 = math.exp %771 : vector<2x128xf32>
    %cst_126 = arith.constant 1.000000e+00 : f32
    %773 = vector.broadcast %cst_126 : f32 to vector<2x128xf32>
    %774 = arith.addf %773, %772 : vector<2x128xf32>
    %775 = arith.divf %773, %774 : vector<2x128xf32>
    %776 = math.tanh %770 : vector<2x128xf32>
    %777 = vector.extract_strided_slice %775 {offsets = [0, 0], sizes = [2, 32], strides = [1, 1]} : vector<2x128xf32> to vector<2x32xf32>
    %778 = vector.extract_strided_slice %775 {offsets = [0, 32], sizes = [2, 32], strides = [1, 1]} : vector<2x128xf32> to vector<2x32xf32>
    %779 = vector.extract_strided_slice %776 {offsets = [0, 64], sizes = [2, 32], strides = [1, 1]} : vector<2x128xf32> to vector<2x32xf32>
    %780 = vector.extract_strided_slice %775 {offsets = [0, 96], sizes = [2, 32], strides = [1, 1]} : vector<2x128xf32> to vector<2x32xf32>
    %781 = arith.mulf %778, %762 : vector<2x32xf32>
    %782 = arith.mulf %777, %779 : vector<2x32xf32>
    %783 = arith.addf %781, %782 : vector<2x32xf32>
    %784 = math.tanh %783 : vector<2x32xf32>
    %785 = arith.mulf %780, %784 : vector<2x32xf32>
    %c0_127 = arith.constant 0 : index
    %c3328 = arith.constant 3328 : index
    %786 = vector.load %arg13[%c0_127, %c3328] : memref<2x8192xf32, #tpu.memory_space<vmem>>, vector<2x128xf32>
    %787 = arith.truncf %785 : vector<2x32xf32> to vector<2x32xbf16>
    %cst_128 = arith.constant dense<0.000000e+00> : vector<2x128xf32>
    %788 = tpu.matmul %787, %236, %cst_128 {dimension_numbers = #tpu.dot_dimension_numbers<[1], [0], [0], [1], [0, 0, 1, 1], [], []>} : vector<2x32xbf16>, vector<32x128xbf16>, vector<2x128xf32> -> vector<2x128xf32>
    %789 = arith.addf %786, %788 : vector<2x128xf32>
    %790 = vector.broadcast %237 : vector<1x128xf32> to vector<2x128xf32>
    %791 = arith.addf %789, %790 : vector<2x128xf32>
    %792 = arith.negf %791 : vector<2x128xf32>
    %793 = math.exp %792 : vector<2x128xf32>
    %cst_129 = arith.constant 1.000000e+00 : f32
    %794 = vector.broadcast %cst_129 : f32 to vector<2x128xf32>
    %795 = arith.addf %794, %793 : vector<2x128xf32>
    %796 = arith.divf %794, %795 : vector<2x128xf32>
    %797 = math.tanh %791 : vector<2x128xf32>
    %798 = vector.extract_strided_slice %796 {offsets = [0, 0], sizes = [2, 32], strides = [1, 1]} : vector<2x128xf32> to vector<2x32xf32>
    %799 = vector.extract_strided_slice %796 {offsets = [0, 32], sizes = [2, 32], strides = [1, 1]} : vector<2x128xf32> to vector<2x32xf32>
    %800 = vector.extract_strided_slice %797 {offsets = [0, 64], sizes = [2, 32], strides = [1, 1]} : vector<2x128xf32> to vector<2x32xf32>
    %801 = vector.extract_strided_slice %796 {offsets = [0, 96], sizes = [2, 32], strides = [1, 1]} : vector<2x128xf32> to vector<2x32xf32>
    %802 = arith.mulf %799, %783 : vector<2x32xf32>
    %803 = arith.mulf %798, %800 : vector<2x32xf32>
    %804 = arith.addf %802, %803 : vector<2x32xf32>
    %805 = math.tanh %804 : vector<2x32xf32>
    %806 = arith.mulf %801, %805 : vector<2x32xf32>
    %c0_130 = arith.constant 0 : index
    %c3456 = arith.constant 3456 : index
    %807 = vector.load %arg13[%c0_130, %c3456] : memref<2x8192xf32, #tpu.memory_space<vmem>>, vector<2x128xf32>
    %808 = arith.truncf %806 : vector<2x32xf32> to vector<2x32xbf16>
    %cst_131 = arith.constant dense<0.000000e+00> : vector<2x128xf32>
    %809 = tpu.matmul %808, %236, %cst_131 {dimension_numbers = #tpu.dot_dimension_numbers<[1], [0], [0], [1], [0, 0, 1, 1], [], []>} : vector<2x32xbf16>, vector<32x128xbf16>, vector<2x128xf32> -> vector<2x128xf32>
    %810 = arith.addf %807, %809 : vector<2x128xf32>
    %811 = vector.broadcast %237 : vector<1x128xf32> to vector<2x128xf32>
    %812 = arith.addf %810, %811 : vector<2x128xf32>
    %813 = arith.negf %812 : vector<2x128xf32>
    %814 = math.exp %813 : vector<2x128xf32>
    %cst_132 = arith.constant 1.000000e+00 : f32
    %815 = vector.broadcast %cst_132 : f32 to vector<2x128xf32>
    %816 = arith.addf %815, %814 : vector<2x128xf32>
    %817 = arith.divf %815, %816 : vector<2x128xf32>
    %818 = math.tanh %812 : vector<2x128xf32>
    %819 = vector.extract_strided_slice %817 {offsets = [0, 0], sizes = [2, 32], strides = [1, 1]} : vector<2x128xf32> to vector<2x32xf32>
    %820 = vector.extract_strided_slice %817 {offsets = [0, 32], sizes = [2, 32], strides = [1, 1]} : vector<2x128xf32> to vector<2x32xf32>
    %821 = vector.extract_strided_slice %818 {offsets = [0, 64], sizes = [2, 32], strides = [1, 1]} : vector<2x128xf32> to vector<2x32xf32>
    %822 = vector.extract_strided_slice %817 {offsets = [0, 96], sizes = [2, 32], strides = [1, 1]} : vector<2x128xf32> to vector<2x32xf32>
    %823 = arith.mulf %820, %804 : vector<2x32xf32>
    %824 = arith.mulf %819, %821 : vector<2x32xf32>
    %825 = arith.addf %823, %824 : vector<2x32xf32>
    %826 = math.tanh %825 : vector<2x32xf32>
    %827 = arith.mulf %822, %826 : vector<2x32xf32>
    %c0_133 = arith.constant 0 : index
    %c3584 = arith.constant 3584 : index
    %828 = vector.load %arg13[%c0_133, %c3584] : memref<2x8192xf32, #tpu.memory_space<vmem>>, vector<2x128xf32>
    %829 = arith.truncf %827 : vector<2x32xf32> to vector<2x32xbf16>
    %cst_134 = arith.constant dense<0.000000e+00> : vector<2x128xf32>
    %830 = tpu.matmul %829, %236, %cst_134 {dimension_numbers = #tpu.dot_dimension_numbers<[1], [0], [0], [1], [0, 0, 1, 1], [], []>} : vector<2x32xbf16>, vector<32x128xbf16>, vector<2x128xf32> -> vector<2x128xf32>
    %831 = arith.addf %828, %830 : vector<2x128xf32>
    %832 = vector.broadcast %237 : vector<1x128xf32> to vector<2x128xf32>
    %833 = arith.addf %831, %832 : vector<2x128xf32>
    %834 = arith.negf %833 : vector<2x128xf32>
    %835 = math.exp %834 : vector<2x128xf32>
    %cst_135 = arith.constant 1.000000e+00 : f32
    %836 = vector.broadcast %cst_135 : f32 to vector<2x128xf32>
    %837 = arith.addf %836, %835 : vector<2x128xf32>
    %838 = arith.divf %836, %837 : vector<2x128xf32>
    %839 = math.tanh %833 : vector<2x128xf32>
    %840 = vector.extract_strided_slice %838 {offsets = [0, 0], sizes = [2, 32], strides = [1, 1]} : vector<2x128xf32> to vector<2x32xf32>
    %841 = vector.extract_strided_slice %838 {offsets = [0, 32], sizes = [2, 32], strides = [1, 1]} : vector<2x128xf32> to vector<2x32xf32>
    %842 = vector.extract_strided_slice %839 {offsets = [0, 64], sizes = [2, 32], strides = [1, 1]} : vector<2x128xf32> to vector<2x32xf32>
    %843 = vector.extract_strided_slice %838 {offsets = [0, 96], sizes = [2, 32], strides = [1, 1]} : vector<2x128xf32> to vector<2x32xf32>
    %844 = arith.mulf %841, %825 : vector<2x32xf32>
    %845 = arith.mulf %840, %842 : vector<2x32xf32>
    %846 = arith.addf %844, %845 : vector<2x32xf32>
    %847 = math.tanh %846 : vector<2x32xf32>
    %848 = arith.mulf %843, %847 : vector<2x32xf32>
    %c0_136 = arith.constant 0 : index
    %c3712 = arith.constant 3712 : index
    %849 = vector.load %arg13[%c0_136, %c3712] : memref<2x8192xf32, #tpu.memory_space<vmem>>, vector<2x128xf32>
    %850 = arith.truncf %848 : vector<2x32xf32> to vector<2x32xbf16>
    %cst_137 = arith.constant dense<0.000000e+00> : vector<2x128xf32>
    %851 = tpu.matmul %850, %236, %cst_137 {dimension_numbers = #tpu.dot_dimension_numbers<[1], [0], [0], [1], [0, 0, 1, 1], [], []>} : vector<2x32xbf16>, vector<32x128xbf16>, vector<2x128xf32> -> vector<2x128xf32>
    %852 = arith.addf %849, %851 : vector<2x128xf32>
    %853 = vector.broadcast %237 : vector<1x128xf32> to vector<2x128xf32>
    %854 = arith.addf %852, %853 : vector<2x128xf32>
    %855 = arith.negf %854 : vector<2x128xf32>
    %856 = math.exp %855 : vector<2x128xf32>
    %cst_138 = arith.constant 1.000000e+00 : f32
    %857 = vector.broadcast %cst_138 : f32 to vector<2x128xf32>
    %858 = arith.addf %857, %856 : vector<2x128xf32>
    %859 = arith.divf %857, %858 : vector<2x128xf32>
    %860 = math.tanh %854 : vector<2x128xf32>
    %861 = vector.extract_strided_slice %859 {offsets = [0, 0], sizes = [2, 32], strides = [1, 1]} : vector<2x128xf32> to vector<2x32xf32>
    %862 = vector.extract_strided_slice %859 {offsets = [0, 32], sizes = [2, 32], strides = [1, 1]} : vector<2x128xf32> to vector<2x32xf32>
    %863 = vector.extract_strided_slice %860 {offsets = [0, 64], sizes = [2, 32], strides = [1, 1]} : vector<2x128xf32> to vector<2x32xf32>
    %864 = vector.extract_strided_slice %859 {offsets = [0, 96], sizes = [2, 32], strides = [1, 1]} : vector<2x128xf32> to vector<2x32xf32>
    %865 = arith.mulf %862, %846 : vector<2x32xf32>
    %866 = arith.mulf %861, %863 : vector<2x32xf32>
    %867 = arith.addf %865, %866 : vector<2x32xf32>
    %868 = math.tanh %867 : vector<2x32xf32>
    %869 = arith.mulf %864, %868 : vector<2x32xf32>
    %c0_139 = arith.constant 0 : index
    %c3840 = arith.constant 3840 : index
    %870 = vector.load %arg13[%c0_139, %c3840] : memref<2x8192xf32, #tpu.memory_space<vmem>>, vector<2x128xf32>
    %871 = arith.truncf %869 : vector<2x32xf32> to vector<2x32xbf16>
    %cst_140 = arith.constant dense<0.000000e+00> : vector<2x128xf32>
    %872 = tpu.matmul %871, %236, %cst_140 {dimension_numbers = #tpu.dot_dimension_numbers<[1], [0], [0], [1], [0, 0, 1, 1], [], []>} : vector<2x32xbf16>, vector<32x128xbf16>, vector<2x128xf32> -> vector<2x128xf32>
    %873 = arith.addf %870, %872 : vector<2x128xf32>
    %874 = vector.broadcast %237 : vector<1x128xf32> to vector<2x128xf32>
    %875 = arith.addf %873, %874 : vector<2x128xf32>
    %876 = arith.negf %875 : vector<2x128xf32>
    %877 = math.exp %876 : vector<2x128xf32>
    %cst_141 = arith.constant 1.000000e+00 : f32
    %878 = vector.broadcast %cst_141 : f32 to vector<2x128xf32>
    %879 = arith.addf %878, %877 : vector<2x128xf32>
    %880 = arith.divf %878, %879 : vector<2x128xf32>
    %881 = math.tanh %875 : vector<2x128xf32>
    %882 = vector.extract_strided_slice %880 {offsets = [0, 0], sizes = [2, 32], strides = [1, 1]} : vector<2x128xf32> to vector<2x32xf32>
    %883 = vector.extract_strided_slice %880 {offsets = [0, 32], sizes = [2, 32], strides = [1, 1]} : vector<2x128xf32> to vector<2x32xf32>
    %884 = vector.extract_strided_slice %881 {offsets = [0, 64], sizes = [2, 32], strides = [1, 1]} : vector<2x128xf32> to vector<2x32xf32>
    %885 = vector.extract_strided_slice %880 {offsets = [0, 96], sizes = [2, 32], strides = [1, 1]} : vector<2x128xf32> to vector<2x32xf32>
    %886 = arith.mulf %883, %867 : vector<2x32xf32>
    %887 = arith.mulf %882, %884 : vector<2x32xf32>
    %888 = arith.addf %886, %887 : vector<2x32xf32>
    %889 = math.tanh %888 : vector<2x32xf32>
    %890 = arith.mulf %885, %889 : vector<2x32xf32>
    %c0_142 = arith.constant 0 : index
    %c3968 = arith.constant 3968 : index
    %891 = vector.load %arg13[%c0_142, %c3968] : memref<2x8192xf32, #tpu.memory_space<vmem>>, vector<2x128xf32>
    %892 = arith.truncf %890 : vector<2x32xf32> to vector<2x32xbf16>
    %cst_143 = arith.constant dense<0.000000e+00> : vector<2x128xf32>
    %893 = tpu.matmul %892, %236, %cst_143 {dimension_numbers = #tpu.dot_dimension_numbers<[1], [0], [0], [1], [0, 0, 1, 1], [], []>} : vector<2x32xbf16>, vector<32x128xbf16>, vector<2x128xf32> -> vector<2x128xf32>
    %894 = arith.addf %891, %893 : vector<2x128xf32>
    %895 = vector.broadcast %237 : vector<1x128xf32> to vector<2x128xf32>
    %896 = arith.addf %894, %895 : vector<2x128xf32>
    %897 = arith.negf %896 : vector<2x128xf32>
    %898 = math.exp %897 : vector<2x128xf32>
    %cst_144 = arith.constant 1.000000e+00 : f32
    %899 = vector.broadcast %cst_144 : f32 to vector<2x128xf32>
    %900 = arith.addf %899, %898 : vector<2x128xf32>
    %901 = arith.divf %899, %900 : vector<2x128xf32>
    %902 = math.tanh %896 : vector<2x128xf32>
    %903 = vector.extract_strided_slice %901 {offsets = [0, 0], sizes = [2, 32], strides = [1, 1]} : vector<2x128xf32> to vector<2x32xf32>
    %904 = vector.extract_strided_slice %901 {offsets = [0, 32], sizes = [2, 32], strides = [1, 1]} : vector<2x128xf32> to vector<2x32xf32>
    %905 = vector.extract_strided_slice %902 {offsets = [0, 64], sizes = [2, 32], strides = [1, 1]} : vector<2x128xf32> to vector<2x32xf32>
    %906 = vector.extract_strided_slice %901 {offsets = [0, 96], sizes = [2, 32], strides = [1, 1]} : vector<2x128xf32> to vector<2x32xf32>
    %907 = arith.mulf %904, %888 : vector<2x32xf32>
    %908 = arith.mulf %903, %905 : vector<2x32xf32>
    %909 = arith.addf %907, %908 : vector<2x32xf32>
    %910 = math.tanh %909 : vector<2x32xf32>
    %911 = arith.mulf %906, %910 : vector<2x32xf32>
    %c0_145 = arith.constant 0 : index
    %c4096_146 = arith.constant 4096 : index
    %912 = vector.load %arg13[%c0_145, %c4096_146] : memref<2x8192xf32, #tpu.memory_space<vmem>>, vector<2x128xf32>
    %913 = arith.truncf %911 : vector<2x32xf32> to vector<2x32xbf16>
    %cst_147 = arith.constant dense<0.000000e+00> : vector<2x128xf32>
    %914 = tpu.matmul %913, %236, %cst_147 {dimension_numbers = #tpu.dot_dimension_numbers<[1], [0], [0], [1], [0, 0, 1, 1], [], []>} : vector<2x32xbf16>, vector<32x128xbf16>, vector<2x128xf32> -> vector<2x128xf32>
    %915 = arith.addf %912, %914 : vector<2x128xf32>
    %916 = vector.broadcast %237 : vector<1x128xf32> to vector<2x128xf32>
    %917 = arith.addf %915, %916 : vector<2x128xf32>
    %918 = arith.negf %917 : vector<2x128xf32>
    %919 = math.exp %918 : vector<2x128xf32>
    %cst_148 = arith.constant 1.000000e+00 : f32
    %920 = vector.broadcast %cst_148 : f32 to vector<2x128xf32>
    %921 = arith.addf %920, %919 : vector<2x128xf32>
    %922 = arith.divf %920, %921 : vector<2x128xf32>
    %923 = math.tanh %917 : vector<2x128xf32>
    %924 = vector.extract_strided_slice %922 {offsets = [0, 0], sizes = [2, 32], strides = [1, 1]} : vector<2x128xf32> to vector<2x32xf32>
    %925 = vector.extract_strided_slice %922 {offsets = [0, 32], sizes = [2, 32], strides = [1, 1]} : vector<2x128xf32> to vector<2x32xf32>
    %926 = vector.extract_strided_slice %923 {offsets = [0, 64], sizes = [2, 32], strides = [1, 1]} : vector<2x128xf32> to vector<2x32xf32>
    %927 = vector.extract_strided_slice %922 {offsets = [0, 96], sizes = [2, 32], strides = [1, 1]} : vector<2x128xf32> to vector<2x32xf32>
    %928 = arith.mulf %925, %909 : vector<2x32xf32>
    %929 = arith.mulf %924, %926 : vector<2x32xf32>
    %930 = arith.addf %928, %929 : vector<2x32xf32>
    %931 = math.tanh %930 : vector<2x32xf32>
    %932 = arith.mulf %927, %931 : vector<2x32xf32>
    %c0_149 = arith.constant 0 : index
    %c4224 = arith.constant 4224 : index
    %933 = vector.load %arg13[%c0_149, %c4224] : memref<2x8192xf32, #tpu.memory_space<vmem>>, vector<2x128xf32>
    %934 = arith.truncf %932 : vector<2x32xf32> to vector<2x32xbf16>
    %cst_150 = arith.constant dense<0.000000e+00> : vector<2x128xf32>
    %935 = tpu.matmul %934, %236, %cst_150 {dimension_numbers = #tpu.dot_dimension_numbers<[1], [0], [0], [1], [0, 0, 1, 1], [], []>} : vector<2x32xbf16>, vector<32x128xbf16>, vector<2x128xf32> -> vector<2x128xf32>
    %936 = arith.addf %933, %935 : vector<2x128xf32>
    %937 = vector.broadcast %237 : vector<1x128xf32> to vector<2x128xf32>
    %938 = arith.addf %936, %937 : vector<2x128xf32>
    %939 = arith.negf %938 : vector<2x128xf32>
    %940 = math.exp %939 : vector<2x128xf32>
    %cst_151 = arith.constant 1.000000e+00 : f32
    %941 = vector.broadcast %cst_151 : f32 to vector<2x128xf32>
    %942 = arith.addf %941, %940 : vector<2x128xf32>
    %943 = arith.divf %941, %942 : vector<2x128xf32>
    %944 = math.tanh %938 : vector<2x128xf32>
    %945 = vector.extract_strided_slice %943 {offsets = [0, 0], sizes = [2, 32], strides = [1, 1]} : vector<2x128xf32> to vector<2x32xf32>
    %946 = vector.extract_strided_slice %943 {offsets = [0, 32], sizes = [2, 32], strides = [1, 1]} : vector<2x128xf32> to vector<2x32xf32>
    %947 = vector.extract_strided_slice %944 {offsets = [0, 64], sizes = [2, 32], strides = [1, 1]} : vector<2x128xf32> to vector<2x32xf32>
    %948 = vector.extract_strided_slice %943 {offsets = [0, 96], sizes = [2, 32], strides = [1, 1]} : vector<2x128xf32> to vector<2x32xf32>
    %949 = arith.mulf %946, %930 : vector<2x32xf32>
    %950 = arith.mulf %945, %947 : vector<2x32xf32>
    %951 = arith.addf %949, %950 : vector<2x32xf32>
    %952 = math.tanh %951 : vector<2x32xf32>
    %953 = arith.mulf %948, %952 : vector<2x32xf32>
    %c0_152 = arith.constant 0 : index
    %c4352 = arith.constant 4352 : index
    %954 = vector.load %arg13[%c0_152, %c4352] : memref<2x8192xf32, #tpu.memory_space<vmem>>, vector<2x128xf32>
    %955 = arith.truncf %953 : vector<2x32xf32> to vector<2x32xbf16>
    %cst_153 = arith.constant dense<0.000000e+00> : vector<2x128xf32>
    %956 = tpu.matmul %955, %236, %cst_153 {dimension_numbers = #tpu.dot_dimension_numbers<[1], [0], [0], [1], [0, 0, 1, 1], [], []>} : vector<2x32xbf16>, vector<32x128xbf16>, vector<2x128xf32> -> vector<2x128xf32>
    %957 = arith.addf %954, %956 : vector<2x128xf32>
    %958 = vector.broadcast %237 : vector<1x128xf32> to vector<2x128xf32>
    %959 = arith.addf %957, %958 : vector<2x128xf32>
    %960 = arith.negf %959 : vector<2x128xf32>
    %961 = math.exp %960 : vector<2x128xf32>
    %cst_154 = arith.constant 1.000000e+00 : f32
    %962 = vector.broadcast %cst_154 : f32 to vector<2x128xf32>
    %963 = arith.addf %962, %961 : vector<2x128xf32>
    %964 = arith.divf %962, %963 : vector<2x128xf32>
    %965 = math.tanh %959 : vector<2x128xf32>
    %966 = vector.extract_strided_slice %964 {offsets = [0, 0], sizes = [2, 32], strides = [1, 1]} : vector<2x128xf32> to vector<2x32xf32>
    %967 = vector.extract_strided_slice %964 {offsets = [0, 32], sizes = [2, 32], strides = [1, 1]} : vector<2x128xf32> to vector<2x32xf32>
    %968 = vector.extract_strided_slice %965 {offsets = [0, 64], sizes = [2, 32], strides = [1, 1]} : vector<2x128xf32> to vector<2x32xf32>
    %969 = vector.extract_strided_slice %964 {offsets = [0, 96], sizes = [2, 32], strides = [1, 1]} : vector<2x128xf32> to vector<2x32xf32>
    %970 = arith.mulf %967, %951 : vector<2x32xf32>
    %971 = arith.mulf %966, %968 : vector<2x32xf32>
    %972 = arith.addf %970, %971 : vector<2x32xf32>
    %973 = math.tanh %972 : vector<2x32xf32>
    %974 = arith.mulf %969, %973 : vector<2x32xf32>
    %c0_155 = arith.constant 0 : index
    %c4480 = arith.constant 4480 : index
    %975 = vector.load %arg13[%c0_155, %c4480] : memref<2x8192xf32, #tpu.memory_space<vmem>>, vector<2x128xf32>
    %976 = arith.truncf %974 : vector<2x32xf32> to vector<2x32xbf16>
    %cst_156 = arith.constant dense<0.000000e+00> : vector<2x128xf32>
    %977 = tpu.matmul %976, %236, %cst_156 {dimension_numbers = #tpu.dot_dimension_numbers<[1], [0], [0], [1], [0, 0, 1, 1], [], []>} : vector<2x32xbf16>, vector<32x128xbf16>, vector<2x128xf32> -> vector<2x128xf32>
    %978 = arith.addf %975, %977 : vector<2x128xf32>
    %979 = vector.broadcast %237 : vector<1x128xf32> to vector<2x128xf32>
    %980 = arith.addf %978, %979 : vector<2x128xf32>
    %981 = arith.negf %980 : vector<2x128xf32>
    %982 = math.exp %981 : vector<2x128xf32>
    %cst_157 = arith.constant 1.000000e+00 : f32
    %983 = vector.broadcast %cst_157 : f32 to vector<2x128xf32>
    %984 = arith.addf %983, %982 : vector<2x128xf32>
    %985 = arith.divf %983, %984 : vector<2x128xf32>
    %986 = math.tanh %980 : vector<2x128xf32>
    %987 = vector.extract_strided_slice %985 {offsets = [0, 0], sizes = [2, 32], strides = [1, 1]} : vector<2x128xf32> to vector<2x32xf32>
    %988 = vector.extract_strided_slice %985 {offsets = [0, 32], sizes = [2, 32], strides = [1, 1]} : vector<2x128xf32> to vector<2x32xf32>
    %989 = vector.extract_strided_slice %986 {offsets = [0, 64], sizes = [2, 32], strides = [1, 1]} : vector<2x128xf32> to vector<2x32xf32>
    %990 = vector.extract_strided_slice %985 {offsets = [0, 96], sizes = [2, 32], strides = [1, 1]} : vector<2x128xf32> to vector<2x32xf32>
    %991 = arith.mulf %988, %972 : vector<2x32xf32>
    %992 = arith.mulf %987, %989 : vector<2x32xf32>
    %993 = arith.addf %991, %992 : vector<2x32xf32>
    %994 = math.tanh %993 : vector<2x32xf32>
    %995 = arith.mulf %990, %994 : vector<2x32xf32>
    %c0_158 = arith.constant 0 : index
    %c4608 = arith.constant 4608 : index
    %996 = vector.load %arg13[%c0_158, %c4608] : memref<2x8192xf32, #tpu.memory_space<vmem>>, vector<2x128xf32>
    %997 = arith.truncf %995 : vector<2x32xf32> to vector<2x32xbf16>
    %cst_159 = arith.constant dense<0.000000e+00> : vector<2x128xf32>
    %998 = tpu.matmul %997, %236, %cst_159 {dimension_numbers = #tpu.dot_dimension_numbers<[1], [0], [0], [1], [0, 0, 1, 1], [], []>} : vector<2x32xbf16>, vector<32x128xbf16>, vector<2x128xf32> -> vector<2x128xf32>
    %999 = arith.addf %996, %998 : vector<2x128xf32>
    %1000 = vector.broadcast %237 : vector<1x128xf32> to vector<2x128xf32>
    %1001 = arith.addf %999, %1000 : vector<2x128xf32>
    %1002 = arith.negf %1001 : vector<2x128xf32>
    %1003 = math.exp %1002 : vector<2x128xf32>
    %cst_160 = arith.constant 1.000000e+00 : f32
    %1004 = vector.broadcast %cst_160 : f32 to vector<2x128xf32>
    %1005 = arith.addf %1004, %1003 : vector<2x128xf32>
    %1006 = arith.divf %1004, %1005 : vector<2x128xf32>
    %1007 = math.tanh %1001 : vector<2x128xf32>
    %1008 = vector.extract_strided_slice %1006 {offsets = [0, 0], sizes = [2, 32], strides = [1, 1]} : vector<2x128xf32> to vector<2x32xf32>
    %1009 = vector.extract_strided_slice %1006 {offsets = [0, 32], sizes = [2, 32], strides = [1, 1]} : vector<2x128xf32> to vector<2x32xf32>
    %1010 = vector.extract_strided_slice %1007 {offsets = [0, 64], sizes = [2, 32], strides = [1, 1]} : vector<2x128xf32> to vector<2x32xf32>
    %1011 = vector.extract_strided_slice %1006 {offsets = [0, 96], sizes = [2, 32], strides = [1, 1]} : vector<2x128xf32> to vector<2x32xf32>
    %1012 = arith.mulf %1009, %993 : vector<2x32xf32>
    %1013 = arith.mulf %1008, %1010 : vector<2x32xf32>
    %1014 = arith.addf %1012, %1013 : vector<2x32xf32>
    %1015 = math.tanh %1014 : vector<2x32xf32>
    %1016 = arith.mulf %1011, %1015 : vector<2x32xf32>
    %c0_161 = arith.constant 0 : index
    %c4736 = arith.constant 4736 : index
    %1017 = vector.load %arg13[%c0_161, %c4736] : memref<2x8192xf32, #tpu.memory_space<vmem>>, vector<2x128xf32>
    %1018 = arith.truncf %1016 : vector<2x32xf32> to vector<2x32xbf16>
    %cst_162 = arith.constant dense<0.000000e+00> : vector<2x128xf32>
    %1019 = tpu.matmul %1018, %236, %cst_162 {dimension_numbers = #tpu.dot_dimension_numbers<[1], [0], [0], [1], [0, 0, 1, 1], [], []>} : vector<2x32xbf16>, vector<32x128xbf16>, vector<2x128xf32> -> vector<2x128xf32>
    %1020 = arith.addf %1017, %1019 : vector<2x128xf32>
    %1021 = vector.broadcast %237 : vector<1x128xf32> to vector<2x128xf32>
    %1022 = arith.addf %1020, %1021 : vector<2x128xf32>
    %1023 = arith.negf %1022 : vector<2x128xf32>
    %1024 = math.exp %1023 : vector<2x128xf32>
    %cst_163 = arith.constant 1.000000e+00 : f32
    %1025 = vector.broadcast %cst_163 : f32 to vector<2x128xf32>
    %1026 = arith.addf %1025, %1024 : vector<2x128xf32>
    %1027 = arith.divf %1025, %1026 : vector<2x128xf32>
    %1028 = math.tanh %1022 : vector<2x128xf32>
    %1029 = vector.extract_strided_slice %1027 {offsets = [0, 0], sizes = [2, 32], strides = [1, 1]} : vector<2x128xf32> to vector<2x32xf32>
    %1030 = vector.extract_strided_slice %1027 {offsets = [0, 32], sizes = [2, 32], strides = [1, 1]} : vector<2x128xf32> to vector<2x32xf32>
    %1031 = vector.extract_strided_slice %1028 {offsets = [0, 64], sizes = [2, 32], strides = [1, 1]} : vector<2x128xf32> to vector<2x32xf32>
    %1032 = vector.extract_strided_slice %1027 {offsets = [0, 96], sizes = [2, 32], strides = [1, 1]} : vector<2x128xf32> to vector<2x32xf32>
    %1033 = arith.mulf %1030, %1014 : vector<2x32xf32>
    %1034 = arith.mulf %1029, %1031 : vector<2x32xf32>
    %1035 = arith.addf %1033, %1034 : vector<2x32xf32>
    %1036 = math.tanh %1035 : vector<2x32xf32>
    %1037 = arith.mulf %1032, %1036 : vector<2x32xf32>
    %c0_164 = arith.constant 0 : index
    %c4864 = arith.constant 4864 : index
    %1038 = vector.load %arg13[%c0_164, %c4864] : memref<2x8192xf32, #tpu.memory_space<vmem>>, vector<2x128xf32>
    %1039 = arith.truncf %1037 : vector<2x32xf32> to vector<2x32xbf16>
    %cst_165 = arith.constant dense<0.000000e+00> : vector<2x128xf32>
    %1040 = tpu.matmul %1039, %236, %cst_165 {dimension_numbers = #tpu.dot_dimension_numbers<[1], [0], [0], [1], [0, 0, 1, 1], [], []>} : vector<2x32xbf16>, vector<32x128xbf16>, vector<2x128xf32> -> vector<2x128xf32>
    %1041 = arith.addf %1038, %1040 : vector<2x128xf32>
    %1042 = vector.broadcast %237 : vector<1x128xf32> to vector<2x128xf32>
    %1043 = arith.addf %1041, %1042 : vector<2x128xf32>
    %1044 = arith.negf %1043 : vector<2x128xf32>
    %1045 = math.exp %1044 : vector<2x128xf32>
    %cst_166 = arith.constant 1.000000e+00 : f32
    %1046 = vector.broadcast %cst_166 : f32 to vector<2x128xf32>
    %1047 = arith.addf %1046, %1045 : vector<2x128xf32>
    %1048 = arith.divf %1046, %1047 : vector<2x128xf32>
    %1049 = math.tanh %1043 : vector<2x128xf32>
    %1050 = vector.extract_strided_slice %1048 {offsets = [0, 0], sizes = [2, 32], strides = [1, 1]} : vector<2x128xf32> to vector<2x32xf32>
    %1051 = vector.extract_strided_slice %1048 {offsets = [0, 32], sizes = [2, 32], strides = [1, 1]} : vector<2x128xf32> to vector<2x32xf32>
    %1052 = vector.extract_strided_slice %1049 {offsets = [0, 64], sizes = [2, 32], strides = [1, 1]} : vector<2x128xf32> to vector<2x32xf32>
    %1053 = vector.extract_strided_slice %1048 {offsets = [0, 96], sizes = [2, 32], strides = [1, 1]} : vector<2x128xf32> to vector<2x32xf32>
    %1054 = arith.mulf %1051, %1035 : vector<2x32xf32>
    %1055 = arith.mulf %1050, %1052 : vector<2x32xf32>
    %1056 = arith.addf %1054, %1055 : vector<2x32xf32>
    %1057 = math.tanh %1056 : vector<2x32xf32>
    %1058 = arith.mulf %1053, %1057 : vector<2x32xf32>
    %c0_167 = arith.constant 0 : index
    %c4992 = arith.constant 4992 : index
    %1059 = vector.load %arg13[%c0_167, %c4992] : memref<2x8192xf32, #tpu.memory_space<vmem>>, vector<2x128xf32>
    %1060 = arith.truncf %1058 : vector<2x32xf32> to vector<2x32xbf16>
    %cst_168 = arith.constant dense<0.000000e+00> : vector<2x128xf32>
    %1061 = tpu.matmul %1060, %236, %cst_168 {dimension_numbers = #tpu.dot_dimension_numbers<[1], [0], [0], [1], [0, 0, 1, 1], [], []>} : vector<2x32xbf16>, vector<32x128xbf16>, vector<2x128xf32> -> vector<2x128xf32>
    %1062 = arith.addf %1059, %1061 : vector<2x128xf32>
    %1063 = vector.broadcast %237 : vector<1x128xf32> to vector<2x128xf32>
    %1064 = arith.addf %1062, %1063 : vector<2x128xf32>
    %1065 = arith.negf %1064 : vector<2x128xf32>
    %1066 = math.exp %1065 : vector<2x128xf32>
    %cst_169 = arith.constant 1.000000e+00 : f32
    %1067 = vector.broadcast %cst_169 : f32 to vector<2x128xf32>
    %1068 = arith.addf %1067, %1066 : vector<2x128xf32>
    %1069 = arith.divf %1067, %1068 : vector<2x128xf32>
    %1070 = math.tanh %1064 : vector<2x128xf32>
    %1071 = vector.extract_strided_slice %1069 {offsets = [0, 0], sizes = [2, 32], strides = [1, 1]} : vector<2x128xf32> to vector<2x32xf32>
    %1072 = vector.extract_strided_slice %1069 {offsets = [0, 32], sizes = [2, 32], strides = [1, 1]} : vector<2x128xf32> to vector<2x32xf32>
    %1073 = vector.extract_strided_slice %1070 {offsets = [0, 64], sizes = [2, 32], strides = [1, 1]} : vector<2x128xf32> to vector<2x32xf32>
    %1074 = vector.extract_strided_slice %1069 {offsets = [0, 96], sizes = [2, 32], strides = [1, 1]} : vector<2x128xf32> to vector<2x32xf32>
    %1075 = arith.mulf %1072, %1056 : vector<2x32xf32>
    %1076 = arith.mulf %1071, %1073 : vector<2x32xf32>
    %1077 = arith.addf %1075, %1076 : vector<2x32xf32>
    %1078 = math.tanh %1077 : vector<2x32xf32>
    %1079 = arith.mulf %1074, %1078 : vector<2x32xf32>
    %c0_170 = arith.constant 0 : index
    %c5120 = arith.constant 5120 : index
    %1080 = vector.load %arg13[%c0_170, %c5120] : memref<2x8192xf32, #tpu.memory_space<vmem>>, vector<2x128xf32>
    %1081 = arith.truncf %1079 : vector<2x32xf32> to vector<2x32xbf16>
    %cst_171 = arith.constant dense<0.000000e+00> : vector<2x128xf32>
    %1082 = tpu.matmul %1081, %236, %cst_171 {dimension_numbers = #tpu.dot_dimension_numbers<[1], [0], [0], [1], [0, 0, 1, 1], [], []>} : vector<2x32xbf16>, vector<32x128xbf16>, vector<2x128xf32> -> vector<2x128xf32>
    %1083 = arith.addf %1080, %1082 : vector<2x128xf32>
    %1084 = vector.broadcast %237 : vector<1x128xf32> to vector<2x128xf32>
    %1085 = arith.addf %1083, %1084 : vector<2x128xf32>
    %1086 = arith.negf %1085 : vector<2x128xf32>
    %1087 = math.exp %1086 : vector<2x128xf32>
    %cst_172 = arith.constant 1.000000e+00 : f32
    %1088 = vector.broadcast %cst_172 : f32 to vector<2x128xf32>
    %1089 = arith.addf %1088, %1087 : vector<2x128xf32>
    %1090 = arith.divf %1088, %1089 : vector<2x128xf32>
    %1091 = math.tanh %1085 : vector<2x128xf32>
    %1092 = vector.extract_strided_slice %1090 {offsets = [0, 0], sizes = [2, 32], strides = [1, 1]} : vector<2x128xf32> to vector<2x32xf32>
    %1093 = vector.extract_strided_slice %1090 {offsets = [0, 32], sizes = [2, 32], strides = [1, 1]} : vector<2x128xf32> to vector<2x32xf32>
    %1094 = vector.extract_strided_slice %1091 {offsets = [0, 64], sizes = [2, 32], strides = [1, 1]} : vector<2x128xf32> to vector<2x32xf32>
    %1095 = vector.extract_strided_slice %1090 {offsets = [0, 96], sizes = [2, 32], strides = [1, 1]} : vector<2x128xf32> to vector<2x32xf32>
    %1096 = arith.mulf %1093, %1077 : vector<2x32xf32>
    %1097 = arith.mulf %1092, %1094 : vector<2x32xf32>
    %1098 = arith.addf %1096, %1097 : vector<2x32xf32>
    %1099 = math.tanh %1098 : vector<2x32xf32>
    %1100 = arith.mulf %1095, %1099 : vector<2x32xf32>
    %c0_173 = arith.constant 0 : index
    %c5248 = arith.constant 5248 : index
    %1101 = vector.load %arg13[%c0_173, %c5248] : memref<2x8192xf32, #tpu.memory_space<vmem>>, vector<2x128xf32>
    %1102 = arith.truncf %1100 : vector<2x32xf32> to vector<2x32xbf16>
    %cst_174 = arith.constant dense<0.000000e+00> : vector<2x128xf32>
    %1103 = tpu.matmul %1102, %236, %cst_174 {dimension_numbers = #tpu.dot_dimension_numbers<[1], [0], [0], [1], [0, 0, 1, 1], [], []>} : vector<2x32xbf16>, vector<32x128xbf16>, vector<2x128xf32> -> vector<2x128xf32>
    %1104 = arith.addf %1101, %1103 : vector<2x128xf32>
    %1105 = vector.broadcast %237 : vector<1x128xf32> to vector<2x128xf32>
    %1106 = arith.addf %1104, %1105 : vector<2x128xf32>
    %1107 = arith.negf %1106 : vector<2x128xf32>
    %1108 = math.exp %1107 : vector<2x128xf32>
    %cst_175 = arith.constant 1.000000e+00 : f32
    %1109 = vector.broadcast %cst_175 : f32 to vector<2x128xf32>
    %1110 = arith.addf %1109, %1108 : vector<2x128xf32>
    %1111 = arith.divf %1109, %1110 : vector<2x128xf32>
    %1112 = math.tanh %1106 : vector<2x128xf32>
    %1113 = vector.extract_strided_slice %1111 {offsets = [0, 0], sizes = [2, 32], strides = [1, 1]} : vector<2x128xf32> to vector<2x32xf32>
    %1114 = vector.extract_strided_slice %1111 {offsets = [0, 32], sizes = [2, 32], strides = [1, 1]} : vector<2x128xf32> to vector<2x32xf32>
    %1115 = vector.extract_strided_slice %1112 {offsets = [0, 64], sizes = [2, 32], strides = [1, 1]} : vector<2x128xf32> to vector<2x32xf32>
    %1116 = vector.extract_strided_slice %1111 {offsets = [0, 96], sizes = [2, 32], strides = [1, 1]} : vector<2x128xf32> to vector<2x32xf32>
    %1117 = arith.mulf %1114, %1098 : vector<2x32xf32>
    %1118 = arith.mulf %1113, %1115 : vector<2x32xf32>
    %1119 = arith.addf %1117, %1118 : vector<2x32xf32>
    %1120 = math.tanh %1119 : vector<2x32xf32>
    %1121 = arith.mulf %1116, %1120 : vector<2x32xf32>
    %c0_176 = arith.constant 0 : index
    %c5376 = arith.constant 5376 : index
    %1122 = vector.load %arg13[%c0_176, %c5376] : memref<2x8192xf32, #tpu.memory_space<vmem>>, vector<2x128xf32>
    %1123 = arith.truncf %1121 : vector<2x32xf32> to vector<2x32xbf16>
    %cst_177 = arith.constant dense<0.000000e+00> : vector<2x128xf32>
    %1124 = tpu.matmul %1123, %236, %cst_177 {dimension_numbers = #tpu.dot_dimension_numbers<[1], [0], [0], [1], [0, 0, 1, 1], [], []>} : vector<2x32xbf16>, vector<32x128xbf16>, vector<2x128xf32> -> vector<2x128xf32>
    %1125 = arith.addf %1122, %1124 : vector<2x128xf32>
    %1126 = vector.broadcast %237 : vector<1x128xf32> to vector<2x128xf32>
    %1127 = arith.addf %1125, %1126 : vector<2x128xf32>
    %1128 = arith.negf %1127 : vector<2x128xf32>
    %1129 = math.exp %1128 : vector<2x128xf32>
    %cst_178 = arith.constant 1.000000e+00 : f32
    %1130 = vector.broadcast %cst_178 : f32 to vector<2x128xf32>
    %1131 = arith.addf %1130, %1129 : vector<2x128xf32>
    %1132 = arith.divf %1130, %1131 : vector<2x128xf32>
    %1133 = math.tanh %1127 : vector<2x128xf32>
    %1134 = vector.extract_strided_slice %1132 {offsets = [0, 0], sizes = [2, 32], strides = [1, 1]} : vector<2x128xf32> to vector<2x32xf32>
    %1135 = vector.extract_strided_slice %1132 {offsets = [0, 32], sizes = [2, 32], strides = [1, 1]} : vector<2x128xf32> to vector<2x32xf32>
    %1136 = vector.extract_strided_slice %1133 {offsets = [0, 64], sizes = [2, 32], strides = [1, 1]} : vector<2x128xf32> to vector<2x32xf32>
    %1137 = vector.extract_strided_slice %1132 {offsets = [0, 96], sizes = [2, 32], strides = [1, 1]} : vector<2x128xf32> to vector<2x32xf32>
    %1138 = arith.mulf %1135, %1119 : vector<2x32xf32>
    %1139 = arith.mulf %1134, %1136 : vector<2x32xf32>
    %1140 = arith.addf %1138, %1139 : vector<2x32xf32>
    %1141 = math.tanh %1140 : vector<2x32xf32>
    %1142 = arith.mulf %1137, %1141 : vector<2x32xf32>
    %c0_179 = arith.constant 0 : index
    %c5504 = arith.constant 5504 : index
    %1143 = vector.load %arg13[%c0_179, %c5504] : memref<2x8192xf32, #tpu.memory_space<vmem>>, vector<2x128xf32>
    %1144 = arith.truncf %1142 : vector<2x32xf32> to vector<2x32xbf16>
    %cst_180 = arith.constant dense<0.000000e+00> : vector<2x128xf32>
    %1145 = tpu.matmul %1144, %236, %cst_180 {dimension_numbers = #tpu.dot_dimension_numbers<[1], [0], [0], [1], [0, 0, 1, 1], [], []>} : vector<2x32xbf16>, vector<32x128xbf16>, vector<2x128xf32> -> vector<2x128xf32>
    %1146 = arith.addf %1143, %1145 : vector<2x128xf32>
    %1147 = vector.broadcast %237 : vector<1x128xf32> to vector<2x128xf32>
    %1148 = arith.addf %1146, %1147 : vector<2x128xf32>
    %1149 = arith.negf %1148 : vector<2x128xf32>
    %1150 = math.exp %1149 : vector<2x128xf32>
    %cst_181 = arith.constant 1.000000e+00 : f32
    %1151 = vector.broadcast %cst_181 : f32 to vector<2x128xf32>
    %1152 = arith.addf %1151, %1150 : vector<2x128xf32>
    %1153 = arith.divf %1151, %1152 : vector<2x128xf32>
    %1154 = math.tanh %1148 : vector<2x128xf32>
    %1155 = vector.extract_strided_slice %1153 {offsets = [0, 0], sizes = [2, 32], strides = [1, 1]} : vector<2x128xf32> to vector<2x32xf32>
    %1156 = vector.extract_strided_slice %1153 {offsets = [0, 32], sizes = [2, 32], strides = [1, 1]} : vector<2x128xf32> to vector<2x32xf32>
    %1157 = vector.extract_strided_slice %1154 {offsets = [0, 64], sizes = [2, 32], strides = [1, 1]} : vector<2x128xf32> to vector<2x32xf32>
    %1158 = vector.extract_strided_slice %1153 {offsets = [0, 96], sizes = [2, 32], strides = [1, 1]} : vector<2x128xf32> to vector<2x32xf32>
    %1159 = arith.mulf %1156, %1140 : vector<2x32xf32>
    %1160 = arith.mulf %1155, %1157 : vector<2x32xf32>
    %1161 = arith.addf %1159, %1160 : vector<2x32xf32>
    %1162 = math.tanh %1161 : vector<2x32xf32>
    %1163 = arith.mulf %1158, %1162 : vector<2x32xf32>
    %c0_182 = arith.constant 0 : index
    %c5632 = arith.constant 5632 : index
    %1164 = vector.load %arg13[%c0_182, %c5632] : memref<2x8192xf32, #tpu.memory_space<vmem>>, vector<2x128xf32>
    %1165 = arith.truncf %1163 : vector<2x32xf32> to vector<2x32xbf16>
    %cst_183 = arith.constant dense<0.000000e+00> : vector<2x128xf32>
    %1166 = tpu.matmul %1165, %236, %cst_183 {dimension_numbers = #tpu.dot_dimension_numbers<[1], [0], [0], [1], [0, 0, 1, 1], [], []>} : vector<2x32xbf16>, vector<32x128xbf16>, vector<2x128xf32> -> vector<2x128xf32>
    %1167 = arith.addf %1164, %1166 : vector<2x128xf32>
    %1168 = vector.broadcast %237 : vector<1x128xf32> to vector<2x128xf32>
    %1169 = arith.addf %1167, %1168 : vector<2x128xf32>
    %1170 = arith.negf %1169 : vector<2x128xf32>
    %1171 = math.exp %1170 : vector<2x128xf32>
    %cst_184 = arith.constant 1.000000e+00 : f32
    %1172 = vector.broadcast %cst_184 : f32 to vector<2x128xf32>
    %1173 = arith.addf %1172, %1171 : vector<2x128xf32>
    %1174 = arith.divf %1172, %1173 : vector<2x128xf32>
    %1175 = math.tanh %1169 : vector<2x128xf32>
    %1176 = vector.extract_strided_slice %1174 {offsets = [0, 0], sizes = [2, 32], strides = [1, 1]} : vector<2x128xf32> to vector<2x32xf32>
    %1177 = vector.extract_strided_slice %1174 {offsets = [0, 32], sizes = [2, 32], strides = [1, 1]} : vector<2x128xf32> to vector<2x32xf32>
    %1178 = vector.extract_strided_slice %1175 {offsets = [0, 64], sizes = [2, 32], strides = [1, 1]} : vector<2x128xf32> to vector<2x32xf32>
    %1179 = vector.extract_strided_slice %1174 {offsets = [0, 96], sizes = [2, 32], strides = [1, 1]} : vector<2x128xf32> to vector<2x32xf32>
    %1180 = arith.mulf %1177, %1161 : vector<2x32xf32>
    %1181 = arith.mulf %1176, %1178 : vector<2x32xf32>
    %1182 = arith.addf %1180, %1181 : vector<2x32xf32>
    %1183 = math.tanh %1182 : vector<2x32xf32>
    %1184 = arith.mulf %1179, %1183 : vector<2x32xf32>
    %c0_185 = arith.constant 0 : index
    %c5760 = arith.constant 5760 : index
    %1185 = vector.load %arg13[%c0_185, %c5760] : memref<2x8192xf32, #tpu.memory_space<vmem>>, vector<2x128xf32>
    %1186 = arith.truncf %1184 : vector<2x32xf32> to vector<2x32xbf16>
    %cst_186 = arith.constant dense<0.000000e+00> : vector<2x128xf32>
    %1187 = tpu.matmul %1186, %236, %cst_186 {dimension_numbers = #tpu.dot_dimension_numbers<[1], [0], [0], [1], [0, 0, 1, 1], [], []>} : vector<2x32xbf16>, vector<32x128xbf16>, vector<2x128xf32> -> vector<2x128xf32>
    %1188 = arith.addf %1185, %1187 : vector<2x128xf32>
    %1189 = vector.broadcast %237 : vector<1x128xf32> to vector<2x128xf32>
    %1190 = arith.addf %1188, %1189 : vector<2x128xf32>
    %1191 = arith.negf %1190 : vector<2x128xf32>
    %1192 = math.exp %1191 : vector<2x128xf32>
    %cst_187 = arith.constant 1.000000e+00 : f32
    %1193 = vector.broadcast %cst_187 : f32 to vector<2x128xf32>
    %1194 = arith.addf %1193, %1192 : vector<2x128xf32>
    %1195 = arith.divf %1193, %1194 : vector<2x128xf32>
    %1196 = math.tanh %1190 : vector<2x128xf32>
    %1197 = vector.extract_strided_slice %1195 {offsets = [0, 0], sizes = [2, 32], strides = [1, 1]} : vector<2x128xf32> to vector<2x32xf32>
    %1198 = vector.extract_strided_slice %1195 {offsets = [0, 32], sizes = [2, 32], strides = [1, 1]} : vector<2x128xf32> to vector<2x32xf32>
    %1199 = vector.extract_strided_slice %1196 {offsets = [0, 64], sizes = [2, 32], strides = [1, 1]} : vector<2x128xf32> to vector<2x32xf32>
    %1200 = vector.extract_strided_slice %1195 {offsets = [0, 96], sizes = [2, 32], strides = [1, 1]} : vector<2x128xf32> to vector<2x32xf32>
    %1201 = arith.mulf %1198, %1182 : vector<2x32xf32>
    %1202 = arith.mulf %1197, %1199 : vector<2x32xf32>
    %1203 = arith.addf %1201, %1202 : vector<2x32xf32>
    %1204 = math.tanh %1203 : vector<2x32xf32>
    %1205 = arith.mulf %1200, %1204 : vector<2x32xf32>
    %c0_188 = arith.constant 0 : index
    %c5888 = arith.constant 5888 : index
    %1206 = vector.load %arg13[%c0_188, %c5888] : memref<2x8192xf32, #tpu.memory_space<vmem>>, vector<2x128xf32>
    %1207 = arith.truncf %1205 : vector<2x32xf32> to vector<2x32xbf16>
    %cst_189 = arith.constant dense<0.000000e+00> : vector<2x128xf32>
    %1208 = tpu.matmul %1207, %236, %cst_189 {dimension_numbers = #tpu.dot_dimension_numbers<[1], [0], [0], [1], [0, 0, 1, 1], [], []>} : vector<2x32xbf16>, vector<32x128xbf16>, vector<2x128xf32> -> vector<2x128xf32>
    %1209 = arith.addf %1206, %1208 : vector<2x128xf32>
    %1210 = vector.broadcast %237 : vector<1x128xf32> to vector<2x128xf32>
    %1211 = arith.addf %1209, %1210 : vector<2x128xf32>
    %1212 = arith.negf %1211 : vector<2x128xf32>
    %1213 = math.exp %1212 : vector<2x128xf32>
    %cst_190 = arith.constant 1.000000e+00 : f32
    %1214 = vector.broadcast %cst_190 : f32 to vector<2x128xf32>
    %1215 = arith.addf %1214, %1213 : vector<2x128xf32>
    %1216 = arith.divf %1214, %1215 : vector<2x128xf32>
    %1217 = math.tanh %1211 : vector<2x128xf32>
    %1218 = vector.extract_strided_slice %1216 {offsets = [0, 0], sizes = [2, 32], strides = [1, 1]} : vector<2x128xf32> to vector<2x32xf32>
    %1219 = vector.extract_strided_slice %1216 {offsets = [0, 32], sizes = [2, 32], strides = [1, 1]} : vector<2x128xf32> to vector<2x32xf32>
    %1220 = vector.extract_strided_slice %1217 {offsets = [0, 64], sizes = [2, 32], strides = [1, 1]} : vector<2x128xf32> to vector<2x32xf32>
    %1221 = vector.extract_strided_slice %1216 {offsets = [0, 96], sizes = [2, 32], strides = [1, 1]} : vector<2x128xf32> to vector<2x32xf32>
    %1222 = arith.mulf %1219, %1203 : vector<2x32xf32>
    %1223 = arith.mulf %1218, %1220 : vector<2x32xf32>
    %1224 = arith.addf %1222, %1223 : vector<2x32xf32>
    %1225 = math.tanh %1224 : vector<2x32xf32>
    %1226 = arith.mulf %1221, %1225 : vector<2x32xf32>
    %c0_191 = arith.constant 0 : index
    %c6016 = arith.constant 6016 : index
    %1227 = vector.load %arg13[%c0_191, %c6016] : memref<2x8192xf32, #tpu.memory_space<vmem>>, vector<2x128xf32>
    %1228 = arith.truncf %1226 : vector<2x32xf32> to vector<2x32xbf16>
    %cst_192 = arith.constant dense<0.000000e+00> : vector<2x128xf32>
    %1229 = tpu.matmul %1228, %236, %cst_192 {dimension_numbers = #tpu.dot_dimension_numbers<[1], [0], [0], [1], [0, 0, 1, 1], [], []>} : vector<2x32xbf16>, vector<32x128xbf16>, vector<2x128xf32> -> vector<2x128xf32>
    %1230 = arith.addf %1227, %1229 : vector<2x128xf32>
    %1231 = vector.broadcast %237 : vector<1x128xf32> to vector<2x128xf32>
    %1232 = arith.addf %1230, %1231 : vector<2x128xf32>
    %1233 = arith.negf %1232 : vector<2x128xf32>
    %1234 = math.exp %1233 : vector<2x128xf32>
    %cst_193 = arith.constant 1.000000e+00 : f32
    %1235 = vector.broadcast %cst_193 : f32 to vector<2x128xf32>
    %1236 = arith.addf %1235, %1234 : vector<2x128xf32>
    %1237 = arith.divf %1235, %1236 : vector<2x128xf32>
    %1238 = math.tanh %1232 : vector<2x128xf32>
    %1239 = vector.extract_strided_slice %1237 {offsets = [0, 0], sizes = [2, 32], strides = [1, 1]} : vector<2x128xf32> to vector<2x32xf32>
    %1240 = vector.extract_strided_slice %1237 {offsets = [0, 32], sizes = [2, 32], strides = [1, 1]} : vector<2x128xf32> to vector<2x32xf32>
    %1241 = vector.extract_strided_slice %1238 {offsets = [0, 64], sizes = [2, 32], strides = [1, 1]} : vector<2x128xf32> to vector<2x32xf32>
    %1242 = vector.extract_strided_slice %1237 {offsets = [0, 96], sizes = [2, 32], strides = [1, 1]} : vector<2x128xf32> to vector<2x32xf32>
    %1243 = arith.mulf %1240, %1224 : vector<2x32xf32>
    %1244 = arith.mulf %1239, %1241 : vector<2x32xf32>
    %1245 = arith.addf %1243, %1244 : vector<2x32xf32>
    %1246 = math.tanh %1245 : vector<2x32xf32>
    %1247 = arith.mulf %1242, %1246 : vector<2x32xf32>
    %c0_194 = arith.constant 0 : index
    %c6144 = arith.constant 6144 : index
    %1248 = vector.load %arg13[%c0_194, %c6144] : memref<2x8192xf32, #tpu.memory_space<vmem>>, vector<2x128xf32>
    %1249 = arith.truncf %1247 : vector<2x32xf32> to vector<2x32xbf16>
    %cst_195 = arith.constant dense<0.000000e+00> : vector<2x128xf32>
    %1250 = tpu.matmul %1249, %236, %cst_195 {dimension_numbers = #tpu.dot_dimension_numbers<[1], [0], [0], [1], [0, 0, 1, 1], [], []>} : vector<2x32xbf16>, vector<32x128xbf16>, vector<2x128xf32> -> vector<2x128xf32>
    %1251 = arith.addf %1248, %1250 : vector<2x128xf32>
    %1252 = vector.broadcast %237 : vector<1x128xf32> to vector<2x128xf32>
    %1253 = arith.addf %1251, %1252 : vector<2x128xf32>
    %1254 = arith.negf %1253 : vector<2x128xf32>
    %1255 = math.exp %1254 : vector<2x128xf32>
    %cst_196 = arith.constant 1.000000e+00 : f32
    %1256 = vector.broadcast %cst_196 : f32 to vector<2x128xf32>
    %1257 = arith.addf %1256, %1255 : vector<2x128xf32>
    %1258 = arith.divf %1256, %1257 : vector<2x128xf32>
    %1259 = math.tanh %1253 : vector<2x128xf32>
    %1260 = vector.extract_strided_slice %1258 {offsets = [0, 0], sizes = [2, 32], strides = [1, 1]} : vector<2x128xf32> to vector<2x32xf32>
    %1261 = vector.extract_strided_slice %1258 {offsets = [0, 32], sizes = [2, 32], strides = [1, 1]} : vector<2x128xf32> to vector<2x32xf32>
    %1262 = vector.extract_strided_slice %1259 {offsets = [0, 64], sizes = [2, 32], strides = [1, 1]} : vector<2x128xf32> to vector<2x32xf32>
    %1263 = vector.extract_strided_slice %1258 {offsets = [0, 96], sizes = [2, 32], strides = [1, 1]} : vector<2x128xf32> to vector<2x32xf32>
    %1264 = arith.mulf %1261, %1245 : vector<2x32xf32>
    %1265 = arith.mulf %1260, %1262 : vector<2x32xf32>
    %1266 = arith.addf %1264, %1265 : vector<2x32xf32>
    %1267 = math.tanh %1266 : vector<2x32xf32>
    %1268 = arith.mulf %1263, %1267 : vector<2x32xf32>
    %c0_197 = arith.constant 0 : index
    %c6272 = arith.constant 6272 : index
    %1269 = vector.load %arg13[%c0_197, %c6272] : memref<2x8192xf32, #tpu.memory_space<vmem>>, vector<2x128xf32>
    %1270 = arith.truncf %1268 : vector<2x32xf32> to vector<2x32xbf16>
    %cst_198 = arith.constant dense<0.000000e+00> : vector<2x128xf32>
    %1271 = tpu.matmul %1270, %236, %cst_198 {dimension_numbers = #tpu.dot_dimension_numbers<[1], [0], [0], [1], [0, 0, 1, 1], [], []>} : vector<2x32xbf16>, vector<32x128xbf16>, vector<2x128xf32> -> vector<2x128xf32>
    %1272 = arith.addf %1269, %1271 : vector<2x128xf32>
    %1273 = vector.broadcast %237 : vector<1x128xf32> to vector<2x128xf32>
    %1274 = arith.addf %1272, %1273 : vector<2x128xf32>
    %1275 = arith.negf %1274 : vector<2x128xf32>
    %1276 = math.exp %1275 : vector<2x128xf32>
    %cst_199 = arith.constant 1.000000e+00 : f32
    %1277 = vector.broadcast %cst_199 : f32 to vector<2x128xf32>
    %1278 = arith.addf %1277, %1276 : vector<2x128xf32>
    %1279 = arith.divf %1277, %1278 : vector<2x128xf32>
    %1280 = math.tanh %1274 : vector<2x128xf32>
    %1281 = vector.extract_strided_slice %1279 {offsets = [0, 0], sizes = [2, 32], strides = [1, 1]} : vector<2x128xf32> to vector<2x32xf32>
    %1282 = vector.extract_strided_slice %1279 {offsets = [0, 32], sizes = [2, 32], strides = [1, 1]} : vector<2x128xf32> to vector<2x32xf32>
    %1283 = vector.extract_strided_slice %1280 {offsets = [0, 64], sizes = [2, 32], strides = [1, 1]} : vector<2x128xf32> to vector<2x32xf32>
    %1284 = vector.extract_strided_slice %1279 {offsets = [0, 96], sizes = [2, 32], strides = [1, 1]} : vector<2x128xf32> to vector<2x32xf32>
    %1285 = arith.mulf %1282, %1266 : vector<2x32xf32>
    %1286 = arith.mulf %1281, %1283 : vector<2x32xf32>
    %1287 = arith.addf %1285, %1286 : vector<2x32xf32>
    %1288 = math.tanh %1287 : vector<2x32xf32>
    %1289 = arith.mulf %1284, %1288 : vector<2x32xf32>
    %c0_200 = arith.constant 0 : index
    %c6400 = arith.constant 6400 : index
    %1290 = vector.load %arg13[%c0_200, %c6400] : memref<2x8192xf32, #tpu.memory_space<vmem>>, vector<2x128xf32>
    %1291 = arith.truncf %1289 : vector<2x32xf32> to vector<2x32xbf16>
    %cst_201 = arith.constant dense<0.000000e+00> : vector<2x128xf32>
    %1292 = tpu.matmul %1291, %236, %cst_201 {dimension_numbers = #tpu.dot_dimension_numbers<[1], [0], [0], [1], [0, 0, 1, 1], [], []>} : vector<2x32xbf16>, vector<32x128xbf16>, vector<2x128xf32> -> vector<2x128xf32>
    %1293 = arith.addf %1290, %1292 : vector<2x128xf32>
    %1294 = vector.broadcast %237 : vector<1x128xf32> to vector<2x128xf32>
    %1295 = arith.addf %1293, %1294 : vector<2x128xf32>
    %1296 = arith.negf %1295 : vector<2x128xf32>
    %1297 = math.exp %1296 : vector<2x128xf32>
    %cst_202 = arith.constant 1.000000e+00 : f32
    %1298 = vector.broadcast %cst_202 : f32 to vector<2x128xf32>
    %1299 = arith.addf %1298, %1297 : vector<2x128xf32>
    %1300 = arith.divf %1298, %1299 : vector<2x128xf32>
    %1301 = math.tanh %1295 : vector<2x128xf32>
    %1302 = vector.extract_strided_slice %1300 {offsets = [0, 0], sizes = [2, 32], strides = [1, 1]} : vector<2x128xf32> to vector<2x32xf32>
    %1303 = vector.extract_strided_slice %1300 {offsets = [0, 32], sizes = [2, 32], strides = [1, 1]} : vector<2x128xf32> to vector<2x32xf32>
    %1304 = vector.extract_strided_slice %1301 {offsets = [0, 64], sizes = [2, 32], strides = [1, 1]} : vector<2x128xf32> to vector<2x32xf32>
    %1305 = vector.extract_strided_slice %1300 {offsets = [0, 96], sizes = [2, 32], strides = [1, 1]} : vector<2x128xf32> to vector<2x32xf32>
    %1306 = arith.mulf %1303, %1287 : vector<2x32xf32>
    %1307 = arith.mulf %1302, %1304 : vector<2x32xf32>
    %1308 = arith.addf %1306, %1307 : vector<2x32xf32>
    %1309 = math.tanh %1308 : vector<2x32xf32>
    %1310 = arith.mulf %1305, %1309 : vector<2x32xf32>
    %c0_203 = arith.constant 0 : index
    %c6528 = arith.constant 6528 : index
    %1311 = vector.load %arg13[%c0_203, %c6528] : memref<2x8192xf32, #tpu.memory_space<vmem>>, vector<2x128xf32>
    %1312 = arith.truncf %1310 : vector<2x32xf32> to vector<2x32xbf16>
    %cst_204 = arith.constant dense<0.000000e+00> : vector<2x128xf32>
    %1313 = tpu.matmul %1312, %236, %cst_204 {dimension_numbers = #tpu.dot_dimension_numbers<[1], [0], [0], [1], [0, 0, 1, 1], [], []>} : vector<2x32xbf16>, vector<32x128xbf16>, vector<2x128xf32> -> vector<2x128xf32>
    %1314 = arith.addf %1311, %1313 : vector<2x128xf32>
    %1315 = vector.broadcast %237 : vector<1x128xf32> to vector<2x128xf32>
    %1316 = arith.addf %1314, %1315 : vector<2x128xf32>
    %1317 = arith.negf %1316 : vector<2x128xf32>
    %1318 = math.exp %1317 : vector<2x128xf32>
    %cst_205 = arith.constant 1.000000e+00 : f32
    %1319 = vector.broadcast %cst_205 : f32 to vector<2x128xf32>
    %1320 = arith.addf %1319, %1318 : vector<2x128xf32>
    %1321 = arith.divf %1319, %1320 : vector<2x128xf32>
    %1322 = math.tanh %1316 : vector<2x128xf32>
    %1323 = vector.extract_strided_slice %1321 {offsets = [0, 0], sizes = [2, 32], strides = [1, 1]} : vector<2x128xf32> to vector<2x32xf32>
    %1324 = vector.extract_strided_slice %1321 {offsets = [0, 32], sizes = [2, 32], strides = [1, 1]} : vector<2x128xf32> to vector<2x32xf32>
    %1325 = vector.extract_strided_slice %1322 {offsets = [0, 64], sizes = [2, 32], strides = [1, 1]} : vector<2x128xf32> to vector<2x32xf32>
    %1326 = vector.extract_strided_slice %1321 {offsets = [0, 96], sizes = [2, 32], strides = [1, 1]} : vector<2x128xf32> to vector<2x32xf32>
    %1327 = arith.mulf %1324, %1308 : vector<2x32xf32>
    %1328 = arith.mulf %1323, %1325 : vector<2x32xf32>
    %1329 = arith.addf %1327, %1328 : vector<2x32xf32>
    %1330 = math.tanh %1329 : vector<2x32xf32>
    %1331 = arith.mulf %1326, %1330 : vector<2x32xf32>
    %c0_206 = arith.constant 0 : index
    %c6656 = arith.constant 6656 : index
    %1332 = vector.load %arg13[%c0_206, %c6656] : memref<2x8192xf32, #tpu.memory_space<vmem>>, vector<2x128xf32>
    %1333 = arith.truncf %1331 : vector<2x32xf32> to vector<2x32xbf16>
    %cst_207 = arith.constant dense<0.000000e+00> : vector<2x128xf32>
    %1334 = tpu.matmul %1333, %236, %cst_207 {dimension_numbers = #tpu.dot_dimension_numbers<[1], [0], [0], [1], [0, 0, 1, 1], [], []>} : vector<2x32xbf16>, vector<32x128xbf16>, vector<2x128xf32> -> vector<2x128xf32>
    %1335 = arith.addf %1332, %1334 : vector<2x128xf32>
    %1336 = vector.broadcast %237 : vector<1x128xf32> to vector<2x128xf32>
    %1337 = arith.addf %1335, %1336 : vector<2x128xf32>
    %1338 = arith.negf %1337 : vector<2x128xf32>
    %1339 = math.exp %1338 : vector<2x128xf32>
    %cst_208 = arith.constant 1.000000e+00 : f32
    %1340 = vector.broadcast %cst_208 : f32 to vector<2x128xf32>
    %1341 = arith.addf %1340, %1339 : vector<2x128xf32>
    %1342 = arith.divf %1340, %1341 : vector<2x128xf32>
    %1343 = math.tanh %1337 : vector<2x128xf32>
    %1344 = vector.extract_strided_slice %1342 {offsets = [0, 0], sizes = [2, 32], strides = [1, 1]} : vector<2x128xf32> to vector<2x32xf32>
    %1345 = vector.extract_strided_slice %1342 {offsets = [0, 32], sizes = [2, 32], strides = [1, 1]} : vector<2x128xf32> to vector<2x32xf32>
    %1346 = vector.extract_strided_slice %1343 {offsets = [0, 64], sizes = [2, 32], strides = [1, 1]} : vector<2x128xf32> to vector<2x32xf32>
    %1347 = vector.extract_strided_slice %1342 {offsets = [0, 96], sizes = [2, 32], strides = [1, 1]} : vector<2x128xf32> to vector<2x32xf32>
    %1348 = arith.mulf %1345, %1329 : vector<2x32xf32>
    %1349 = arith.mulf %1344, %1346 : vector<2x32xf32>
    %1350 = arith.addf %1348, %1349 : vector<2x32xf32>
    %1351 = math.tanh %1350 : vector<2x32xf32>
    %1352 = arith.mulf %1347, %1351 : vector<2x32xf32>
    %c0_209 = arith.constant 0 : index
    %c6784 = arith.constant 6784 : index
    %1353 = vector.load %arg13[%c0_209, %c6784] : memref<2x8192xf32, #tpu.memory_space<vmem>>, vector<2x128xf32>
    %1354 = arith.truncf %1352 : vector<2x32xf32> to vector<2x32xbf16>
    %cst_210 = arith.constant dense<0.000000e+00> : vector<2x128xf32>
    %1355 = tpu.matmul %1354, %236, %cst_210 {dimension_numbers = #tpu.dot_dimension_numbers<[1], [0], [0], [1], [0, 0, 1, 1], [], []>} : vector<2x32xbf16>, vector<32x128xbf16>, vector<2x128xf32> -> vector<2x128xf32>
    %1356 = arith.addf %1353, %1355 : vector<2x128xf32>
    %1357 = vector.broadcast %237 : vector<1x128xf32> to vector<2x128xf32>
    %1358 = arith.addf %1356, %1357 : vector<2x128xf32>
    %1359 = arith.negf %1358 : vector<2x128xf32>
    %1360 = math.exp %1359 : vector<2x128xf32>
    %cst_211 = arith.constant 1.000000e+00 : f32
    %1361 = vector.broadcast %cst_211 : f32 to vector<2x128xf32>
    %1362 = arith.addf %1361, %1360 : vector<2x128xf32>
    %1363 = arith.divf %1361, %1362 : vector<2x128xf32>
    %1364 = math.tanh %1358 : vector<2x128xf32>
    %1365 = vector.extract_strided_slice %1363 {offsets = [0, 0], sizes = [2, 32], strides = [1, 1]} : vector<2x128xf32> to vector<2x32xf32>
    %1366 = vector.extract_strided_slice %1363 {offsets = [0, 32], sizes = [2, 32], strides = [1, 1]} : vector<2x128xf32> to vector<2x32xf32>
    %1367 = vector.extract_strided_slice %1364 {offsets = [0, 64], sizes = [2, 32], strides = [1, 1]} : vector<2x128xf32> to vector<2x32xf32>
    %1368 = vector.extract_strided_slice %1363 {offsets = [0, 96], sizes = [2, 32], strides = [1, 1]} : vector<2x128xf32> to vector<2x32xf32>
    %1369 = arith.mulf %1366, %1350 : vector<2x32xf32>
    %1370 = arith.mulf %1365, %1367 : vector<2x32xf32>
    %1371 = arith.addf %1369, %1370 : vector<2x32xf32>
    %1372 = math.tanh %1371 : vector<2x32xf32>
    %1373 = arith.mulf %1368, %1372 : vector<2x32xf32>
    %c0_212 = arith.constant 0 : index
    %c6912 = arith.constant 6912 : index
    %1374 = vector.load %arg13[%c0_212, %c6912] : memref<2x8192xf32, #tpu.memory_space<vmem>>, vector<2x128xf32>
    %1375 = arith.truncf %1373 : vector<2x32xf32> to vector<2x32xbf16>
    %cst_213 = arith.constant dense<0.000000e+00> : vector<2x128xf32>
    %1376 = tpu.matmul %1375, %236, %cst_213 {dimension_numbers = #tpu.dot_dimension_numbers<[1], [0], [0], [1], [0, 0, 1, 1], [], []>} : vector<2x32xbf16>, vector<32x128xbf16>, vector<2x128xf32> -> vector<2x128xf32>
    %1377 = arith.addf %1374, %1376 : vector<2x128xf32>
    %1378 = vector.broadcast %237 : vector<1x128xf32> to vector<2x128xf32>
    %1379 = arith.addf %1377, %1378 : vector<2x128xf32>
    %1380 = arith.negf %1379 : vector<2x128xf32>
    %1381 = math.exp %1380 : vector<2x128xf32>
    %cst_214 = arith.constant 1.000000e+00 : f32
    %1382 = vector.broadcast %cst_214 : f32 to vector<2x128xf32>
    %1383 = arith.addf %1382, %1381 : vector<2x128xf32>
    %1384 = arith.divf %1382, %1383 : vector<2x128xf32>
    %1385 = math.tanh %1379 : vector<2x128xf32>
    %1386 = vector.extract_strided_slice %1384 {offsets = [0, 0], sizes = [2, 32], strides = [1, 1]} : vector<2x128xf32> to vector<2x32xf32>
    %1387 = vector.extract_strided_slice %1384 {offsets = [0, 32], sizes = [2, 32], strides = [1, 1]} : vector<2x128xf32> to vector<2x32xf32>
    %1388 = vector.extract_strided_slice %1385 {offsets = [0, 64], sizes = [2, 32], strides = [1, 1]} : vector<2x128xf32> to vector<2x32xf32>
    %1389 = vector.extract_strided_slice %1384 {offsets = [0, 96], sizes = [2, 32], strides = [1, 1]} : vector<2x128xf32> to vector<2x32xf32>
    %1390 = arith.mulf %1387, %1371 : vector<2x32xf32>
    %1391 = arith.mulf %1386, %1388 : vector<2x32xf32>
    %1392 = arith.addf %1390, %1391 : vector<2x32xf32>
    %1393 = math.tanh %1392 : vector<2x32xf32>
    %1394 = arith.mulf %1389, %1393 : vector<2x32xf32>
    %c0_215 = arith.constant 0 : index
    %c7040 = arith.constant 7040 : index
    %1395 = vector.load %arg13[%c0_215, %c7040] : memref<2x8192xf32, #tpu.memory_space<vmem>>, vector<2x128xf32>
    %1396 = arith.truncf %1394 : vector<2x32xf32> to vector<2x32xbf16>
    %cst_216 = arith.constant dense<0.000000e+00> : vector<2x128xf32>
    %1397 = tpu.matmul %1396, %236, %cst_216 {dimension_numbers = #tpu.dot_dimension_numbers<[1], [0], [0], [1], [0, 0, 1, 1], [], []>} : vector<2x32xbf16>, vector<32x128xbf16>, vector<2x128xf32> -> vector<2x128xf32>
    %1398 = arith.addf %1395, %1397 : vector<2x128xf32>
    %1399 = vector.broadcast %237 : vector<1x128xf32> to vector<2x128xf32>
    %1400 = arith.addf %1398, %1399 : vector<2x128xf32>
    %1401 = arith.negf %1400 : vector<2x128xf32>
    %1402 = math.exp %1401 : vector<2x128xf32>
    %cst_217 = arith.constant 1.000000e+00 : f32
    %1403 = vector.broadcast %cst_217 : f32 to vector<2x128xf32>
    %1404 = arith.addf %1403, %1402 : vector<2x128xf32>
    %1405 = arith.divf %1403, %1404 : vector<2x128xf32>
    %1406 = math.tanh %1400 : vector<2x128xf32>
    %1407 = vector.extract_strided_slice %1405 {offsets = [0, 0], sizes = [2, 32], strides = [1, 1]} : vector<2x128xf32> to vector<2x32xf32>
    %1408 = vector.extract_strided_slice %1405 {offsets = [0, 32], sizes = [2, 32], strides = [1, 1]} : vector<2x128xf32> to vector<2x32xf32>
    %1409 = vector.extract_strided_slice %1406 {offsets = [0, 64], sizes = [2, 32], strides = [1, 1]} : vector<2x128xf32> to vector<2x32xf32>
    %1410 = vector.extract_strided_slice %1405 {offsets = [0, 96], sizes = [2, 32], strides = [1, 1]} : vector<2x128xf32> to vector<2x32xf32>
    %1411 = arith.mulf %1408, %1392 : vector<2x32xf32>
    %1412 = arith.mulf %1407, %1409 : vector<2x32xf32>
    %1413 = arith.addf %1411, %1412 : vector<2x32xf32>
    %1414 = math.tanh %1413 : vector<2x32xf32>
    %1415 = arith.mulf %1410, %1414 : vector<2x32xf32>
    %c0_218 = arith.constant 0 : index
    %c7168 = arith.constant 7168 : index
    %1416 = vector.load %arg13[%c0_218, %c7168] : memref<2x8192xf32, #tpu.memory_space<vmem>>, vector<2x128xf32>
    %1417 = arith.truncf %1415 : vector<2x32xf32> to vector<2x32xbf16>
    %cst_219 = arith.constant dense<0.000000e+00> : vector<2x128xf32>
    %1418 = tpu.matmul %1417, %236, %cst_219 {dimension_numbers = #tpu.dot_dimension_numbers<[1], [0], [0], [1], [0, 0, 1, 1], [], []>} : vector<2x32xbf16>, vector<32x128xbf16>, vector<2x128xf32> -> vector<2x128xf32>
    %1419 = arith.addf %1416, %1418 : vector<2x128xf32>
    %1420 = vector.broadcast %237 : vector<1x128xf32> to vector<2x128xf32>
    %1421 = arith.addf %1419, %1420 : vector<2x128xf32>
    %1422 = arith.negf %1421 : vector<2x128xf32>
    %1423 = math.exp %1422 : vector<2x128xf32>
    %cst_220 = arith.constant 1.000000e+00 : f32
    %1424 = vector.broadcast %cst_220 : f32 to vector<2x128xf32>
    %1425 = arith.addf %1424, %1423 : vector<2x128xf32>
    %1426 = arith.divf %1424, %1425 : vector<2x128xf32>
    %1427 = math.tanh %1421 : vector<2x128xf32>
    %1428 = vector.extract_strided_slice %1426 {offsets = [0, 0], sizes = [2, 32], strides = [1, 1]} : vector<2x128xf32> to vector<2x32xf32>
    %1429 = vector.extract_strided_slice %1426 {offsets = [0, 32], sizes = [2, 32], strides = [1, 1]} : vector<2x128xf32> to vector<2x32xf32>
    %1430 = vector.extract_strided_slice %1427 {offsets = [0, 64], sizes = [2, 32], strides = [1, 1]} : vector<2x128xf32> to vector<2x32xf32>
    %1431 = vector.extract_strided_slice %1426 {offsets = [0, 96], sizes = [2, 32], strides = [1, 1]} : vector<2x128xf32> to vector<2x32xf32>
    %1432 = arith.mulf %1429, %1413 : vector<2x32xf32>
    %1433 = arith.mulf %1428, %1430 : vector<2x32xf32>
    %1434 = arith.addf %1432, %1433 : vector<2x32xf32>
    %1435 = math.tanh %1434 : vector<2x32xf32>
    %1436 = arith.mulf %1431, %1435 : vector<2x32xf32>
    %c0_221 = arith.constant 0 : index
    %c7296 = arith.constant 7296 : index
    %1437 = vector.load %arg13[%c0_221, %c7296] : memref<2x8192xf32, #tpu.memory_space<vmem>>, vector<2x128xf32>
    %1438 = arith.truncf %1436 : vector<2x32xf32> to vector<2x32xbf16>
    %cst_222 = arith.constant dense<0.000000e+00> : vector<2x128xf32>
    %1439 = tpu.matmul %1438, %236, %cst_222 {dimension_numbers = #tpu.dot_dimension_numbers<[1], [0], [0], [1], [0, 0, 1, 1], [], []>} : vector<2x32xbf16>, vector<32x128xbf16>, vector<2x128xf32> -> vector<2x128xf32>
    %1440 = arith.addf %1437, %1439 : vector<2x128xf32>
    %1441 = vector.broadcast %237 : vector<1x128xf32> to vector<2x128xf32>
    %1442 = arith.addf %1440, %1441 : vector<2x128xf32>
    %1443 = arith.negf %1442 : vector<2x128xf32>
    %1444 = math.exp %1443 : vector<2x128xf32>
    %cst_223 = arith.constant 1.000000e+00 : f32
    %1445 = vector.broadcast %cst_223 : f32 to vector<2x128xf32>
    %1446 = arith.addf %1445, %1444 : vector<2x128xf32>
    %1447 = arith.divf %1445, %1446 : vector<2x128xf32>
    %1448 = math.tanh %1442 : vector<2x128xf32>
    %1449 = vector.extract_strided_slice %1447 {offsets = [0, 0], sizes = [2, 32], strides = [1, 1]} : vector<2x128xf32> to vector<2x32xf32>
    %1450 = vector.extract_strided_slice %1447 {offsets = [0, 32], sizes = [2, 32], strides = [1, 1]} : vector<2x128xf32> to vector<2x32xf32>
    %1451 = vector.extract_strided_slice %1448 {offsets = [0, 64], sizes = [2, 32], strides = [1, 1]} : vector<2x128xf32> to vector<2x32xf32>
    %1452 = vector.extract_strided_slice %1447 {offsets = [0, 96], sizes = [2, 32], strides = [1, 1]} : vector<2x128xf32> to vector<2x32xf32>
    %1453 = arith.mulf %1450, %1434 : vector<2x32xf32>
    %1454 = arith.mulf %1449, %1451 : vector<2x32xf32>
    %1455 = arith.addf %1453, %1454 : vector<2x32xf32>
    %1456 = math.tanh %1455 : vector<2x32xf32>
    %1457 = arith.mulf %1452, %1456 : vector<2x32xf32>
    %c0_224 = arith.constant 0 : index
    %c7424 = arith.constant 7424 : index
    %1458 = vector.load %arg13[%c0_224, %c7424] : memref<2x8192xf32, #tpu.memory_space<vmem>>, vector<2x128xf32>
    %1459 = arith.truncf %1457 : vector<2x32xf32> to vector<2x32xbf16>
    %cst_225 = arith.constant dense<0.000000e+00> : vector<2x128xf32>
    %1460 = tpu.matmul %1459, %236, %cst_225 {dimension_numbers = #tpu.dot_dimension_numbers<[1], [0], [0], [1], [0, 0, 1, 1], [], []>} : vector<2x32xbf16>, vector<32x128xbf16>, vector<2x128xf32> -> vector<2x128xf32>
    %1461 = arith.addf %1458, %1460 : vector<2x128xf32>
    %1462 = vector.broadcast %237 : vector<1x128xf32> to vector<2x128xf32>
    %1463 = arith.addf %1461, %1462 : vector<2x128xf32>
    %1464 = arith.negf %1463 : vector<2x128xf32>
    %1465 = math.exp %1464 : vector<2x128xf32>
    %cst_226 = arith.constant 1.000000e+00 : f32
    %1466 = vector.broadcast %cst_226 : f32 to vector<2x128xf32>
    %1467 = arith.addf %1466, %1465 : vector<2x128xf32>
    %1468 = arith.divf %1466, %1467 : vector<2x128xf32>
    %1469 = math.tanh %1463 : vector<2x128xf32>
    %1470 = vector.extract_strided_slice %1468 {offsets = [0, 0], sizes = [2, 32], strides = [1, 1]} : vector<2x128xf32> to vector<2x32xf32>
    %1471 = vector.extract_strided_slice %1468 {offsets = [0, 32], sizes = [2, 32], strides = [1, 1]} : vector<2x128xf32> to vector<2x32xf32>
    %1472 = vector.extract_strided_slice %1469 {offsets = [0, 64], sizes = [2, 32], strides = [1, 1]} : vector<2x128xf32> to vector<2x32xf32>
    %1473 = vector.extract_strided_slice %1468 {offsets = [0, 96], sizes = [2, 32], strides = [1, 1]} : vector<2x128xf32> to vector<2x32xf32>
    %1474 = arith.mulf %1471, %1455 : vector<2x32xf32>
    %1475 = arith.mulf %1470, %1472 : vector<2x32xf32>
    %1476 = arith.addf %1474, %1475 : vector<2x32xf32>
    %1477 = math.tanh %1476 : vector<2x32xf32>
    %1478 = arith.mulf %1473, %1477 : vector<2x32xf32>
    %c0_227 = arith.constant 0 : index
    %c7552 = arith.constant 7552 : index
    %1479 = vector.load %arg13[%c0_227, %c7552] : memref<2x8192xf32, #tpu.memory_space<vmem>>, vector<2x128xf32>
    %1480 = arith.truncf %1478 : vector<2x32xf32> to vector<2x32xbf16>
    %cst_228 = arith.constant dense<0.000000e+00> : vector<2x128xf32>
    %1481 = tpu.matmul %1480, %236, %cst_228 {dimension_numbers = #tpu.dot_dimension_numbers<[1], [0], [0], [1], [0, 0, 1, 1], [], []>} : vector<2x32xbf16>, vector<32x128xbf16>, vector<2x128xf32> -> vector<2x128xf32>
    %1482 = arith.addf %1479, %1481 : vector<2x128xf32>
    %1483 = vector.broadcast %237 : vector<1x128xf32> to vector<2x128xf32>
    %1484 = arith.addf %1482, %1483 : vector<2x128xf32>
    %1485 = arith.negf %1484 : vector<2x128xf32>
    %1486 = math.exp %1485 : vector<2x128xf32>
    %cst_229 = arith.constant 1.000000e+00 : f32
    %1487 = vector.broadcast %cst_229 : f32 to vector<2x128xf32>
    %1488 = arith.addf %1487, %1486 : vector<2x128xf32>
    %1489 = arith.divf %1487, %1488 : vector<2x128xf32>
    %1490 = math.tanh %1484 : vector<2x128xf32>
    %1491 = vector.extract_strided_slice %1489 {offsets = [0, 0], sizes = [2, 32], strides = [1, 1]} : vector<2x128xf32> to vector<2x32xf32>
    %1492 = vector.extract_strided_slice %1489 {offsets = [0, 32], sizes = [2, 32], strides = [1, 1]} : vector<2x128xf32> to vector<2x32xf32>
    %1493 = vector.extract_strided_slice %1490 {offsets = [0, 64], sizes = [2, 32], strides = [1, 1]} : vector<2x128xf32> to vector<2x32xf32>
    %1494 = vector.extract_strided_slice %1489 {offsets = [0, 96], sizes = [2, 32], strides = [1, 1]} : vector<2x128xf32> to vector<2x32xf32>
    %1495 = arith.mulf %1492, %1476 : vector<2x32xf32>
    %1496 = arith.mulf %1491, %1493 : vector<2x32xf32>
    %1497 = arith.addf %1495, %1496 : vector<2x32xf32>
    %1498 = math.tanh %1497 : vector<2x32xf32>
    %1499 = arith.mulf %1494, %1498 : vector<2x32xf32>
    %c0_230 = arith.constant 0 : index
    %c7680 = arith.constant 7680 : index
    %1500 = vector.load %arg13[%c0_230, %c7680] : memref<2x8192xf32, #tpu.memory_space<vmem>>, vector<2x128xf32>
    %1501 = arith.truncf %1499 : vector<2x32xf32> to vector<2x32xbf16>
    %cst_231 = arith.constant dense<0.000000e+00> : vector<2x128xf32>
    %1502 = tpu.matmul %1501, %236, %cst_231 {dimension_numbers = #tpu.dot_dimension_numbers<[1], [0], [0], [1], [0, 0, 1, 1], [], []>} : vector<2x32xbf16>, vector<32x128xbf16>, vector<2x128xf32> -> vector<2x128xf32>
    %1503 = arith.addf %1500, %1502 : vector<2x128xf32>
    %1504 = vector.broadcast %237 : vector<1x128xf32> to vector<2x128xf32>
    %1505 = arith.addf %1503, %1504 : vector<2x128xf32>
    %1506 = arith.negf %1505 : vector<2x128xf32>
    %1507 = math.exp %1506 : vector<2x128xf32>
    %cst_232 = arith.constant 1.000000e+00 : f32
    %1508 = vector.broadcast %cst_232 : f32 to vector<2x128xf32>
    %1509 = arith.addf %1508, %1507 : vector<2x128xf32>
    %1510 = arith.divf %1508, %1509 : vector<2x128xf32>
    %1511 = math.tanh %1505 : vector<2x128xf32>
    %1512 = vector.extract_strided_slice %1510 {offsets = [0, 0], sizes = [2, 32], strides = [1, 1]} : vector<2x128xf32> to vector<2x32xf32>
    %1513 = vector.extract_strided_slice %1510 {offsets = [0, 32], sizes = [2, 32], strides = [1, 1]} : vector<2x128xf32> to vector<2x32xf32>
    %1514 = vector.extract_strided_slice %1511 {offsets = [0, 64], sizes = [2, 32], strides = [1, 1]} : vector<2x128xf32> to vector<2x32xf32>
    %1515 = vector.extract_strided_slice %1510 {offsets = [0, 96], sizes = [2, 32], strides = [1, 1]} : vector<2x128xf32> to vector<2x32xf32>
    %1516 = arith.mulf %1513, %1497 : vector<2x32xf32>
    %1517 = arith.mulf %1512, %1514 : vector<2x32xf32>
    %1518 = arith.addf %1516, %1517 : vector<2x32xf32>
    %1519 = math.tanh %1518 : vector<2x32xf32>
    %1520 = arith.mulf %1515, %1519 : vector<2x32xf32>
    %c0_233 = arith.constant 0 : index
    %c7808 = arith.constant 7808 : index
    %1521 = vector.load %arg13[%c0_233, %c7808] : memref<2x8192xf32, #tpu.memory_space<vmem>>, vector<2x128xf32>
    %1522 = arith.truncf %1520 : vector<2x32xf32> to vector<2x32xbf16>
    %cst_234 = arith.constant dense<0.000000e+00> : vector<2x128xf32>
    %1523 = tpu.matmul %1522, %236, %cst_234 {dimension_numbers = #tpu.dot_dimension_numbers<[1], [0], [0], [1], [0, 0, 1, 1], [], []>} : vector<2x32xbf16>, vector<32x128xbf16>, vector<2x128xf32> -> vector<2x128xf32>
    %1524 = arith.addf %1521, %1523 : vector<2x128xf32>
    %1525 = vector.broadcast %237 : vector<1x128xf32> to vector<2x128xf32>
    %1526 = arith.addf %1524, %1525 : vector<2x128xf32>
    %1527 = arith.negf %1526 : vector<2x128xf32>
    %1528 = math.exp %1527 : vector<2x128xf32>
    %cst_235 = arith.constant 1.000000e+00 : f32
    %1529 = vector.broadcast %cst_235 : f32 to vector<2x128xf32>
    %1530 = arith.addf %1529, %1528 : vector<2x128xf32>
    %1531 = arith.divf %1529, %1530 : vector<2x128xf32>
    %1532 = math.tanh %1526 : vector<2x128xf32>
    %1533 = vector.extract_strided_slice %1531 {offsets = [0, 0], sizes = [2, 32], strides = [1, 1]} : vector<2x128xf32> to vector<2x32xf32>
    %1534 = vector.extract_strided_slice %1531 {offsets = [0, 32], sizes = [2, 32], strides = [1, 1]} : vector<2x128xf32> to vector<2x32xf32>
    %1535 = vector.extract_strided_slice %1532 {offsets = [0, 64], sizes = [2, 32], strides = [1, 1]} : vector<2x128xf32> to vector<2x32xf32>
    %1536 = vector.extract_strided_slice %1531 {offsets = [0, 96], sizes = [2, 32], strides = [1, 1]} : vector<2x128xf32> to vector<2x32xf32>
    %1537 = arith.mulf %1534, %1518 : vector<2x32xf32>
    %1538 = arith.mulf %1533, %1535 : vector<2x32xf32>
    %1539 = arith.addf %1537, %1538 : vector<2x32xf32>
    %1540 = math.tanh %1539 : vector<2x32xf32>
    %1541 = arith.mulf %1536, %1540 : vector<2x32xf32>
    %c0_236 = arith.constant 0 : index
    %c7936 = arith.constant 7936 : index
    %1542 = vector.load %arg13[%c0_236, %c7936] : memref<2x8192xf32, #tpu.memory_space<vmem>>, vector<2x128xf32>
    %1543 = arith.truncf %1541 : vector<2x32xf32> to vector<2x32xbf16>
    %cst_237 = arith.constant dense<0.000000e+00> : vector<2x128xf32>
    %1544 = tpu.matmul %1543, %236, %cst_237 {dimension_numbers = #tpu.dot_dimension_numbers<[1], [0], [0], [1], [0, 0, 1, 1], [], []>} : vector<2x32xbf16>, vector<32x128xbf16>, vector<2x128xf32> -> vector<2x128xf32>
    %1545 = arith.addf %1542, %1544 : vector<2x128xf32>
    %1546 = vector.broadcast %237 : vector<1x128xf32> to vector<2x128xf32>
    %1547 = arith.addf %1545, %1546 : vector<2x128xf32>
    %1548 = arith.negf %1547 : vector<2x128xf32>
    %1549 = math.exp %1548 : vector<2x128xf32>
    %cst_238 = arith.constant 1.000000e+00 : f32
    %1550 = vector.broadcast %cst_238 : f32 to vector<2x128xf32>
    %1551 = arith.addf %1550, %1549 : vector<2x128xf32>
    %1552 = arith.divf %1550, %1551 : vector<2x128xf32>
    %1553 = math.tanh %1547 : vector<2x128xf32>
    %1554 = vector.extract_strided_slice %1552 {offsets = [0, 0], sizes = [2, 32], strides = [1, 1]} : vector<2x128xf32> to vector<2x32xf32>
    %1555 = vector.extract_strided_slice %1552 {offsets = [0, 32], sizes = [2, 32], strides = [1, 1]} : vector<2x128xf32> to vector<2x32xf32>
    %1556 = vector.extract_strided_slice %1553 {offsets = [0, 64], sizes = [2, 32], strides = [1, 1]} : vector<2x128xf32> to vector<2x32xf32>
    %1557 = vector.extract_strided_slice %1552 {offsets = [0, 96], sizes = [2, 32], strides = [1, 1]} : vector<2x128xf32> to vector<2x32xf32>
    %1558 = arith.mulf %1555, %1539 : vector<2x32xf32>
    %1559 = arith.mulf %1554, %1556 : vector<2x32xf32>
    %1560 = arith.addf %1558, %1559 : vector<2x32xf32>
    %1561 = math.tanh %1560 : vector<2x32xf32>
    %1562 = arith.mulf %1557, %1561 : vector<2x32xf32>
    %c0_239 = arith.constant 0 : index
    %c8064 = arith.constant 8064 : index
    %1563 = vector.load %arg13[%c0_239, %c8064] : memref<2x8192xf32, #tpu.memory_space<vmem>>, vector<2x128xf32>
    %1564 = arith.truncf %1562 : vector<2x32xf32> to vector<2x32xbf16>
    %cst_240 = arith.constant dense<0.000000e+00> : vector<2x128xf32>
    %1565 = tpu.matmul %1564, %236, %cst_240 {dimension_numbers = #tpu.dot_dimension_numbers<[1], [0], [0], [1], [0, 0, 1, 1], [], []>} : vector<2x32xbf16>, vector<32x128xbf16>, vector<2x128xf32> -> vector<2x128xf32>
    %1566 = arith.addf %1563, %1565 : vector<2x128xf32>
    %1567 = vector.broadcast %237 : vector<1x128xf32> to vector<2x128xf32>
    %1568 = arith.addf %1566, %1567 : vector<2x128xf32>
    %1569 = arith.negf %1568 : vector<2x128xf32>
    %1570 = math.exp %1569 : vector<2x128xf32>
    %cst_241 = arith.constant 1.000000e+00 : f32
    %1571 = vector.broadcast %cst_241 : f32 to vector<2x128xf32>
    %1572 = arith.addf %1571, %1570 : vector<2x128xf32>
    %1573 = arith.divf %1571, %1572 : vector<2x128xf32>
    %1574 = math.tanh %1568 : vector<2x128xf32>
    %1575 = vector.extract_strided_slice %1573 {offsets = [0, 0], sizes = [2, 32], strides = [1, 1]} : vector<2x128xf32> to vector<2x32xf32>
    %1576 = vector.extract_strided_slice %1573 {offsets = [0, 32], sizes = [2, 32], strides = [1, 1]} : vector<2x128xf32> to vector<2x32xf32>
    %1577 = vector.extract_strided_slice %1574 {offsets = [0, 64], sizes = [2, 32], strides = [1, 1]} : vector<2x128xf32> to vector<2x32xf32>
    %1578 = vector.extract_strided_slice %1573 {offsets = [0, 96], sizes = [2, 32], strides = [1, 1]} : vector<2x128xf32> to vector<2x32xf32>
    %1579 = arith.mulf %1576, %1560 : vector<2x32xf32>
    %1580 = arith.mulf %1575, %1577 : vector<2x32xf32>
    %1581 = arith.addf %1579, %1580 : vector<2x32xf32>
    %1582 = math.tanh %1581 : vector<2x32xf32>
    %1583 = arith.mulf %1578, %1582 : vector<2x32xf32>
    %1584 = vector.extract_strided_slice %228 {offsets = [0, 124], sizes = [2, 4], strides = [1, 1]} : vector<2x128xf32> to vector<2x4xf32>
    %1585 = arith.truncf %1584 : vector<2x4xf32> to vector<2x4xbf16>
    %c0_242 = arith.constant 0 : index
    %c0_243 = arith.constant 0 : index
    %1586 = vector.load %arg7[%c0_242, %c0_243] : memref<4x128xbf16, #tpu.memory_space<vmem>>, vector<4x128xbf16>
    %cst_244 = arith.constant dense<0.000000e+00> : vector<2x128xf32>
    %1587 = tpu.matmul %1585, %1586, %cst_244 {dimension_numbers = #tpu.dot_dimension_numbers<[1], [0], [0], [1], [0, 0, 1, 1], [], []>} : vector<2x4xbf16>, vector<4x128xbf16>, vector<2x128xf32> -> vector<2x128xf32>
    %c0_245 = arith.constant 0 : index
    %c0_246 = arith.constant 0 : index
    %1588 = vector.load %arg8[%c0_245, %c0_246] : memref<1x128xf32, #tpu.memory_space<vmem>>, vector<1x128xf32>
    %1589 = vector.broadcast %1588 : vector<1x128xf32> to vector<2x128xf32>
    %1590 = arith.addf %1587, %1589 : vector<2x128xf32>
    %1591 = arith.negf %1590 : vector<2x128xf32>
    %1592 = math.exp %1591 : vector<2x128xf32>
    %cst_247 = arith.constant 1.000000e+00 : f32
    %1593 = vector.broadcast %cst_247 : f32 to vector<2x128xf32>
    %1594 = arith.addf %1593, %1592 : vector<2x128xf32>
    %1595 = arith.divf %1593, %1594 : vector<2x128xf32>
    %1596 = math.tanh %1590 : vector<2x128xf32>
    %1597 = vector.extract_strided_slice %1595 {offsets = [0, 96], sizes = [2, 32], strides = [1, 1]} : vector<2x128xf32> to vector<2x32xf32>
    %1598 = vector.extract_strided_slice %1595 {offsets = [0, 0], sizes = [2, 32], strides = [1, 1]} : vector<2x128xf32> to vector<2x32xf32>
    %1599 = vector.extract_strided_slice %1596 {offsets = [0, 64], sizes = [2, 32], strides = [1, 1]} : vector<2x128xf32> to vector<2x32xf32>
    %1600 = arith.mulf %1598, %1599 : vector<2x32xf32>
    %1601 = math.tanh %1600 : vector<2x32xf32>
    %1602 = arith.mulf %1597, %1601 : vector<2x32xf32>
    %1603 = arith.truncf %1583 : vector<2x32xf32> to vector<2x32xbf16>
    %c0_248 = arith.constant 0 : index
    %c0_249 = arith.constant 0 : index
    %1604 = vector.load %arg9[%c0_248, %c0_249] : memref<32x10xbf16, #tpu.memory_space<vmem>>, vector<32x10xbf16>
    %cst_250 = arith.constant dense<0.000000e+00> : vector<2x10xf32>
    %1605 = tpu.matmul %1603, %1604, %cst_250 {dimension_numbers = #tpu.dot_dimension_numbers<[1], [0], [0], [1], [0, 0, 1, 1], [], []>} : vector<2x32xbf16>, vector<32x10xbf16>, vector<2x10xf32> -> vector<2x10xf32>
    %1606 = arith.truncf %1602 : vector<2x32xf32> to vector<2x32xbf16>
    %c0_251 = arith.constant 0 : index
    %c0_252 = arith.constant 0 : index
    %1607 = vector.load %arg10[%c0_251, %c0_252] : memref<32x10xbf16, #tpu.memory_space<vmem>>, vector<32x10xbf16>
    %cst_253 = arith.constant dense<0.000000e+00> : vector<2x10xf32>
    %1608 = tpu.matmul %1606, %1607, %cst_253 {dimension_numbers = #tpu.dot_dimension_numbers<[1], [0], [0], [1], [0, 0, 1, 1], [], []>} : vector<2x32xbf16>, vector<32x10xbf16>, vector<2x10xf32> -> vector<2x10xf32>
    %1609 = arith.addf %1605, %1608 : vector<2x10xf32>
    %c0_254 = arith.constant 0 : index
    %c0_255 = arith.constant 0 : index
    %1610 = vector.load %arg11[%c0_254, %c0_255] : memref<1x10xf32, #tpu.memory_space<vmem>>, vector<1x10xf32>
    %1611 = vector.broadcast %1610 : vector<1x10xf32> to vector<2x10xf32>
    %1612 = arith.addf %1609, %1611 : vector<2x10xf32>
    %1613 = arith.negf %1612 : vector<2x10xf32>
    %1614 = math.exp %1613 : vector<2x10xf32>
    %cst_256 = arith.constant 1.000000e+00 : f32
    %1615 = vector.broadcast %cst_256 : f32 to vector<2x10xf32>
    %1616 = arith.addf %1615, %1614 : vector<2x10xf32>
    %1617 = arith.divf %1615, %1616 : vector<2x10xf32>
    %c0_257 = arith.constant 0 : index
    %c0_258 = arith.constant 0 : index
    %1618 = vector.load %arg12[%c0_257, %c0_258] : memref<2x10xf32, #tpu.memory_space<vmem>>, vector<2x10xf32>
    tpu.vector_store %arg12[%c0_257, %c0_258], %1617 {strides = array<i32>} : memref<2x10xf32, #tpu.memory_space<vmem>>, vector<2x10xf32>,
    return
  }
}

</mosaic_0001>

<llo_original>
// kernel: channelwise_lstm_forward.1
$region0: #{channelwise_lstm_forward.1}
  #allocation0 [shape = 'u32[]', space=smem, size = 0x4, offset = 0x4, fixed_abs, tag = 'smem constant byte address 0x4 - core index']
  #allocation1 [shape = 'u32[72,128]{1,0:T(1,128)}', space=vmem, size = 0x9000, scoped, tag = 'internal scratch']
  #allocation2 [shape = 'f32[2,8192]{1,0:T(2,128)}', space=vmem, size = 0x10000, scoped, tag = 'scratch operand']
  %s0 = inlined_call_operand.vmem [shape: bf16[16,4], index: 0, kind: input, shape index: {}]
  %s1 = inlined_call_operand.vmem [shape: bf16[4,1024], index: 1, kind: input, shape index: {}]
  %s2 = inlined_call_operand.vmem [shape: f32[1,1024], index: 2, kind: input, shape index: {}]
  %s3 = inlined_call_operand.hbm [shape: bf16[128,512], index: 3, kind: input, shape index: {}]
  %s4 = inlined_call_operand.hbm [shape: bf16[128,4096], index: 4, kind: input, shape index: {}]
  %s5 = inlined_call_operand.vmem [shape: bf16[32,128], index: 5, kind: input, shape index: {}]
  %s6 = inlined_call_operand.vmem [shape: f32[1,128], index: 6, kind: input, shape index: {}]
  %s7 = inlined_call_operand.vmem [shape: bf16[4,128], index: 7, kind: input, shape index: {}]
  %s8 = inlined_call_operand.vmem [shape: f32[1,128], index: 8, kind: input, shape index: {}]
  %s9 = inlined_call_operand.vmem [shape: bf16[32,10], index: 9, kind: input, shape index: {}]
  %s10 = inlined_call_operand.vmem [shape: bf16[32,10], index: 10, kind: input, shape index: {}]
  %s11 = inlined_call_operand.vmem [shape: f32[1,10], index: 11, kind: input, shape index: {}]
  %s12 = inlined_call_operand.hbm [shape: f32[2,10], index: 12, kind: output, shape index: {}]
  %s13 = sld [smem:[#allocation0]]
  $region66: #{channelwise_lstm_forward.1} parent=0
    _
  %s15 = ssub.s32 1, %s13
  %s16 = scalar_select 0, %s15, %s13
  $region1: #{channelwise_lstm_forward.1} parent=0
    #allocation3 [shape = 'u8[131072]{0}', space=vmem, size = 0x20000, scoped, tag = 'input window, operand 3, single buffered']
    #allocation4 [shape = 's32[1]{0}', space=sflag, size = 0x4, scoped, tag = 'scoped memory for channelwise_lstm_forward.1']
    #allocation5 [shape = 's32[1]{0}', space=sflag, size = 0x4, scoped, tag = 'scoped memory for channelwise_lstm_forward.1']
    #allocation6 [shape = 'u8[1048576]{0}', space=vmem, size = 0x100000, scoped, tag = 'input window, operand 4, single buffered']
    #allocation7 [shape = 's32[1]{0}', space=sflag, size = 0x4, scoped, tag = 'scoped memory for channelwise_lstm_forward.1']
    #allocation8 [shape = 'u8[1024]{0}', space=vmem, size = 0x400, scoped, tag = 'output window, operand 0, single buffered']
    %17 = vsyncpa [#allocation4], 0
    %18 = vsyncpa [#allocation7], 0
    %19 = vsyncpa [#allocation5], 0
    // Predicated region
    $region2: #{channelwise_lstm_forward.1} parent=1 // pred_check
      _
    $region3: #{channelwise_lstm_forward.1} parent=1 // pred_check_branch
      %21 = sbr.rel (0) target = $region5
    $region4: #{channelwise_lstm_forward.1} parent=1 // pred_region
      _
    $region5: #{channelwise_lstm_forward.1} parent=1 // pred_fallthru
      _
    // Predicated region
    $region6: #{channelwise_lstm_forward.1} parent=1 // pred_check
      _
    $region7: #{channelwise_lstm_forward.1} parent=1 // pred_check_branch
      %23 = sbr.rel (0) target = $region9
    $region8: #{channelwise_lstm_forward.1} parent=1 // pred_region
      _
    $region9: #{channelwise_lstm_forward.1} parent=1 // pred_fallthru
      _
    // Predicated region
    $region10: #{channelwise_lstm_forward.1} parent=1 // pred_check
      _
    $region11: #{channelwise_lstm_forward.1} parent=1 // pred_check_branch
      %25 = sbr.rel (0) target = $region13
    $region12: #{channelwise_lstm_forward.1} parent=1 // pred_region
      _
    $region13: #{channelwise_lstm_forward.1} parent=1 // pred_fallthru
      _
    // Predicated region
    $region14: #{channelwise_lstm_forward.1} parent=1 // pred_check
      _
    $region15: #{channelwise_lstm_forward.1} parent=1 // pred_check_branch
      %27 = sbr.rel (0) target = $region17
    $region16: #{channelwise_lstm_forward.1} parent=1 // pred_region
      %29 = vsyncadd [#allocation4], 0
      %s30 = sshll.u32 %s3, 4
      %s31 = int_to_ptr.hbm [resolvable:$true] %s30
      %s32 = sshll.u32 [#allocation3], 4
      %s33 = int_to_ptr.vmem [resolvable:$true] %s32
      %38 = dma.hbm_to_vmem [thread:$0]  %s31, 4096, %s33, [#allocation4], 256, 256, 16
    $region17: #{channelwise_lstm_forward.1} parent=1 // pred_fallthru
      _
    // Predicated region
    $region18: #{channelwise_lstm_forward.1} parent=1 // pred_check
      _
    $region19: #{channelwise_lstm_forward.1} parent=1 // pred_check_branch
      %40 = sbr.rel (0) target = $region21
    $region20: #{channelwise_lstm_forward.1} parent=1 // pred_region
      %42 = vsyncadd [#allocation7], 0
      %s43 = sshll.u32 %s4, 4
      %s44 = int_to_ptr.hbm [resolvable:$true] %s43
      %s45 = sshll.u32 [#allocation6], 4
      %s46 = int_to_ptr.vmem [resolvable:$true] %s45
      %51 = dma.hbm_to_vmem [thread:$0]  %s44, 32768, %s46, [#allocation7], 2048, 2048, 128
    $region21: #{channelwise_lstm_forward.1} parent=1 // pred_fallthru
      _
    // Predicated region
    $region22: #{channelwise_lstm_forward.1} parent=1 // pred_check
      _
    $region23: #{channelwise_lstm_forward.1} parent=1 // pred_check_branch
      %53 = sbr.rel (0) target = $region25
    $region24: #{channelwise_lstm_forward.1} parent=1 // pred_region
      _
    $region25: #{channelwise_lstm_forward.1} parent=1 // pred_fallthru
      _
    // Predicated region
    $region26: #{channelwise_lstm_forward.1} parent=1 // pred_check
      _
    $region27: #{channelwise_lstm_forward.1} parent=1 // pred_check_branch
      %55 = sbr.rel (0) target = $region29
    $region28: #{channelwise_lstm_forward.1} parent=1 // pred_region
      _
    $region29: #{channelwise_lstm_forward.1} parent=1 // pred_fallthru
      _
    // Predicated region
    $region30: #{channelwise_lstm_forward.1} parent=1 // pred_check
      _
    $region31: #{channelwise_lstm_forward.1} parent=1 // pred_check_branch
      %57 = sbr.rel (0) target = $region33
    $region32: #{channelwise_lstm_forward.1} parent=1 // pred_region
      _
    $region33: #{channelwise_lstm_forward.1} parent=1 // pred_fallthru
      _
    // Predicated region
    $region34: #{channelwise_lstm_forward.1} parent=1 // pred_check
      _
    $region35: #{channelwise_lstm_forward.1} parent=1 // pred_check_branch
      %59 = sbr.rel (0) target = $region37
    $region36: #{channelwise_lstm_forward.1} parent=1 // pred_region
      _
    $region37: #{channelwise_lstm_forward.1} parent=1 // pred_fallthru
      _
    // Predicated region
    $region38: #{channelwise_lstm_forward.1} parent=1 // pred_check
      _
    $region39: #{channelwise_lstm_forward.1} parent=1 // pred_check_branch
      %61 = sbr.rel (0) target = $region41
    $region40: #{channelwise_lstm_forward.1} parent=1 // pred_region
      _
    $region41: #{channelwise_lstm_forward.1} parent=1 // pred_fallthru
      _
    // Predicated region
    $region42: #{channelwise_lstm_forward.1} parent=1 // pred_check
      _
    $region43: #{channelwise_lstm_forward.1} parent=1 // pred_check_branch
      %63 = sbr.rel (0) target = $region45
    $region44: #{channelwise_lstm_forward.1} parent=1 // pred_region
      _
    $region45: #{channelwise_lstm_forward.1} parent=1 // pred_fallthru
      _
    // Predicated region
    $region46: #{channelwise_lstm_forward.1} parent=1 // pred_check
      _
    $region47: #{channelwise_lstm_forward.1} parent=1 // pred_check_branch
      %65 = sbr.rel (0) target = $region49
    $region48: #{channelwise_lstm_forward.1} parent=1 // pred_region
      _
    $region49: #{channelwise_lstm_forward.1} parent=1 // pred_fallthru
      _
    // Predicated region
    $region50: #{channelwise_lstm_forward.1} parent=1 // pred_check
      _
    $region51: #{channelwise_lstm_forward.1} parent=1 // pred_check_branch
      %67 = sbr.rel (0) target = $region53
    $region52: #{channelwise_lstm_forward.1} parent=1 // pred_region
      %69 = dma.done [#allocation4], 4096
    $region53: #{channelwise_lstm_forward.1} parent=1 // pred_fallthru
      _
    // Predicated region
    $region54: #{channelwise_lstm_forward.1} parent=1 // pred_check
      _
    $region55: #{channelwise_lstm_forward.1} parent=1 // pred_check_branch
      %71 = sbr.rel (0) target = $region57
    $region56: #{channelwise_lstm_forward.1} parent=1 // pred_region
      %73 = dma.done [#allocation7], 32768
    $region57: #{channelwise_lstm_forward.1} parent=1 // pred_fallthru
      _
    %v75 = vld [vmem:[%s0] sm:$0xf]
    %v76 = vld [vmem:[%s0 + $0x4] sm:$0xf]
    %v77 = vld [vmem:[%s1] sm:$0xff]
    %v78 = vld [vmem:[%s1 + $0x8] sm:$0xff]
    %v79 = vld [vmem:[%s2] sm:$0xff]
    %v81 = vperm.slane %v79, 0
    %v82 = vperm.slane %v79, 1
    %v83 = vperm.slane %v79, 2
    %v84 = vperm.slane %v79, 3
    %v85 = vperm.slane %v79, 4
    %v86 = vperm.slane %v79, 6
    %v87 = vperm.slane %v79, 7
    %v97 = vunpack.c.l.b16 %v75
    %v98 = vunpack.c.l.b16 %v76
    %v99 = vpack.c.b16 %v98, %v97
    %101 = vst [vmem:[#allocation1] ss:$4 sm:$0xff] %v77
    %s103 = scalar_lea.vmem [#allocation1], 32
    %104 = vst [vmem:[%s103] ss:$4 sm:$0xff] %v78
    %v105 = vld.sshfl [vmem:[#allocation1] sm:$0xff pattern:$0x73625140]
    %v106 = vld.sshfl [vmem:[#allocation1 + $0x8] sm:$0xff pattern:$0x73625140]
    %v107 = vld.sshfl [vmem:[#allocation1 + $0x10] sm:$0xff pattern:$0x73625140]
    %v108 = vld.sshfl [vmem:[#allocation1 + $0x18] sm:$0xff pattern:$0x73625140]
    %v109 = vld.sshfl [vmem:[#allocation1 + $0x20] sm:$0xff pattern:$0x73625140]
    %v110 = vld.sshfl [vmem:[#allocation1 + $0x30] sm:$0xff pattern:$0x73625140]
    %v111 = vld.sshfl [vmem:[#allocation1 + $0x38] sm:$0xff pattern:$0x73625140]
    %vm112 = vcmask 31744
    %v114 = vsel %vm112, %v99, 0
    %vm116 = vcmask 1041408
    %v117 = vsel %vm116, %v105, 0
    %v119 = vsel %vm116, %v106, 0
    %v121 = vsel %vm116, %v107, 0
    %v123 = vsel %vm116, %v108, 0
    %v125 = vsel %vm116, %v109, 0
    %v127 = vsel %vm116, %v110, 0
    %v129 = vsel %vm116, %v111, 0
    %131 = vmatpush.bf16.msra.mxu0 0
    %132 = vmatpush.bf16.msra.mxu0 0
    %133 = vmatpush.bf16.msra.mxu0 0
    %134 = vmatpush.bf16.msra.mxu0 0
    %135 = vmatpush.bf16.msra.mxu0 0
    %136 = vmatpush.bf16.msra.mxu0 0
    %137 = vmatpush.bf16.msra.mxu0 0
    %138 = vmatpush.bf16.msra.mxu0 %v117
    %139 = vmatmul.bf16.gmra.mxu0 %v114
    %v140 = vpop.f32.mrf.mxu0
    %v141 = vadd.f32 %v81, %v140
    %v142 = vpop.f32.mrf.mxu0
    %v143 = vadd.f32 %v81, %v142
    %144 = vdwg.mxu0
    %145 = vmatpush.bf16.msra.mxu0 0
    %146 = vmatpush.bf16.msra.mxu0 0
    %147 = vmatpush.bf16.msra.mxu0 0
    %148 = vmatpush.bf16.msra.mxu0 0
    %149 = vmatpush.bf16.msra.mxu0 0
    %150 = vmatpush.bf16.msra.mxu0 0
    %151 = vmatpush.bf16.msra.mxu0 0
    %152 = vmatpush.bf16.msra.mxu0 %v119
    %153 = vmatmul.bf16.gmra.mxu0 %v114
    %v154 = vpop.f32.mrf.mxu0
    %v155 = vadd.f32 %v82, %v154
    %v156 = vpop.f32.mrf.mxu0
    %v157 = vadd.f32 %v82, %v156
    %158 = vdwg.mxu0
    %159 = vmatpush.bf16.msra.mxu0 0
    %160 = vmatpush.bf16.msra.mxu0 0
    %161 = vmatpush.bf16.msra.mxu0 0
    %162 = vmatpush.bf16.msra.mxu0 0
    %163 = vmatpush.bf16.msra.mxu0 0
    %164 = vmatpush.bf16.msra.mxu0 0
    %165 = vmatpush.bf16.msra.mxu0 0
    %166 = vmatpush.bf16.msra.mxu0 %v121
    %167 = vmatmul.bf16.gmra.mxu0 %v114
    %v168 = vpop.f32.mrf.mxu0
    %v169 = vadd.f32 %v83, %v168
    %v170 = vpop.f32.mrf.mxu0
    %v171 = vadd.f32 %v83, %v170
    %172 = vdwg.mxu0
    %173 = vmatpush.bf16.msra.mxu0 0
    %174 = vmatpush.bf16.msra.mxu0 0
    %175 = vmatpush.bf16.msra.mxu0 0
    %176 = vmatpush.bf16.msra.mxu0 0
    %177 = vmatpush.bf16.msra.mxu0 0
    %178 = vmatpush.bf16.msra.mxu0 0
    %179 = vmatpush.bf16.msra.mxu0 0
    %180 = vmatpush.bf16.msra.mxu0 %v123
    %181 = vmatmul.bf16.gmra.mxu0 %v114
    %v182 = vpop.f32.mrf.mxu0
    %v183 = vadd.f32 %v84, %v182
    %v184 = vpop.f32.mrf.mxu0
    %v185 = vadd.f32 %v84, %v184
    %186 = vdwg.mxu0
    %187 = vmatpush.bf16.msra.mxu0 0
    %188 = vmatpush.bf16.msra.mxu0 0
    %189 = vmatpush.bf16.msra.mxu0 0
    %190 = vmatpush.bf16.msra.mxu0 0
    %191 = vmatpush.bf16.msra.mxu0 0
    %192 = vmatpush.bf16.msra.mxu0 0
    %193 = vmatpush.bf16.msra.mxu0 0
    %194 = vmatpush.bf16.msra.mxu0 %v125
    %195 = vmatmul.bf16.gmra.mxu0 %v114
    %v196 = vpop.f32.mrf.mxu0
    %v197 = vpop.f32.mrf.mxu0
    %v198 = vadd.f32 %v85, %v197
    %199 = vdwg.mxu0
    %200 = vmatpush.bf16.msra.mxu0 0
    %201 = vmatpush.bf16.msra.mxu0 0
    %202 = vmatpush.bf16.msra.mxu0 0
    %203 = vmatpush.bf16.msra.mxu0 0
    %204 = vmatpush.bf16.msra.mxu0 0
    %205 = vmatpush.bf16.msra.mxu0 0
    %206 = vmatpush.bf16.msra.mxu0 0
    %207 = vmatpush.bf16.msra.mxu0 %v127
    %208 = vmatmul.bf16.gmra.mxu0 %v114
    %v209 = vpop.f32.mrf.mxu0
    %v210 = vpop.f32.mrf.mxu0
    %v211 = vadd.f32 %v86, %v210
    %212 = vdwg.mxu0
    %213 = vmatpush.bf16.msra.mxu0 0
    %214 = vmatpush.bf16.msra.mxu0 0
    %215 = vmatpush.bf16.msra.mxu0 0
    %216 = vmatpush.bf16.msra.mxu0 0
    %217 = vmatpush.bf16.msra.mxu0 0
    %218 = vmatpush.bf16.msra.mxu0 0
    %219 = vmatpush.bf16.msra.mxu0 0
    %220 = vmatpush.bf16.msra.mxu0 %v129
    %221 = vmatmul.bf16.gmra.mxu0 %v114
    %v222 = vpop.f32.mrf.mxu0
    %v223 = vpop.f32.mrf.mxu0
    %v224 = vadd.f32 %v87, %v223
    %225 = vdwg.mxu0
    %v226 = vld [vmem:[#allocation3] sm:$0xff]
    %v227 = vld [vmem:[#allocation3 + $0x8] sm:$0xff]
    %v228 = vld [vmem:[#allocation3 + $0x10] sm:$0xff]
    %v229 = vld [vmem:[#allocation3 + $0x18] sm:$0xff]
    %v230 = vld [vmem:[#allocation3 + $0x20] sm:$0xff]
    %v231 = vld [vmem:[#allocation3 + $0x28] sm:$0xff]
    %v232 = vld [vmem:[#allocation3 + $0x30] sm:$0xff]
    %v233 = vld [vmem:[#allocation3 + $0x38] sm:$0xff]
    %v234 = vld [vmem:[#allocation3 + $0x40] sm:$0xff]
    %v235 = vld [vmem:[#allocation3 + $0x48] sm:$0xff]
    %v236 = vld [vmem:[#allocation3 + $0x50] sm:$0xff]
    %v237 = vld [vmem:[#allocation3 + $0x58] sm:$0xff]
    %v238 = vld [vmem:[#allocation3 + $0x60] sm:$0xff]
    %v239 = vld [vmem:[#allocation3 + $0x68] sm:$0xff]
    %v240 = vld [vmem:[#allocation3 + $0x70] sm:$0xff]
    %v241 = vld [vmem:[#allocation3 + $0x78] sm:$0xff]
    %v242 = vld [vmem:[#allocation3 + $0x80] sm:$0xff]
    %v243 = vld [vmem:[#allocation3 + $0x88] sm:$0xff]
    %v244 = vld [vmem:[#allocation3 + $0x90] sm:$0xff]
    %v245 = vld [vmem:[#allocation3 + $0x98] sm:$0xff]
    %v246 = vld [vmem:[#allocation3 + $0xa0] sm:$0xff]
    %v247 = vld [vmem:[#allocation3 + $0xa8] sm:$0xff]
    %v248 = vld [vmem:[#allocation3 + $0xb0] sm:$0xff]
    %v249 = vld [vmem:[#allocation3 + $0xb8] sm:$0xff]
    %v250 = vld [vmem:[#allocation3 + $0xc0] sm:$0xff]
    %v251 = vld [vmem:[#allocation3 + $0xc8] sm:$0xff]
    %v252 = vld [vmem:[#allocation3 + $0xd0] sm:$0xff]
    %v253 = vld [vmem:[#allocation3 + $0xd8] sm:$0xff]
    %v254 = vld [vmem:[#allocation3 + $0xe0] sm:$0xff]
    %v255 = vld [vmem:[#allocation3 + $0xe8] sm:$0xff]
    %v256 = vld [vmem:[#allocation3 + $0xf0] sm:$0xff]
    %v257 = vld [vmem:[#allocation3 + $0xf8] sm:$0xff]
    %v290 = vunpack.c.l.b16 %v226
    %v291 = vunpack.c.h.b16 %v226
    %v292 = vunpack.c.l.b16 %v227
    %v293 = vunpack.c.h.b16 %v227
    %v294 = vunpack.c.l.b16 %v228
    %v295 = vunpack.c.h.b16 %v228
    %v296 = vunpack.c.l.b16 %v229
    %v297 = vunpack.c.h.b16 %v229
    %v298 = vunpack.c.l.b16 %v230
    %v299 = vunpack.c.h.b16 %v230
    %v300 = vunpack.c.l.b16 %v231
    %v301 = vunpack.c.h.b16 %v231
    %v302 = vunpack.c.l.b16 %v232
    %v303 = vunpack.c.h.b16 %v232
    %v304 = vunpack.c.l.b16 %v233
    %v305 = vunpack.c.h.b16 %v233
    %v306 = vunpack.c.l.b16 %v234
    %v307 = vunpack.c.h.b16 %v234
    %v308 = vunpack.c.l.b16 %v235
    %v309 = vunpack.c.h.b16 %v235
    %v310 = vunpack.c.l.b16 %v236
    %v311 = vunpack.c.h.b16 %v236
    %v312 = vunpack.c.l.b16 %v237
    %v313 = vunpack.c.h.b16 %v237
    %v314 = vunpack.c.l.b16 %v238
    %v315 = vunpack.c.h.b16 %v238
    %v316 = vunpack.c.l.b16 %v239
    %v317 = vunpack.c.h.b16 %v239
    %v318 = vunpack.c.l.b16 %v240
    %v319 = vunpack.c.h.b16 %v240
    %v320 = vunpack.c.l.b16 %v241
    %v321 = vunpack.c.h.b16 %v241
    %v322 = vunpack.c.l.b16 %v242
    %v323 = vunpack.c.h.b16 %v242
    %v324 = vunpack.c.l.b16 %v243
    %v325 = vunpack.c.h.b16 %v243
    %v326 = vunpack.c.l.b16 %v244
    %v327 = vunpack.c.h.b16 %v244
    %v328 = vunpack.c.l.b16 %v245
    %v329 = vunpack.c.h.b16 %v245
    %v330 = vunpack.c.l.b16 %v246
    %v331 = vunpack.c.h.b16 %v246
    %v332 = vunpack.c.l.b16 %v247
    %v333 = vunpack.c.h.b16 %v247
    %v334 = vunpack.c.l.b16 %v248
    %v335 = vunpack.c.h.b16 %v248
    %v336 = vunpack.c.l.b16 %v249
    %v337 = vunpack.c.h.b16 %v249
    %v338 = vunpack.c.l.b16 %v250
    %v339 = vunpack.c.h.b16 %v250
    %v340 = vunpack.c.l.b16 %v251
    %v341 = vunpack.c.h.b16 %v251
    %v342 = vunpack.c.l.b16 %v252
    %v343 = vunpack.c.h.b16 %v252
    %v344 = vunpack.c.l.b16 %v253
    %v345 = vunpack.c.h.b16 %v253
    %v346 = vunpack.c.l.b16 %v254
    %v347 = vunpack.c.h.b16 %v254
    %v348 = vunpack.c.l.b16 %v255
    %v349 = vunpack.c.h.b16 %v255
    %v350 = vunpack.c.l.b16 %v256
    %v351 = vunpack.c.h.b16 %v256
    %v352 = vunpack.c.l.b16 %v257
    %v353 = vunpack.c.h.b16 %v257
    %v354 = vpack.c.b16 %v294, %v290
    %v355 = vpack.c.b16 %v295, %v291
    %v356 = vpack.c.b16 %v296, %v292
    %v357 = vpack.c.b16 %v297, %v293
    %v358 = vpack.c.b16 %v302, %v298
    %v359 = vpack.c.b16 %v303, %v299
    %v360 = vpack.c.b16 %v304, %v300
    %v361 = vpack.c.b16 %v305, %v301
    %v362 = vpack.c.b16 %v310, %v306
    %v363 = vpack.c.b16 %v311, %v307
    %v364 = vpack.c.b16 %v312, %v308
    %v365 = vpack.c.b16 %v313, %v309
    %v366 = vpack.c.b16 %v318, %v314
    %v367 = vpack.c.b16 %v319, %v315
    %v368 = vpack.c.b16 %v320, %v316
    %v369 = vpack.c.b16 %v321, %v317
    %v370 = vpack.c.b16 %v326, %v322
    %v371 = vpack.c.b16 %v327, %v323
    %v372 = vpack.c.b16 %v328, %v324
    %v373 = vpack.c.b16 %v329, %v325
    %v374 = vpack.c.b16 %v334, %v330
    %v375 = vpack.c.b16 %v335, %v331
    %v376 = vpack.c.b16 %v336, %v332
    %v377 = vpack.c.b16 %v337, %v333
    %v378 = vpack.c.b16 %v342, %v338
    %v379 = vpack.c.b16 %v343, %v339
    %v380 = vpack.c.b16 %v344, %v340
    %v381 = vpack.c.b16 %v345, %v341
    %v382 = vpack.c.b16 %v350, %v346
    %v383 = vpack.c.b16 %v351, %v347
    %v384 = vpack.c.b16 %v352, %v348
    %v385 = vpack.c.b16 %v353, %v349
    %418 = vmatpush.bf16.msra.mxu0 %v382
    %419 = vmatpush.bf16.msra.mxu0 %v378
    %420 = vmatpush.bf16.msra.mxu0 %v374
    %421 = vmatpush.bf16.msra.mxu0 %v370
    %422 = vmatpush.bf16.msra.mxu0 %v366
    %423 = vmatpush.bf16.msra.mxu0 %v362
    %424 = vmatpush.bf16.msra.mxu0 %v358
    %425 = vmatpush.bf16.msra.mxu0 %v354
    %426 = vmatmul.bf16.gmra.mxu0 0
    %v427 = vpop.f32.mrf.mxu0
    %v428 = vadd.f32 0.0, %v427
    %v429 = vpop.f32.mrf.mxu0
    %430 = vdwg.mxu0
    %431 = vmatpush.bf16.msra.mxu0 %v383
    %432 = vmatpush.bf16.msra.mxu0 %v379
    %433 = vmatpush.bf16.msra.mxu0 %v375
    %434 = vmatpush.bf16.msra.mxu0 %v371
    %435 = vmatpush.bf16.msra.mxu0 %v367
    %436 = vmatpush.bf16.msra.mxu0 %v363
    %437 = vmatpush.bf16.msra.mxu0 %v359
    %438 = vmatpush.bf16.msra.mxu0 %v355
    %439 = vmatmul.bf16.gmra.mxu0 0
    %v440 = vpop.f32.mrf.mxu0
    %v441 = vadd.f32 0.0, %v440
    %v442 = vpop.f32.mrf.mxu0
    %443 = vdwg.mxu0
    %444 = vmatpush.bf16.msra.mxu0 %v384
    %445 = vmatpush.bf16.msra.mxu0 %v380
    %446 = vmatpush.bf16.msra.mxu0 %v376
    %447 = vmatpush.bf16.msra.mxu0 %v372
    %448 = vmatpush.bf16.msra.mxu0 %v368
    %449 = vmatpush.bf16.msra.mxu0 %v364
    %450 = vmatpush.bf16.msra.mxu0 %v360
    %451 = vmatpush.bf16.msra.mxu0 %v356
    %452 = vmatmul.bf16.gmra.mxu0 0
    %v453 = vpop.f32.mrf.mxu0
    %v454 = vadd.f32 0.0, %v453
    %v455 = vpop.f32.mrf.mxu0
    %456 = vdwg.mxu0
    %457 = vmatpush.bf16.msra.mxu0 %v385
    %458 = vmatpush.bf16.msra.mxu0 %v381
    %459 = vmatpush.bf16.msra.mxu0 %v377
    %460 = vmatpush.bf16.msra.mxu0 %v373
    %461 = vmatpush.bf16.msra.mxu0 %v369
    %462 = vmatpush.bf16.msra.mxu0 %v365
    %463 = vmatpush.bf16.msra.mxu0 %v361
    %464 = vmatpush.bf16.msra.mxu0 %v357
    %465 = vmatmul.bf16.gmra.mxu0 0
    %v466 = vpop.f32.mrf.mxu0
    %v467 = vadd.f32 0.0, %v466
    %v468 = vpop.f32.mrf.mxu0
    %469 = vdwg.mxu0
    %v470 = vadd.f32 %v141, %v428
    %v471 = vadd.f32 %v155, %v441
    %v472 = vadd.f32 %v169, %v454
    %v473 = vadd.f32 %v183, %v467
    %v474 = vxor.u32 %v470, 2147483648
    %v475 = vxor.u32 %v471, 2147483648
    %v476 = vmul.f32 %v474, 1.442695
    %v477 = vpow.pop %v476
    %v478 = vmul.f32 %v475, 1.442695
    %v479 = vpow.pop %v478
    %v480 = vadd.f32 %v477, 1.0
    %v481 = vadd.f32 %v479, 1.0
    %v482 = vrcp.pop %v480
    %v483 = vmul.f32 %v480, %v482
    %v484 = vsub.f32 1.0, %v483
    %v485 = vmul.f32 %v482, %v484
    %v486 = vadd.f32 %v482, %v485
    %vm487 = vweird.f32 %v480
    %vm488 = vweird.f32 %v482
    %vm489 = vmor %vm487, %vm488
    %v490 = vsel %vm489, %v482, %v486
    %v491 = vand.u32 2147483647, %v480
    %vm492 = vcmp.eq.f32.partialorder %v491, 8.507059e+37
    %v493 = vand.u32 %v480, 2147483648
    %v494 = vor.u32 1.1754944e-38, %v493
    %v495 = vsel %vm492, %v494, %v490
    %v496 = vmul.f32 1.0, %v495
    %v497 = vrcp.pop %v481
    %v498 = vmul.f32 %v481, %v497
    %v499 = vsub.f32 1.0, %v498
    %v500 = vmul.f32 %v497, %v499
    %v501 = vadd.f32 %v497, %v500
    %vm502 = vweird.f32 %v481
    %vm503 = vweird.f32 %v497
    %vm504 = vmor %vm502, %vm503
    %v505 = vsel %vm504, %v497, %v501
    %v506 = vand.u32 2147483647, %v481
    %vm507 = vcmp.eq.f32.partialorder %v506, 8.507059e+37
    %v508 = vand.u32 %v481, 2147483648
    %v509 = vor.u32 1.1754944e-38, %v508
    %v510 = vsel %vm507, %v509, %v505
    %v511 = vmul.f32 1.0, %v510
    %v512 = vtanh.pop %v472
    %v513 = vxor.u32 %v473, 2147483648
    %v514 = vmul.f32 %v513, 1.442695
    %v515 = vpow.pop %v514
    %v516 = vadd.f32 %v515, 1.0
    %v517 = vrcp.pop %v516
    %v518 = vmul.f32 %v516, %v517
    %v519 = vsub.f32 1.0, %v518
    %v520 = vmul.f32 %v517, %v519
    %v521 = vadd.f32 %v517, %v520
    %vm522 = vweird.f32 %v516
    %vm523 = vweird.f32 %v517
    %vm524 = vmor %vm522, %vm523
    %v525 = vsel %vm524, %v517, %v521
    %v526 = vand.u32 2147483647, %v516
    %vm527 = vcmp.eq.f32.partialorder %v526, 8.507059e+37
    %v528 = vand.u32 %v516, 2147483648
    %v529 = vor.u32 1.1754944e-38, %v528
    %v530 = vsel %vm527, %v529, %v525
    %v531 = vmul.f32 1.0, %v530
    %v532 = vmul.f32 %v511, 0.0
    %v533 = vmul.f32 %v496, %v512
    %v534 = vadd.f32 %v532, %v533
    %v535 = vtanh.pop %v534
    %v536 = vmul.f32 %v531, %v535
    %v537 = vpack.c.bf16 %v536, %v536
    %538 = vmatpush.bf16.msra.mxu0 %v382
    %539 = vmatpush.bf16.msra.mxu0 %v378
    %540 = vmatpush.bf16.msra.mxu0 %v374
    %541 = vmatpush.bf16.msra.mxu0 %v370
    %542 = vmatpush.bf16.msra.mxu0 %v366
    %543 = vmatpush.bf16.msra.mxu0 %v362
    %544 = vmatpush.bf16.msra.mxu0 %v358
    %545 = vmatpush.bf16.msra.mxu0 %v354
    %546 = vmatmul.bf16.gmra.mxu0 %v537
    %v547 = vpop.f32.mrf.mxu0
    %v548 = vadd.f32 0.0, %v547
    %v549 = vpop.f32.mrf.mxu0
    %550 = vdwg.mxu0
    %551 = vmatpush.bf16.msra.mxu0 %v383
    %552 = vmatpush.bf16.msra.mxu0 %v379
    %553 = vmatpush.bf16.msra.mxu0 %v375
    %554 = vmatpush.bf16.msra.mxu0 %v371
    %555 = vmatpush.bf16.msra.mxu0 %v367
    %556 = vmatpush.bf16.msra.mxu0 %v363
    %557 = vmatpush.bf16.msra.mxu0 %v359
    %558 = vmatpush.bf16.msra.mxu0 %v355
    %559 = vmatmul.bf16.gmra.mxu0 %v537
    %v560 = vpop.f32.mrf.mxu0
    %v561 = vadd.f32 0.0, %v560
    %v562 = vpop.f32.mrf.mxu0
    %563 = vdwg.mxu0
    %564 = vmatpush.bf16.msra.mxu0 %v384
    %565 = vmatpush.bf16.msra.mxu0 %v380
    %566 = vmatpush.bf16.msra.mxu0 %v376
    %567 = vmatpush.bf16.msra.mxu0 %v372
    %568 = vmatpush.bf16.msra.mxu0 %v368
    %569 = vmatpush.bf16.msra.mxu0 %v364
    %570 = vmatpush.bf16.msra.mxu0 %v360
    %571 = vmatpush.bf16.msra.mxu0 %v356
    %572 = vmatmul.bf16.gmra.mxu0 %v537
    %v573 = vpop.f32.mrf.mxu0
    %v574 = vadd.f32 0.0, %v573
    %v575 = vpop.f32.mrf.mxu0
    %576 = vdwg.mxu0
    %577 = vmatpush.bf16.msra.mxu0 %v385
    %578 = vmatpush.bf16.msra.mxu0 %v381
    %579 = vmatpush.bf16.msra.mxu0 %v377
    %580 = vmatpush.bf16.msra.mxu0 %v373
    %581 = vmatpush.bf16.msra.mxu0 %v369
    %582 = vmatpush.bf16.msra.mxu0 %v365
    %583 = vmatpush.bf16.msra.mxu0 %v361
    %584 = vmatpush.bf16.msra.mxu0 %v357
    %585 = vmatmul.bf16.gmra.mxu0 %v537
    %v586 = vpop.f32.mrf.mxu0
    %v587 = vadd.f32 0.0, %v586
    %v588 = vpop.f32.mrf.mxu0
    %589 = vdwg.mxu0
    %v594 = vrot.slane %v548, 6
    %v595 = vrot.slane %v561, 6
    %v596 = vrot.slane %v574, 6
    %v597 = vrot.slane %v587, 6
    %v602 = vadd.f32 %v141, %v594
    %v603 = vadd.f32 %v155, %v595
    %v604 = vadd.f32 %v169, %v596
    %v605 = vadd.f32 %v183, %v597
    %v606 = vxor.u32 %v602, 2147483648
    %v607 = vxor.u32 %v603, 2147483648
    %v608 = vmul.f32 %v606, 1.442695
    %v609 = vpow.pop %v608
    %v610 = vmul.f32 %v607, 1.442695
    %v611 = vpow.pop %v610
    %v612 = vadd.f32 %v609, 1.0
    %v613 = vadd.f32 %v611, 1.0
    %v614 = vrcp.pop %v612
    %v615 = vmul.f32 %v612, %v614
    %v616 = vsub.f32 1.0, %v615
    %v617 = vmul.f32 %v614, %v616
    %v618 = vadd.f32 %v614, %v617
    %vm619 = vweird.f32 %v612
    %vm620 = vweird.f32 %v614
    %vm621 = vmor %vm619, %vm620
    %v622 = vsel %vm621, %v614, %v618
    %v623 = vand.u32 2147483647, %v612
    %vm624 = vcmp.eq.f32.partialorder %v623, 8.507059e+37
    %v625 = vand.u32 %v612, 2147483648
    %v626 = vor.u32 1.1754944e-38, %v625
    %v627 = vsel %vm624, %v626, %v622
    %v628 = vmul.f32 1.0, %v627
    %v629 = vrcp.pop %v613
    %v630 = vmul.f32 %v613, %v629
    %v631 = vsub.f32 1.0, %v630
    %v632 = vmul.f32 %v629, %v631
    %v633 = vadd.f32 %v629, %v632
    %vm634 = vweird.f32 %v613
    %vm635 = vweird.f32 %v629
    %vm636 = vmor %vm634, %vm635
    %v637 = vsel %vm636, %v629, %v633
    %v638 = vand.u32 2147483647, %v613
    %vm639 = vcmp.eq.f32.partialorder %v638, 8.507059e+37
    %v640 = vand.u32 %v613, 2147483648
    %v641 = vor.u32 1.1754944e-38, %v640
    %v642 = vsel %vm639, %v641, %v637
    %v643 = vmul.f32 1.0, %v642
    %v644 = vtanh.pop %v604
    %v645 = vxor.u32 %v605, 2147483648
    %v646 = vmul.f32 %v645, 1.442695
    %v647 = vpow.pop %v646
    %v648 = vadd.f32 %v647, 1.0
    %v649 = vrcp.pop %v648
    %v650 = vmul.f32 %v648, %v649
    %v651 = vsub.f32 1.0, %v650
    %v652 = vmul.f32 %v649, %v651
    %v653 = vadd.f32 %v649, %v652
    %vm654 = vweird.f32 %v648
    %vm655 = vweird.f32 %v649
    %vm656 = vmor %vm654, %vm655
    %v657 = vsel %vm656, %v649, %v653
    %v658 = vand.u32 2147483647, %v648
    %vm659 = vcmp.eq.f32.partialorder %v658, 8.507059e+37
    %v660 = vand.u32 %v648, 2147483648
    %v661 = vor.u32 1.1754944e-38, %v660
    %v662 = vsel %vm659, %v661, %v657
    %v663 = vmul.f32 1.0, %v662
    %v665 = vrot.slane %v534, 6
    %v667 = vmul.f32 %v643, %v665
    %v668 = vmul.f32 %v628, %v644
    %v669 = vadd.f32 %v667, %v668
    %v670 = vtanh.pop %v669
    %v671 = vmul.f32 %v663, %v670
    %v672 = vpack.c.bf16 %v671, %v671
    %v674 = vrot.slane %v672, 1
    %676 = vmatpush.bf16.msra.mxu0 %v382
    %677 = vmatpush.bf16.msra.mxu0 %v378
    %678 = vmatpush.bf16.msra.mxu0 %v374
    %679 = vmatpush.bf16.msra.mxu0 %v370
    %680 = vmatpush.bf16.msra.mxu0 %v366
    %681 = vmatpush.bf16.msra.mxu0 %v362
    %682 = vmatpush.bf16.msra.mxu0 %v358
    %683 = vmatpush.bf16.msra.mxu0 %v354
    %684 = vmatmul.bf16.gmra.mxu0 %v674
    %v685 = vpop.f32.mrf.mxu0
    %v686 = vadd.f32 0.0, %v685
    %v687 = vpop.f32.mrf.mxu0
    %688 = vdwg.mxu0
    %689 = vmatpush.bf16.msra.mxu0 %v383
    %690 = vmatpush.bf16.msra.mxu0 %v379
    %691 = vmatpush.bf16.msra.mxu0 %v375
    %692 = vmatpush.bf16.msra.mxu0 %v371
    %693 = vmatpush.bf16.msra.mxu0 %v367
    %694 = vmatpush.bf16.msra.mxu0 %v363
    %695 = vmatpush.bf16.msra.mxu0 %v359
    %696 = vmatpush.bf16.msra.mxu0 %v355
    %697 = vmatmul.bf16.gmra.mxu0 %v674
    %v698 = vpop.f32.mrf.mxu0
    %v699 = vadd.f32 0.0, %v698
    %v700 = vpop.f32.mrf.mxu0
    %701 = vdwg.mxu0
    %702 = vmatpush.bf16.msra.mxu0 %v384
    %703 = vmatpush.bf16.msra.mxu0 %v380
    %704 = vmatpush.bf16.msra.mxu0 %v376
    %705 = vmatpush.bf16.msra.mxu0 %v372
    %706 = vmatpush.bf16.msra.mxu0 %v368
    %707 = vmatpush.bf16.msra.mxu0 %v364
    %708 = vmatpush.bf16.msra.mxu0 %v360
    %709 = vmatpush.bf16.msra.mxu0 %v356
    %710 = vmatmul.bf16.gmra.mxu0 %v674
    %v711 = vpop.f32.mrf.mxu0
    %v712 = vadd.f32 0.0, %v711
    %v713 = vpop.f32.mrf.mxu0
    %714 = vdwg.mxu0
    %715 = vmatpush.bf16.msra.mxu0 %v385
    %716 = vmatpush.bf16.msra.mxu0 %v381
    %717 = vmatpush.bf16.msra.mxu0 %v377
    %718 = vmatpush.bf16.msra.mxu0 %v373
    %719 = vmatpush.bf16.msra.mxu0 %v369
    %720 = vmatpush.bf16.msra.mxu0 %v365
    %721 = vmatpush.bf16.msra.mxu0 %v361
    %722 = vmatpush.bf16.msra.mxu0 %v357
    %723 = vmatmul.bf16.gmra.mxu0 %v674
    %v724 = vpop.f32.mrf.mxu0
    %v725 = vadd.f32 0.0, %v724
    %v726 = vpop.f32.mrf.mxu0
    %727 = vdwg.mxu0
    %v732 = vrot.slane %v686, 4
    %v733 = vrot.slane %v699, 4
    %v734 = vrot.slane %v712, 4
    %v735 = vrot.slane %v725, 4
    %v740 = vadd.f32 %v141, %v732
    %v741 = vadd.f32 %v155, %v733
    %v742 = vadd.f32 %v169, %v734
    %v743 = vadd.f32 %v183, %v735
    %v744 = vxor.u32 %v740, 2147483648
    %v745 = vxor.u32 %v741, 2147483648
    %v746 = vmul.f32 %v744, 1.442695
    %v747 = vpow.pop %v746
    %v748 = vmul.f32 %v745, 1.442695
    %v749 = vpow.pop %v748
    %v750 = vadd.f32 %v747, 1.0
    %v751 = vadd.f32 %v749, 1.0
    %v752 = vrcp.pop %v750
    %v753 = vmul.f32 %v750, %v752
    %v754 = vsub.f32 1.0, %v753
    %v755 = vmul.f32 %v752, %v754
    %v756 = vadd.f32 %v752, %v755
    %vm757 = vweird.f32 %v750
    %vm758 = vweird.f32 %v752
    %vm759 = vmor %vm757, %vm758
    %v760 = vsel %vm759, %v752, %v756
    %v761 = vand.u32 2147483647, %v750
    %vm762 = vcmp.eq.f32.partialorder %v761, 8.507059e+37
    %v763 = vand.u32 %v750, 2147483648
    %v764 = vor.u32 1.1754944e-38, %v763
    %v765 = vsel %vm762, %v764, %v760
    %v766 = vmul.f32 1.0, %v765
    %v767 = vrcp.pop %v751
    %v768 = vmul.f32 %v751, %v767
    %v769 = vsub.f32 1.0, %v768
    %v770 = vmul.f32 %v767, %v769
    %v771 = vadd.f32 %v767, %v770
    %vm772 = vweird.f32 %v751
    %vm773 = vweird.f32 %v767
    %vm774 = vmor %vm772, %vm773
    %v775 = vsel %vm774, %v767, %v771
    %v776 = vand.u32 2147483647, %v751
    %vm777 = vcmp.eq.f32.partialorder %v776, 8.507059e+37
    %v778 = vand.u32 %v751, 2147483648
    %v779 = vor.u32 1.1754944e-38, %v778
    %v780 = vsel %vm777, %v779, %v775
    %v781 = vmul.f32 1.0, %v780
    %v782 = vtanh.pop %v742
    %v783 = vxor.u32 %v743, 2147483648
    %v784 = vmul.f32 %v783, 1.442695
    %v785 = vpow.pop %v784
    %v786 = vadd.f32 %v785, 1.0
    %v787 = vrcp.pop %v786
    %v788 = vmul.f32 %v786, %v787
    %v789 = vsub.f32 1.0, %v788
    %v790 = vmul.f32 %v787, %v789
    %v791 = vadd.f32 %v787, %v790
    %vm792 = vweird.f32 %v786
    %vm793 = vweird.f32 %v787
    %vm794 = vmor %vm792, %vm793
    %v795 = vsel %vm794, %v787, %v791
    %v796 = vand.u32 2147483647, %v786
    %vm797 = vcmp.eq.f32.partialorder %v796, 8.507059e+37
    %v798 = vand.u32 %v786, 2147483648
    %v799 = vor.u32 1.1754944e-38, %v798
    %v800 = vsel %vm797, %v799, %v795
    %v801 = vmul.f32 1.0, %v800
    %v803 = vrot.slane %v669, 6
    %v805 = vmul.f32 %v781, %v803
    %v806 = vmul.f32 %v766, %v782
    %v807 = vadd.f32 %v805, %v806
    %v808 = vtanh.pop %v807
    %v809 = vmul.f32 %v801, %v808
    %v810 = vpack.c.bf16 %v809, %v809
    %v812 = vrot.slane %v810, 2
    %814 = vmatpush.bf16.msra.mxu0 %v382
    %815 = vmatpush.bf16.msra.mxu0 %v378
    %816 = vmatpush.bf16.msra.mxu0 %v374
    %817 = vmatpush.bf16.msra.mxu0 %v370
    %818 = vmatpush.bf16.msra.mxu0 %v366
    %819 = vmatpush.bf16.msra.mxu0 %v362
    %820 = vmatpush.bf16.msra.mxu0 %v358
    %821 = vmatpush.bf16.msra.mxu0 %v354
    %822 = vmatmul.bf16.gmra.mxu0 %v812
    %v823 = vpop.f32.mrf.mxu0
    %v824 = vadd.f32 0.0, %v823
    %v825 = vpop.f32.mrf.mxu0
    %826 = vdwg.mxu0
    %827 = vmatpush.bf16.msra.mxu0 %v383
    %828 = vmatpush.bf16.msra.mxu0 %v379
    %829 = vmatpush.bf16.msra.mxu0 %v375
    %830 = vmatpush.bf16.msra.mxu0 %v371
    %831 = vmatpush.bf16.msra.mxu0 %v367
    %832 = vmatpush.bf16.msra.mxu0 %v363
    %833 = vmatpush.bf16.msra.mxu0 %v359
    %834 = vmatpush.bf16.msra.mxu0 %v355
    %835 = vmatmul.bf16.gmra.mxu0 %v812
    %v836 = vpop.f32.mrf.mxu0
    %v837 = vadd.f32 0.0, %v836
    %v838 = vpop.f32.mrf.mxu0
    %839 = vdwg.mxu0
    %840 = vmatpush.bf16.msra.mxu0 %v384
    %841 = vmatpush.bf16.msra.mxu0 %v380
    %842 = vmatpush.bf16.msra.mxu0 %v376
    %843 = vmatpush.bf16.msra.mxu0 %v372
    %844 = vmatpush.bf16.msra.mxu0 %v368
    %845 = vmatpush.bf16.msra.mxu0 %v364
    %846 = vmatpush.bf16.msra.mxu0 %v360
    %847 = vmatpush.bf16.msra.mxu0 %v356
    %848 = vmatmul.bf16.gmra.mxu0 %v812
    %v849 = vpop.f32.mrf.mxu0
    %v850 = vadd.f32 0.0, %v849
    %v851 = vpop.f32.mrf.mxu0
    %852 = vdwg.mxu0
    %853 = vmatpush.bf16.msra.mxu0 %v385
    %854 = vmatpush.bf16.msra.mxu0 %v381
    %855 = vmatpush.bf16.msra.mxu0 %v377
    %856 = vmatpush.bf16.msra.mxu0 %v373
    %857 = vmatpush.bf16.msra.mxu0 %v369
    %858 = vmatpush.bf16.msra.mxu0 %v365
    %859 = vmatpush.bf16.msra.mxu0 %v361
    %860 = vmatpush.bf16.msra.mxu0 %v357
    %861 = vmatmul.bf16.gmra.mxu0 %v812
    %v862 = vpop.f32.mrf.mxu0
    %v863 = vadd.f32 0.0, %v862
    %v864 = vpop.f32.mrf.mxu0
    %865 = vdwg.mxu0
    %v870 = vrot.slane %v824, 2
    %v871 = vrot.slane %v837, 2
    %v872 = vrot.slane %v850, 2
    %v873 = vrot.slane %v863, 2
    %v878 = vadd.f32 %v141, %v870
    %v879 = vadd.f32 %v155, %v871
    %v880 = vadd.f32 %v169, %v872
    %v881 = vadd.f32 %v183, %v873
    %v882 = vxor.u32 %v878, 2147483648
    %v883 = vxor.u32 %v879, 2147483648
    %v884 = vmul.f32 %v882, 1.442695
    %v885 = vpow.pop %v884
    %v886 = vmul.f32 %v883, 1.442695
    %v887 = vpow.pop %v886
    %v888 = vadd.f32 %v885, 1.0
    %v889 = vadd.f32 %v887, 1.0
    %v890 = vrcp.pop %v888
    %v891 = vmul.f32 %v888, %v890
    %v892 = vsub.f32 1.0, %v891
    %v893 = vmul.f32 %v890, %v892
    %v894 = vadd.f32 %v890, %v893
    %vm895 = vweird.f32 %v888
    %vm896 = vweird.f32 %v890
    %vm897 = vmor %vm895, %vm896
    %v898 = vsel %vm897, %v890, %v894
    %v899 = vand.u32 2147483647, %v888
    %vm900 = vcmp.eq.f32.partialorder %v899, 8.507059e+37
    %v901 = vand.u32 %v888, 2147483648
    %v902 = vor.u32 1.1754944e-38, %v901
    %v903 = vsel %vm900, %v902, %v898
    %v904 = vmul.f32 1.0, %v903
    %v905 = vrcp.pop %v889
    %v906 = vmul.f32 %v889, %v905
    %v907 = vsub.f32 1.0, %v906
    %v908 = vmul.f32 %v905, %v907
    %v909 = vadd.f32 %v905, %v908
    %vm910 = vweird.f32 %v889
    %vm911 = vweird.f32 %v905
    %vm912 = vmor %vm910, %vm911
    %v913 = vsel %vm912, %v905, %v909
    %v914 = vand.u32 2147483647, %v889
    %vm915 = vcmp.eq.f32.partialorder %v914, 8.507059e+37
    %v916 = vand.u32 %v889, 2147483648
    %v917 = vor.u32 1.1754944e-38, %v916
    %v918 = vsel %vm915, %v917, %v913
    %v919 = vmul.f32 1.0, %v918
    %v920 = vtanh.pop %v880
    %v921 = vxor.u32 %v881, 2147483648
    %v922 = vmul.f32 %v921, 1.442695
    %v923 = vpow.pop %v922
    %v924 = vadd.f32 %v923, 1.0
    %v925 = vrcp.pop %v924
    %v926 = vmul.f32 %v924, %v925
    %v927 = vsub.f32 1.0, %v926
    %v928 = vmul.f32 %v925, %v927
    %v929 = vadd.f32 %v925, %v928
    %vm930 = vweird.f32 %v924
    %vm931 = vweird.f32 %v925
    %vm932 = vmor %vm930, %vm931
    %v933 = vsel %vm932, %v925, %v929
    %v934 = vand.u32 2147483647, %v924
    %vm935 = vcmp.eq.f32.partialorder %v934, 8.507059e+37
    %v936 = vand.u32 %v924, 2147483648
    %v937 = vor.u32 1.1754944e-38, %v936
    %v938 = vsel %vm935, %v937, %v933
    %v939 = vmul.f32 1.0, %v938
    %v941 = vrot.slane %v807, 6
    %v943 = vmul.f32 %v919, %v941
    %v944 = vmul.f32 %v904, %v920
    %v945 = vadd.f32 %v943, %v944
    %v946 = vtanh.pop %v945
    %v947 = vmul.f32 %v939, %v946
    %v948 = vpack.c.bf16 %v947, %v947
    %v950 = vrot.slane %v948, 3
    %952 = vmatpush.bf16.msra.mxu0 %v382
    %953 = vmatpush.bf16.msra.mxu0 %v378
    %954 = vmatpush.bf16.msra.mxu0 %v374
    %955 = vmatpush.bf16.msra.mxu0 %v370
    %956 = vmatpush.bf16.msra.mxu0 %v366
    %957 = vmatpush.bf16.msra.mxu0 %v362
    %958 = vmatpush.bf16.msra.mxu0 %v358
    %959 = vmatpush.bf16.msra.mxu0 %v354
    %960 = vmatmul.bf16.gmra.mxu0 %v950
    %v961 = vpop.f32.mrf.mxu0
    %v962 = vadd.f32 0.0, %v961
    %v963 = vpop.f32.mrf.mxu0
    %964 = vdwg.mxu0
    %965 = vmatpush.bf16.msra.mxu0 %v383
    %966 = vmatpush.bf16.msra.mxu0 %v379
    %967 = vmatpush.bf16.msra.mxu0 %v375
    %968 = vmatpush.bf16.msra.mxu0 %v371
    %969 = vmatpush.bf16.msra.mxu0 %v367
    %970 = vmatpush.bf16.msra.mxu0 %v363
    %971 = vmatpush.bf16.msra.mxu0 %v359
    %972 = vmatpush.bf16.msra.mxu0 %v355
    %973 = vmatmul.bf16.gmra.mxu0 %v950
    %v974 = vpop.f32.mrf.mxu0
    %v975 = vadd.f32 0.0, %v974
    %v976 = vpop.f32.mrf.mxu0
    %977 = vdwg.mxu0
    %978 = vmatpush.bf16.msra.mxu0 %v384
    %979 = vmatpush.bf16.msra.mxu0 %v380
    %980 = vmatpush.bf16.msra.mxu0 %v376
    %981 = vmatpush.bf16.msra.mxu0 %v372
    %982 = vmatpush.bf16.msra.mxu0 %v368
    %983 = vmatpush.bf16.msra.mxu0 %v364
    %984 = vmatpush.bf16.msra.mxu0 %v360
    %985 = vmatpush.bf16.msra.mxu0 %v356
    %986 = vmatmul.bf16.gmra.mxu0 %v950
    %v987 = vpop.f32.mrf.mxu0
    %v988 = vadd.f32 0.0, %v987
    %v989 = vpop.f32.mrf.mxu0
    %990 = vdwg.mxu0
    %991 = vmatpush.bf16.msra.mxu0 %v385
    %992 = vmatpush.bf16.msra.mxu0 %v381
    %993 = vmatpush.bf16.msra.mxu0 %v377
    %994 = vmatpush.bf16.msra.mxu0 %v373
    %995 = vmatpush.bf16.msra.mxu0 %v369
    %996 = vmatpush.bf16.msra.mxu0 %v365
    %997 = vmatpush.bf16.msra.mxu0 %v361
    %998 = vmatpush.bf16.msra.mxu0 %v357
    %999 = vmatmul.bf16.gmra.mxu0 %v950
    %v1000 = vpop.f32.mrf.mxu0
    %v1001 = vadd.f32 0.0, %v1000
    %v1002 = vpop.f32.mrf.mxu0
    %1003 = vdwg.mxu0
    %v1004 = vadd.f32 %v143, %v962
    %v1005 = vadd.f32 %v157, %v975
    %v1006 = vadd.f32 %v171, %v988
    %v1007 = vadd.f32 %v185, %v1001
    %v1008 = vxor.u32 %v1004, 2147483648
    %v1009 = vxor.u32 %v1005, 2147483648
    %v1010 = vmul.f32 %v1008, 1.442695
    %v1011 = vpow.pop %v1010
    %v1012 = vmul.f32 %v1009, 1.442695
    %v1013 = vpow.pop %v1012
    %v1014 = vadd.f32 %v1011, 1.0
    %v1015 = vadd.f32 %v1013, 1.0
    %v1016 = vrcp.pop %v1014
    %v1017 = vmul.f32 %v1014, %v1016
    %v1018 = vsub.f32 1.0, %v1017
    %v1019 = vmul.f32 %v1016, %v1018
    %v1020 = vadd.f32 %v1016, %v1019
    %vm1021 = vweird.f32 %v1014
    %vm1022 = vweird.f32 %v1016
    %vm1023 = vmor %vm1021, %vm1022
    %v1024 = vsel %vm1023, %v1016, %v1020
    %v1025 = vand.u32 2147483647, %v1014
    %vm1026 = vcmp.eq.f32.partialorder %v1025, 8.507059e+37
    %v1027 = vand.u32 %v1014, 2147483648
    %v1028 = vor.u32 1.1754944e-38, %v1027
    %v1029 = vsel %vm1026, %v1028, %v1024
    %v1030 = vmul.f32 1.0, %v1029
    %v1031 = vrcp.pop %v1015
    %v1032 = vmul.f32 %v1015, %v1031
    %v1033 = vsub.f32 1.0, %v1032
    %v1034 = vmul.f32 %v1031, %v1033
    %v1035 = vadd.f32 %v1031, %v1034
    %vm1036 = vweird.f32 %v1015
    %vm1037 = vweird.f32 %v1031
    %vm1038 = vmor %vm1036, %vm1037
    %v1039 = vsel %vm1038, %v1031, %v1035
    %v1040 = vand.u32 2147483647, %v1015
    %vm1041 = vcmp.eq.f32.partialorder %v1040, 8.507059e+37
    %v1042 = vand.u32 %v1015, 2147483648
    %v1043 = vor.u32 1.1754944e-38, %v1042
    %v1044 = vsel %vm1041, %v1043, %v1039
    %v1045 = vmul.f32 1.0, %v1044
    %v1046 = vtanh.pop %v1006
    %v1047 = vxor.u32 %v1007, 2147483648
    %v1048 = vmul.f32 %v1047, 1.442695
    %v1049 = vpow.pop %v1048
    %v1050 = vadd.f32 %v1049, 1.0
    %v1051 = vrcp.pop %v1050
    %v1052 = vmul.f32 %v1050, %v1051
    %v1053 = vsub.f32 1.0, %v1052
    %v1054 = vmul.f32 %v1051, %v1053
    %v1055 = vadd.f32 %v1051, %v1054
    %vm1056 = vweird.f32 %v1050
    %vm1057 = vweird.f32 %v1051
    %vm1058 = vmor %vm1056, %vm1057
    %v1059 = vsel %vm1058, %v1051, %v1055
    %v1060 = vand.u32 2147483647, %v1050
    %vm1061 = vcmp.eq.f32.partialorder %v1060, 8.507059e+37
    %v1062 = vand.u32 %v1050, 2147483648
    %v1063 = vor.u32 1.1754944e-38, %v1062
    %v1064 = vsel %vm1061, %v1063, %v1059
    %v1065 = vmul.f32 1.0, %v1064
    %v1067 = vrot.slane %v945, 6
    %v1069 = vmul.f32 %v1045, %v1067
    %v1070 = vmul.f32 %v1030, %v1046
    %v1071 = vadd.f32 %v1069, %v1070
    %v1072 = vtanh.pop %v1071
    %v1073 = vmul.f32 %v1065, %v1072
    %v1074 = vpack.c.bf16 %v1073, %v1073
    %1075 = vmatpush.bf16.msra.mxu0 %v382
    %1076 = vmatpush.bf16.msra.mxu0 %v378
    %1077 = vmatpush.bf16.msra.mxu0 %v374
    %1078 = vmatpush.bf16.msra.mxu0 %v370
    %1079 = vmatpush.bf16.msra.mxu0 %v366
    %1080 = vmatpush.bf16.msra.mxu0 %v362
    %1081 = vmatpush.bf16.msra.mxu0 %v358
    %1082 = vmatpush.bf16.msra.mxu0 %v354
    %1083 = vmatmul.bf16.gmra.mxu0 %v1074
    %v1084 = vpop.f32.mrf.mxu0
    %v1085 = vadd.f32 0.0, %v1084
    %v1086 = vpop.f32.mrf.mxu0
    %1087 = vdwg.mxu0
    %1088 = vmatpush.bf16.msra.mxu0 %v383
    %1089 = vmatpush.bf16.msra.mxu0 %v379
    %1090 = vmatpush.bf16.msra.mxu0 %v375
    %1091 = vmatpush.bf16.msra.mxu0 %v371
    %1092 = vmatpush.bf16.msra.mxu0 %v367
    %1093 = vmatpush.bf16.msra.mxu0 %v363
    %1094 = vmatpush.bf16.msra.mxu0 %v359
    %1095 = vmatpush.bf16.msra.mxu0 %v355
    %1096 = vmatmul.bf16.gmra.mxu0 %v1074
    %v1097 = vpop.f32.mrf.mxu0
    %v1098 = vadd.f32 0.0, %v1097
    %v1099 = vpop.f32.mrf.mxu0
    %1100 = vdwg.mxu0
    %1101 = vmatpush.bf16.msra.mxu0 %v384
    %1102 = vmatpush.bf16.msra.mxu0 %v380
    %1103 = vmatpush.bf16.msra.mxu0 %v376
    %1104 = vmatpush.bf16.msra.mxu0 %v372
    %1105 = vmatpush.bf16.msra.mxu0 %v368
    %1106 = vmatpush.bf16.msra.mxu0 %v364
    %1107 = vmatpush.bf16.msra.mxu0 %v360
    %1108 = vmatpush.bf16.msra.mxu0 %v356
    %1109 = vmatmul.bf16.gmra.mxu0 %v1074
    %v1110 = vpop.f32.mrf.mxu0
    %v1111 = vadd.f32 0.0, %v1110
    %v1112 = vpop.f32.mrf.mxu0
    %1113 = vdwg.mxu0
    %1114 = vmatpush.bf16.msra.mxu0 %v385
    %1115 = vmatpush.bf16.msra.mxu0 %v381
    %1116 = vmatpush.bf16.msra.mxu0 %v377
    %1117 = vmatpush.bf16.msra.mxu0 %v373
    %1118 = vmatpush.bf16.msra.mxu0 %v369
    %1119 = vmatpush.bf16.msra.mxu0 %v365
    %1120 = vmatpush.bf16.msra.mxu0 %v361
    %1121 = vmatpush.bf16.msra.mxu0 %v357
    %1122 = vmatmul.bf16.gmra.mxu0 %v1074
    %v1123 = vpop.f32.mrf.mxu0
    %v1124 = vadd.f32 0.0, %v1123
    %v1125 = vpop.f32.mrf.mxu0
    %1126 = vdwg.mxu0
    %v1131 = vrot.slane %v1085, 6
    %v1132 = vrot.slane %v1098, 6
    %v1133 = vrot.slane %v1111, 6
    %v1134 = vrot.slane %v1124, 6
    %v1139 = vadd.f32 %v143, %v1131
    %v1140 = vadd.f32 %v157, %v1132
    %v1141 = vadd.f32 %v171, %v1133
    %v1142 = vadd.f32 %v185, %v1134
    %v1143 = vxor.u32 %v1139, 2147483648
    %v1144 = vxor.u32 %v1140, 2147483648
    %v1145 = vmul.f32 %v1143, 1.442695
    %v1146 = vpow.pop %v1145
    %v1147 = vmul.f32 %v1144, 1.442695
    %v1148 = vpow.pop %v1147
    %v1149 = vadd.f32 %v1146, 1.0
    %v1150 = vadd.f32 %v1148, 1.0
    %v1151 = vrcp.pop %v1149
    %v1152 = vmul.f32 %v1149, %v1151
    %v1153 = vsub.f32 1.0, %v1152
    %v1154 = vmul.f32 %v1151, %v1153
    %v1155 = vadd.f32 %v1151, %v1154
    %vm1156 = vweird.f32 %v1149
    %vm1157 = vweird.f32 %v1151
    %vm1158 = vmor %vm1156, %vm1157
    %v1159 = vsel %vm1158, %v1151, %v1155
    %v1160 = vand.u32 2147483647, %v1149
    %vm1161 = vcmp.eq.f32.partialorder %v1160, 8.507059e+37
    %v1162 = vand.u32 %v1149, 2147483648
    %v1163 = vor.u32 1.1754944e-38, %v1162
    %v1164 = vsel %vm1161, %v1163, %v1159
    %v1165 = vmul.f32 1.0, %v1164
    %v1166 = vrcp.pop %v1150
    %v1167 = vmul.f32 %v1150, %v1166
    %v1168 = vsub.f32 1.0, %v1167
    %v1169 = vmul.f32 %v1166, %v1168
    %v1170 = vadd.f32 %v1166, %v1169
    %vm1171 = vweird.f32 %v1150
    %vm1172 = vweird.f32 %v1166
    %vm1173 = vmor %vm1171, %vm1172
    %v1174 = vsel %vm1173, %v1166, %v1170
    %v1175 = vand.u32 2147483647, %v1150
    %vm1176 = vcmp.eq.f32.partialorder %v1175, 8.507059e+37
    %v1177 = vand.u32 %v1150, 2147483648
    %v1178 = vor.u32 1.1754944e-38, %v1177
    %v1179 = vsel %vm1176, %v1178, %v1174
    %v1180 = vmul.f32 1.0, %v1179
    %v1181 = vtanh.pop %v1141
    %v1182 = vxor.u32 %v1142, 2147483648
    %v1183 = vmul.f32 %v1182, 1.442695
    %v1184 = vpow.pop %v1183
    %v1185 = vadd.f32 %v1184, 1.0
    %v1186 = vrcp.pop %v1185
    %v1187 = vmul.f32 %v1185, %v1186
    %v1188 = vsub.f32 1.0, %v1187
    %v1189 = vmul.f32 %v1186, %v1188
    %v1190 = vadd.f32 %v1186, %v1189
    %vm1191 = vweird.f32 %v1185
    %vm1192 = vweird.f32 %v1186
    %vm1193 = vmor %vm1191, %vm1192
    %v1194 = vsel %vm1193, %v1186, %v1190
    %v1195 = vand.u32 2147483647, %v1185
    %vm1196 = vcmp.eq.f32.partialorder %v1195, 8.507059e+37
    %v1197 = vand.u32 %v1185, 2147483648
    %v1198 = vor.u32 1.1754944e-38, %v1197
    %v1199 = vsel %vm1196, %v1198, %v1194
    %v1200 = vmul.f32 1.0, %v1199
    %v1202 = vrot.slane %v1071, 6
    %v1204 = vmul.f32 %v1180, %v1202
    %v1205 = vmul.f32 %v1165, %v1181
    %v1206 = vadd.f32 %v1204, %v1205
    %v1207 = vtanh.pop %v1206
    %v1208 = vmul.f32 %v1200, %v1207
    %v1209 = vpack.c.bf16 %v1208, %v1208
    %v1211 = vrot.slane %v1209, 1
    %1213 = vmatpush.bf16.msra.mxu0 %v382
    %1214 = vmatpush.bf16.msra.mxu0 %v378
    %1215 = vmatpush.bf16.msra.mxu0 %v374
    %1216 = vmatpush.bf16.msra.mxu0 %v370
    %1217 = vmatpush.bf16.msra.mxu0 %v366
    %1218 = vmatpush.bf16.msra.mxu0 %v362
    %1219 = vmatpush.bf16.msra.mxu0 %v358
    %1220 = vmatpush.bf16.msra.mxu0 %v354
    %1221 = vmatmul.bf16.gmra.mxu0 %v1211
    %v1222 = vpop.f32.mrf.mxu0
    %v1223 = vadd.f32 0.0, %v1222
    %v1224 = vpop.f32.mrf.mxu0
    %1225 = vdwg.mxu0
    %1226 = vmatpush.bf16.msra.mxu0 %v383
    %1227 = vmatpush.bf16.msra.mxu0 %v379
    %1228 = vmatpush.bf16.msra.mxu0 %v375
    %1229 = vmatpush.bf16.msra.mxu0 %v371
    %1230 = vmatpush.bf16.msra.mxu0 %v367
    %1231 = vmatpush.bf16.msra.mxu0 %v363
    %1232 = vmatpush.bf16.msra.mxu0 %v359
    %1233 = vmatpush.bf16.msra.mxu0 %v355
    %1234 = vmatmul.bf16.gmra.mxu0 %v1211
    %v1235 = vpop.f32.mrf.mxu0
    %v1236 = vadd.f32 0.0, %v1235
    %v1237 = vpop.f32.mrf.mxu0
    %1238 = vdwg.mxu0
    %1239 = vmatpush.bf16.msra.mxu0 %v384
    %1240 = vmatpush.bf16.msra.mxu0 %v380
    %1241 = vmatpush.bf16.msra.mxu0 %v376
    %1242 = vmatpush.bf16.msra.mxu0 %v372
    %1243 = vmatpush.bf16.msra.mxu0 %v368
    %1244 = vmatpush.bf16.msra.mxu0 %v364
    %1245 = vmatpush.bf16.msra.mxu0 %v360
    %1246 = vmatpush.bf16.msra.mxu0 %v356
    %1247 = vmatmul.bf16.gmra.mxu0 %v1211
    %v1248 = vpop.f32.mrf.mxu0
    %v1249 = vadd.f32 0.0, %v1248
    %v1250 = vpop.f32.mrf.mxu0
    %1251 = vdwg.mxu0
    %1252 = vmatpush.bf16.msra.mxu0 %v385
    %1253 = vmatpush.bf16.msra.mxu0 %v381
    %1254 = vmatpush.bf16.msra.mxu0 %v377
    %1255 = vmatpush.bf16.msra.mxu0 %v373
    %1256 = vmatpush.bf16.msra.mxu0 %v369
    %1257 = vmatpush.bf16.msra.mxu0 %v365
    %1258 = vmatpush.bf16.msra.mxu0 %v361
    %1259 = vmatpush.bf16.msra.mxu0 %v357
    %1260 = vmatmul.bf16.gmra.mxu0 %v1211
    %v1261 = vpop.f32.mrf.mxu0
    %v1262 = vadd.f32 0.0, %v1261
    %v1263 = vpop.f32.mrf.mxu0
    %1264 = vdwg.mxu0
    %v1269 = vrot.slane %v1223, 4
    %v1270 = vrot.slane %v1236, 4
    %v1271 = vrot.slane %v1249, 4
    %v1272 = vrot.slane %v1262, 4
    %v1277 = vadd.f32 %v143, %v1269
    %v1278 = vadd.f32 %v157, %v1270
    %v1279 = vadd.f32 %v171, %v1271
    %v1280 = vadd.f32 %v185, %v1272
    %v1281 = vxor.u32 %v1277, 2147483648
    %v1282 = vxor.u32 %v1278, 2147483648
    %v1283 = vmul.f32 %v1281, 1.442695
    %v1284 = vpow.pop %v1283
    %v1285 = vmul.f32 %v1282, 1.442695
    %v1286 = vpow.pop %v1285
    %v1287 = vadd.f32 %v1284, 1.0
    %v1288 = vadd.f32 %v1286, 1.0
    %v1289 = vrcp.pop %v1287
    %v1290 = vmul.f32 %v1287, %v1289
    %v1291 = vsub.f32 1.0, %v1290
    %v1292 = vmul.f32 %v1289, %v1291
    %v1293 = vadd.f32 %v1289, %v1292
    %vm1294 = vweird.f32 %v1287
    %vm1295 = vweird.f32 %v1289
    %vm1296 = vmor %vm1294, %vm1295
    %v1297 = vsel %vm1296, %v1289, %v1293
    %v1298 = vand.u32 2147483647, %v1287
    %vm1299 = vcmp.eq.f32.partialorder %v1298, 8.507059e+37
    %v1300 = vand.u32 %v1287, 2147483648
    %v1301 = vor.u32 1.1754944e-38, %v1300
    %v1302 = vsel %vm1299, %v1301, %v1297
    %v1303 = vmul.f32 1.0, %v1302
    %v1304 = vrcp.pop %v1288
    %v1305 = vmul.f32 %v1288, %v1304
    %v1306 = vsub.f32 1.0, %v1305
    %v1307 = vmul.f32 %v1304, %v1306
    %v1308 = vadd.f32 %v1304, %v1307
    %vm1309 = vweird.f32 %v1288
    %vm1310 = vweird.f32 %v1304
    %vm1311 = vmor %vm1309, %vm1310
    %v1312 = vsel %vm1311, %v1304, %v1308
    %v1313 = vand.u32 2147483647, %v1288
    %vm1314 = vcmp.eq.f32.partialorder %v1313, 8.507059e+37
    %v1315 = vand.u32 %v1288, 2147483648
    %v1316 = vor.u32 1.1754944e-38, %v1315
    %v1317 = vsel %vm1314, %v1316, %v1312
    %v1318 = vmul.f32 1.0, %v1317
    %v1319 = vtanh.pop %v1279
    %v1320 = vxor.u32 %v1280, 2147483648
    %v1321 = vmul.f32 %v1320, 1.442695
    %v1322 = vpow.pop %v1321
    %v1323 = vadd.f32 %v1322, 1.0
    %v1324 = vrcp.pop %v1323
    %v1325 = vmul.f32 %v1323, %v1324
    %v1326 = vsub.f32 1.0, %v1325
    %v1327 = vmul.f32 %v1324, %v1326
    %v1328 = vadd.f32 %v1324, %v1327
    %vm1329 = vweird.f32 %v1323
    %vm1330 = vweird.f32 %v1324
    %vm1331 = vmor %vm1329, %vm1330
    %v1332 = vsel %vm1331, %v1324, %v1328
    %v1333 = vand.u32 2147483647, %v1323
    %vm1334 = vcmp.eq.f32.partialorder %v1333, 8.507059e+37
    %v1335 = vand.u32 %v1323, 2147483648
    %v1336 = vor.u32 1.1754944e-38, %v1335
    %v1337 = vsel %vm1334, %v1336, %v1332
    %v1338 = vmul.f32 1.0, %v1337
    %v1340 = vrot.slane %v1206, 6
    %v1342 = vmul.f32 %v1318, %v1340
    %v1343 = vmul.f32 %v1303, %v1319
    %v1344 = vadd.f32 %v1342, %v1343
    %v1345 = vtanh.pop %v1344
    %v1346 = vmul.f32 %v1338, %v1345
    %v1347 = vpack.c.bf16 %v1346, %v1346
    %v1349 = vrot.slane %v1347, 2
    %1351 = vmatpush.bf16.msra.mxu0 %v382
    %1352 = vmatpush.bf16.msra.mxu0 %v378
    %1353 = vmatpush.bf16.msra.mxu0 %v374
    %1354 = vmatpush.bf16.msra.mxu0 %v370
    %1355 = vmatpush.bf16.msra.mxu0 %v366
    %1356 = vmatpush.bf16.msra.mxu0 %v362
    %1357 = vmatpush.bf16.msra.mxu0 %v358
    %1358 = vmatpush.bf16.msra.mxu0 %v354
    %1359 = vmatmul.bf16.gmra.mxu0 %v1349
    %v1360 = vpop.f32.mrf.mxu0
    %v1361 = vadd.f32 0.0, %v1360
    %v1362 = vpop.f32.mrf.mxu0
    %1363 = vdwg.mxu0
    %1364 = vmatpush.bf16.msra.mxu0 %v383
    %1365 = vmatpush.bf16.msra.mxu0 %v379
    %1366 = vmatpush.bf16.msra.mxu0 %v375
    %1367 = vmatpush.bf16.msra.mxu0 %v371
    %1368 = vmatpush.bf16.msra.mxu0 %v367
    %1369 = vmatpush.bf16.msra.mxu0 %v363
    %1370 = vmatpush.bf16.msra.mxu0 %v359
    %1371 = vmatpush.bf16.msra.mxu0 %v355
    %1372 = vmatmul.bf16.gmra.mxu0 %v1349
    %v1373 = vpop.f32.mrf.mxu0
    %v1374 = vadd.f32 0.0, %v1373
    %v1375 = vpop.f32.mrf.mxu0
    %1376 = vdwg.mxu0
    %1377 = vmatpush.bf16.msra.mxu0 %v384
    %1378 = vmatpush.bf16.msra.mxu0 %v380
    %1379 = vmatpush.bf16.msra.mxu0 %v376
    %1380 = vmatpush.bf16.msra.mxu0 %v372
    %1381 = vmatpush.bf16.msra.mxu0 %v368
    %1382 = vmatpush.bf16.msra.mxu0 %v364
    %1383 = vmatpush.bf16.msra.mxu0 %v360
    %1384 = vmatpush.bf16.msra.mxu0 %v356
    %1385 = vmatmul.bf16.gmra.mxu0 %v1349
    %v1386 = vpop.f32.mrf.mxu0
    %v1387 = vadd.f32 0.0, %v1386
    %v1388 = vpop.f32.mrf.mxu0
    %1389 = vdwg.mxu0
    %1390 = vmatpush.bf16.msra.mxu0 %v385
    %1391 = vmatpush.bf16.msra.mxu0 %v381
    %1392 = vmatpush.bf16.msra.mxu0 %v377
    %1393 = vmatpush.bf16.msra.mxu0 %v373
    %1394 = vmatpush.bf16.msra.mxu0 %v369
    %1395 = vmatpush.bf16.msra.mxu0 %v365
    %1396 = vmatpush.bf16.msra.mxu0 %v361
    %1397 = vmatpush.bf16.msra.mxu0 %v357
    %1398 = vmatmul.bf16.gmra.mxu0 %v1349
    %v1399 = vpop.f32.mrf.mxu0
    %v1400 = vadd.f32 0.0, %v1399
    %v1401 = vpop.f32.mrf.mxu0
    %1402 = vdwg.mxu0
    %v1407 = vrot.slane %v1361, 2
    %v1408 = vrot.slane %v1374, 2
    %v1409 = vrot.slane %v1387, 2
    %v1410 = vrot.slane %v1400, 2
    %v1415 = vadd.f32 %v143, %v1407
    %v1416 = vadd.f32 %v157, %v1408
    %v1417 = vadd.f32 %v171, %v1409
    %v1418 = vadd.f32 %v185, %v1410
    %v1419 = vxor.u32 %v1415, 2147483648
    %v1420 = vxor.u32 %v1416, 2147483648
    %v1421 = vmul.f32 %v1419, 1.442695
    %v1422 = vpow.pop %v1421
    %v1423 = vmul.f32 %v1420, 1.442695
    %v1424 = vpow.pop %v1423
    %v1425 = vadd.f32 %v1422, 1.0
    %v1426 = vadd.f32 %v1424, 1.0
    %v1427 = vrcp.pop %v1425
    %v1428 = vmul.f32 %v1425, %v1427
    %v1429 = vsub.f32 1.0, %v1428
    %v1430 = vmul.f32 %v1427, %v1429
    %v1431 = vadd.f32 %v1427, %v1430
    %vm1432 = vweird.f32 %v1425
    %vm1433 = vweird.f32 %v1427
    %vm1434 = vmor %vm1432, %vm1433
    %v1435 = vsel %vm1434, %v1427, %v1431
    %v1436 = vand.u32 2147483647, %v1425
    %vm1437 = vcmp.eq.f32.partialorder %v1436, 8.507059e+37
    %v1438 = vand.u32 %v1425, 2147483648
    %v1439 = vor.u32 1.1754944e-38, %v1438
    %v1440 = vsel %vm1437, %v1439, %v1435
    %v1441 = vmul.f32 1.0, %v1440
    %v1442 = vrcp.pop %v1426
    %v1443 = vmul.f32 %v1426, %v1442
    %v1444 = vsub.f32 1.0, %v1443
    %v1445 = vmul.f32 %v1442, %v1444
    %v1446 = vadd.f32 %v1442, %v1445
    %vm1447 = vweird.f32 %v1426
    %vm1448 = vweird.f32 %v1442
    %vm1449 = vmor %vm1447, %vm1448
    %v1450 = vsel %vm1449, %v1442, %v1446
    %v1451 = vand.u32 2147483647, %v1426
    %vm1452 = vcmp.eq.f32.partialorder %v1451, 8.507059e+37
    %v1453 = vand.u32 %v1426, 2147483648
    %v1454 = vor.u32 1.1754944e-38, %v1453
    %v1455 = vsel %vm1452, %v1454, %v1450
    %v1456 = vmul.f32 1.0, %v1455
    %v1457 = vtanh.pop %v1417
    %v1458 = vxor.u32 %v1418, 2147483648
    %v1459 = vmul.f32 %v1458, 1.442695
    %v1460 = vpow.pop %v1459
    %v1461 = vadd.f32 %v1460, 1.0
    %v1462 = vrcp.pop %v1461
    %v1463 = vmul.f32 %v1461, %v1462
    %v1464 = vsub.f32 1.0, %v1463
    %v1465 = vmul.f32 %v1462, %v1464
    %v1466 = vadd.f32 %v1462, %v1465
    %vm1467 = vweird.f32 %v1461
    %vm1468 = vweird.f32 %v1462
    %vm1469 = vmor %vm1467, %vm1468
    %v1470 = vsel %vm1469, %v1462, %v1466
    %v1471 = vand.u32 2147483647, %v1461
    %vm1472 = vcmp.eq.f32.partialorder %v1471, 8.507059e+37
    %v1473 = vand.u32 %v1461, 2147483648
    %v1474 = vor.u32 1.1754944e-38, %v1473
    %v1475 = vsel %vm1472, %v1474, %v1470
    %v1476 = vmul.f32 1.0, %v1475
    %v1478 = vrot.slane %v1344, 6
    %v1480 = vmul.f32 %v1456, %v1478
    %v1481 = vmul.f32 %v1441, %v1457
    %v1482 = vadd.f32 %v1480, %v1481
    %v1483 = vtanh.pop %v1482
    %v1484 = vmul.f32 %v1476, %v1483
    %v1485 = vxor.u32 %v198, 2147483648
    %v1486 = vmul.f32 %v1485, 1.442695
    %v1487 = vpow.pop %v1486
    %v1488 = vadd.f32 %v1487, 1.0
    %v1489 = vrcp.pop %v1488
    %v1490 = vmul.f32 %v1488, %v1489
    %v1491 = vsub.f32 1.0, %v1490
    %v1492 = vmul.f32 %v1489, %v1491
    %v1493 = vadd.f32 %v1489, %v1492
    %vm1494 = vweird.f32 %v1488
    %vm1495 = vweird.f32 %v1489
    %vm1496 = vmor %vm1494, %vm1495
    %v1497 = vsel %vm1496, %v1489, %v1493
    %v1498 = vand.u32 2147483647, %v1488
    %vm1499 = vcmp.eq.f32.partialorder %v1498, 8.507059e+37
    %v1500 = vand.u32 %v1488, 2147483648
    %v1501 = vor.u32 1.1754944e-38, %v1500
    %v1502 = vsel %vm1499, %v1501, %v1497
    %v1503 = vmul.f32 1.0, %v1502
    %v1504 = vtanh.pop %v211
    %v1505 = vxor.u32 %v224, 2147483648
    %v1506 = vmul.f32 %v1505, 1.442695
    %v1507 = vpow.pop %v1506
    %v1508 = vadd.f32 %v1507, 1.0
    %v1509 = vrcp.pop %v1508
    %v1510 = vmul.f32 %v1508, %v1509
    %v1511 = vsub.f32 1.0, %v1510
    %v1512 = vmul.f32 %v1509, %v1511
    %v1513 = vadd.f32 %v1509, %v1512
    %vm1514 = vweird.f32 %v1508
    %vm1515 = vweird.f32 %v1509
    %vm1516 = vmor %vm1514, %vm1515
    %v1517 = vsel %vm1516, %v1509, %v1513
    %v1518 = vand.u32 2147483647, %v1508
    %vm1519 = vcmp.eq.f32.partialorder %v1518, 8.507059e+37
    %v1520 = vand.u32 %v1508, 2147483648
    %v1521 = vor.u32 1.1754944e-38, %v1520
    %v1522 = vsel %vm1519, %v1521, %v1517
    %v1523 = vmul.f32 1.0, %v1522
    %v1524 = vmul.f32 %v1503, %v1504
    %v1525 = vtanh.pop %v1524
    %v1526 = vmul.f32 %v1523, %v1525
    %v1527 = vld [vmem:[#allocation6] sm:$0xff]
    %v1528 = vld [vmem:[#allocation6 + $0x8] sm:$0xff]
    %v1529 = vld [vmem:[#allocation6 + $0x10] sm:$0xff]
    %v1530 = vld [vmem:[#allocation6 + $0x18] sm:$0xff]
    %v1531 = vld [vmem:[#allocation6 + $0x20] sm:$0xff]
    %v1532 = vld [vmem:[#allocation6 + $0x28] sm:$0xff]
    %v1533 = vld [vmem:[#allocation6 + $0x30] sm:$0xff]
    %v1534 = vld [vmem:[#allocation6 + $0x38] sm:$0xff]
    %v1535 = vld [vmem:[#allocation6 + $0x40] sm:$0xff]
    %v1536 = vld [vmem:[#allocation6 + $0x48] sm:$0xff]
    %v1537 = vld [vmem:[#allocation6 + $0x50] sm:$0xff]
    %v1538 = vld [vmem:[#allocation6 + $0x58] sm:$0xff]
    %v1539 = vld [vmem:[#allocation6 + $0x60] sm:$0xff]
    %v1540 = vld [vmem:[#allocation6 + $0x68] sm:$0xff]
    %v1541 = vld [vmem:[#allocation6 + $0x70] sm:$0xff]
    %v1542 = vld [vmem:[#allocation6 + $0x78] sm:$0xff]
    %v1543 = vld [vmem:[#allocation6 + $0x80] sm:$0xff]
    %v1544 = vld [vmem:[#allocation6 + $0x88] sm:$0xff]
    %v1545 = vld [vmem:[#allocation6 + $0x90] sm:$0xff]
    %v1546 = vld [vmem:[#allocation6 + $0x98] sm:$0xff]
    %v1547 = vld [vmem:[#allocation6 + $0xa0] sm:$0xff]
    %v1548 = vld [vmem:[#allocation6 + $0xa8] sm:$0xff]
    %v1549 = vld [vmem:[#allocation6 + $0xb0] sm:$0xff]
    %v1550 = vld [vmem:[#allocation6 + $0xb8] sm:$0xff]
    %v1551 = vld [vmem:[#allocation6 + $0xc0] sm:$0xff]
    %v1552 = vld [vmem:[#allocation6 + $0xc8] sm:$0xff]
    %v1553 = vld [vmem:[#allocation6 + $0xd0] sm:$0xff]
    %v1554 = vld [vmem:[#allocation6 + $0xd8] sm:$0xff]
    %v1555 = vld [vmem:[#allocation6 + $0xe0] sm:$0xff]
    %v1556 = vld [vmem:[#allocation6 + $0xe8] sm:$0xff]
    %v1557 = vld [vmem:[#allocation6 + $0xf0] sm:$0xff]
    %v1558 = vld [vmem:[#allocation6 + $0xf8] sm:$0xff]
    %v1559 = vld [vmem:[#allocation6 + $0x100] sm:$0xff]
    %v1560 = vld [vmem:[#allocation6 + $0x108] sm:$0xff]
    %v1561 = vld [vmem:[#allocation6 + $0x110] sm:$0xff]
    %v1562 = vld [vmem:[#allocation6 + $0x118] sm:$0xff]
    %v1563 = vld [vmem:[#allocation6 + $0x120] sm:$0xff]
    %v1564 = vld [vmem:[#allocation6 + $0x128] sm:$0xff]
    %v1565 = vld [vmem:[#allocation6 + $0x130] sm:$0xff]
    %v1566 = vld [vmem:[#allocation6 + $0x138] sm:$0xff]
    %v1567 = vld [vmem:[#allocation6 + $0x140] sm:$0xff]
    %v1568 = vld [vmem:[#allocation6 + $0x148] sm:$0xff]
    %v1569 = vld [vmem:[#allocation6 + $0x150] sm:$0xff]
    %v1570 = vld [vmem:[#allocation6 + $0x158] sm:$0xff]
    %v1571 = vld [vmem:[#allocation6 + $0x160] sm:$0xff]
    %v1572 = vld [vmem:[#allocation6 + $0x168] sm:$0xff]
    %v1573 = vld [vmem:[#allocation6 + $0x170] sm:$0xff]
    %v1574 = vld [vmem:[#allocation6 + $0x178] sm:$0xff]
    %v1575 = vld [vmem:[#allocation6 + $0x180] sm:$0xff]
    %v1576 = vld [vmem:[#allocation6 + $0x188] sm:$0xff]
    %v1577 = vld [vmem:[#allocation6 + $0x190] sm:$0xff]
    %v1578 = vld [vmem:[#allocation6 + $0x198] sm:$0xff]
    %v1579 = vld [vmem:[#allocation6 + $0x1a0] sm:$0xff]
    %v1580 = vld [vmem:[#allocation6 + $0x1a8] sm:$0xff]
    %v1581 = vld [vmem:[#allocation6 + $0x1b0] sm:$0xff]
    %v1582 = vld [vmem:[#allocation6 + $0x1b8] sm:$0xff]
    %v1583 = vld [vmem:[#allocation6 + $0x1c0] sm:$0xff]
    %v1584 = vld [vmem:[#allocation6 + $0x1c8] sm:$0xff]
    %v1585 = vld [vmem:[#allocation6 + $0x1d0] sm:$0xff]
    %v1586 = vld [vmem:[#allocation6 + $0x1d8] sm:$0xff]
    %v1587 = vld [vmem:[#allocation6 + $0x1e0] sm:$0xff]
    %v1588 = vld [vmem:[#allocation6 + $0x1e8] sm:$0xff]
    %v1589 = vld [vmem:[#allocation6 + $0x1f0] sm:$0xff]
    %v1590 = vld [vmem:[#allocation6 + $0x1f8] sm:$0xff]
    %v1591 = vld [vmem:[#allocation6 + $0x200] sm:$0xff]
    %v1592 = vld [vmem:[#allocation6 + $0x208] sm:$0xff]
    %v1593 = vld [vmem:[#allocation6 + $0x210] sm:$0xff]
    %v1594 = vld [vmem:[#allocation6 + $0x218] sm:$0xff]
    %v1595 = vld [vmem:[#allocation6 + $0x220] sm:$0xff]
    %v1596 = vld [vmem:[#allocation6 + $0x228] sm:$0xff]
    %v1597 = vld [vmem:[#allocation6 + $0x230] sm:$0xff]
    %v1598 = vld [vmem:[#allocation6 + $0x238] sm:$0xff]
    %v1599 = vld [vmem:[#allocation6 + $0x240] sm:$0xff]
    %v1600 = vld [vmem:[#allocation6 + $0x248] sm:$0xff]
    %v1601 = vld [vmem:[#allocation6 + $0x250] sm:$0xff]
    %v1602 = vld [vmem:[#allocation6 + $0x258] sm:$0xff]
    %v1603 = vld [vmem:[#allocation6 + $0x260] sm:$0xff]
    %v1604 = vld [vmem:[#allocation6 + $0x268] sm:$0xff]
    %v1605 = vld [vmem:[#allocation6 + $0x270] sm:$0xff]
    %v1606 = vld [vmem:[#allocation6 + $0x278] sm:$0xff]
    %v1607 = vld [vmem:[#allocation6 + $0x280] sm:$0xff]
    %v1608 = vld [vmem:[#allocation6 + $0x288] sm:$0xff]
    %v1609 = vld [vmem:[#allocation6 + $0x290] sm:$0xff]
    %v1610 = vld [vmem:[#allocation6 + $0x298] sm:$0xff]
    %v1611 = vld [vmem:[#allocation6 + $0x2a0] sm:$0xff]
    %v1612 = vld [vmem:[#allocation6 + $0x2a8] sm:$0xff]
    %v1613 = vld [vmem:[#allocation6 + $0x2b0] sm:$0xff]
    %v1614 = vld [vmem:[#allocation6 + $0x2b8] sm:$0xff]
    %v1615 = vld [vmem:[#allocation6 + $0x2c0] sm:$0xff]
    %v1616 = vld [vmem:[#allocation6 + $0x2c8] sm:$0xff]
    %v1617 = vld [vmem:[#allocation6 + $0x2d0] sm:$0xff]
    %v1618 = vld [vmem:[#allocation6 + $0x2d8] sm:$0xff]
    %v1619 = vld [vmem:[#allocation6 + $0x2e0] sm:$0xff]
    %v1620 = vld [vmem:[#allocation6 + $0x2e8] sm:$0xff]
    %v1621 = vld [vmem:[#allocation6 + $0x2f0] sm:$0xff]
    %v1622 = vld [vmem:[#allocation6 + $0x2f8] sm:$0xff]
    %v1623 = vld [vmem:[#allocation6 + $0x300] sm:$0xff]
    %v1624 = vld [vmem:[#allocation6 + $0x308] sm:$0xff]
    %v1625 = vld [vmem:[#allocation6 + $0x310] sm:$0xff]
    %v1626 = vld [vmem:[#allocation6 + $0x318] sm:$0xff]
    %v1627 = vld [vmem:[#allocation6 + $0x320] sm:$0xff]
    %v1628 = vld [vmem:[#allocation6 + $0x328] sm:$0xff]
    %v1629 = vld [vmem:[#allocation6 + $0x330] sm:$0xff]
    %v1630 = vld [vmem:[#allocation6 + $0x338] sm:$0xff]
    %v1631 = vld [vmem:[#allocation6 + $0x340] sm:$0xff]
    %v1632 = vld [vmem:[#allocation6 + $0x348] sm:$0xff]
    %v1633 = vld [vmem:[#allocation6 + $0x350] sm:$0xff]
    %v1634 = vld [vmem:[#allocation6 + $0x358] sm:$0xff]
    %v1635 = vld [vmem:[#allocation6 + $0x360] sm:$0xff]
    %v1636 = vld [vmem:[#allocation6 + $0x368] sm:$0xff]
    %v1637 = vld [vmem:[#allocation6 + $0x370] sm:$0xff]
    %v1638 = vld [vmem:[#allocation6 + $0x378] sm:$0xff]
    %v1639 = vld [vmem:[#allocation6 + $0x380] sm:$0xff]
    %v1640 = vld [vmem:[#allocation6 + $0x388] sm:$0xff]
    %v1641 = vld [vmem:[#allocation6 + $0x390] sm:$0xff]
    %v1642 = vld [vmem:[#allocation6 + $0x398] sm:$0xff]
    %v1643 = vld [vmem:[#allocation6 + $0x3a0] sm:$0xff]
    %v1644 = vld [vmem:[#allocation6 + $0x3a8] sm:$0xff]
    %v1645 = vld [vmem:[#allocation6 + $0x3b0] sm:$0xff]
    %v1646 = vld [vmem:[#allocation6 + $0x3b8] sm:$0xff]
    %v1647 = vld [vmem:[#allocation6 + $0x3c0] sm:$0xff]
    %v1648 = vld [vmem:[#allocation6 + $0x3c8] sm:$0xff]
    %v1649 = vld [vmem:[#allocation6 + $0x3d0] sm:$0xff]
    %v1650 = vld [vmem:[#allocation6 + $0x3d8] sm:$0xff]
    %v1651 = vld [vmem:[#allocation6 + $0x3e0] sm:$0xff]
    %v1652 = vld [vmem:[#allocation6 + $0x3e8] sm:$0xff]
    %v1653 = vld [vmem:[#allocation6 + $0x3f0] sm:$0xff]
    %v1654 = vld [vmem:[#allocation6 + $0x3f8] sm:$0xff]
    %v1655 = vld [vmem:[#allocation6 + $0x400] sm:$0xff]
    %v1656 = vld [vmem:[#allocation6 + $0x408] sm:$0xff]
    %v1657 = vld [vmem:[#allocation6 + $0x410] sm:$0xff]
    %v1658 = vld [vmem:[#allocation6 + $0x418] sm:$0xff]
    %v1659 = vld [vmem:[#allocation6 + $0x420] sm:$0xff]
    %v1660 = vld [vmem:[#allocation6 + $0x428] sm:$0xff]
    %v1661 = vld [vmem:[#allocation6 + $0x430] sm:$0xff]
    %v1662 = vld [vmem:[#allocation6 + $0x438] sm:$0xff]
    %v1663 = vld [vmem:[#allocation6 + $0x440] sm:$0xff]
    %v1664 = vld [vmem:[#allocation6 + $0x448] sm:$0xff]
    %v1665 = vld [vmem:[#allocation6 + $0x450] sm:$0xff]
    %v1666 = vld [vmem:[#allocation6 + $0x458] sm:$0xff]
    %v1667 = vld [vmem:[#allocation6 + $0x460] sm:$0xff]
    %v1668 = vld [vmem:[#allocation6 + $0x468] sm:$0xff]
    %v1669 = vld [vmem:[#allocation6 + $0x470] sm:$0xff]
    %v1670 = vld [vmem:[#allocation6 + $0x478] sm:$0xff]
    %v1671 = vld [vmem:[#allocation6 + $0x480] sm:$0xff]
    %v1672 = vld [vmem:[#allocation6 + $0x488] sm:$0xff]
    %v1673 = vld [vmem:[#allocation6 + $0x490] sm:$0xff]
    %v1674 = vld [vmem:[#allocation6 + $0x498] sm:$0xff]
    %v1675 = vld [vmem:[#allocation6 + $0x4a0] sm:$0xff]
    %v1676 = vld [vmem:[#allocation6 + $0x4a8] sm:$0xff]
    %v1677 = vld [vmem:[#allocation6 + $0x4b0] sm:$0xff]
    %v1678 = vld [vmem:[#allocation6 + $0x4b8] sm:$0xff]
    %v1679 = vld [vmem:[#allocation6 + $0x4c0] sm:$0xff]
    %v1680 = vld [vmem:[#allocation6 + $0x4c8] sm:$0xff]
    %v1681 = vld [vmem:[#allocation6 + $0x4d0] sm:$0xff]
    %v1682 = vld [vmem:[#allocation6 + $0x4d8] sm:$0xff]
    %v1683 = vld [vmem:[#allocation6 + $0x4e0] sm:$0xff]
    %v1684 = vld [vmem:[#allocation6 + $0x4e8] sm:$0xff]
    %v1685 = vld [vmem:[#allocation6 + $0x4f0] sm:$0xff]
    %v1686 = vld [vmem:[#allocation6 + $0x4f8] sm:$0xff]
    %v1687 = vld [vmem:[#allocation6 + $0x500] sm:$0xff]
    %v1688 = vld [vmem:[#allocation6 + $0x508] sm:$0xff]
    %v1689 = vld [vmem:[#allocation6 + $0x510] sm:$0xff]
    %v1690 = vld [vmem:[#allocation6 + $0x518] sm:$0xff]
    %v1691 = vld [vmem:[#allocation6 + $0x520] sm:$0xff]
    %v1692 = vld [vmem:[#allocation6 + $0x528] sm:$0xff]
    %v1693 = vld [vmem:[#allocation6 + $0x530] sm:$0xff]
    %v1694 = vld [vmem:[#allocation6 + $0x538] sm:$0xff]
    %v1695 = vld [vmem:[#allocation6 + $0x540] sm:$0xff]
    %v1696 = vld [vmem:[#allocation6 + $0x548] sm:$0xff]
    %v1697 = vld [vmem:[#allocation6 + $0x550] sm:$0xff]
    %v1698 = vld [vmem:[#allocation6 + $0x558] sm:$0xff]
    %v1699 = vld [vmem:[#allocation6 + $0x560] sm:$0xff]
    %v1700 = vld [vmem:[#allocation6 + $0x568] sm:$0xff]
    %v1701 = vld [vmem:[#allocation6 + $0x570] sm:$0xff]
    %v1702 = vld [vmem:[#allocation6 + $0x578] sm:$0xff]
    %v1703 = vld [vmem:[#allocation6 + $0x580] sm:$0xff]
    %v1704 = vld [vmem:[#allocation6 + $0x588] sm:$0xff]
    %v1705 = vld [vmem:[#allocation6 + $0x590] sm:$0xff]
    %v1706 = vld [vmem:[#allocation6 + $0x598] sm:$0xff]
    %v1707 = vld [vmem:[#allocation6 + $0x5a0] sm:$0xff]
    %v1708 = vld [vmem:[#allocation6 + $0x5a8] sm:$0xff]
    %v1709 = vld [vmem:[#allocation6 + $0x5b0] sm:$0xff]
    %v1710 = vld [vmem:[#allocation6 + $0x5b8] sm:$0xff]
    %v1711 = vld [vmem:[#allocation6 + $0x5c0] sm:$0xff]
    %v1712 = vld [vmem:[#allocation6 + $0x5c8] sm:$0xff]
    %v1713 = vld [vmem:[#allocation6 + $0x5d0] sm:$0xff]
    %v1714 = vld [vmem:[#allocation6 + $0x5d8] sm:$0xff]
    %v1715 = vld [vmem:[#allocation6 + $0x5e0] sm:$0xff]
    %v1716 = vld [vmem:[#allocation6 + $0x5e8] sm:$0xff]
    %v1717 = vld [vmem:[#allocation6 + $0x5f0] sm:$0xff]
    %v1718 = vld [vmem:[#allocation6 + $0x5f8] sm:$0xff]
    %v1719 = vld [vmem:[#allocation6 + $0x600] sm:$0xff]
    %v1720 = vld [vmem:[#allocation6 + $0x608] sm:$0xff]
    %v1721 = vld [vmem:[#allocation6 + $0x610] sm:$0xff]
    %v1722 = vld [vmem:[#allocation6 + $0x618] sm:$0xff]
    %v1723 = vld [vmem:[#allocation6 + $0x620] sm:$0xff]
    %v1724 = vld [vmem:[#allocation6 + $0x628] sm:$0xff]
    %v1725 = vld [vmem:[#allocation6 + $0x630] sm:$0xff]
    %v1726 = vld [vmem:[#allocation6 + $0x638] sm:$0xff]
    %v1727 = vld [vmem:[#allocation6 + $0x640] sm:$0xff]
    %v1728 = vld [vmem:[#allocation6 + $0x648] sm:$0xff]
    %v1729 = vld [vmem:[#allocation6 + $0x650] sm:$0xff]
    %v1730 = vld [vmem:[#allocation6 + $0x658] sm:$0xff]
    %v1731 = vld [vmem:[#allocation6 + $0x660] sm:$0xff]
    %v1732 = vld [vmem:[#allocation6 + $0x668] sm:$0xff]
    %v1733 = vld [vmem:[#allocation6 + $0x670] sm:$0xff]
    %v1734 = vld [vmem:[#allocation6 + $0x678] sm:$0xff]
    %v1735 = vld [vmem:[#allocation6 + $0x680] sm:$0xff]
    %v1736 = vld [vmem:[#allocation6 + $0x688] sm:$0xff]
    %v1737 = vld [vmem:[#allocation6 + $0x690] sm:$0xff]
    %v1738 = vld [vmem:[#allocation6 + $0x698] sm:$0xff]
    %v1739 = vld [vmem:[#allocation6 + $0x6a0] sm:$0xff]
    %v1740 = vld [vmem:[#allocation6 + $0x6a8] sm:$0xff]
    %v1741 = vld [vmem:[#allocation6 + $0x6b0] sm:$0xff]
    %v1742 = vld [vmem:[#allocation6 + $0x6b8] sm:$0xff]
    %v1743 = vld [vmem:[#allocation6 + $0x6c0] sm:$0xff]
    %v1744 = vld [vmem:[#allocation6 + $0x6c8] sm:$0xff]
    %v1745 = vld [vmem:[#allocation6 + $0x6d0] sm:$0xff]
    %v1746 = vld [vmem:[#allocation6 + $0x6d8] sm:$0xff]
    %v1747 = vld [vmem:[#allocation6 + $0x6e0] sm:$0xff]
    %v1748 = vld [vmem:[#allocation6 + $0x6e8] sm:$0xff]
    %v1749 = vld [vmem:[#allocation6 + $0x6f0] sm:$0xff]
    %v1750 = vld [vmem:[#allocation6 + $0x6f8] sm:$0xff]
    %v1751 = vld [vmem:[#allocation6 + $0x700] sm:$0xff]
    %v1752 = vld [vmem:[#allocation6 + $0x708] sm:$0xff]
    %v1753 = vld [vmem:[#allocation6 + $0x710] sm:$0xff]
    %v1754 = vld [vmem:[#allocation6 + $0x718] sm:$0xff]
    %v1755 = vld [vmem:[#allocation6 + $0x720] sm:$0xff]
    %v1756 = vld [vmem:[#allocation6 + $0x728] sm:$0xff]
    %v1757 = vld [vmem:[#allocation6 + $0x730] sm:$0xff]
    %v1758 = vld [vmem:[#allocation6 + $0x738] sm:$0xff]
    %v1759 = vld [vmem:[#allocation6 + $0x740] sm:$0xff]
    %v1760 = vld [vmem:[#allocation6 + $0x748] sm:$0xff]
    %v1761 = vld [vmem:[#allocation6 + $0x750] sm:$0xff]
    %v1762 = vld [vmem:[#allocation6 + $0x758] sm:$0xff]
    %v1763 = vld [vmem:[#allocation6 + $0x760] sm:$0xff]
    %v1764 = vld [vmem:[#allocation6 + $0x768] sm:$0xff]
    %v1765 = vld [vmem:[#allocation6 + $0x770] sm:$0xff]
    %v1766 = vld [vmem:[#allocation6 + $0x778] sm:$0xff]
    %v1767 = vld [vmem:[#allocation6 + $0x780] sm:$0xff]
    %v1768 = vld [vmem:[#allocation6 + $0x788] sm:$0xff]
    %v1769 = vld [vmem:[#allocation6 + $0x790] sm:$0xff]
    %v1770 = vld [vmem:[#allocation6 + $0x798] sm:$0xff]
    %v1771 = vld [vmem:[#allocation6 + $0x7a0] sm:$0xff]
    %v1772 = vld [vmem:[#allocation6 + $0x7a8] sm:$0xff]
    %v1773 = vld [vmem:[#allocation6 + $0x7b0] sm:$0xff]
    %v1774 = vld [vmem:[#allocation6 + $0x7b8] sm:$0xff]
    %v1775 = vld [vmem:[#allocation6 + $0x7c0] sm:$0xff]
    %v1776 = vld [vmem:[#allocation6 + $0x7c8] sm:$0xff]
    %v1777 = vld [vmem:[#allocation6 + $0x7d0] sm:$0xff]
    %v1778 = vld [vmem:[#allocation6 + $0x7d8] sm:$0xff]
    %v1779 = vld [vmem:[#allocation6 + $0x7e0] sm:$0xff]
    %v1780 = vld [vmem:[#allocation6 + $0x7e8] sm:$0xff]
    %v1781 = vld [vmem:[#allocation6 + $0x7f0] sm:$0xff]
    %v1782 = vld [vmem:[#allocation6 + $0x7f8] sm:$0xff]
    %v1783 = vpack.c.bf16 %v1484, %v1484
    %v1785 = vrot.slane %v1783, 3
    %v2043 = vunpack.c.l.b16 %v1527
    %v2044 = vunpack.c.h.b16 %v1527
    %v2045 = vunpack.c.l.b16 %v1528
    %v2046 = vunpack.c.h.b16 %v1528
    %v2047 = vunpack.c.l.b16 %v1529
    %v2048 = vunpack.c.h.b16 %v1529
    %v2049 = vunpack.c.l.b16 %v1530
    %v2050 = vunpack.c.h.b16 %v1530
    %v2051 = vunpack.c.l.b16 %v1531
    %v2052 = vunpack.c.h.b16 %v1531
    %v2053 = vunpack.c.l.b16 %v1532
    %v2054 = vunpack.c.h.b16 %v1532
    %v2055 = vunpack.c.l.b16 %v1533
    %v2056 = vunpack.c.h.b16 %v1533
    %v2057 = vunpack.c.l.b16 %v1534
    %v2058 = vunpack.c.h.b16 %v1534
    %v2059 = vunpack.c.l.b16 %v1535
    %v2060 = vunpack.c.h.b16 %v1535
    %v2061 = vunpack.c.l.b16 %v1536
    %v2062 = vunpack.c.h.b16 %v1536
    %v2063 = vunpack.c.l.b16 %v1537
    %v2064 = vunpack.c.h.b16 %v1537
    %v2065 = vunpack.c.l.b16 %v1538
    %v2066 = vunpack.c.h.b16 %v1538
    %v2067 = vunpack.c.l.b16 %v1539
    %v2068 = vunpack.c.h.b16 %v1539
    %v2069 = vunpack.c.l.b16 %v1540
    %v2070 = vunpack.c.h.b16 %v1540
    %v2071 = vunpack.c.l.b16 %v1541
    %v2072 = vunpack.c.h.b16 %v1541
    %v2073 = vunpack.c.l.b16 %v1542
    %v2074 = vunpack.c.h.b16 %v1542
    %v2075 = vunpack.c.l.b16 %v1543
    %v2076 = vunpack.c.h.b16 %v1543
    %v2077 = vunpack.c.l.b16 %v1544
    %v2078 = vunpack.c.h.b16 %v1544
    %v2079 = vunpack.c.l.b16 %v1545
    %v2080 = vunpack.c.h.b16 %v1545
    %v2081 = vunpack.c.l.b16 %v1546
    %v2082 = vunpack.c.h.b16 %v1546
    %v2083 = vunpack.c.l.b16 %v1547
    %v2084 = vunpack.c.h.b16 %v1547
    %v2085 = vunpack.c.l.b16 %v1548
    %v2086 = vunpack.c.h.b16 %v1548
    %v2087 = vunpack.c.l.b16 %v1549
    %v2088 = vunpack.c.h.b16 %v1549
    %v2089 = vunpack.c.l.b16 %v1550
    %v2090 = vunpack.c.h.b16 %v1550
    %v2091 = vunpack.c.l.b16 %v1551
    %v2092 = vunpack.c.h.b16 %v1551
    %v2093 = vunpack.c.l.b16 %v1552
    %v2094 = vunpack.c.h.b16 %v1552
    %v2095 = vunpack.c.l.b16 %v1553
    %v2096 = vunpack.c.h.b16 %v1553
    %v2097 = vunpack.c.l.b16 %v1554
    %v2098 = vunpack.c.h.b16 %v1554
    %v2099 = vunpack.c.l.b16 %v1555
    %v2100 = vunpack.c.h.b16 %v1555
    %v2101 = vunpack.c.l.b16 %v1556
    %v2102 = vunpack.c.h.b16 %v1556
    %v2103 = vunpack.c.l.b16 %v1557
    %v2104 = vunpack.c.h.b16 %v1557
    %v2105 = vunpack.c.l.b16 %v1558
    %v2106 = vunpack.c.h.b16 %v1558
    %v2107 = vunpack.c.l.b16 %v1559
    %v2108 = vunpack.c.h.b16 %v1559
    %v2109 = vunpack.c.l.b16 %v1560
    %v2110 = vunpack.c.h.b16 %v1560
    %v2111 = vunpack.c.l.b16 %v1561
    %v2112 = vunpack.c.h.b16 %v1561
    %v2113 = vunpack.c.l.b16 %v1562
    %v2114 = vunpack.c.h.b16 %v1562
    %v2115 = vunpack.c.l.b16 %v1563
    %v2116 = vunpack.c.h.b16 %v1563
    %v2117 = vunpack.c.l.b16 %v1564
    %v2118 = vunpack.c.h.b16 %v1564
    %v2119 = vunpack.c.l.b16 %v1565
    %v2120 = vunpack.c.h.b16 %v1565
    %v2121 = vunpack.c.l.b16 %v1566
    %v2122 = vunpack.c.h.b16 %v1566
    %v2123 = vunpack.c.l.b16 %v1567
    %v2124 = vunpack.c.h.b16 %v1567
    %v2125 = vunpack.c.l.b16 %v1568
    %v2126 = vunpack.c.h.b16 %v1568
    %v2127 = vunpack.c.l.b16 %v1569
    %v2128 = vunpack.c.h.b16 %v1569
    %v2129 = vunpack.c.l.b16 %v1570
    %v2130 = vunpack.c.h.b16 %v1570
    %v2131 = vunpack.c.l.b16 %v1571
    %v2132 = vunpack.c.h.b16 %v1571
    %v2133 = vunpack.c.l.b16 %v1572
    %v2134 = vunpack.c.h.b16 %v1572
    %v2135 = vunpack.c.l.b16 %v1573
    %v2136 = vunpack.c.h.b16 %v1573
    %v2137 = vunpack.c.l.b16 %v1574
    %v2138 = vunpack.c.h.b16 %v1574
    %v2139 = vunpack.c.l.b16 %v1575
    %v2140 = vunpack.c.h.b16 %v1575
    %v2141 = vunpack.c.l.b16 %v1576
    %v2142 = vunpack.c.h.b16 %v1576
    %v2143 = vunpack.c.l.b16 %v1577
    %v2144 = vunpack.c.h.b16 %v1577
    %v2145 = vunpack.c.l.b16 %v1578
    %v2146 = vunpack.c.h.b16 %v1578
    %v2147 = vunpack.c.l.b16 %v1579
    %v2148 = vunpack.c.h.b16 %v1579
    %v2149 = vunpack.c.l.b16 %v1580
    %v2150 = vunpack.c.h.b16 %v1580
    %v2151 = vunpack.c.l.b16 %v1581
    %v2152 = vunpack.c.h.b16 %v1581
    %v2153 = vunpack.c.l.b16 %v1582
    %v2154 = vunpack.c.h.b16 %v1582
    %v2155 = vunpack.c.l.b16 %v1583
    %v2156 = vunpack.c.h.b16 %v1583
    %v2157 = vunpack.c.l.b16 %v1584
    %v2158 = vunpack.c.h.b16 %v1584
    %v2159 = vunpack.c.l.b16 %v1585
    %v2160 = vunpack.c.h.b16 %v1585
    %v2161 = vunpack.c.l.b16 %v1586
    %v2162 = vunpack.c.h.b16 %v1586
    %v2163 = vunpack.c.l.b16 %v1587
    %v2164 = vunpack.c.h.b16 %v1587
    %v2165 = vunpack.c.l.b16 %v1588
    %v2166 = vunpack.c.h.b16 %v1588
    %v2167 = vunpack.c.l.b16 %v1589
    %v2168 = vunpack.c.h.b16 %v1589
    %v2169 = vunpack.c.l.b16 %v1590
    %v2170 = vunpack.c.h.b16 %v1590
    %v2171 = vunpack.c.l.b16 %v1591
    %v2172 = vunpack.c.h.b16 %v1591
    %v2173 = vunpack.c.l.b16 %v1592
    %v2174 = vunpack.c.h.b16 %v1592
    %v2175 = vunpack.c.l.b16 %v1593
    %v2176 = vunpack.c.h.b16 %v1593
    %v2177 = vunpack.c.l.b16 %v1594
    %v2178 = vunpack.c.h.b16 %v1594
    %v2179 = vunpack.c.l.b16 %v1595
    %v2180 = vunpack.c.h.b16 %v1595
    %v2181 = vunpack.c.l.b16 %v1596
    %v2182 = vunpack.c.h.b16 %v1596
    %v2183 = vunpack.c.l.b16 %v1597
    %v2184 = vunpack.c.h.b16 %v1597
    %v2185 = vunpack.c.l.b16 %v1598
    %v2186 = vunpack.c.h.b16 %v1598
    %v2187 = vunpack.c.l.b16 %v1599
    %v2188 = vunpack.c.h.b16 %v1599
    %v2189 = vunpack.c.l.b16 %v1600
    %v2190 = vunpack.c.h.b16 %v1600
    %v2191 = vunpack.c.l.b16 %v1601
    %v2192 = vunpack.c.h.b16 %v1601
    %v2193 = vunpack.c.l.b16 %v1602
    %v2194 = vunpack.c.h.b16 %v1602
    %v2195 = vunpack.c.l.b16 %v1603
    %v2196 = vunpack.c.h.b16 %v1603
    %v2197 = vunpack.c.l.b16 %v1604
    %v2198 = vunpack.c.h.b16 %v1604
    %v2199 = vunpack.c.l.b16 %v1605
    %v2200 = vunpack.c.h.b16 %v1605
    %v2201 = vunpack.c.l.b16 %v1606
    %v2202 = vunpack.c.h.b16 %v1606
    %v2203 = vunpack.c.l.b16 %v1607
    %v2204 = vunpack.c.h.b16 %v1607
    %v2205 = vunpack.c.l.b16 %v1608
    %v2206 = vunpack.c.h.b16 %v1608
    %v2207 = vunpack.c.l.b16 %v1609
    %v2208 = vunpack.c.h.b16 %v1609
    %v2209 = vunpack.c.l.b16 %v1610
    %v2210 = vunpack.c.h.b16 %v1610
    %v2211 = vunpack.c.l.b16 %v1611
    %v2212 = vunpack.c.h.b16 %v1611
    %v2213 = vunpack.c.l.b16 %v1612
    %v2214 = vunpack.c.h.b16 %v1612
    %v2215 = vunpack.c.l.b16 %v1613
    %v2216 = vunpack.c.h.b16 %v1613
    %v2217 = vunpack.c.l.b16 %v1614
    %v2218 = vunpack.c.h.b16 %v1614
    %v2219 = vunpack.c.l.b16 %v1615
    %v2220 = vunpack.c.h.b16 %v1615
    %v2221 = vunpack.c.l.b16 %v1616
    %v2222 = vunpack.c.h.b16 %v1616
    %v2223 = vunpack.c.l.b16 %v1617
    %v2224 = vunpack.c.h.b16 %v1617
    %v2225 = vunpack.c.l.b16 %v1618
    %v2226 = vunpack.c.h.b16 %v1618
    %v2227 = vunpack.c.l.b16 %v1619
    %v2228 = vunpack.c.h.b16 %v1619
    %v2229 = vunpack.c.l.b16 %v1620
    %v2230 = vunpack.c.h.b16 %v1620
    %v2231 = vunpack.c.l.b16 %v1621
    %v2232 = vunpack.c.h.b16 %v1621
    %v2233 = vunpack.c.l.b16 %v1622
    %v2234 = vunpack.c.h.b16 %v1622
    %v2235 = vunpack.c.l.b16 %v1623
    %v2236 = vunpack.c.h.b16 %v1623
    %v2237 = vunpack.c.l.b16 %v1624
    %v2238 = vunpack.c.h.b16 %v1624
    %v2239 = vunpack.c.l.b16 %v1625
    %v2240 = vunpack.c.h.b16 %v1625
    %v2241 = vunpack.c.l.b16 %v1626
    %v2242 = vunpack.c.h.b16 %v1626
    %v2243 = vunpack.c.l.b16 %v1627
    %v2244 = vunpack.c.h.b16 %v1627
    %v2245 = vunpack.c.l.b16 %v1628
    %v2246 = vunpack.c.h.b16 %v1628
    %v2247 = vunpack.c.l.b16 %v1629
    %v2248 = vunpack.c.h.b16 %v1629
    %v2249 = vunpack.c.l.b16 %v1630
    %v2250 = vunpack.c.h.b16 %v1630
    %v2251 = vunpack.c.l.b16 %v1631
    %v2252 = vunpack.c.h.b16 %v1631
    %v2253 = vunpack.c.l.b16 %v1632
    %v2254 = vunpack.c.h.b16 %v1632
    %v2255 = vunpack.c.l.b16 %v1633
    %v2256 = vunpack.c.h.b16 %v1633
    %v2257 = vunpack.c.l.b16 %v1634
    %v2258 = vunpack.c.h.b16 %v1634
    %v2259 = vunpack.c.l.b16 %v1635
    %v2260 = vunpack.c.h.b16 %v1635
    %v2261 = vunpack.c.l.b16 %v1636
    %v2262 = vunpack.c.h.b16 %v1636
    %v2263 = vunpack.c.l.b16 %v1637
    %v2264 = vunpack.c.h.b16 %v1637
    %v2265 = vunpack.c.l.b16 %v1638
    %v2266 = vunpack.c.h.b16 %v1638
    %v2267 = vunpack.c.l.b16 %v1639
    %v2268 = vunpack.c.h.b16 %v1639
    %v2269 = vunpack.c.l.b16 %v1640
    %v2270 = vunpack.c.h.b16 %v1640
    %v2271 = vunpack.c.l.b16 %v1641
    %v2272 = vunpack.c.h.b16 %v1641
    %v2273 = vunpack.c.l.b16 %v1642
    %v2274 = vunpack.c.h.b16 %v1642
    %v2275 = vunpack.c.l.b16 %v1643
    %v2276 = vunpack.c.h.b16 %v1643
    %v2277 = vunpack.c.l.b16 %v1644
    %v2278 = vunpack.c.h.b16 %v1644
    %v2279 = vunpack.c.l.b16 %v1645
    %v2280 = vunpack.c.h.b16 %v1645
    %v2281 = vunpack.c.l.b16 %v1646
    %v2282 = vunpack.c.h.b16 %v1646
    %v2283 = vunpack.c.l.b16 %v1647
    %v2284 = vunpack.c.h.b16 %v1647
    %v2285 = vunpack.c.l.b16 %v1648
    %v2286 = vunpack.c.h.b16 %v1648
    %v2287 = vunpack.c.l.b16 %v1649
    %v2288 = vunpack.c.h.b16 %v1649
    %v2289 = vunpack.c.l.b16 %v1650
    %v2290 = vunpack.c.h.b16 %v1650
    %v2291 = vunpack.c.l.b16 %v1651
    %v2292 = vunpack.c.h.b16 %v1651
    %v2293 = vunpack.c.l.b16 %v1652
    %v2294 = vunpack.c.h.b16 %v1652
    %v2295 = vunpack.c.l.b16 %v1653
    %v2296 = vunpack.c.h.b16 %v1653
    %v2297 = vunpack.c.l.b16 %v1654
    %v2298 = vunpack.c.h.b16 %v1654
    %v2299 = vunpack.c.l.b16 %v1655
    %v2300 = vunpack.c.h.b16 %v1655
    %v2301 = vunpack.c.l.b16 %v1656
    %v2302 = vunpack.c.h.b16 %v1656
    %v2303 = vunpack.c.l.b16 %v1657
    %v2304 = vunpack.c.h.b16 %v1657
    %v2305 = vunpack.c.l.b16 %v1658
    %v2306 = vunpack.c.h.b16 %v1658
    %v2307 = vunpack.c.l.b16 %v1659
    %v2308 = vunpack.c.h.b16 %v1659
    %v2309 = vunpack.c.l.b16 %v1660
    %v2310 = vunpack.c.h.b16 %v1660
    %v2311 = vunpack.c.l.b16 %v1661
    %v2312 = vunpack.c.h.b16 %v1661
    %v2313 = vunpack.c.l.b16 %v1662
    %v2314 = vunpack.c.h.b16 %v1662
    %v2315 = vunpack.c.l.b16 %v1663
    %v2316 = vunpack.c.h.b16 %v1663
    %v2317 = vunpack.c.l.b16 %v1664
    %v2318 = vunpack.c.h.b16 %v1664
    %v2319 = vunpack.c.l.b16 %v1665
    %v2320 = vunpack.c.h.b16 %v1665
    %v2321 = vunpack.c.l.b16 %v1666
    %v2322 = vunpack.c.h.b16 %v1666
    %v2323 = vunpack.c.l.b16 %v1667
    %v2324 = vunpack.c.h.b16 %v1667
    %v2325 = vunpack.c.l.b16 %v1668
    %v2326 = vunpack.c.h.b16 %v1668
    %v2327 = vunpack.c.l.b16 %v1669
    %v2328 = vunpack.c.h.b16 %v1669
    %v2329 = vunpack.c.l.b16 %v1670
    %v2330 = vunpack.c.h.b16 %v1670
    %v2331 = vunpack.c.l.b16 %v1671
    %v2332 = vunpack.c.h.b16 %v1671
    %v2333 = vunpack.c.l.b16 %v1672
    %v2334 = vunpack.c.h.b16 %v1672
    %v2335 = vunpack.c.l.b16 %v1673
    %v2336 = vunpack.c.h.b16 %v1673
    %v2337 = vunpack.c.l.b16 %v1674
    %v2338 = vunpack.c.h.b16 %v1674
    %v2339 = vunpack.c.l.b16 %v1675
    %v2340 = vunpack.c.h.b16 %v1675
    %v2341 = vunpack.c.l.b16 %v1676
    %v2342 = vunpack.c.h.b16 %v1676
    %v2343 = vunpack.c.l.b16 %v1677
    %v2344 = vunpack.c.h.b16 %v1677
    %v2345 = vunpack.c.l.b16 %v1678
    %v2346 = vunpack.c.h.b16 %v1678
    %v2347 = vunpack.c.l.b16 %v1679
    %v2348 = vunpack.c.h.b16 %v1679
    %v2349 = vunpack.c.l.b16 %v1680
    %v2350 = vunpack.c.h.b16 %v1680
    %v2351 = vunpack.c.l.b16 %v1681
    %v2352 = vunpack.c.h.b16 %v1681
    %v2353 = vunpack.c.l.b16 %v1682
    %v2354 = vunpack.c.h.b16 %v1682
    %v2355 = vunpack.c.l.b16 %v1683
    %v2356 = vunpack.c.h.b16 %v1683
    %v2357 = vunpack.c.l.b16 %v1684
    %v2358 = vunpack.c.h.b16 %v1684
    %v2359 = vunpack.c.l.b16 %v1685
    %v2360 = vunpack.c.h.b16 %v1685
    %v2361 = vunpack.c.l.b16 %v1686
    %v2362 = vunpack.c.h.b16 %v1686
    %v2363 = vunpack.c.l.b16 %v1687
    %v2364 = vunpack.c.h.b16 %v1687
    %v2365 = vunpack.c.l.b16 %v1688
    %v2366 = vunpack.c.h.b16 %v1688
    %v2367 = vunpack.c.l.b16 %v1689
    %v2368 = vunpack.c.h.b16 %v1689
    %v2369 = vunpack.c.l.b16 %v1690
    %v2370 = vunpack.c.h.b16 %v1690
    %v2371 = vunpack.c.l.b16 %v1691
    %v2372 = vunpack.c.h.b16 %v1691
    %v2373 = vunpack.c.l.b16 %v1692
    %v2374 = vunpack.c.h.b16 %v1692
    %v2375 = vunpack.c.l.b16 %v1693
    %v2376 = vunpack.c.h.b16 %v1693
    %v2377 = vunpack.c.l.b16 %v1694
    %v2378 = vunpack.c.h.b16 %v1694
    %v2379 = vunpack.c.l.b16 %v1695
    %v2380 = vunpack.c.h.b16 %v1695
    %v2381 = vunpack.c.l.b16 %v1696
    %v2382 = vunpack.c.h.b16 %v1696
    %v2383 = vunpack.c.l.b16 %v1697
    %v2384 = vunpack.c.h.b16 %v1697
    %v2385 = vunpack.c.l.b16 %v1698
    %v2386 = vunpack.c.h.b16 %v1698
    %v2387 = vunpack.c.l.b16 %v1699
    %v2388 = vunpack.c.h.b16 %v1699
    %v2389 = vunpack.c.l.b16 %v1700
    %v2390 = vunpack.c.h.b16 %v1700
    %v2391 = vunpack.c.l.b16 %v1701
    %v2392 = vunpack.c.h.b16 %v1701
    %v2393 = vunpack.c.l.b16 %v1702
    %v2394 = vunpack.c.h.b16 %v1702
    %v2395 = vunpack.c.l.b16 %v1703
    %v2396 = vunpack.c.h.b16 %v1703
    %v2397 = vunpack.c.l.b16 %v1704
    %v2398 = vunpack.c.h.b16 %v1704
    %v2399 = vunpack.c.l.b16 %v1705
    %v2400 = vunpack.c.h.b16 %v1705
    %v2401 = vunpack.c.l.b16 %v1706
    %v2402 = vunpack.c.h.b16 %v1706
    %v2403 = vunpack.c.l.b16 %v1707
    %v2404 = vunpack.c.h.b16 %v1707
    %v2405 = vunpack.c.l.b16 %v1708
    %v2406 = vunpack.c.h.b16 %v1708
    %v2407 = vunpack.c.l.b16 %v1709
    %v2408 = vunpack.c.h.b16 %v1709
    %v2409 = vunpack.c.l.b16 %v1710
    %v2410 = vunpack.c.h.b16 %v1710
    %v2411 = vunpack.c.l.b16 %v1711
    %v2412 = vunpack.c.h.b16 %v1711
    %v2413 = vunpack.c.l.b16 %v1712
    %v2414 = vunpack.c.h.b16 %v1712
    %v2415 = vunpack.c.l.b16 %v1713
    %v2416 = vunpack.c.h.b16 %v1713
    %v2417 = vunpack.c.l.b16 %v1714
    %v2418 = vunpack.c.h.b16 %v1714
    %v2419 = vunpack.c.l.b16 %v1715
    %v2420 = vunpack.c.h.b16 %v1715
    %v2421 = vunpack.c.l.b16 %v1716
    %v2422 = vunpack.c.h.b16 %v1716
    %v2423 = vunpack.c.l.b16 %v1717
    %v2424 = vunpack.c.h.b16 %v1717
    %v2425 = vunpack.c.l.b16 %v1718
    %v2426 = vunpack.c.h.b16 %v1718
    %v2427 = vunpack.c.l.b16 %v1719
    %v2428 = vunpack.c.h.b16 %v1719
    %v2429 = vunpack.c.l.b16 %v1720
    %v2430 = vunpack.c.h.b16 %v1720
    %v2431 = vunpack.c.l.b16 %v1721
    %v2432 = vunpack.c.h.b16 %v1721
    %v2433 = vunpack.c.l.b16 %v1722
    %v2434 = vunpack.c.h.b16 %v1722
    %v2435 = vunpack.c.l.b16 %v1723
    %v2436 = vunpack.c.h.b16 %v1723
    %v2437 = vunpack.c.l.b16 %v1724
    %v2438 = vunpack.c.h.b16 %v1724
    %v2439 = vunpack.c.l.b16 %v1725
    %v2440 = vunpack.c.h.b16 %v1725
    %v2441 = vunpack.c.l.b16 %v1726
    %v2442 = vunpack.c.h.b16 %v1726
    %v2443 = vunpack.c.l.b16 %v1727
    %v2444 = vunpack.c.h.b16 %v1727
    %v2445 = vunpack.c.l.b16 %v1728
    %v2446 = vunpack.c.h.b16 %v1728
    %v2447 = vunpack.c.l.b16 %v1729
    %v2448 = vunpack.c.h.b16 %v1729
    %v2449 = vunpack.c.l.b16 %v1730
    %v2450 = vunpack.c.h.b16 %v1730
    %v2451 = vunpack.c.l.b16 %v1731
    %v2452 = vunpack.c.h.b16 %v1731
    %v2453 = vunpack.c.l.b16 %v1732
    %v2454 = vunpack.c.h.b16 %v1732
    %v2455 = vunpack.c.l.b16 %v1733
    %v2456 = vunpack.c.h.b16 %v1733
    %v2457 = vunpack.c.l.b16 %v1734
    %v2458 = vunpack.c.h.b16 %v1734
    %v2459 = vunpack.c.l.b16 %v1735
    %v2460 = vunpack.c.h.b16 %v1735
    %v2461 = vunpack.c.l.b16 %v1736
    %v2462 = vunpack.c.h.b16 %v1736
    %v2463 = vunpack.c.l.b16 %v1737
    %v2464 = vunpack.c.h.b16 %v1737
    %v2465 = vunpack.c.l.b16 %v1738
    %v2466 = vunpack.c.h.b16 %v1738
    %v2467 = vunpack.c.l.b16 %v1739
    %v2468 = vunpack.c.h.b16 %v1739
    %v2469 = vunpack.c.l.b16 %v1740
    %v2470 = vunpack.c.h.b16 %v1740
    %v2471 = vunpack.c.l.b16 %v1741
    %v2472 = vunpack.c.h.b16 %v1741
    %v2473 = vunpack.c.l.b16 %v1742
    %v2474 = vunpack.c.h.b16 %v1742
    %v2475 = vunpack.c.l.b16 %v1743
    %v2476 = vunpack.c.h.b16 %v1743
    %v2477 = vunpack.c.l.b16 %v1744
    %v2478 = vunpack.c.h.b16 %v1744
    %v2479 = vunpack.c.l.b16 %v1745
    %v2480 = vunpack.c.h.b16 %v1745
    %v2481 = vunpack.c.l.b16 %v1746
    %v2482 = vunpack.c.h.b16 %v1746
    %v2483 = vunpack.c.l.b16 %v1747
    %v2484 = vunpack.c.h.b16 %v1747
    %v2485 = vunpack.c.l.b16 %v1748
    %v2486 = vunpack.c.h.b16 %v1748
    %v2487 = vunpack.c.l.b16 %v1749
    %v2488 = vunpack.c.h.b16 %v1749
    %v2489 = vunpack.c.l.b16 %v1750
    %v2490 = vunpack.c.h.b16 %v1750
    %v2491 = vunpack.c.l.b16 %v1751
    %v2492 = vunpack.c.h.b16 %v1751
    %v2493 = vunpack.c.l.b16 %v1752
    %v2494 = vunpack.c.h.b16 %v1752
    %v2495 = vunpack.c.l.b16 %v1753
    %v2496 = vunpack.c.h.b16 %v1753
    %v2497 = vunpack.c.l.b16 %v1754
    %v2498 = vunpack.c.h.b16 %v1754
    %v2499 = vunpack.c.l.b16 %v1755
    %v2500 = vunpack.c.h.b16 %v1755
    %v2501 = vunpack.c.l.b16 %v1756
    %v2502 = vunpack.c.h.b16 %v1756
    %v2503 = vunpack.c.l.b16 %v1757
    %v2504 = vunpack.c.h.b16 %v1757
    %v2505 = vunpack.c.l.b16 %v1758
    %v2506 = vunpack.c.h.b16 %v1758
    %v2507 = vunpack.c.l.b16 %v1759
    %v2508 = vunpack.c.h.b16 %v1759
    %v2509 = vunpack.c.l.b16 %v1760
    %v2510 = vunpack.c.h.b16 %v1760
    %v2511 = vunpack.c.l.b16 %v1761
    %v2512 = vunpack.c.h.b16 %v1761
    %v2513 = vunpack.c.l.b16 %v1762
    %v2514 = vunpack.c.h.b16 %v1762
    %v2515 = vunpack.c.l.b16 %v1763
    %v2516 = vunpack.c.h.b16 %v1763
    %v2517 = vunpack.c.l.b16 %v1764
    %v2518 = vunpack.c.h.b16 %v1764
    %v2519 = vunpack.c.l.b16 %v1765
    %v2520 = vunpack.c.h.b16 %v1765
    %v2521 = vunpack.c.l.b16 %v1766
    %v2522 = vunpack.c.h.b16 %v1766
    %v2523 = vunpack.c.l.b16 %v1767
    %v2524 = vunpack.c.h.b16 %v1767
    %v2525 = vunpack.c.l.b16 %v1768
    %v2526 = vunpack.c.h.b16 %v1768
    %v2527 = vunpack.c.l.b16 %v1769
    %v2528 = vunpack.c.h.b16 %v1769
    %v2529 = vunpack.c.l.b16 %v1770
    %v2530 = vunpack.c.h.b16 %v1770
    %v2531 = vunpack.c.l.b16 %v1771
    %v2532 = vunpack.c.h.b16 %v1771
    %v2533 = vunpack.c.l.b16 %v1772
    %v2534 = vunpack.c.h.b16 %v1772
    %v2535 = vunpack.c.l.b16 %v1773
    %v2536 = vunpack.c.h.b16 %v1773
    %v2537 = vunpack.c.l.b16 %v1774
    %v2538 = vunpack.c.h.b16 %v1774
    %v2539 = vunpack.c.l.b16 %v1775
    %v2540 = vunpack.c.h.b16 %v1775
    %v2541 = vunpack.c.l.b16 %v1776
    %v2542 = vunpack.c.h.b16 %v1776
    %v2543 = vunpack.c.l.b16 %v1777
    %v2544 = vunpack.c.h.b16 %v1777
    %v2545 = vunpack.c.l.b16 %v1778
    %v2546 = vunpack.c.h.b16 %v1778
    %v2547 = vunpack.c.l.b16 %v1779
    %v2548 = vunpack.c.h.b16 %v1779
    %v2549 = vunpack.c.l.b16 %v1780
    %v2550 = vunpack.c.h.b16 %v1780
    %v2551 = vunpack.c.l.b16 %v1781
    %v2552 = vunpack.c.h.b16 %v1781
    %v2553 = vunpack.c.l.b16 %v1782
    %v2554 = vunpack.c.h.b16 %v1782
    %v2555 = vpack.c.b16 %v2075, %v2043
    %v2556 = vpack.c.b16 %v2076, %v2044
    %v2557 = vpack.c.b16 %v2077, %v2045
    %v2558 = vpack.c.b16 %v2078, %v2046
    %v2559 = vpack.c.b16 %v2079, %v2047
    %v2560 = vpack.c.b16 %v2080, %v2048
    %v2561 = vpack.c.b16 %v2081, %v2049
    %v2562 = vpack.c.b16 %v2082, %v2050
    %v2563 = vpack.c.b16 %v2083, %v2051
    %v2564 = vpack.c.b16 %v2084, %v2052
    %v2565 = vpack.c.b16 %v2085, %v2053
    %v2566 = vpack.c.b16 %v2086, %v2054
    %v2567 = vpack.c.b16 %v2087, %v2055
    %v2568 = vpack.c.b16 %v2088, %v2056
    %v2569 = vpack.c.b16 %v2089, %v2057
    %v2570 = vpack.c.b16 %v2090, %v2058
    %v2571 = vpack.c.b16 %v2091, %v2059
    %v2572 = vpack.c.b16 %v2092, %v2060
    %v2573 = vpack.c.b16 %v2093, %v2061
    %v2574 = vpack.c.b16 %v2094, %v2062
    %v2575 = vpack.c.b16 %v2095, %v2063
    %v2576 = vpack.c.b16 %v2096, %v2064
    %v2577 = vpack.c.b16 %v2097, %v2065
    %v2578 = vpack.c.b16 %v2098, %v2066
    %v2579 = vpack.c.b16 %v2099, %v2067
    %v2580 = vpack.c.b16 %v2100, %v2068
    %v2581 = vpack.c.b16 %v2101, %v2069
    %v2582 = vpack.c.b16 %v2102, %v2070
    %v2583 = vpack.c.b16 %v2103, %v2071
    %v2584 = vpack.c.b16 %v2104, %v2072
    %v2585 = vpack.c.b16 %v2105, %v2073
    %v2586 = vpack.c.b16 %v2106, %v2074
    %v2587 = vpack.c.b16 %v2139, %v2107
    %v2588 = vpack.c.b16 %v2140, %v2108
    %v2589 = vpack.c.b16 %v2141, %v2109
    %v2590 = vpack.c.b16 %v2142, %v2110
    %v2591 = vpack.c.b16 %v2143, %v2111
    %v2592 = vpack.c.b16 %v2144, %v2112
    %v2593 = vpack.c.b16 %v2145, %v2113
    %v2594 = vpack.c.b16 %v2146, %v2114
    %v2595 = vpack.c.b16 %v2147, %v2115
    %v2596 = vpack.c.b16 %v2148, %v2116
    %v2597 = vpack.c.b16 %v2149, %v2117
    %v2598 = vpack.c.b16 %v2150, %v2118
    %v2599 = vpack.c.b16 %v2151, %v2119
    %v2600 = vpack.c.b16 %v2152, %v2120
    %v2601 = vpack.c.b16 %v2153, %v2121
    %v2602 = vpack.c.b16 %v2154, %v2122
    %v2603 = vpack.c.b16 %v2155, %v2123
    %v2604 = vpack.c.b16 %v2156, %v2124
    %v2605 = vpack.c.b16 %v2157, %v2125
    %v2606 = vpack.c.b16 %v2158, %v2126
    %v2607 = vpack.c.b16 %v2159, %v2127
    %v2608 = vpack.c.b16 %v2160, %v2128
    %v2609 = vpack.c.b16 %v2161, %v2129
    %v2610 = vpack.c.b16 %v2162, %v2130
    %v2611 = vpack.c.b16 %v2163, %v2131
    %v2612 = vpack.c.b16 %v2164, %v2132
    %v2613 = vpack.c.b16 %v2165, %v2133
    %v2614 = vpack.c.b16 %v2166, %v2134
    %v2615 = vpack.c.b16 %v2167, %v2135
    %v2616 = vpack.c.b16 %v2168, %v2136
    %v2617 = vpack.c.b16 %v2169, %v2137
    %v2618 = vpack.c.b16 %v2170, %v2138
    %v2619 = vpack.c.b16 %v2203, %v2171
    %v2620 = vpack.c.b16 %v2204, %v2172
    %v2621 = vpack.c.b16 %v2205, %v2173
    %v2622 = vpack.c.b16 %v2206, %v2174
    %v2623 = vpack.c.b16 %v2207, %v2175
    %v2624 = vpack.c.b16 %v2208, %v2176
    %v2625 = vpack.c.b16 %v2209, %v2177
    %v2626 = vpack.c.b16 %v2210, %v2178
    %v2627 = vpack.c.b16 %v2211, %v2179
    %v2628 = vpack.c.b16 %v2212, %v2180
    %v2629 = vpack.c.b16 %v2213, %v2181
    %v2630 = vpack.c.b16 %v2214, %v2182
    %v2631 = vpack.c.b16 %v2215, %v2183
    %v2632 = vpack.c.b16 %v2216, %v2184
    %v2633 = vpack.c.b16 %v2217, %v2185
    %v2634 = vpack.c.b16 %v2218, %v2186
    %v2635 = vpack.c.b16 %v2219, %v2187
    %v2636 = vpack.c.b16 %v2220, %v2188
    %v2637 = vpack.c.b16 %v2221, %v2189
    %v2638 = vpack.c.b16 %v2222, %v2190
    %v2639 = vpack.c.b16 %v2223, %v2191
    %v2640 = vpack.c.b16 %v2224, %v2192
    %v2641 = vpack.c.b16 %v2225, %v2193
    %v2642 = vpack.c.b16 %v2226, %v2194
    %v2643 = vpack.c.b16 %v2227, %v2195
    %v2644 = vpack.c.b16 %v2228, %v2196
    %v2645 = vpack.c.b16 %v2229, %v2197
    %v2646 = vpack.c.b16 %v2230, %v2198
    %v2647 = vpack.c.b16 %v2231, %v2199
    %v2648 = vpack.c.b16 %v2232, %v2200
    %v2649 = vpack.c.b16 %v2233, %v2201
    %v2650 = vpack.c.b16 %v2234, %v2202
    %v2651 = vpack.c.b16 %v2267, %v2235
    %v2652 = vpack.c.b16 %v2268, %v2236
    %v2653 = vpack.c.b16 %v2269, %v2237
    %v2654 = vpack.c.b16 %v2270, %v2238
    %v2655 = vpack.c.b16 %v2271, %v2239
    %v2656 = vpack.c.b16 %v2272, %v2240
    %v2657 = vpack.c.b16 %v2273, %v2241
    %v2658 = vpack.c.b16 %v2274, %v2242
    %v2659 = vpack.c.b16 %v2275, %v2243
    %v2660 = vpack.c.b16 %v2276, %v2244
    %v2661 = vpack.c.b16 %v2277, %v2245
    %v2662 = vpack.c.b16 %v2278, %v2246
    %v2663 = vpack.c.b16 %v2279, %v2247
    %v2664 = vpack.c.b16 %v2280, %v2248
    %v2665 = vpack.c.b16 %v2281, %v2249
    %v2666 = vpack.c.b16 %v2282, %v2250
    %v2667 = vpack.c.b16 %v2283, %v2251
    %v2668 = vpack.c.b16 %v2284, %v2252
    %v2669 = vpack.c.b16 %v2285, %v2253
    %v2670 = vpack.c.b16 %v2286, %v2254
    %v2671 = vpack.c.b16 %v2287, %v2255
    %v2672 = vpack.c.b16 %v2288, %v2256
    %v2673 = vpack.c.b16 %v2289, %v2257
    %v2674 = vpack.c.b16 %v2290, %v2258
    %v2675 = vpack.c.b16 %v2291, %v2259
    %v2676 = vpack.c.b16 %v2292, %v2260
    %v2677 = vpack.c.b16 %v2293, %v2261
    %v2678 = vpack.c.b16 %v2294, %v2262
    %v2679 = vpack.c.b16 %v2295, %v2263
    %v2680 = vpack.c.b16 %v2296, %v2264
    %v2681 = vpack.c.b16 %v2297, %v2265
    %v2682 = vpack.c.b16 %v2298, %v2266
    %v2683 = vpack.c.b16 %v2331, %v2299
    %v2684 = vpack.c.b16 %v2332, %v2300
    %v2685 = vpack.c.b16 %v2333, %v2301
    %v2686 = vpack.c.b16 %v2334, %v2302
    %v2687 = vpack.c.b16 %v2335, %v2303
    %v2688 = vpack.c.b16 %v2336, %v2304
    %v2689 = vpack.c.b16 %v2337, %v2305
    %v2690 = vpack.c.b16 %v2338, %v2306
    %v2691 = vpack.c.b16 %v2339, %v2307
    %v2692 = vpack.c.b16 %v2340, %v2308
    %v2693 = vpack.c.b16 %v2341, %v2309
    %v2694 = vpack.c.b16 %v2342, %v2310
    %v2695 = vpack.c.b16 %v2343, %v2311
    %v2696 = vpack.c.b16 %v2344, %v2312
    %v2697 = vpack.c.b16 %v2345, %v2313
    %v2698 = vpack.c.b16 %v2346, %v2314
    %v2699 = vpack.c.b16 %v2347, %v2315
    %v2700 = vpack.c.b16 %v2348, %v2316
    %v2701 = vpack.c.b16 %v2349, %v2317
    %v2702 = vpack.c.b16 %v2350, %v2318
    %v2703 = vpack.c.b16 %v2351, %v2319
    %v2704 = vpack.c.b16 %v2352, %v2320
    %v2705 = vpack.c.b16 %v2353, %v2321
    %v2706 = vpack.c.b16 %v2354, %v2322
    %v2707 = vpack.c.b16 %v2355, %v2323
    %v2708 = vpack.c.b16 %v2356, %v2324
    %v2709 = vpack.c.b16 %v2357, %v2325
    %v2710 = vpack.c.b16 %v2358, %v2326
    %v2711 = vpack.c.b16 %v2359, %v2327
    %v2712 = vpack.c.b16 %v2360, %v2328
    %v2713 = vpack.c.b16 %v2361, %v2329
    %v2714 = vpack.c.b16 %v2362, %v2330
    %v2715 = vpack.c.b16 %v2395, %v2363
    %v2716 = vpack.c.b16 %v2396, %v2364
    %v2717 = vpack.c.b16 %v2397, %v2365
    %v2718 = vpack.c.b16 %v2398, %v2366
    %v2719 = vpack.c.b16 %v2399, %v2367
    %v2720 = vpack.c.b16 %v2400, %v2368
    %v2721 = vpack.c.b16 %v2401, %v2369
    %v2722 = vpack.c.b16 %v2402, %v2370
    %v2723 = vpack.c.b16 %v2403, %v2371
    %v2724 = vpack.c.b16 %v2404, %v2372
    %v2725 = vpack.c.b16 %v2405, %v2373
    %v2726 = vpack.c.b16 %v2406, %v2374
    %v2727 = vpack.c.b16 %v2407, %v2375
    %v2728 = vpack.c.b16 %v2408, %v2376
    %v2729 = vpack.c.b16 %v2409, %v2377
    %v2730 = vpack.c.b16 %v2410, %v2378
    %v2731 = vpack.c.b16 %v2411, %v2379
    %v2732 = vpack.c.b16 %v2412, %v2380
    %v2733 = vpack.c.b16 %v2413, %v2381
    %v2734 = vpack.c.b16 %v2414, %v2382
    %v2735 = vpack.c.b16 %v2415, %v2383
    %v2736 = vpack.c.b16 %v2416, %v2384
    %v2737 = vpack.c.b16 %v2417, %v2385
    %v2738 = vpack.c.b16 %v2418, %v2386
    %v2739 = vpack.c.b16 %v2419, %v2387
    %v2740 = vpack.c.b16 %v2420, %v2388
    %v2741 = vpack.c.b16 %v2421, %v2389
    %v2742 = vpack.c.b16 %v2422, %v2390
    %v2743 = vpack.c.b16 %v2423, %v2391
    %v2744 = vpack.c.b16 %v2424, %v2392
    %v2745 = vpack.c.b16 %v2425, %v2393
    %v2746 = vpack.c.b16 %v2426, %v2394
    %v2747 = vpack.c.b16 %v2459, %v2427
    %v2748 = vpack.c.b16 %v2460, %v2428
    %v2749 = vpack.c.b16 %v2461, %v2429
    %v2750 = vpack.c.b16 %v2462, %v2430
    %v2751 = vpack.c.b16 %v2463, %v2431
    %v2752 = vpack.c.b16 %v2464, %v2432
    %v2753 = vpack.c.b16 %v2465, %v2433
    %v2754 = vpack.c.b16 %v2466, %v2434
    %v2755 = vpack.c.b16 %v2467, %v2435
    %v2756 = vpack.c.b16 %v2468, %v2436
    %v2757 = vpack.c.b16 %v2469, %v2437
    %v2758 = vpack.c.b16 %v2470, %v2438
    %v2759 = vpack.c.b16 %v2471, %v2439
    %v2760 = vpack.c.b16 %v2472, %v2440
    %v2761 = vpack.c.b16 %v2473, %v2441
    %v2762 = vpack.c.b16 %v2474, %v2442
    %v2763 = vpack.c.b16 %v2475, %v2443
    %v2764 = vpack.c.b16 %v2476, %v2444
    %v2765 = vpack.c.b16 %v2477, %v2445
    %v2766 = vpack.c.b16 %v2478, %v2446
    %v2767 = vpack.c.b16 %v2479, %v2447
    %v2768 = vpack.c.b16 %v2480, %v2448
    %v2769 = vpack.c.b16 %v2481, %v2449
    %v2770 = vpack.c.b16 %v2482, %v2450
    %v2771 = vpack.c.b16 %v2483, %v2451
    %v2772 = vpack.c.b16 %v2484, %v2452
    %v2773 = vpack.c.b16 %v2485, %v2453
    %v2774 = vpack.c.b16 %v2486, %v2454
    %v2775 = vpack.c.b16 %v2487, %v2455
    %v2776 = vpack.c.b16 %v2488, %v2456
    %v2777 = vpack.c.b16 %v2489, %v2457
    %v2778 = vpack.c.b16 %v2490, %v2458
    %v2779 = vpack.c.b16 %v2523, %v2491
    %v2780 = vpack.c.b16 %v2524, %v2492
    %v2781 = vpack.c.b16 %v2525, %v2493
    %v2782 = vpack.c.b16 %v2526, %v2494
    %v2783 = vpack.c.b16 %v2527, %v2495
    %v2784 = vpack.c.b16 %v2528, %v2496
    %v2785 = vpack.c.b16 %v2529, %v2497
    %v2786 = vpack.c.b16 %v2530, %v2498
    %v2787 = vpack.c.b16 %v2531, %v2499
    %v2788 = vpack.c.b16 %v2532, %v2500
    %v2789 = vpack.c.b16 %v2533, %v2501
    %v2790 = vpack.c.b16 %v2534, %v2502
    %v2791 = vpack.c.b16 %v2535, %v2503
    %v2792 = vpack.c.b16 %v2536, %v2504
    %v2793 = vpack.c.b16 %v2537, %v2505
    %v2794 = vpack.c.b16 %v2538, %v2506
    %v2795 = vpack.c.b16 %v2539, %v2507
    %v2796 = vpack.c.b16 %v2540, %v2508
    %v2797 = vpack.c.b16 %v2541, %v2509
    %v2798 = vpack.c.b16 %v2542, %v2510
    %v2799 = vpack.c.b16 %v2543, %v2511
    %v2800 = vpack.c.b16 %v2544, %v2512
    %v2801 = vpack.c.b16 %v2545, %v2513
    %v2802 = vpack.c.b16 %v2546, %v2514
    %v2803 = vpack.c.b16 %v2547, %v2515
    %v2804 = vpack.c.b16 %v2548, %v2516
    %v2805 = vpack.c.b16 %v2549, %v2517
    %v2806 = vpack.c.b16 %v2550, %v2518
    %v2807 = vpack.c.b16 %v2551, %v2519
    %v2808 = vpack.c.b16 %v2552, %v2520
    %v2809 = vpack.c.b16 %v2553, %v2521
    %v2810 = vpack.c.b16 %v2554, %v2522
    %3067 = vmatpush.bf16.msra.mxu0 %v2779
    %3068 = vmatpush.bf16.msra.mxu0 %v2747
    %3069 = vmatpush.bf16.msra.mxu0 %v2715
    %3070 = vmatpush.bf16.msra.mxu0 %v2683
    %3071 = vmatpush.bf16.msra.mxu0 %v2651
    %3072 = vmatpush.bf16.msra.mxu0 %v2619
    %3073 = vmatpush.bf16.msra.mxu0 %v2587
    %3074 = vmatpush.bf16.msra.mxu0 %v2555
    %3075 = vmatmul.bf16.gmra.mxu0 %v1785
    %v3076 = vpop.f32.mrf.mxu0
    %v3077 = vadd.f32 0.0, %v3076
    %v3078 = vpop.f32.mrf.mxu0
    %3079 = vdwg.mxu0
    %3080 = vmatpush.bf16.msra.mxu0 %v2780
    %3081 = vmatpush.bf16.msra.mxu0 %v2748
    %3082 = vmatpush.bf16.msra.mxu0 %v2716
    %3083 = vmatpush.bf16.msra.mxu0 %v2684
    %3084 = vmatpush.bf16.msra.mxu0 %v2652
    %3085 = vmatpush.bf16.msra.mxu0 %v2620
    %3086 = vmatpush.bf16.msra.mxu0 %v2588
    %3087 = vmatpush.bf16.msra.mxu0 %v2556
    %3088 = vmatmul.bf16.gmra.mxu0 %v1785
    %v3089 = vpop.f32.mrf.mxu0
    %v3090 = vadd.f32 0.0, %v3089
    %v3091 = vpop.f32.mrf.mxu0
    %3092 = vdwg.mxu0
    %3093 = vmatpush.bf16.msra.mxu0 %v2781
    %3094 = vmatpush.bf16.msra.mxu0 %v2749
    %3095 = vmatpush.bf16.msra.mxu0 %v2717
    %3096 = vmatpush.bf16.msra.mxu0 %v2685
    %3097 = vmatpush.bf16.msra.mxu0 %v2653
    %3098 = vmatpush.bf16.msra.mxu0 %v2621
    %3099 = vmatpush.bf16.msra.mxu0 %v2589
    %3100 = vmatpush.bf16.msra.mxu0 %v2557
    %3101 = vmatmul.bf16.gmra.mxu0 %v1785
    %v3102 = vpop.f32.mrf.mxu0
    %v3103 = vadd.f32 0.0, %v3102
    %v3104 = vpop.f32.mrf.mxu0
    %3105 = vdwg.mxu0
    %3106 = vmatpush.bf16.msra.mxu0 %v2782
    %3107 = vmatpush.bf16.msra.mxu0 %v2750
    %3108 = vmatpush.bf16.msra.mxu0 %v2718
    %3109 = vmatpush.bf16.msra.mxu0 %v2686
    %3110 = vmatpush.bf16.msra.mxu0 %v2654
    %3111 = vmatpush.bf16.msra.mxu0 %v2622
    %3112 = vmatpush.bf16.msra.mxu0 %v2590
    %3113 = vmatpush.bf16.msra.mxu0 %v2558
    %3114 = vmatmul.bf16.gmra.mxu0 %v1785
    %v3115 = vpop.f32.mrf.mxu0
    %v3116 = vadd.f32 0.0, %v3115
    %v3117 = vpop.f32.mrf.mxu0
    %3118 = vdwg.mxu0
    %3119 = vmatpush.bf16.msra.mxu0 %v2783
    %3120 = vmatpush.bf16.msra.mxu0 %v2751
    %3121 = vmatpush.bf16.msra.mxu0 %v2719
    %3122 = vmatpush.bf16.msra.mxu0 %v2687
    %3123 = vmatpush.bf16.msra.mxu0 %v2655
    %3124 = vmatpush.bf16.msra.mxu0 %v2623
    %3125 = vmatpush.bf16.msra.mxu0 %v2591
    %3126 = vmatpush.bf16.msra.mxu0 %v2559
    %3127 = vmatmul.bf16.gmra.mxu0 %v1785
    %v3128 = vpop.f32.mrf.mxu0
    %v3129 = vadd.f32 0.0, %v3128
    %v3130 = vpop.f32.mrf.mxu0
    %3131 = vdwg.mxu0
    %3132 = vmatpush.bf16.msra.mxu0 %v2784
    %3133 = vmatpush.bf16.msra.mxu0 %v2752
    %3134 = vmatpush.bf16.msra.mxu0 %v2720
    %3135 = vmatpush.bf16.msra.mxu0 %v2688
    %3136 = vmatpush.bf16.msra.mxu0 %v2656
    %3137 = vmatpush.bf16.msra.mxu0 %v2624
    %3138 = vmatpush.bf16.msra.mxu0 %v2592
    %3139 = vmatpush.bf16.msra.mxu0 %v2560
    %3140 = vmatmul.bf16.gmra.mxu0 %v1785
    %v3141 = vpop.f32.mrf.mxu0
    %v3142 = vadd.f32 0.0, %v3141
    %v3143 = vpop.f32.mrf.mxu0
    %3144 = vdwg.mxu0
    %3145 = vmatpush.bf16.msra.mxu0 %v2785
    %3146 = vmatpush.bf16.msra.mxu0 %v2753
    %3147 = vmatpush.bf16.msra.mxu0 %v2721
    %3148 = vmatpush.bf16.msra.mxu0 %v2689
    %3149 = vmatpush.bf16.msra.mxu0 %v2657
    %3150 = vmatpush.bf16.msra.mxu0 %v2625
    %3151 = vmatpush.bf16.msra.mxu0 %v2593
    %3152 = vmatpush.bf16.msra.mxu0 %v2561
    %3153 = vmatmul.bf16.gmra.mxu0 %v1785
    %v3154 = vpop.f32.mrf.mxu0
    %v3155 = vadd.f32 0.0, %v3154
    %v3156 = vpop.f32.mrf.mxu0
    %3157 = vdwg.mxu0
    %3158 = vmatpush.bf16.msra.mxu0 %v2786
    %3159 = vmatpush.bf16.msra.mxu0 %v2754
    %3160 = vmatpush.bf16.msra.mxu0 %v2722
    %3161 = vmatpush.bf16.msra.mxu0 %v2690
    %3162 = vmatpush.bf16.msra.mxu0 %v2658
    %3163 = vmatpush.bf16.msra.mxu0 %v2626
    %3164 = vmatpush.bf16.msra.mxu0 %v2594
    %3165 = vmatpush.bf16.msra.mxu0 %v2562
    %3166 = vmatmul.bf16.gmra.mxu0 %v1785
    %v3167 = vpop.f32.mrf.mxu0
    %v3168 = vadd.f32 0.0, %v3167
    %v3169 = vpop.f32.mrf.mxu0
    %3170 = vdwg.mxu0
    %3171 = vmatpush.bf16.msra.mxu0 %v2787
    %3172 = vmatpush.bf16.msra.mxu0 %v2755
    %3173 = vmatpush.bf16.msra.mxu0 %v2723
    %3174 = vmatpush.bf16.msra.mxu0 %v2691
    %3175 = vmatpush.bf16.msra.mxu0 %v2659
    %3176 = vmatpush.bf16.msra.mxu0 %v2627
    %3177 = vmatpush.bf16.msra.mxu0 %v2595
    %3178 = vmatpush.bf16.msra.mxu0 %v2563
    %3179 = vmatmul.bf16.gmra.mxu0 %v1785
    %v3180 = vpop.f32.mrf.mxu0
    %v3181 = vadd.f32 0.0, %v3180
    %v3182 = vpop.f32.mrf.mxu0
    %3183 = vdwg.mxu0
    %3184 = vmatpush.bf16.msra.mxu0 %v2788
    %3185 = vmatpush.bf16.msra.mxu0 %v2756
    %3186 = vmatpush.bf16.msra.mxu0 %v2724
    %3187 = vmatpush.bf16.msra.mxu0 %v2692
    %3188 = vmatpush.bf16.msra.mxu0 %v2660
    %3189 = vmatpush.bf16.msra.mxu0 %v2628
    %3190 = vmatpush.bf16.msra.mxu0 %v2596
    %3191 = vmatpush.bf16.msra.mxu0 %v2564
    %3192 = vmatmul.bf16.gmra.mxu0 %v1785
    %v3193 = vpop.f32.mrf.mxu0
    %v3194 = vadd.f32 0.0, %v3193
    %v3195 = vpop.f32.mrf.mxu0
    %3196 = vdwg.mxu0
    %3197 = vmatpush.bf16.msra.mxu0 %v2789
    %3198 = vmatpush.bf16.msra.mxu0 %v2757
    %3199 = vmatpush.bf16.msra.mxu0 %v2725
    %3200 = vmatpush.bf16.msra.mxu0 %v2693
    %3201 = vmatpush.bf16.msra.mxu0 %v2661
    %3202 = vmatpush.bf16.msra.mxu0 %v2629
    %3203 = vmatpush.bf16.msra.mxu0 %v2597
    %3204 = vmatpush.bf16.msra.mxu0 %v2565
    %3205 = vmatmul.bf16.gmra.mxu0 %v1785
    %v3206 = vpop.f32.mrf.mxu0
    %v3207 = vadd.f32 0.0, %v3206
    %v3208 = vpop.f32.mrf.mxu0
    %3209 = vdwg.mxu0
    %3210 = vmatpush.bf16.msra.mxu0 %v2790
    %3211 = vmatpush.bf16.msra.mxu0 %v2758
    %3212 = vmatpush.bf16.msra.mxu0 %v2726
    %3213 = vmatpush.bf16.msra.mxu0 %v2694
    %3214 = vmatpush.bf16.msra.mxu0 %v2662
    %3215 = vmatpush.bf16.msra.mxu0 %v2630
    %3216 = vmatpush.bf16.msra.mxu0 %v2598
    %3217 = vmatpush.bf16.msra.mxu0 %v2566
    %3218 = vmatmul.bf16.gmra.mxu0 %v1785
    %v3219 = vpop.f32.mrf.mxu0
    %v3220 = vadd.f32 0.0, %v3219
    %v3221 = vpop.f32.mrf.mxu0
    %3222 = vdwg.mxu0
    %3223 = vmatpush.bf16.msra.mxu0 %v2791
    %3224 = vmatpush.bf16.msra.mxu0 %v2759
    %3225 = vmatpush.bf16.msra.mxu0 %v2727
    %3226 = vmatpush.bf16.msra.mxu0 %v2695
    %3227 = vmatpush.bf16.msra.mxu0 %v2663
    %3228 = vmatpush.bf16.msra.mxu0 %v2631
    %3229 = vmatpush.bf16.msra.mxu0 %v2599
    %3230 = vmatpush.bf16.msra.mxu0 %v2567
    %3231 = vmatmul.bf16.gmra.mxu0 %v1785
    %v3232 = vpop.f32.mrf.mxu0
    %v3233 = vadd.f32 0.0, %v3232
    %v3234 = vpop.f32.mrf.mxu0
    %3235 = vdwg.mxu0
    %3236 = vmatpush.bf16.msra.mxu0 %v2792
    %3237 = vmatpush.bf16.msra.mxu0 %v2760
    %3238 = vmatpush.bf16.msra.mxu0 %v2728
    %3239 = vmatpush.bf16.msra.mxu0 %v2696
    %3240 = vmatpush.bf16.msra.mxu0 %v2664
    %3241 = vmatpush.bf16.msra.mxu0 %v2632
    %3242 = vmatpush.bf16.msra.mxu0 %v2600
    %3243 = vmatpush.bf16.msra.mxu0 %v2568
    %3244 = vmatmul.bf16.gmra.mxu0 %v1785
    %v3245 = vpop.f32.mrf.mxu0
    %v3246 = vadd.f32 0.0, %v3245
    %v3247 = vpop.f32.mrf.mxu0
    %3248 = vdwg.mxu0
    %3249 = vmatpush.bf16.msra.mxu0 %v2793
    %3250 = vmatpush.bf16.msra.mxu0 %v2761
    %3251 = vmatpush.bf16.msra.mxu0 %v2729
    %3252 = vmatpush.bf16.msra.mxu0 %v2697
    %3253 = vmatpush.bf16.msra.mxu0 %v2665
    %3254 = vmatpush.bf16.msra.mxu0 %v2633
    %3255 = vmatpush.bf16.msra.mxu0 %v2601
    %3256 = vmatpush.bf16.msra.mxu0 %v2569
    %3257 = vmatmul.bf16.gmra.mxu0 %v1785
    %v3258 = vpop.f32.mrf.mxu0
    %v3259 = vadd.f32 0.0, %v3258
    %v3260 = vpop.f32.mrf.mxu0
    %3261 = vdwg.mxu0
    %3262 = vmatpush.bf16.msra.mxu0 %v2794
    %3263 = vmatpush.bf16.msra.mxu0 %v2762
    %3264 = vmatpush.bf16.msra.mxu0 %v2730
    %3265 = vmatpush.bf16.msra.mxu0 %v2698
    %3266 = vmatpush.bf16.msra.mxu0 %v2666
    %3267 = vmatpush.bf16.msra.mxu0 %v2634
    %3268 = vmatpush.bf16.msra.mxu0 %v2602
    %3269 = vmatpush.bf16.msra.mxu0 %v2570
    %3270 = vmatmul.bf16.gmra.mxu0 %v1785
    %v3271 = vpop.f32.mrf.mxu0
    %v3272 = vadd.f32 0.0, %v3271
    %v3273 = vpop.f32.mrf.mxu0
    %3274 = vdwg.mxu0
    %3275 = vmatpush.bf16.msra.mxu0 %v2795
    %3276 = vmatpush.bf16.msra.mxu0 %v2763
    %3277 = vmatpush.bf16.msra.mxu0 %v2731
    %3278 = vmatpush.bf16.msra.mxu0 %v2699
    %3279 = vmatpush.bf16.msra.mxu0 %v2667
    %3280 = vmatpush.bf16.msra.mxu0 %v2635
    %3281 = vmatpush.bf16.msra.mxu0 %v2603
    %3282 = vmatpush.bf16.msra.mxu0 %v2571
    %3283 = vmatmul.bf16.gmra.mxu0 %v1785
    %v3284 = vpop.f32.mrf.mxu0
    %v3285 = vadd.f32 0.0, %v3284
    %v3286 = vpop.f32.mrf.mxu0
    %3287 = vdwg.mxu0
    %3288 = vmatpush.bf16.msra.mxu0 %v2796
    %3289 = vmatpush.bf16.msra.mxu0 %v2764
    %3290 = vmatpush.bf16.msra.mxu0 %v2732
    %3291 = vmatpush.bf16.msra.mxu0 %v2700
    %3292 = vmatpush.bf16.msra.mxu0 %v2668
    %3293 = vmatpush.bf16.msra.mxu0 %v2636
    %3294 = vmatpush.bf16.msra.mxu0 %v2604
    %3295 = vmatpush.bf16.msra.mxu0 %v2572
    %3296 = vmatmul.bf16.gmra.mxu0 %v1785
    %v3297 = vpop.f32.mrf.mxu0
    %v3298 = vadd.f32 0.0, %v3297
    %v3299 = vpop.f32.mrf.mxu0
    %3300 = vdwg.mxu0
    %3301 = vmatpush.bf16.msra.mxu0 %v2797
    %3302 = vmatpush.bf16.msra.mxu0 %v2765
    %3303 = vmatpush.bf16.msra.mxu0 %v2733
    %3304 = vmatpush.bf16.msra.mxu0 %v2701
    %3305 = vmatpush.bf16.msra.mxu0 %v2669
    %3306 = vmatpush.bf16.msra.mxu0 %v2637
    %3307 = vmatpush.bf16.msra.mxu0 %v2605
    %3308 = vmatpush.bf16.msra.mxu0 %v2573
    %3309 = vmatmul.bf16.gmra.mxu0 %v1785
    %v3310 = vpop.f32.mrf.mxu0
    %v3311 = vadd.f32 0.0, %v3310
    %v3312 = vpop.f32.mrf.mxu0
    %3313 = vdwg.mxu0
    %3314 = vmatpush.bf16.msra.mxu0 %v2798
    %3315 = vmatpush.bf16.msra.mxu0 %v2766
    %3316 = vmatpush.bf16.msra.mxu0 %v2734
    %3317 = vmatpush.bf16.msra.mxu0 %v2702
    %3318 = vmatpush.bf16.msra.mxu0 %v2670
    %3319 = vmatpush.bf16.msra.mxu0 %v2638
    %3320 = vmatpush.bf16.msra.mxu0 %v2606
    %3321 = vmatpush.bf16.msra.mxu0 %v2574
    %3322 = vmatmul.bf16.gmra.mxu0 %v1785
    %v3323 = vpop.f32.mrf.mxu0
    %v3324 = vadd.f32 0.0, %v3323
    %v3325 = vpop.f32.mrf.mxu0
    %3326 = vdwg.mxu0
    %3327 = vmatpush.bf16.msra.mxu0 %v2799
    %3328 = vmatpush.bf16.msra.mxu0 %v2767
    %3329 = vmatpush.bf16.msra.mxu0 %v2735
    %3330 = vmatpush.bf16.msra.mxu0 %v2703
    %3331 = vmatpush.bf16.msra.mxu0 %v2671
    %3332 = vmatpush.bf16.msra.mxu0 %v2639
    %3333 = vmatpush.bf16.msra.mxu0 %v2607
    %3334 = vmatpush.bf16.msra.mxu0 %v2575
    %3335 = vmatmul.bf16.gmra.mxu0 %v1785
    %v3336 = vpop.f32.mrf.mxu0
    %v3337 = vadd.f32 0.0, %v3336
    %v3338 = vpop.f32.mrf.mxu0
    %3339 = vdwg.mxu0
    %3340 = vmatpush.bf16.msra.mxu0 %v2800
    %3341 = vmatpush.bf16.msra.mxu0 %v2768
    %3342 = vmatpush.bf16.msra.mxu0 %v2736
    %3343 = vmatpush.bf16.msra.mxu0 %v2704
    %3344 = vmatpush.bf16.msra.mxu0 %v2672
    %3345 = vmatpush.bf16.msra.mxu0 %v2640
    %3346 = vmatpush.bf16.msra.mxu0 %v2608
    %3347 = vmatpush.bf16.msra.mxu0 %v2576
    %3348 = vmatmul.bf16.gmra.mxu0 %v1785
    %v3349 = vpop.f32.mrf.mxu0
    %v3350 = vadd.f32 0.0, %v3349
    %v3351 = vpop.f32.mrf.mxu0
    %3352 = vdwg.mxu0
    %3353 = vmatpush.bf16.msra.mxu0 %v2801
    %3354 = vmatpush.bf16.msra.mxu0 %v2769
    %3355 = vmatpush.bf16.msra.mxu0 %v2737
    %3356 = vmatpush.bf16.msra.mxu0 %v2705
    %3357 = vmatpush.bf16.msra.mxu0 %v2673
    %3358 = vmatpush.bf16.msra.mxu0 %v2641
    %3359 = vmatpush.bf16.msra.mxu0 %v2609
    %3360 = vmatpush.bf16.msra.mxu0 %v2577
    %3361 = vmatmul.bf16.gmra.mxu0 %v1785
    %v3362 = vpop.f32.mrf.mxu0
    %v3363 = vadd.f32 0.0, %v3362
    %v3364 = vpop.f32.mrf.mxu0
    %3365 = vdwg.mxu0
    %3366 = vmatpush.bf16.msra.mxu0 %v2802
    %3367 = vmatpush.bf16.msra.mxu0 %v2770
    %3368 = vmatpush.bf16.msra.mxu0 %v2738
    %3369 = vmatpush.bf16.msra.mxu0 %v2706
    %3370 = vmatpush.bf16.msra.mxu0 %v2674
    %3371 = vmatpush.bf16.msra.mxu0 %v2642
    %3372 = vmatpush.bf16.msra.mxu0 %v2610
    %3373 = vmatpush.bf16.msra.mxu0 %v2578
    %3374 = vmatmul.bf16.gmra.mxu0 %v1785
    %v3375 = vpop.f32.mrf.mxu0
    %v3376 = vadd.f32 0.0, %v3375
    %v3377 = vpop.f32.mrf.mxu0
    %3378 = vdwg.mxu0
    %3379 = vmatpush.bf16.msra.mxu0 %v2803
    %3380 = vmatpush.bf16.msra.mxu0 %v2771
    %3381 = vmatpush.bf16.msra.mxu0 %v2739
    %3382 = vmatpush.bf16.msra.mxu0 %v2707
    %3383 = vmatpush.bf16.msra.mxu0 %v2675
    %3384 = vmatpush.bf16.msra.mxu0 %v2643
    %3385 = vmatpush.bf16.msra.mxu0 %v2611
    %3386 = vmatpush.bf16.msra.mxu0 %v2579
    %3387 = vmatmul.bf16.gmra.mxu0 %v1785
    %v3388 = vpop.f32.mrf.mxu0
    %v3389 = vadd.f32 0.0, %v3388
    %v3390 = vpop.f32.mrf.mxu0
    %3391 = vdwg.mxu0
    %3392 = vmatpush.bf16.msra.mxu0 %v2804
    %3393 = vmatpush.bf16.msra.mxu0 %v2772
    %3394 = vmatpush.bf16.msra.mxu0 %v2740
    %3395 = vmatpush.bf16.msra.mxu0 %v2708
    %3396 = vmatpush.bf16.msra.mxu0 %v2676
    %3397 = vmatpush.bf16.msra.mxu0 %v2644
    %3398 = vmatpush.bf16.msra.mxu0 %v2612
    %3399 = vmatpush.bf16.msra.mxu0 %v2580
    %3400 = vmatmul.bf16.gmra.mxu0 %v1785
    %v3401 = vpop.f32.mrf.mxu0
    %v3402 = vadd.f32 0.0, %v3401
    %v3403 = vpop.f32.mrf.mxu0
    %3404 = vdwg.mxu0
    %3405 = vmatpush.bf16.msra.mxu0 %v2805
    %3406 = vmatpush.bf16.msra.mxu0 %v2773
    %3407 = vmatpush.bf16.msra.mxu0 %v2741
    %3408 = vmatpush.bf16.msra.mxu0 %v2709
    %3409 = vmatpush.bf16.msra.mxu0 %v2677
    %3410 = vmatpush.bf16.msra.mxu0 %v2645
    %3411 = vmatpush.bf16.msra.mxu0 %v2613
    %3412 = vmatpush.bf16.msra.mxu0 %v2581
    %3413 = vmatmul.bf16.gmra.mxu0 %v1785
    %v3414 = vpop.f32.mrf.mxu0
    %v3415 = vadd.f32 0.0, %v3414
    %v3416 = vpop.f32.mrf.mxu0
    %3417 = vdwg.mxu0
    %3418 = vmatpush.bf16.msra.mxu0 %v2806
    %3419 = vmatpush.bf16.msra.mxu0 %v2774
    %3420 = vmatpush.bf16.msra.mxu0 %v2742
    %3421 = vmatpush.bf16.msra.mxu0 %v2710
    %3422 = vmatpush.bf16.msra.mxu0 %v2678
    %3423 = vmatpush.bf16.msra.mxu0 %v2646
    %3424 = vmatpush.bf16.msra.mxu0 %v2614
    %3425 = vmatpush.bf16.msra.mxu0 %v2582
    %3426 = vmatmul.bf16.gmra.mxu0 %v1785
    %v3427 = vpop.f32.mrf.mxu0
    %v3428 = vadd.f32 0.0, %v3427
    %v3429 = vpop.f32.mrf.mxu0
    %3430 = vdwg.mxu0
    %3431 = vmatpush.bf16.msra.mxu0 %v2807
    %3432 = vmatpush.bf16.msra.mxu0 %v2775
    %3433 = vmatpush.bf16.msra.mxu0 %v2743
    %3434 = vmatpush.bf16.msra.mxu0 %v2711
    %3435 = vmatpush.bf16.msra.mxu0 %v2679
    %3436 = vmatpush.bf16.msra.mxu0 %v2647
    %3437 = vmatpush.bf16.msra.mxu0 %v2615
    %3438 = vmatpush.bf16.msra.mxu0 %v2583
    %3439 = vmatmul.bf16.gmra.mxu0 %v1785
    %v3440 = vpop.f32.mrf.mxu0
    %v3441 = vadd.f32 0.0, %v3440
    %v3442 = vpop.f32.mrf.mxu0
    %3443 = vdwg.mxu0
    %3444 = vmatpush.bf16.msra.mxu0 %v2808
    %3445 = vmatpush.bf16.msra.mxu0 %v2776
    %3446 = vmatpush.bf16.msra.mxu0 %v2744
    %3447 = vmatpush.bf16.msra.mxu0 %v2712
    %3448 = vmatpush.bf16.msra.mxu0 %v2680
    %3449 = vmatpush.bf16.msra.mxu0 %v2648
    %3450 = vmatpush.bf16.msra.mxu0 %v2616
    %3451 = vmatpush.bf16.msra.mxu0 %v2584
    %3452 = vmatmul.bf16.gmra.mxu0 %v1785
    %v3453 = vpop.f32.mrf.mxu0
    %v3454 = vadd.f32 0.0, %v3453
    %v3455 = vpop.f32.mrf.mxu0
    %3456 = vdwg.mxu0
    %3457 = vmatpush.bf16.msra.mxu0 %v2809
    %3458 = vmatpush.bf16.msra.mxu0 %v2777
    %3459 = vmatpush.bf16.msra.mxu0 %v2745
    %3460 = vmatpush.bf16.msra.mxu0 %v2713
    %3461 = vmatpush.bf16.msra.mxu0 %v2681
    %3462 = vmatpush.bf16.msra.mxu0 %v2649
    %3463 = vmatpush.bf16.msra.mxu0 %v2617
    %3464 = vmatpush.bf16.msra.mxu0 %v2585
    %3465 = vmatmul.bf16.gmra.mxu0 %v1785
    %v3466 = vpop.f32.mrf.mxu0
    %v3467 = vadd.f32 0.0, %v3466
    %v3468 = vpop.f32.mrf.mxu0
    %3469 = vdwg.mxu0
    %3470 = vmatpush.bf16.msra.mxu0 %v2810
    %3471 = vmatpush.bf16.msra.mxu0 %v2778
    %3472 = vmatpush.bf16.msra.mxu0 %v2746
    %3473 = vmatpush.bf16.msra.mxu0 %v2714
    %3474 = vmatpush.bf16.msra.mxu0 %v2682
    %3475 = vmatpush.bf16.msra.mxu0 %v2650
    %3476 = vmatpush.bf16.msra.mxu0 %v2618
    %3477 = vmatpush.bf16.msra.mxu0 %v2586
    %3478 = vmatmul.bf16.gmra.mxu0 %v1785
    %v3479 = vpop.f32.mrf.mxu0
    %v3480 = vadd.f32 0.0, %v3479
    %v3481 = vpop.f32.mrf.mxu0
    %3482 = vdwg.mxu0
    %v3515 = vrot.slane %v3090, 6
    %v3516 = vrot.slane %v3103, 4
    %v3517 = vrot.slane %v3116, 2
    %v3518 = vrot.slane %v3142, 6
    %v3519 = vrot.slane %v3155, 4
    %v3520 = vrot.slane %v3168, 2
    %v3521 = vrot.slane %v3194, 6
    %v3522 = vrot.slane %v3207, 4
    %v3523 = vrot.slane %v3220, 2
    %v3524 = vrot.slane %v3246, 6
    %v3525 = vrot.slane %v3259, 4
    %v3526 = vrot.slane %v3272, 2
    %v3527 = vrot.slane %v3298, 6
    %v3528 = vrot.slane %v3311, 4
    %v3529 = vrot.slane %v3324, 2
    %v3530 = vrot.slane %v3350, 6
    %v3531 = vrot.slane %v3363, 4
    %v3532 = vrot.slane %v3376, 2
    %v3533 = vrot.slane %v3402, 6
    %v3534 = vrot.slane %v3415, 4
    %v3535 = vrot.slane %v3428, 2
    %v3536 = vrot.slane %v3454, 6
    %v3537 = vrot.slane %v3467, 4
    %v3538 = vrot.slane %v3480, 2
    %v3539 = vsel %vm116, %v3077, %v3515
    %vm3540 = vcmask 1045508
    %v3541 = vsel %vm3540, %v3516, %v3517
    %vm3542 = vcmask 1043456
    %v3543 = vsel %vm3542, %v3539, %v3541
    %v3544 = vsel %vm116, %v3129, %v3518
    %v3545 = vsel %vm3540, %v3519, %v3520
    %v3546 = vsel %vm3542, %v3544, %v3545
    %v3547 = vsel %vm116, %v3181, %v3521
    %v3548 = vsel %vm3540, %v3522, %v3523
    %v3549 = vsel %vm3542, %v3547, %v3548
    %v3550 = vsel %vm116, %v3233, %v3524
    %v3551 = vsel %vm3540, %v3525, %v3526
    %v3552 = vsel %vm3542, %v3550, %v3551
    %v3553 = vsel %vm116, %v3285, %v3527
    %v3554 = vsel %vm3540, %v3528, %v3529
    %v3555 = vsel %vm3542, %v3553, %v3554
    %v3556 = vsel %vm116, %v3337, %v3530
    %v3557 = vsel %vm3540, %v3531, %v3532
    %v3558 = vsel %vm3542, %v3556, %v3557
    %v3559 = vsel %vm116, %v3389, %v3533
    %v3560 = vsel %vm3540, %v3534, %v3535
    %v3561 = vsel %vm3542, %v3559, %v3560
    %v3562 = vsel %vm116, %v3441, %v3536
    %v3563 = vsel %vm3540, %v3537, %v3538
    %v3564 = vsel %vm3542, %v3562, %v3563
    %3573 = vst [vmem:[#allocation2] sm:$0xff] %v3543
    %3574 = vst [vmem:[#allocation2 + $0x8] sm:$0xff] %v3546
    %3575 = vst [vmem:[#allocation2 + $0x10] sm:$0xff] %v3549
    %3576 = vst [vmem:[#allocation2 + $0x18] sm:$0xff] %v3552
    %3577 = vst [vmem:[#allocation2 + $0x20] sm:$0xff] %v3555
    %3578 = vst [vmem:[#allocation2 + $0x28] sm:$0xff] %v3558
    %3579 = vst [vmem:[#allocation2 + $0x30] sm:$0xff] %v3561
    %3580 = vst [vmem:[#allocation2 + $0x38] sm:$0xff] %v3564
    %v3581 = vpack.c.bf16 %v1526, %v1526
    %v3583 = vrot.slane %v3581, 3
    %3585 = vmatpush.bf16.msra.mxu0 %v2779
    %3586 = vmatpush.bf16.msra.mxu0 %v2747
    %3587 = vmatpush.bf16.msra.mxu0 %v2715
    %3588 = vmatpush.bf16.msra.mxu0 %v2683
    %3589 = vmatpush.bf16.msra.mxu0 %v2651
    %3590 = vmatpush.bf16.msra.mxu0 %v2619
    %3591 = vmatpush.bf16.msra.mxu0 %v2587
    %3592 = vmatpush.bf16.msra.mxu0 %v2555
    %3593 = vmatmul.bf16.gmra.mxu0 %v3583
    %v3594 = vpop.f32.mrf.mxu0
    %v3595 = vadd.f32 0.0, %v3594
    %v3596 = vpop.f32.mrf.mxu0
    %3597 = vdwg.mxu0
    %3598 = vmatpush.bf16.msra.mxu0 %v2780
    %3599 = vmatpush.bf16.msra.mxu0 %v2748
    %3600 = vmatpush.bf16.msra.mxu0 %v2716
    %3601 = vmatpush.bf16.msra.mxu0 %v2684
    %3602 = vmatpush.bf16.msra.mxu0 %v2652
    %3603 = vmatpush.bf16.msra.mxu0 %v2620
    %3604 = vmatpush.bf16.msra.mxu0 %v2588
    %3605 = vmatpush.bf16.msra.mxu0 %v2556
    %3606 = vmatmul.bf16.gmra.mxu0 %v3583
    %v3607 = vpop.f32.mrf.mxu0
    %v3608 = vadd.f32 0.0, %v3607
    %v3609 = vpop.f32.mrf.mxu0
    %3610 = vdwg.mxu0
    %3611 = vmatpush.bf16.msra.mxu0 %v2781
    %3612 = vmatpush.bf16.msra.mxu0 %v2749
    %3613 = vmatpush.bf16.msra.mxu0 %v2717
    %3614 = vmatpush.bf16.msra.mxu0 %v2685
    %3615 = vmatpush.bf16.msra.mxu0 %v2653
    %3616 = vmatpush.bf16.msra.mxu0 %v2621
    %3617 = vmatpush.bf16.msra.mxu0 %v2589
    %3618 = vmatpush.bf16.msra.mxu0 %v2557
    %3619 = vmatmul.bf16.gmra.mxu0 %v3583
    %v3620 = vpop.f32.mrf.mxu0
    %v3621 = vadd.f32 0.0, %v3620
    %v3622 = vpop.f32.mrf.mxu0
    %3623 = vdwg.mxu0
    %3624 = vmatpush.bf16.msra.mxu0 %v2782
    %3625 = vmatpush.bf16.msra.mxu0 %v2750
    %3626 = vmatpush.bf16.msra.mxu0 %v2718
    %3627 = vmatpush.bf16.msra.mxu0 %v2686
    %3628 = vmatpush.bf16.msra.mxu0 %v2654
    %3629 = vmatpush.bf16.msra.mxu0 %v2622
    %3630 = vmatpush.bf16.msra.mxu0 %v2590
    %3631 = vmatpush.bf16.msra.mxu0 %v2558
    %3632 = vmatmul.bf16.gmra.mxu0 %v3583
    %v3633 = vpop.f32.mrf.mxu0
    %v3634 = vadd.f32 0.0, %v3633
    %v3635 = vpop.f32.mrf.mxu0
    %3636 = vdwg.mxu0
    %3637 = vmatpush.bf16.msra.mxu0 %v2783
    %3638 = vmatpush.bf16.msra.mxu0 %v2751
    %3639 = vmatpush.bf16.msra.mxu0 %v2719
    %3640 = vmatpush.bf16.msra.mxu0 %v2687
    %3641 = vmatpush.bf16.msra.mxu0 %v2655
    %3642 = vmatpush.bf16.msra.mxu0 %v2623
    %3643 = vmatpush.bf16.msra.mxu0 %v2591
    %3644 = vmatpush.bf16.msra.mxu0 %v2559
    %3645 = vmatmul.bf16.gmra.mxu0 %v3583
    %v3646 = vpop.f32.mrf.mxu0
    %v3647 = vadd.f32 0.0, %v3646
    %v3648 = vpop.f32.mrf.mxu0
    %3649 = vdwg.mxu0
    %3650 = vmatpush.bf16.msra.mxu0 %v2784
    %3651 = vmatpush.bf16.msra.mxu0 %v2752
    %3652 = vmatpush.bf16.msra.mxu0 %v2720
    %3653 = vmatpush.bf16.msra.mxu0 %v2688
    %3654 = vmatpush.bf16.msra.mxu0 %v2656
    %3655 = vmatpush.bf16.msra.mxu0 %v2624
    %3656 = vmatpush.bf16.msra.mxu0 %v2592
    %3657 = vmatpush.bf16.msra.mxu0 %v2560
    %3658 = vmatmul.bf16.gmra.mxu0 %v3583
    %v3659 = vpop.f32.mrf.mxu0
    %v3660 = vadd.f32 0.0, %v3659
    %v3661 = vpop.f32.mrf.mxu0
    %3662 = vdwg.mxu0
    %3663 = vmatpush.bf16.msra.mxu0 %v2785
    %3664 = vmatpush.bf16.msra.mxu0 %v2753
    %3665 = vmatpush.bf16.msra.mxu0 %v2721
    %3666 = vmatpush.bf16.msra.mxu0 %v2689
    %3667 = vmatpush.bf16.msra.mxu0 %v2657
    %3668 = vmatpush.bf16.msra.mxu0 %v2625
    %3669 = vmatpush.bf16.msra.mxu0 %v2593
    %3670 = vmatpush.bf16.msra.mxu0 %v2561
    %3671 = vmatmul.bf16.gmra.mxu0 %v3583
    %v3672 = vpop.f32.mrf.mxu0
    %v3673 = vadd.f32 0.0, %v3672
    %v3674 = vpop.f32.mrf.mxu0
    %3675 = vdwg.mxu0
    %3676 = vmatpush.bf16.msra.mxu0 %v2786
    %3677 = vmatpush.bf16.msra.mxu0 %v2754
    %3678 = vmatpush.bf16.msra.mxu0 %v2722
    %3679 = vmatpush.bf16.msra.mxu0 %v2690
    %3680 = vmatpush.bf16.msra.mxu0 %v2658
    %3681 = vmatpush.bf16.msra.mxu0 %v2626
    %3682 = vmatpush.bf16.msra.mxu0 %v2594
    %3683 = vmatpush.bf16.msra.mxu0 %v2562
    %3684 = vmatmul.bf16.gmra.mxu0 %v3583
    %v3685 = vpop.f32.mrf.mxu0
    %v3686 = vadd.f32 0.0, %v3685
    %v3687 = vpop.f32.mrf.mxu0
    %3688 = vdwg.mxu0
    %3689 = vmatpush.bf16.msra.mxu0 %v2787
    %3690 = vmatpush.bf16.msra.mxu0 %v2755
    %3691 = vmatpush.bf16.msra.mxu0 %v2723
    %3692 = vmatpush.bf16.msra.mxu0 %v2691
    %3693 = vmatpush.bf16.msra.mxu0 %v2659
    %3694 = vmatpush.bf16.msra.mxu0 %v2627
    %3695 = vmatpush.bf16.msra.mxu0 %v2595
    %3696 = vmatpush.bf16.msra.mxu0 %v2563
    %3697 = vmatmul.bf16.gmra.mxu0 %v3583
    %v3698 = vpop.f32.mrf.mxu0
    %v3699 = vadd.f32 0.0, %v3698
    %v3700 = vpop.f32.mrf.mxu0
    %3701 = vdwg.mxu0
    %3702 = vmatpush.bf16.msra.mxu0 %v2788
    %3703 = vmatpush.bf16.msra.mxu0 %v2756
    %3704 = vmatpush.bf16.msra.mxu0 %v2724
    %3705 = vmatpush.bf16.msra.mxu0 %v2692
    %3706 = vmatpush.bf16.msra.mxu0 %v2660
    %3707 = vmatpush.bf16.msra.mxu0 %v2628
    %3708 = vmatpush.bf16.msra.mxu0 %v2596
    %3709 = vmatpush.bf16.msra.mxu0 %v2564
    %3710 = vmatmul.bf16.gmra.mxu0 %v3583
    %v3711 = vpop.f32.mrf.mxu0
    %v3712 = vadd.f32 0.0, %v3711
    %v3713 = vpop.f32.mrf.mxu0
    %3714 = vdwg.mxu0
    %3715 = vmatpush.bf16.msra.mxu0 %v2789
    %3716 = vmatpush.bf16.msra.mxu0 %v2757
    %3717 = vmatpush.bf16.msra.mxu0 %v2725
    %3718 = vmatpush.bf16.msra.mxu0 %v2693
    %3719 = vmatpush.bf16.msra.mxu0 %v2661
    %3720 = vmatpush.bf16.msra.mxu0 %v2629
    %3721 = vmatpush.bf16.msra.mxu0 %v2597
    %3722 = vmatpush.bf16.msra.mxu0 %v2565
    %3723 = vmatmul.bf16.gmra.mxu0 %v3583
    %v3724 = vpop.f32.mrf.mxu0
    %v3725 = vadd.f32 0.0, %v3724
    %v3726 = vpop.f32.mrf.mxu0
    %3727 = vdwg.mxu0
    %3728 = vmatpush.bf16.msra.mxu0 %v2790
    %3729 = vmatpush.bf16.msra.mxu0 %v2758
    %3730 = vmatpush.bf16.msra.mxu0 %v2726
    %3731 = vmatpush.bf16.msra.mxu0 %v2694
    %3732 = vmatpush.bf16.msra.mxu0 %v2662
    %3733 = vmatpush.bf16.msra.mxu0 %v2630
    %3734 = vmatpush.bf16.msra.mxu0 %v2598
    %3735 = vmatpush.bf16.msra.mxu0 %v2566
    %3736 = vmatmul.bf16.gmra.mxu0 %v3583
    %v3737 = vpop.f32.mrf.mxu0
    %v3738 = vadd.f32 0.0, %v3737
    %v3739 = vpop.f32.mrf.mxu0
    %3740 = vdwg.mxu0
    %3741 = vmatpush.bf16.msra.mxu0 %v2791
    %3742 = vmatpush.bf16.msra.mxu0 %v2759
    %3743 = vmatpush.bf16.msra.mxu0 %v2727
    %3744 = vmatpush.bf16.msra.mxu0 %v2695
    %3745 = vmatpush.bf16.msra.mxu0 %v2663
    %3746 = vmatpush.bf16.msra.mxu0 %v2631
    %3747 = vmatpush.bf16.msra.mxu0 %v2599
    %3748 = vmatpush.bf16.msra.mxu0 %v2567
    %3749 = vmatmul.bf16.gmra.mxu0 %v3583
    %v3750 = vpop.f32.mrf.mxu0
    %v3751 = vadd.f32 0.0, %v3750
    %v3752 = vpop.f32.mrf.mxu0
    %3753 = vdwg.mxu0
    %3754 = vmatpush.bf16.msra.mxu0 %v2792
    %3755 = vmatpush.bf16.msra.mxu0 %v2760
    %3756 = vmatpush.bf16.msra.mxu0 %v2728
    %3757 = vmatpush.bf16.msra.mxu0 %v2696
    %3758 = vmatpush.bf16.msra.mxu0 %v2664
    %3759 = vmatpush.bf16.msra.mxu0 %v2632
    %3760 = vmatpush.bf16.msra.mxu0 %v2600
    %3761 = vmatpush.bf16.msra.mxu0 %v2568
    %3762 = vmatmul.bf16.gmra.mxu0 %v3583
    %v3763 = vpop.f32.mrf.mxu0
    %v3764 = vadd.f32 0.0, %v3763
    %v3765 = vpop.f32.mrf.mxu0
    %3766 = vdwg.mxu0
    %3767 = vmatpush.bf16.msra.mxu0 %v2793
    %3768 = vmatpush.bf16.msra.mxu0 %v2761
    %3769 = vmatpush.bf16.msra.mxu0 %v2729
    %3770 = vmatpush.bf16.msra.mxu0 %v2697
    %3771 = vmatpush.bf16.msra.mxu0 %v2665
    %3772 = vmatpush.bf16.msra.mxu0 %v2633
    %3773 = vmatpush.bf16.msra.mxu0 %v2601
    %3774 = vmatpush.bf16.msra.mxu0 %v2569
    %3775 = vmatmul.bf16.gmra.mxu0 %v3583
    %v3776 = vpop.f32.mrf.mxu0
    %v3777 = vadd.f32 0.0, %v3776
    %v3778 = vpop.f32.mrf.mxu0
    %3779 = vdwg.mxu0
    %3780 = vmatpush.bf16.msra.mxu0 %v2794
    %3781 = vmatpush.bf16.msra.mxu0 %v2762
    %3782 = vmatpush.bf16.msra.mxu0 %v2730
    %3783 = vmatpush.bf16.msra.mxu0 %v2698
    %3784 = vmatpush.bf16.msra.mxu0 %v2666
    %3785 = vmatpush.bf16.msra.mxu0 %v2634
    %3786 = vmatpush.bf16.msra.mxu0 %v2602
    %3787 = vmatpush.bf16.msra.mxu0 %v2570
    %3788 = vmatmul.bf16.gmra.mxu0 %v3583
    %v3789 = vpop.f32.mrf.mxu0
    %v3790 = vadd.f32 0.0, %v3789
    %v3791 = vpop.f32.mrf.mxu0
    %3792 = vdwg.mxu0
    %3793 = vmatpush.bf16.msra.mxu0 %v2795
    %3794 = vmatpush.bf16.msra.mxu0 %v2763
    %3795 = vmatpush.bf16.msra.mxu0 %v2731
    %3796 = vmatpush.bf16.msra.mxu0 %v2699
    %3797 = vmatpush.bf16.msra.mxu0 %v2667
    %3798 = vmatpush.bf16.msra.mxu0 %v2635
    %3799 = vmatpush.bf16.msra.mxu0 %v2603
    %3800 = vmatpush.bf16.msra.mxu0 %v2571
    %3801 = vmatmul.bf16.gmra.mxu0 %v3583
    %v3802 = vpop.f32.mrf.mxu0
    %v3803 = vadd.f32 0.0, %v3802
    %v3804 = vpop.f32.mrf.mxu0
    %3805 = vdwg.mxu0
    %3806 = vmatpush.bf16.msra.mxu0 %v2796
    %3807 = vmatpush.bf16.msra.mxu0 %v2764
    %3808 = vmatpush.bf16.msra.mxu0 %v2732
    %3809 = vmatpush.bf16.msra.mxu0 %v2700
    %3810 = vmatpush.bf16.msra.mxu0 %v2668
    %3811 = vmatpush.bf16.msra.mxu0 %v2636
    %3812 = vmatpush.bf16.msra.mxu0 %v2604
    %3813 = vmatpush.bf16.msra.mxu0 %v2572
    %3814 = vmatmul.bf16.gmra.mxu0 %v3583
    %v3815 = vpop.f32.mrf.mxu0
    %v3816 = vadd.f32 0.0, %v3815
    %v3817 = vpop.f32.mrf.mxu0
    %3818 = vdwg.mxu0
    %3819 = vmatpush.bf16.msra.mxu0 %v2797
    %3820 = vmatpush.bf16.msra.mxu0 %v2765
    %3821 = vmatpush.bf16.msra.mxu0 %v2733
    %3822 = vmatpush.bf16.msra.mxu0 %v2701
    %3823 = vmatpush.bf16.msra.mxu0 %v2669
    %3824 = vmatpush.bf16.msra.mxu0 %v2637
    %3825 = vmatpush.bf16.msra.mxu0 %v2605
    %3826 = vmatpush.bf16.msra.mxu0 %v2573
    %3827 = vmatmul.bf16.gmra.mxu0 %v3583
    %v3828 = vpop.f32.mrf.mxu0
    %v3829 = vadd.f32 0.0, %v3828
    %v3830 = vpop.f32.mrf.mxu0
    %3831 = vdwg.mxu0
    %3832 = vmatpush.bf16.msra.mxu0 %v2798
    %3833 = vmatpush.bf16.msra.mxu0 %v2766
    %3834 = vmatpush.bf16.msra.mxu0 %v2734
    %3835 = vmatpush.bf16.msra.mxu0 %v2702
    %3836 = vmatpush.bf16.msra.mxu0 %v2670
    %3837 = vmatpush.bf16.msra.mxu0 %v2638
    %3838 = vmatpush.bf16.msra.mxu0 %v2606
    %3839 = vmatpush.bf16.msra.mxu0 %v2574
    %3840 = vmatmul.bf16.gmra.mxu0 %v3583
    %v3841 = vpop.f32.mrf.mxu0
    %v3842 = vadd.f32 0.0, %v3841
    %v3843 = vpop.f32.mrf.mxu0
    %3844 = vdwg.mxu0
    %3845 = vmatpush.bf16.msra.mxu0 %v2799
    %3846 = vmatpush.bf16.msra.mxu0 %v2767
    %3847 = vmatpush.bf16.msra.mxu0 %v2735
    %3848 = vmatpush.bf16.msra.mxu0 %v2703
    %3849 = vmatpush.bf16.msra.mxu0 %v2671
    %3850 = vmatpush.bf16.msra.mxu0 %v2639
    %3851 = vmatpush.bf16.msra.mxu0 %v2607
    %3852 = vmatpush.bf16.msra.mxu0 %v2575
    %3853 = vmatmul.bf16.gmra.mxu0 %v3583
    %v3854 = vpop.f32.mrf.mxu0
    %v3855 = vadd.f32 0.0, %v3854
    %v3856 = vpop.f32.mrf.mxu0
    %3857 = vdwg.mxu0
    %3858 = vmatpush.bf16.msra.mxu0 %v2800
    %3859 = vmatpush.bf16.msra.mxu0 %v2768
    %3860 = vmatpush.bf16.msra.mxu0 %v2736
    %3861 = vmatpush.bf16.msra.mxu0 %v2704
    %3862 = vmatpush.bf16.msra.mxu0 %v2672
    %3863 = vmatpush.bf16.msra.mxu0 %v2640
    %3864 = vmatpush.bf16.msra.mxu0 %v2608
    %3865 = vmatpush.bf16.msra.mxu0 %v2576
    %3866 = vmatmul.bf16.gmra.mxu0 %v3583
    %v3867 = vpop.f32.mrf.mxu0
    %v3868 = vadd.f32 0.0, %v3867
    %v3869 = vpop.f32.mrf.mxu0
    %3870 = vdwg.mxu0
    %3871 = vmatpush.bf16.msra.mxu0 %v2801
    %3872 = vmatpush.bf16.msra.mxu0 %v2769
    %3873 = vmatpush.bf16.msra.mxu0 %v2737
    %3874 = vmatpush.bf16.msra.mxu0 %v2705
    %3875 = vmatpush.bf16.msra.mxu0 %v2673
    %3876 = vmatpush.bf16.msra.mxu0 %v2641
    %3877 = vmatpush.bf16.msra.mxu0 %v2609
    %3878 = vmatpush.bf16.msra.mxu0 %v2577
    %3879 = vmatmul.bf16.gmra.mxu0 %v3583
    %v3880 = vpop.f32.mrf.mxu0
    %v3881 = vadd.f32 0.0, %v3880
    %v3882 = vpop.f32.mrf.mxu0
    %3883 = vdwg.mxu0
    %3884 = vmatpush.bf16.msra.mxu0 %v2802
    %3885 = vmatpush.bf16.msra.mxu0 %v2770
    %3886 = vmatpush.bf16.msra.mxu0 %v2738
    %3887 = vmatpush.bf16.msra.mxu0 %v2706
    %3888 = vmatpush.bf16.msra.mxu0 %v2674
    %3889 = vmatpush.bf16.msra.mxu0 %v2642
    %3890 = vmatpush.bf16.msra.mxu0 %v2610
    %3891 = vmatpush.bf16.msra.mxu0 %v2578
    %3892 = vmatmul.bf16.gmra.mxu0 %v3583
    %v3893 = vpop.f32.mrf.mxu0
    %v3894 = vadd.f32 0.0, %v3893
    %v3895 = vpop.f32.mrf.mxu0
    %3896 = vdwg.mxu0
    %3897 = vmatpush.bf16.msra.mxu0 %v2803
    %3898 = vmatpush.bf16.msra.mxu0 %v2771
    %3899 = vmatpush.bf16.msra.mxu0 %v2739
    %3900 = vmatpush.bf16.msra.mxu0 %v2707
    %3901 = vmatpush.bf16.msra.mxu0 %v2675
    %3902 = vmatpush.bf16.msra.mxu0 %v2643
    %3903 = vmatpush.bf16.msra.mxu0 %v2611
    %3904 = vmatpush.bf16.msra.mxu0 %v2579
    %3905 = vmatmul.bf16.gmra.mxu0 %v3583
    %v3906 = vpop.f32.mrf.mxu0
    %v3907 = vadd.f32 0.0, %v3906
    %v3908 = vpop.f32.mrf.mxu0
    %3909 = vdwg.mxu0
    %3910 = vmatpush.bf16.msra.mxu0 %v2804
    %3911 = vmatpush.bf16.msra.mxu0 %v2772
    %3912 = vmatpush.bf16.msra.mxu0 %v2740
    %3913 = vmatpush.bf16.msra.mxu0 %v2708
    %3914 = vmatpush.bf16.msra.mxu0 %v2676
    %3915 = vmatpush.bf16.msra.mxu0 %v2644
    %3916 = vmatpush.bf16.msra.mxu0 %v2612
    %3917 = vmatpush.bf16.msra.mxu0 %v2580
    %3918 = vmatmul.bf16.gmra.mxu0 %v3583
    %v3919 = vpop.f32.mrf.mxu0
    %v3920 = vadd.f32 0.0, %v3919
    %v3921 = vpop.f32.mrf.mxu0
    %3922 = vdwg.mxu0
    %3923 = vmatpush.bf16.msra.mxu0 %v2805
    %3924 = vmatpush.bf16.msra.mxu0 %v2773
    %3925 = vmatpush.bf16.msra.mxu0 %v2741
    %3926 = vmatpush.bf16.msra.mxu0 %v2709
    %3927 = vmatpush.bf16.msra.mxu0 %v2677
    %3928 = vmatpush.bf16.msra.mxu0 %v2645
    %3929 = vmatpush.bf16.msra.mxu0 %v2613
    %3930 = vmatpush.bf16.msra.mxu0 %v2581
    %3931 = vmatmul.bf16.gmra.mxu0 %v3583
    %v3932 = vpop.f32.mrf.mxu0
    %v3933 = vadd.f32 0.0, %v3932
    %v3934 = vpop.f32.mrf.mxu0
    %3935 = vdwg.mxu0
    %3936 = vmatpush.bf16.msra.mxu0 %v2806
    %3937 = vmatpush.bf16.msra.mxu0 %v2774
    %3938 = vmatpush.bf16.msra.mxu0 %v2742
    %3939 = vmatpush.bf16.msra.mxu0 %v2710
    %3940 = vmatpush.bf16.msra.mxu0 %v2678
    %3941 = vmatpush.bf16.msra.mxu0 %v2646
    %3942 = vmatpush.bf16.msra.mxu0 %v2614
    %3943 = vmatpush.bf16.msra.mxu0 %v2582
    %3944 = vmatmul.bf16.gmra.mxu0 %v3583
    %v3945 = vpop.f32.mrf.mxu0
    %v3946 = vadd.f32 0.0, %v3945
    %v3947 = vpop.f32.mrf.mxu0
    %3948 = vdwg.mxu0
    %3949 = vmatpush.bf16.msra.mxu0 %v2807
    %3950 = vmatpush.bf16.msra.mxu0 %v2775
    %3951 = vmatpush.bf16.msra.mxu0 %v2743
    %3952 = vmatpush.bf16.msra.mxu0 %v2711
    %3953 = vmatpush.bf16.msra.mxu0 %v2679
    %3954 = vmatpush.bf16.msra.mxu0 %v2647
    %3955 = vmatpush.bf16.msra.mxu0 %v2615
    %3956 = vmatpush.bf16.msra.mxu0 %v2583
    %3957 = vmatmul.bf16.gmra.mxu0 %v3583
    %v3958 = vpop.f32.mrf.mxu0
    %v3959 = vadd.f32 0.0, %v3958
    %v3960 = vpop.f32.mrf.mxu0
    %3961 = vdwg.mxu0
    %3962 = vmatpush.bf16.msra.mxu0 %v2808
    %3963 = vmatpush.bf16.msra.mxu0 %v2776
    %3964 = vmatpush.bf16.msra.mxu0 %v2744
    %3965 = vmatpush.bf16.msra.mxu0 %v2712
    %3966 = vmatpush.bf16.msra.mxu0 %v2680
    %3967 = vmatpush.bf16.msra.mxu0 %v2648
    %3968 = vmatpush.bf16.msra.mxu0 %v2616
    %3969 = vmatpush.bf16.msra.mxu0 %v2584
    %3970 = vmatmul.bf16.gmra.mxu0 %v3583
    %v3971 = vpop.f32.mrf.mxu0
    %v3972 = vadd.f32 0.0, %v3971
    %v3973 = vpop.f32.mrf.mxu0
    %3974 = vdwg.mxu0
    %3975 = vmatpush.bf16.msra.mxu0 %v2809
    %3976 = vmatpush.bf16.msra.mxu0 %v2777
    %3977 = vmatpush.bf16.msra.mxu0 %v2745
    %3978 = vmatpush.bf16.msra.mxu0 %v2713
    %3979 = vmatpush.bf16.msra.mxu0 %v2681
    %3980 = vmatpush.bf16.msra.mxu0 %v2649
    %3981 = vmatpush.bf16.msra.mxu0 %v2617
    %3982 = vmatpush.bf16.msra.mxu0 %v2585
    %3983 = vmatmul.bf16.gmra.mxu0 %v3583
    %v3984 = vpop.f32.mrf.mxu0
    %v3985 = vadd.f32 0.0, %v3984
    %v3986 = vpop.f32.mrf.mxu0
    %3987 = vdwg.mxu0
    %3988 = vmatpush.bf16.msra.mxu0 %v2810
    %3989 = vmatpush.bf16.msra.mxu0 %v2778
    %3990 = vmatpush.bf16.msra.mxu0 %v2746
    %3991 = vmatpush.bf16.msra.mxu0 %v2714
    %3992 = vmatpush.bf16.msra.mxu0 %v2682
    %3993 = vmatpush.bf16.msra.mxu0 %v2650
    %3994 = vmatpush.bf16.msra.mxu0 %v2618
    %3995 = vmatpush.bf16.msra.mxu0 %v2586
    %3996 = vmatmul.bf16.gmra.mxu0 %v3583
    %v3997 = vpop.f32.mrf.mxu0
    %v3998 = vadd.f32 0.0, %v3997
    %v3999 = vpop.f32.mrf.mxu0
    %4000 = vdwg.mxu0
    %v4033 = vrot.slane %v3608, 6
    %v4034 = vrot.slane %v3621, 4
    %v4035 = vrot.slane %v3634, 2
    %v4036 = vrot.slane %v3660, 6
    %v4037 = vrot.slane %v3673, 4
    %v4038 = vrot.slane %v3686, 2
    %v4039 = vrot.slane %v3712, 6
    %v4040 = vrot.slane %v3725, 4
    %v4041 = vrot.slane %v3738, 2
    %v4042 = vrot.slane %v3764, 6
    %v4043 = vrot.slane %v3777, 4
    %v4044 = vrot.slane %v3790, 2
    %v4045 = vrot.slane %v3816, 6
    %v4046 = vrot.slane %v3829, 4
    %v4047 = vrot.slane %v3842, 2
    %v4048 = vrot.slane %v3868, 6
    %v4049 = vrot.slane %v3881, 4
    %v4050 = vrot.slane %v3894, 2
    %v4051 = vrot.slane %v3920, 6
    %v4052 = vrot.slane %v3933, 4
    %v4053 = vrot.slane %v3946, 2
    %v4054 = vrot.slane %v3972, 6
    %v4055 = vrot.slane %v3985, 4
    %v4056 = vrot.slane %v3998, 2
    %v4057 = vsel %vm116, %v3595, %v4033
    %v4058 = vsel %vm3540, %v4034, %v4035
    %v4059 = vsel %vm3542, %v4057, %v4058
    %v4060 = vsel %vm116, %v3647, %v4036
    %v4061 = vsel %vm3540, %v4037, %v4038
    %v4062 = vsel %vm3542, %v4060, %v4061
    %v4063 = vsel %vm116, %v3699, %v4039
    %v4064 = vsel %vm3540, %v4040, %v4041
    %v4065 = vsel %vm3542, %v4063, %v4064
    %v4066 = vsel %vm116, %v3751, %v4042
    %v4067 = vsel %vm3540, %v4043, %v4044
    %v4068 = vsel %vm3542, %v4066, %v4067
    %v4069 = vsel %vm116, %v3803, %v4045
    %v4070 = vsel %vm3540, %v4046, %v4047
    %v4071 = vsel %vm3542, %v4069, %v4070
    %v4072 = vsel %vm116, %v3855, %v4048
    %v4073 = vsel %vm3540, %v4049, %v4050
    %v4074 = vsel %vm3542, %v4072, %v4073
    %v4075 = vsel %vm116, %v3907, %v4051
    %v4076 = vsel %vm3540, %v4052, %v4053
    %v4077 = vsel %vm3542, %v4075, %v4076
    %v4078 = vsel %vm116, %v3959, %v4054
    %v4079 = vsel %vm3540, %v4055, %v4056
    %v4080 = vsel %vm3542, %v4078, %v4079
    %4089 = vst [vmem:[#allocation2 + $0x40] sm:$0xff] %v4059
    %4090 = vst [vmem:[#allocation2 + $0x48] sm:$0xff] %v4062
    %4091 = vst [vmem:[#allocation2 + $0x50] sm:$0xff] %v4065
    %4092 = vst [vmem:[#allocation2 + $0x58] sm:$0xff] %v4068
    %4093 = vst [vmem:[#allocation2 + $0x60] sm:$0xff] %v4071
    %4094 = vst [vmem:[#allocation2 + $0x68] sm:$0xff] %v4074
    %4095 = vst [vmem:[#allocation2 + $0x70] sm:$0xff] %v4077
    %4096 = vst [vmem:[#allocation2 + $0x78] sm:$0xff] %v4080
    %v4097 = vld [vmem:[%s5] sm:$0xf]
    %v4098 = vld [vmem:[%s5 + $0x4] sm:$0xf]
    %v4099 = vld [vmem:[%s5 + $0x8] sm:$0xf]
    %v4100 = vld [vmem:[%s5 + $0xc] sm:$0xf]
    %v4101 = vld [vmem:[%s6] sm:$0x1]
    %v4102 = vld [vmem:[#allocation2] sm:$0x3]
    %v4107 = vunpack.c.l.b16 %v4097
    %v4108 = vunpack.c.l.b16 %v4098
    %v4109 = vunpack.c.l.b16 %v4099
    %v4110 = vunpack.c.l.b16 %v4100
    %v4111 = vpack.c.b16 %v4108, %v4107
    %v4112 = vpack.c.b16 %v4110, %v4109
    %vm4115 = vcmask 261120
    %v4117 = vsel %vm4115, 0, 0
    %4119 = vmatpush.bf16.msra.mxu0 0
    %4120 = vmatpush.bf16.msra.mxu0 0
    %4121 = vmatpush.bf16.msra.mxu0 0
    %4122 = vmatpush.bf16.msra.mxu0 0
    %4123 = vmatpush.bf16.msra.mxu0 0
    %4124 = vmatpush.bf16.msra.mxu0 0
    %4125 = vmatpush.bf16.msra.mxu0 %v4112
    %4126 = vmatpush.bf16.msra.mxu0 %v4111
    %4127 = vmatmul.bf16.gmra.mxu0 %v4117
    %v4128 = vpop.f32.mrf.mxu0
    %v4129 = vadd.f32 0.0, %v4128
    %v4130 = vpop.f32.mrf.mxu0
    %4131 = vdwg.mxu0
    %v4132 = vadd.f32 %v4102, %v4129
    %v4134 = vperm.slane %v4101, 0
    %v4136 = vadd.f32 %v4132, %v4134
    %v4137 = vxor.u32 %v4136, 2147483648
    %v4138 = vmul.f32 %v4137, 1.442695
    %v4139 = vpow.pop %v4138
    %v4140 = vadd.f32 %v4139, 1.0
    %v4141 = vrcp.pop %v4140
    %v4142 = vmul.f32 %v4140, %v4141
    %v4143 = vsub.f32 1.0, %v4142
    %v4144 = vmul.f32 %v4141, %v4143
    %v4145 = vadd.f32 %v4141, %v4144
    %vm4146 = vweird.f32 %v4140
    %vm4147 = vweird.f32 %v4141
    %vm4148 = vmor %vm4146, %vm4147
    %v4149 = vsel %vm4148, %v4141, %v4145
    %v4150 = vand.u32 2147483647, %v4140
    %vm4151 = vcmp.eq.f32.partialorder %v4150, 8.507059e+37
    %v4152 = vand.u32 %v4140, 2147483648
    %v4153 = vor.u32 1.1754944e-38, %v4152
    %v4154 = vsel %vm4151, %v4153, %v4149
    %v4155 = vmul.f32 1.0, %v4154
    %v4156 = vtanh.pop %v4136
    %v4157 = vmul.f32 %v4155, 0.0
    %4159 = vrot.lane.b32.xlu0 %v4156, 64
    %v4160 = vpop.permute.xlu0 %4159
    %v4162 = vmul.f32 %v4155, %v4160
    %4164 = vrot.lane.b32.xlu0 %v4162, 32
    %v4165 = vpop.permute.xlu0 %4164
    %v4167 = vadd.f32 %v4157, %v4165
    %v4168 = vtanh.pop %v4167
    %4170 = vrot.lane.b32.xlu0 %v4168, 64
    %v4171 = vpop.permute.xlu0 %4170
    %v4173 = vmul.f32 %v4155, %v4171
    %v4174 = vld [vmem:[#allocation2 + $0x2] sm:$0x3]
    %v4175 = vpack.c.bf16 %v4173, %v4173
    %4177 = vrot.lane.b32.xlu0 %v4175, 32
    %v4178 = vpop.permute.xlu0 %4177
    %v4180 = vsel %vm4115, %v4178, 0
    %4182 = vmatpush.bf16.msra.mxu0 0
    %4183 = vmatpush.bf16.msra.mxu0 0
    %4184 = vmatpush.bf16.msra.mxu0 0
    %4185 = vmatpush.bf16.msra.mxu0 0
    %4186 = vmatpush.bf16.msra.mxu0 0
    %4187 = vmatpush.bf16.msra.mxu0 0
    %4188 = vmatpush.bf16.msra.mxu0 %v4112
    %4189 = vmatpush.bf16.msra.mxu0 %v4111
    %4190 = vmatmul.bf16.gmra.mxu0 %v4180
    %v4191 = vpop.f32.mrf.mxu0
    %v4192 = vadd.f32 0.0, %v4191
    %v4193 = vpop.f32.mrf.mxu0
    %4194 = vdwg.mxu0
    %v4195 = vadd.f32 %v4174, %v4192
    %v4196 = vadd.f32 %v4195, %v4134
    %v4197 = vxor.u32 %v4196, 2147483648
    %v4198 = vmul.f32 %v4197, 1.442695
    %v4199 = vpow.pop %v4198
    %v4200 = vadd.f32 %v4199, 1.0
    %v4201 = vrcp.pop %v4200
    %v4202 = vmul.f32 %v4200, %v4201
    %v4203 = vsub.f32 1.0, %v4202
    %v4204 = vmul.f32 %v4201, %v4203
    %v4205 = vadd.f32 %v4201, %v4204
    %vm4206 = vweird.f32 %v4200
    %vm4207 = vweird.f32 %v4201
    %vm4208 = vmor %vm4206, %vm4207
    %v4209 = vsel %vm4208, %v4201, %v4205
    %v4210 = vand.u32 2147483647, %v4200
    %vm4211 = vcmp.eq.f32.partialorder %v4210, 8.507059e+37
    %v4212 = vand.u32 %v4200, 2147483648
    %v4213 = vor.u32 1.1754944e-38, %v4212
    %v4214 = vsel %vm4211, %v4213, %v4209
    %v4215 = vmul.f32 1.0, %v4214
    %v4216 = vtanh.pop %v4196
    %v4217 = vmul.f32 %v4215, %v4167
    %4219 = vrot.lane.b32.xlu0 %v4216, 64
    %v4220 = vpop.permute.xlu0 %4219
    %v4222 = vmul.f32 %v4215, %v4220
    %4224 = vrot.lane.b32.xlu0 %v4222, 32
    %v4225 = vpop.permute.xlu0 %4224
    %v4227 = vadd.f32 %v4217, %v4225
    %v4228 = vtanh.pop %v4227
    %4230 = vrot.lane.b32.xlu0 %v4228, 64
    %v4231 = vpop.permute.xlu0 %4230
    %v4233 = vmul.f32 %v4215, %v4231
    %v4234 = vld [vmem:[#allocation2 + $0x4] sm:$0x3]
    %v4235 = vpack.c.bf16 %v4233, %v4233
    %4237 = vrot.lane.b32.xlu0 %v4235, 32
    %v4238 = vpop.permute.xlu0 %4237
    %v4240 = vsel %vm4115, %v4238, 0
    %4242 = vmatpush.bf16.msra.mxu0 0
    %4243 = vmatpush.bf16.msra.mxu0 0
    %4244 = vmatpush.bf16.msra.mxu0 0
    %4245 = vmatpush.bf16.msra.mxu0 0
    %4246 = vmatpush.bf16.msra.mxu0 0
    %4247 = vmatpush.bf16.msra.mxu0 0
    %4248 = vmatpush.bf16.msra.mxu0 %v4112
    %4249 = vmatpush.bf16.msra.mxu0 %v4111
    %4250 = vmatmul.bf16.gmra.mxu0 %v4240
    %v4251 = vpop.f32.mrf.mxu0
    %v4252 = vadd.f32 0.0, %v4251
    %v4253 = vpop.f32.mrf.mxu0
    %4254 = vdwg.mxu0
    %v4255 = vadd.f32 %v4234, %v4252
    %v4256 = vadd.f32 %v4255, %v4134
    %v4257 = vxor.u32 %v4256, 2147483648
    %v4258 = vmul.f32 %v4257, 1.442695
    %v4259 = vpow.pop %v4258
    %v4260 = vadd.f32 %v4259, 1.0
    %v4261 = vrcp.pop %v4260
    %v4262 = vmul.f32 %v4260, %v4261
    %v4263 = vsub.f32 1.0, %v4262
    %v4264 = vmul.f32 %v4261, %v4263
    %v4265 = vadd.f32 %v4261, %v4264
    %vm4266 = vweird.f32 %v4260
    %vm4267 = vweird.f32 %v4261
    %vm4268 = vmor %vm4266, %vm4267
    %v4269 = vsel %vm4268, %v4261, %v4265
    %v4270 = vand.u32 2147483647, %v4260
    %vm4271 = vcmp.eq.f32.partialorder %v4270, 8.507059e+37
    %v4272 = vand.u32 %v4260, 2147483648
    %v4273 = vor.u32 1.1754944e-38, %v4272
    %v4274 = vsel %vm4271, %v4273, %v4269
    %v4275 = vmul.f32 1.0, %v4274
    %v4276 = vtanh.pop %v4256
    %v4277 = vmul.f32 %v4275, %v4227
    %4279 = vrot.lane.b32.xlu0 %v4276, 64
    %v4280 = vpop.permute.xlu0 %4279
    %v4282 = vmul.f32 %v4275, %v4280
    %4284 = vrot.lane.b32.xlu0 %v4282, 32
    %v4285 = vpop.permute.xlu0 %4284
    %v4287 = vadd.f32 %v4277, %v4285
    %v4288 = vtanh.pop %v4287
    %4290 = vrot.lane.b32.xlu0 %v4288, 64
    %v4291 = vpop.permute.xlu0 %4290
    %v4293 = vmul.f32 %v4275, %v4291
    %v4294 = vld [vmem:[#allocation2 + $0x6] sm:$0x3]
    %v4295 = vpack.c.bf16 %v4293, %v4293
    %4297 = vrot.lane.b32.xlu0 %v4295, 32
    %v4298 = vpop.permute.xlu0 %4297
    %v4300 = vsel %vm4115, %v4298, 0
    %4302 = vmatpush.bf16.msra.mxu0 0
    %4303 = vmatpush.bf16.msra.mxu0 0
    %4304 = vmatpush.bf16.msra.mxu0 0
    %4305 = vmatpush.bf16.msra.mxu0 0
    %4306 = vmatpush.bf16.msra.mxu0 0
    %4307 = vmatpush.bf16.msra.mxu0 0
    %4308 = vmatpush.bf16.msra.mxu0 %v4112
    %4309 = vmatpush.bf16.msra.mxu0 %v4111
    %4310 = vmatmul.bf16.gmra.mxu0 %v4300
    %v4311 = vpop.f32.mrf.mxu0
    %v4312 = vadd.f32 0.0, %v4311
    %v4313 = vpop.f32.mrf.mxu0
    %4314 = vdwg.mxu0
    %v4315 = vadd.f32 %v4294, %v4312
    %v4316 = vadd.f32 %v4315, %v4134
    %v4317 = vxor.u32 %v4316, 2147483648
    %v4318 = vmul.f32 %v4317, 1.442695
    %v4319 = vpow.pop %v4318
    %v4320 = vadd.f32 %v4319, 1.0
    %v4321 = vrcp.pop %v4320
    %v4322 = vmul.f32 %v4320, %v4321
    %v4323 = vsub.f32 1.0, %v4322
    %v4324 = vmul.f32 %v4321, %v4323
    %v4325 = vadd.f32 %v4321, %v4324
    %vm4326 = vweird.f32 %v4320
    %vm4327 = vweird.f32 %v4321
    %vm4328 = vmor %vm4326, %vm4327
    %v4329 = vsel %vm4328, %v4321, %v4325
    %v4330 = vand.u32 2147483647, %v4320
    %vm4331 = vcmp.eq.f32.partialorder %v4330, 8.507059e+37
    %v4332 = vand.u32 %v4320, 2147483648
    %v4333 = vor.u32 1.1754944e-38, %v4332
    %v4334 = vsel %vm4331, %v4333, %v4329
    %v4335 = vmul.f32 1.0, %v4334
    %v4336 = vtanh.pop %v4316
    %v4337 = vmul.f32 %v4335, %v4287
    %4339 = vrot.lane.b32.xlu0 %v4336, 64
    %v4340 = vpop.permute.xlu0 %4339
    %v4342 = vmul.f32 %v4335, %v4340
    %4344 = vrot.lane.b32.xlu0 %v4342, 32
    %v4345 = vpop.permute.xlu0 %4344
    %v4347 = vadd.f32 %v4337, %v4345
    %v4348 = vtanh.pop %v4347
    %4350 = vrot.lane.b32.xlu0 %v4348, 64
    %v4351 = vpop.permute.xlu0 %4350
    %v4353 = vmul.f32 %v4335, %v4351
    %v4354 = vld [vmem:[#allocation2 + $0x8] sm:$0x3]
    %v4355 = vpack.c.bf16 %v4353, %v4353
    %4357 = vrot.lane.b32.xlu0 %v4355, 32
    %v4358 = vpop.permute.xlu0 %4357
    %v4360 = vsel %vm4115, %v4358, 0
    %4362 = vmatpush.bf16.msra.mxu0 0
    %4363 = vmatpush.bf16.msra.mxu0 0
    %4364 = vmatpush.bf16.msra.mxu0 0
    %4365 = vmatpush.bf16.msra.mxu0 0
    %4366 = vmatpush.bf16.msra.mxu0 0
    %4367 = vmatpush.bf16.msra.mxu0 0
    %4368 = vmatpush.bf16.msra.mxu0 %v4112
    %4369 = vmatpush.bf16.msra.mxu0 %v4111
    %4370 = vmatmul.bf16.gmra.mxu0 %v4360
    %v4371 = vpop.f32.mrf.mxu0
    %v4372 = vadd.f32 0.0, %v4371
    %v4373 = vpop.f32.mrf.mxu0
    %4374 = vdwg.mxu0
    %v4375 = vadd.f32 %v4354, %v4372
    %v4376 = vadd.f32 %v4375, %v4134
    %v4377 = vxor.u32 %v4376, 2147483648
    %v4378 = vmul.f32 %v4377, 1.442695
    %v4379 = vpow.pop %v4378
    %v4380 = vadd.f32 %v4379, 1.0
    %v4381 = vrcp.pop %v4380
    %v4382 = vmul.f32 %v4380, %v4381
    %v4383 = vsub.f32 1.0, %v4382
    %v4384 = vmul.f32 %v4381, %v4383
    %v4385 = vadd.f32 %v4381, %v4384
    %vm4386 = vweird.f32 %v4380
    %vm4387 = vweird.f32 %v4381
    %vm4388 = vmor %vm4386, %vm4387
    %v4389 = vsel %vm4388, %v4381, %v4385
    %v4390 = vand.u32 2147483647, %v4380
    %vm4391 = vcmp.eq.f32.partialorder %v4390, 8.507059e+37
    %v4392 = vand.u32 %v4380, 2147483648
    %v4393 = vor.u32 1.1754944e-38, %v4392
    %v4394 = vsel %vm4391, %v4393, %v4389
    %v4395 = vmul.f32 1.0, %v4394
    %v4396 = vtanh.pop %v4376
    %v4397 = vmul.f32 %v4395, %v4347
    %4399 = vrot.lane.b32.xlu0 %v4396, 64
    %v4400 = vpop.permute.xlu0 %4399
    %v4402 = vmul.f32 %v4395, %v4400
    %4404 = vrot.lane.b32.xlu0 %v4402, 32
    %v4405 = vpop.permute.xlu0 %4404
    %v4407 = vadd.f32 %v4397, %v4405
    %v4408 = vtanh.pop %v4407
    %4410 = vrot.lane.b32.xlu0 %v4408, 64
    %v4411 = vpop.permute.xlu0 %4410
    %v4413 = vmul.f32 %v4395, %v4411
    %v4414 = vld [vmem:[#allocation2 + $0xa] sm:$0x3]
    %v4415 = vpack.c.bf16 %v4413, %v4413
    %4417 = vrot.lane.b32.xlu0 %v4415, 32
    %v4418 = vpop.permute.xlu0 %4417
    %v4420 = vsel %vm4115, %v4418, 0
    %4422 = vmatpush.bf16.msra.mxu0 0
    %4423 = vmatpush.bf16.msra.mxu0 0
    %4424 = vmatpush.bf16.msra.mxu0 0
    %4425 = vmatpush.bf16.msra.mxu0 0
    %4426 = vmatpush.bf16.msra.mxu0 0
    %4427 = vmatpush.bf16.msra.mxu0 0
    %4428 = vmatpush.bf16.msra.mxu0 %v4112
    %4429 = vmatpush.bf16.msra.mxu0 %v4111
    %4430 = vmatmul.bf16.gmra.mxu0 %v4420
    %v4431 = vpop.f32.mrf.mxu0
    %v4432 = vadd.f32 0.0, %v4431
    %v4433 = vpop.f32.mrf.mxu0
    %4434 = vdwg.mxu0
    %v4435 = vadd.f32 %v4414, %v4432
    %v4436 = vadd.f32 %v4435, %v4134
    %v4437 = vxor.u32 %v4436, 2147483648
    %v4438 = vmul.f32 %v4437, 1.442695
    %v4439 = vpow.pop %v4438
    %v4440 = vadd.f32 %v4439, 1.0
    %v4441 = vrcp.pop %v4440
    %v4442 = vmul.f32 %v4440, %v4441
    %v4443 = vsub.f32 1.0, %v4442
    %v4444 = vmul.f32 %v4441, %v4443
    %v4445 = vadd.f32 %v4441, %v4444
    %vm4446 = vweird.f32 %v4440
    %vm4447 = vweird.f32 %v4441
    %vm4448 = vmor %vm4446, %vm4447
    %v4449 = vsel %vm4448, %v4441, %v4445
    %v4450 = vand.u32 2147483647, %v4440
    %vm4451 = vcmp.eq.f32.partialorder %v4450, 8.507059e+37
    %v4452 = vand.u32 %v4440, 2147483648
    %v4453 = vor.u32 1.1754944e-38, %v4452
    %v4454 = vsel %vm4451, %v4453, %v4449
    %v4455 = vmul.f32 1.0, %v4454
    %v4456 = vtanh.pop %v4436
    %v4457 = vmul.f32 %v4455, %v4407
    %4459 = vrot.lane.b32.xlu0 %v4456, 64
    %v4460 = vpop.permute.xlu0 %4459
    %v4462 = vmul.f32 %v4455, %v4460
    %4464 = vrot.lane.b32.xlu0 %v4462, 32
    %v4465 = vpop.permute.xlu0 %4464
    %v4467 = vadd.f32 %v4457, %v4465
    %v4468 = vtanh.pop %v4467
    %4470 = vrot.lane.b32.xlu0 %v4468, 64
    %v4471 = vpop.permute.xlu0 %4470
    %v4473 = vmul.f32 %v4455, %v4471
    %v4474 = vld [vmem:[#allocation2 + $0xc] sm:$0x3]
    %v4475 = vpack.c.bf16 %v4473, %v4473
    %4477 = vrot.lane.b32.xlu0 %v4475, 32
    %v4478 = vpop.permute.xlu0 %4477
    %v4480 = vsel %vm4115, %v4478, 0
    %4482 = vmatpush.bf16.msra.mxu0 0
    %4483 = vmatpush.bf16.msra.mxu0 0
    %4484 = vmatpush.bf16.msra.mxu0 0
    %4485 = vmatpush.bf16.msra.mxu0 0
    %4486 = vmatpush.bf16.msra.mxu0 0
    %4487 = vmatpush.bf16.msra.mxu0 0
    %4488 = vmatpush.bf16.msra.mxu0 %v4112
    %4489 = vmatpush.bf16.msra.mxu0 %v4111
    %4490 = vmatmul.bf16.gmra.mxu0 %v4480
    %v4491 = vpop.f32.mrf.mxu0
    %v4492 = vadd.f32 0.0, %v4491
    %v4493 = vpop.f32.mrf.mxu0
    %4494 = vdwg.mxu0
    %v4495 = vadd.f32 %v4474, %v4492
    %v4496 = vadd.f32 %v4495, %v4134
    %v4497 = vxor.u32 %v4496, 2147483648
    %v4498 = vmul.f32 %v4497, 1.442695
    %v4499 = vpow.pop %v4498
    %v4500 = vadd.f32 %v4499, 1.0
    %v4501 = vrcp.pop %v4500
    %v4502 = vmul.f32 %v4500, %v4501
    %v4503 = vsub.f32 1.0, %v4502
    %v4504 = vmul.f32 %v4501, %v4503
    %v4505 = vadd.f32 %v4501, %v4504
    %vm4506 = vweird.f32 %v4500
    %vm4507 = vweird.f32 %v4501
    %vm4508 = vmor %vm4506, %vm4507
    %v4509 = vsel %vm4508, %v4501, %v4505
    %v4510 = vand.u32 2147483647, %v4500
    %vm4511 = vcmp.eq.f32.partialorder %v4510, 8.507059e+37
    %v4512 = vand.u32 %v4500, 2147483648
    %v4513 = vor.u32 1.1754944e-38, %v4512
    %v4514 = vsel %vm4511, %v4513, %v4509
    %v4515 = vmul.f32 1.0, %v4514
    %v4516 = vtanh.pop %v4496
    %v4517 = vmul.f32 %v4515, %v4467
    %4519 = vrot.lane.b32.xlu0 %v4516, 64
    %v4520 = vpop.permute.xlu0 %4519
    %v4522 = vmul.f32 %v4515, %v4520
    %4524 = vrot.lane.b32.xlu0 %v4522, 32
    %v4525 = vpop.permute.xlu0 %4524
    %v4527 = vadd.f32 %v4517, %v4525
    %v4528 = vtanh.pop %v4527
    %4530 = vrot.lane.b32.xlu0 %v4528, 64
    %v4531 = vpop.permute.xlu0 %4530
    %v4533 = vmul.f32 %v4515, %v4531
    %v4534 = vld [vmem:[#allocation2 + $0xe] sm:$0x3]
    %v4535 = vpack.c.bf16 %v4533, %v4533
    %4537 = vrot.lane.b32.xlu0 %v4535, 32
    %v4538 = vpop.permute.xlu0 %4537
    %v4540 = vsel %vm4115, %v4538, 0
    %4542 = vmatpush.bf16.msra.mxu0 0
    %4543 = vmatpush.bf16.msra.mxu0 0
    %4544 = vmatpush.bf16.msra.mxu0 0
    %4545 = vmatpush.bf16.msra.mxu0 0
    %4546 = vmatpush.bf16.msra.mxu0 0
    %4547 = vmatpush.bf16.msra.mxu0 0
    %4548 = vmatpush.bf16.msra.mxu0 %v4112
    %4549 = vmatpush.bf16.msra.mxu0 %v4111
    %4550 = vmatmul.bf16.gmra.mxu0 %v4540
    %v4551 = vpop.f32.mrf.mxu0
    %v4552 = vadd.f32 0.0, %v4551
    %v4553 = vpop.f32.mrf.mxu0
    %4554 = vdwg.mxu0
    %v4555 = vadd.f32 %v4534, %v4552
    %v4556 = vadd.f32 %v4555, %v4134
    %v4557 = vxor.u32 %v4556, 2147483648
    %v4558 = vmul.f32 %v4557, 1.442695
    %v4559 = vpow.pop %v4558
    %v4560 = vadd.f32 %v4559, 1.0
    %v4561 = vrcp.pop %v4560
    %v4562 = vmul.f32 %v4560, %v4561
    %v4563 = vsub.f32 1.0, %v4562
    %v4564 = vmul.f32 %v4561, %v4563
    %v4565 = vadd.f32 %v4561, %v4564
    %vm4566 = vweird.f32 %v4560
    %vm4567 = vweird.f32 %v4561
    %vm4568 = vmor %vm4566, %vm4567
    %v4569 = vsel %vm4568, %v4561, %v4565
    %v4570 = vand.u32 2147483647, %v4560
    %vm4571 = vcmp.eq.f32.partialorder %v4570, 8.507059e+37
    %v4572 = vand.u32 %v4560, 2147483648
    %v4573 = vor.u32 1.1754944e-38, %v4572
    %v4574 = vsel %vm4571, %v4573, %v4569
    %v4575 = vmul.f32 1.0, %v4574
    %v4576 = vtanh.pop %v4556
    %v4577 = vmul.f32 %v4575, %v4527
    %4579 = vrot.lane.b32.xlu0 %v4576, 64
    %v4580 = vpop.permute.xlu0 %4579
    %v4582 = vmul.f32 %v4575, %v4580
    %4584 = vrot.lane.b32.xlu0 %v4582, 32
    %v4585 = vpop.permute.xlu0 %4584
    %v4587 = vadd.f32 %v4577, %v4585
    %v4588 = vtanh.pop %v4587
    %4590 = vrot.lane.b32.xlu0 %v4588, 64
    %v4591 = vpop.permute.xlu0 %4590
    %v4593 = vmul.f32 %v4575, %v4591
    %v4594 = vld [vmem:[#allocation2 + $0x10] sm:$0x3]
    %v4595 = vpack.c.bf16 %v4593, %v4593
    %4597 = vrot.lane.b32.xlu0 %v4595, 32
    %v4598 = vpop.permute.xlu0 %4597
    %v4600 = vsel %vm4115, %v4598, 0
    %4602 = vmatpush.bf16.msra.mxu0 0
    %4603 = vmatpush.bf16.msra.mxu0 0
    %4604 = vmatpush.bf16.msra.mxu0 0
    %4605 = vmatpush.bf16.msra.mxu0 0
    %4606 = vmatpush.bf16.msra.mxu0 0
    %4607 = vmatpush.bf16.msra.mxu0 0
    %4608 = vmatpush.bf16.msra.mxu0 %v4112
    %4609 = vmatpush.bf16.msra.mxu0 %v4111
    %4610 = vmatmul.bf16.gmra.mxu0 %v4600
    %v4611 = vpop.f32.mrf.mxu0
    %v4612 = vadd.f32 0.0, %v4611
    %v4613 = vpop.f32.mrf.mxu0
    %4614 = vdwg.mxu0
    %v4615 = vadd.f32 %v4594, %v4612
    %v4616 = vadd.f32 %v4615, %v4134
    %v4617 = vxor.u32 %v4616, 2147483648
    %v4618 = vmul.f32 %v4617, 1.442695
    %v4619 = vpow.pop %v4618
    %v4620 = vadd.f32 %v4619, 1.0
    %v4621 = vrcp.pop %v4620
    %v4622 = vmul.f32 %v4620, %v4621
    %v4623 = vsub.f32 1.0, %v4622
    %v4624 = vmul.f32 %v4621, %v4623
    %v4625 = vadd.f32 %v4621, %v4624
    %vm4626 = vweird.f32 %v4620
    %vm4627 = vweird.f32 %v4621
    %vm4628 = vmor %vm4626, %vm4627
    %v4629 = vsel %vm4628, %v4621, %v4625
    %v4630 = vand.u32 2147483647, %v4620
    %vm4631 = vcmp.eq.f32.partialorder %v4630, 8.507059e+37
    %v4632 = vand.u32 %v4620, 2147483648
    %v4633 = vor.u32 1.1754944e-38, %v4632
    %v4634 = vsel %vm4631, %v4633, %v4629
    %v4635 = vmul.f32 1.0, %v4634
    %v4636 = vtanh.pop %v4616
    %v4637 = vmul.f32 %v4635, %v4587
    %4639 = vrot.lane.b32.xlu0 %v4636, 64
    %v4640 = vpop.permute.xlu0 %4639
    %v4642 = vmul.f32 %v4635, %v4640
    %4644 = vrot.lane.b32.xlu0 %v4642, 32
    %v4645 = vpop.permute.xlu0 %4644
    %v4647 = vadd.f32 %v4637, %v4645
    %v4648 = vtanh.pop %v4647
    %4650 = vrot.lane.b32.xlu0 %v4648, 64
    %v4651 = vpop.permute.xlu0 %4650
    %v4653 = vmul.f32 %v4635, %v4651
    %v4654 = vld [vmem:[#allocation2 + $0x12] sm:$0x3]
    %v4655 = vpack.c.bf16 %v4653, %v4653
    %4657 = vrot.lane.b32.xlu0 %v4655, 32
    %v4658 = vpop.permute.xlu0 %4657
    %v4660 = vsel %vm4115, %v4658, 0
    %4662 = vmatpush.bf16.msra.mxu0 0
    %4663 = vmatpush.bf16.msra.mxu0 0
    %4664 = vmatpush.bf16.msra.mxu0 0
    %4665 = vmatpush.bf16.msra.mxu0 0
    %4666 = vmatpush.bf16.msra.mxu0 0
    %4667 = vmatpush.bf16.msra.mxu0 0
    %4668 = vmatpush.bf16.msra.mxu0 %v4112
    %4669 = vmatpush.bf16.msra.mxu0 %v4111
    %4670 = vmatmul.bf16.gmra.mxu0 %v4660
    %v4671 = vpop.f32.mrf.mxu0
    %v4672 = vadd.f32 0.0, %v4671
    %v4673 = vpop.f32.mrf.mxu0
    %4674 = vdwg.mxu0
    %v4675 = vadd.f32 %v4654, %v4672
    %v4676 = vadd.f32 %v4675, %v4134
    %v4677 = vxor.u32 %v4676, 2147483648
    %v4678 = vmul.f32 %v4677, 1.442695
    %v4679 = vpow.pop %v4678
    %v4680 = vadd.f32 %v4679, 1.0
    %v4681 = vrcp.pop %v4680
    %v4682 = vmul.f32 %v4680, %v4681
    %v4683 = vsub.f32 1.0, %v4682
    %v4684 = vmul.f32 %v4681, %v4683
    %v4685 = vadd.f32 %v4681, %v4684
    %vm4686 = vweird.f32 %v4680
    %vm4687 = vweird.f32 %v4681
    %vm4688 = vmor %vm4686, %vm4687
    %v4689 = vsel %vm4688, %v4681, %v4685
    %v4690 = vand.u32 2147483647, %v4680
    %vm4691 = vcmp.eq.f32.partialorder %v4690, 8.507059e+37
    %v4692 = vand.u32 %v4680, 2147483648
    %v4693 = vor.u32 1.1754944e-38, %v4692
    %v4694 = vsel %vm4691, %v4693, %v4689
    %v4695 = vmul.f32 1.0, %v4694
    %v4696 = vtanh.pop %v4676
    %v4697 = vmul.f32 %v4695, %v4647
    %4699 = vrot.lane.b32.xlu0 %v4696, 64
    %v4700 = vpop.permute.xlu0 %4699
    %v4702 = vmul.f32 %v4695, %v4700
    %4704 = vrot.lane.b32.xlu0 %v4702, 32
    %v4705 = vpop.permute.xlu0 %4704
    %v4707 = vadd.f32 %v4697, %v4705
    %v4708 = vtanh.pop %v4707
    %4710 = vrot.lane.b32.xlu0 %v4708, 64
    %v4711 = vpop.permute.xlu0 %4710
    %v4713 = vmul.f32 %v4695, %v4711
    %v4714 = vld [vmem:[#allocation2 + $0x14] sm:$0x3]
    %v4715 = vpack.c.bf16 %v4713, %v4713
    %4717 = vrot.lane.b32.xlu0 %v4715, 32
    %v4718 = vpop.permute.xlu0 %4717
    %v4720 = vsel %vm4115, %v4718, 0
    %4722 = vmatpush.bf16.msra.mxu0 0
    %4723 = vmatpush.bf16.msra.mxu0 0
    %4724 = vmatpush.bf16.msra.mxu0 0
    %4725 = vmatpush.bf16.msra.mxu0 0
    %4726 = vmatpush.bf16.msra.mxu0 0
    %4727 = vmatpush.bf16.msra.mxu0 0
    %4728 = vmatpush.bf16.msra.mxu0 %v4112
    %4729 = vmatpush.bf16.msra.mxu0 %v4111
    %4730 = vmatmul.bf16.gmra.mxu0 %v4720
    %v4731 = vpop.f32.mrf.mxu0
    %v4732 = vadd.f32 0.0, %v4731
    %v4733 = vpop.f32.mrf.mxu0
    %4734 = vdwg.mxu0
    %v4735 = vadd.f32 %v4714, %v4732
    %v4736 = vadd.f32 %v4735, %v4134
    %v4737 = vxor.u32 %v4736, 2147483648
    %v4738 = vmul.f32 %v4737, 1.442695
    %v4739 = vpow.pop %v4738
    %v4740 = vadd.f32 %v4739, 1.0
    %v4741 = vrcp.pop %v4740
    %v4742 = vmul.f32 %v4740, %v4741
    %v4743 = vsub.f32 1.0, %v4742
    %v4744 = vmul.f32 %v4741, %v4743
    %v4745 = vadd.f32 %v4741, %v4744
    %vm4746 = vweird.f32 %v4740
    %vm4747 = vweird.f32 %v4741
    %vm4748 = vmor %vm4746, %vm4747
    %v4749 = vsel %vm4748, %v4741, %v4745
    %v4750 = vand.u32 2147483647, %v4740
    %vm4751 = vcmp.eq.f32.partialorder %v4750, 8.507059e+37
    %v4752 = vand.u32 %v4740, 2147483648
    %v4753 = vor.u32 1.1754944e-38, %v4752
    %v4754 = vsel %vm4751, %v4753, %v4749
    %v4755 = vmul.f32 1.0, %v4754
    %v4756 = vtanh.pop %v4736
    %v4757 = vmul.f32 %v4755, %v4707
    %4759 = vrot.lane.b32.xlu0 %v4756, 64
    %v4760 = vpop.permute.xlu0 %4759
    %v4762 = vmul.f32 %v4755, %v4760
    %4764 = vrot.lane.b32.xlu0 %v4762, 32
    %v4765 = vpop.permute.xlu0 %4764
    %v4767 = vadd.f32 %v4757, %v4765
    %v4768 = vtanh.pop %v4767
    %4770 = vrot.lane.b32.xlu0 %v4768, 64
    %v4771 = vpop.permute.xlu0 %4770
    %v4773 = vmul.f32 %v4755, %v4771
    %v4774 = vld [vmem:[#allocation2 + $0x16] sm:$0x3]
    %v4775 = vpack.c.bf16 %v4773, %v4773
    %4777 = vrot.lane.b32.xlu0 %v4775, 32
    %v4778 = vpop.permute.xlu0 %4777
    %v4780 = vsel %vm4115, %v4778, 0
    %4782 = vmatpush.bf16.msra.mxu0 0
    %4783 = vmatpush.bf16.msra.mxu0 0
    %4784 = vmatpush.bf16.msra.mxu0 0
    %4785 = vmatpush.bf16.msra.mxu0 0
    %4786 = vmatpush.bf16.msra.mxu0 0
    %4787 = vmatpush.bf16.msra.mxu0 0
    %4788 = vmatpush.bf16.msra.mxu0 %v4112
    %4789 = vmatpush.bf16.msra.mxu0 %v4111
    %4790 = vmatmul.bf16.gmra.mxu0 %v4780
    %v4791 = vpop.f32.mrf.mxu0
    %v4792 = vadd.f32 0.0, %v4791
    %v4793 = vpop.f32.mrf.mxu0
    %4794 = vdwg.mxu0
    %v4795 = vadd.f32 %v4774, %v4792
    %v4796 = vadd.f32 %v4795, %v4134
    %v4797 = vxor.u32 %v4796, 2147483648
    %v4798 = vmul.f32 %v4797, 1.442695
    %v4799 = vpow.pop %v4798
    %v4800 = vadd.f32 %v4799, 1.0
    %v4801 = vrcp.pop %v4800
    %v4802 = vmul.f32 %v4800, %v4801
    %v4803 = vsub.f32 1.0, %v4802
    %v4804 = vmul.f32 %v4801, %v4803
    %v4805 = vadd.f32 %v4801, %v4804
    %vm4806 = vweird.f32 %v4800
    %vm4807 = vweird.f32 %v4801
    %vm4808 = vmor %vm4806, %vm4807
    %v4809 = vsel %vm4808, %v4801, %v4805
    %v4810 = vand.u32 2147483647, %v4800
    %vm4811 = vcmp.eq.f32.partialorder %v4810, 8.507059e+37
    %v4812 = vand.u32 %v4800, 2147483648
    %v4813 = vor.u32 1.1754944e-38, %v4812
    %v4814 = vsel %vm4811, %v4813, %v4809
    %v4815 = vmul.f32 1.0, %v4814
    %v4816 = vtanh.pop %v4796
    %v4817 = vmul.f32 %v4815, %v4767
    %4819 = vrot.lane.b32.xlu0 %v4816, 64
    %v4820 = vpop.permute.xlu0 %4819
    %v4822 = vmul.f32 %v4815, %v4820
    %4824 = vrot.lane.b32.xlu0 %v4822, 32
    %v4825 = vpop.permute.xlu0 %4824
    %v4827 = vadd.f32 %v4817, %v4825
    %v4828 = vtanh.pop %v4827
    %4830 = vrot.lane.b32.xlu0 %v4828, 64
    %v4831 = vpop.permute.xlu0 %4830
    %v4833 = vmul.f32 %v4815, %v4831
    %v4834 = vld [vmem:[#allocation2 + $0x18] sm:$0x3]
    %v4835 = vpack.c.bf16 %v4833, %v4833
    %4837 = vrot.lane.b32.xlu0 %v4835, 32
    %v4838 = vpop.permute.xlu0 %4837
    %v4840 = vsel %vm4115, %v4838, 0
    %4842 = vmatpush.bf16.msra.mxu0 0
    %4843 = vmatpush.bf16.msra.mxu0 0
    %4844 = vmatpush.bf16.msra.mxu0 0
    %4845 = vmatpush.bf16.msra.mxu0 0
    %4846 = vmatpush.bf16.msra.mxu0 0
    %4847 = vmatpush.bf16.msra.mxu0 0
    %4848 = vmatpush.bf16.msra.mxu0 %v4112
    %4849 = vmatpush.bf16.msra.mxu0 %v4111
    %4850 = vmatmul.bf16.gmra.mxu0 %v4840
    %v4851 = vpop.f32.mrf.mxu0
    %v4852 = vadd.f32 0.0, %v4851
    %v4853 = vpop.f32.mrf.mxu0
    %4854 = vdwg.mxu0
    %v4855 = vadd.f32 %v4834, %v4852
    %v4856 = vadd.f32 %v4855, %v4134
    %v4857 = vxor.u32 %v4856, 2147483648
    %v4858 = vmul.f32 %v4857, 1.442695
    %v4859 = vpow.pop %v4858
    %v4860 = vadd.f32 %v4859, 1.0
    %v4861 = vrcp.pop %v4860
    %v4862 = vmul.f32 %v4860, %v4861
    %v4863 = vsub.f32 1.0, %v4862
    %v4864 = vmul.f32 %v4861, %v4863
    %v4865 = vadd.f32 %v4861, %v4864
    %vm4866 = vweird.f32 %v4860
    %vm4867 = vweird.f32 %v4861
    %vm4868 = vmor %vm4866, %vm4867
    %v4869 = vsel %vm4868, %v4861, %v4865
    %v4870 = vand.u32 2147483647, %v4860
    %vm4871 = vcmp.eq.f32.partialorder %v4870, 8.507059e+37
    %v4872 = vand.u32 %v4860, 2147483648
    %v4873 = vor.u32 1.1754944e-38, %v4872
    %v4874 = vsel %vm4871, %v4873, %v4869
    %v4875 = vmul.f32 1.0, %v4874
    %v4876 = vtanh.pop %v4856
    %v4877 = vmul.f32 %v4875, %v4827
    %4879 = vrot.lane.b32.xlu0 %v4876, 64
    %v4880 = vpop.permute.xlu0 %4879
    %v4882 = vmul.f32 %v4875, %v4880
    %4884 = vrot.lane.b32.xlu0 %v4882, 32
    %v4885 = vpop.permute.xlu0 %4884
    %v4887 = vadd.f32 %v4877, %v4885
    %v4888 = vtanh.pop %v4887
    %4890 = vrot.lane.b32.xlu0 %v4888, 64
    %v4891 = vpop.permute.xlu0 %4890
    %v4893 = vmul.f32 %v4875, %v4891
    %v4894 = vld [vmem:[#allocation2 + $0x1a] sm:$0x3]
    %v4895 = vpack.c.bf16 %v4893, %v4893
    %4897 = vrot.lane.b32.xlu0 %v4895, 32
    %v4898 = vpop.permute.xlu0 %4897
    %v4900 = vsel %vm4115, %v4898, 0
    %4902 = vmatpush.bf16.msra.mxu0 0
    %4903 = vmatpush.bf16.msra.mxu0 0
    %4904 = vmatpush.bf16.msra.mxu0 0
    %4905 = vmatpush.bf16.msra.mxu0 0
    %4906 = vmatpush.bf16.msra.mxu0 0
    %4907 = vmatpush.bf16.msra.mxu0 0
    %4908 = vmatpush.bf16.msra.mxu0 %v4112
    %4909 = vmatpush.bf16.msra.mxu0 %v4111
    %4910 = vmatmul.bf16.gmra.mxu0 %v4900
    %v4911 = vpop.f32.mrf.mxu0
    %v4912 = vadd.f32 0.0, %v4911
    %v4913 = vpop.f32.mrf.mxu0
    %4914 = vdwg.mxu0
    %v4915 = vadd.f32 %v4894, %v4912
    %v4916 = vadd.f32 %v4915, %v4134
    %v4917 = vxor.u32 %v4916, 2147483648
    %v4918 = vmul.f32 %v4917, 1.442695
    %v4919 = vpow.pop %v4918
    %v4920 = vadd.f32 %v4919, 1.0
    %v4921 = vrcp.pop %v4920
    %v4922 = vmul.f32 %v4920, %v4921
    %v4923 = vsub.f32 1.0, %v4922
    %v4924 = vmul.f32 %v4921, %v4923
    %v4925 = vadd.f32 %v4921, %v4924
    %vm4926 = vweird.f32 %v4920
    %vm4927 = vweird.f32 %v4921
    %vm4928 = vmor %vm4926, %vm4927
    %v4929 = vsel %vm4928, %v4921, %v4925
    %v4930 = vand.u32 2147483647, %v4920
    %vm4931 = vcmp.eq.f32.partialorder %v4930, 8.507059e+37
    %v4932 = vand.u32 %v4920, 2147483648
    %v4933 = vor.u32 1.1754944e-38, %v4932
    %v4934 = vsel %vm4931, %v4933, %v4929
    %v4935 = vmul.f32 1.0, %v4934
    %v4936 = vtanh.pop %v4916
    %v4937 = vmul.f32 %v4935, %v4887
    %4939 = vrot.lane.b32.xlu0 %v4936, 64
    %v4940 = vpop.permute.xlu0 %4939
    %v4942 = vmul.f32 %v4935, %v4940
    %4944 = vrot.lane.b32.xlu0 %v4942, 32
    %v4945 = vpop.permute.xlu0 %4944
    %v4947 = vadd.f32 %v4937, %v4945
    %v4948 = vtanh.pop %v4947
    %4950 = vrot.lane.b32.xlu0 %v4948, 64
    %v4951 = vpop.permute.xlu0 %4950
    %v4953 = vmul.f32 %v4935, %v4951
    %v4954 = vld [vmem:[#allocation2 + $0x1c] sm:$0x3]
    %v4955 = vpack.c.bf16 %v4953, %v4953
    %4957 = vrot.lane.b32.xlu0 %v4955, 32
    %v4958 = vpop.permute.xlu0 %4957
    %v4960 = vsel %vm4115, %v4958, 0
    %4962 = vmatpush.bf16.msra.mxu0 0
    %4963 = vmatpush.bf16.msra.mxu0 0
    %4964 = vmatpush.bf16.msra.mxu0 0
    %4965 = vmatpush.bf16.msra.mxu0 0
    %4966 = vmatpush.bf16.msra.mxu0 0
    %4967 = vmatpush.bf16.msra.mxu0 0
    %4968 = vmatpush.bf16.msra.mxu0 %v4112
    %4969 = vmatpush.bf16.msra.mxu0 %v4111
    %4970 = vmatmul.bf16.gmra.mxu0 %v4960
    %v4971 = vpop.f32.mrf.mxu0
    %v4972 = vadd.f32 0.0, %v4971
    %v4973 = vpop.f32.mrf.mxu0
    %4974 = vdwg.mxu0
    %v4975 = vadd.f32 %v4954, %v4972
    %v4976 = vadd.f32 %v4975, %v4134
    %v4977 = vxor.u32 %v4976, 2147483648
    %v4978 = vmul.f32 %v4977, 1.442695
    %v4979 = vpow.pop %v4978
    %v4980 = vadd.f32 %v4979, 1.0
    %v4981 = vrcp.pop %v4980
    %v4982 = vmul.f32 %v4980, %v4981
    %v4983 = vsub.f32 1.0, %v4982
    %v4984 = vmul.f32 %v4981, %v4983
    %v4985 = vadd.f32 %v4981, %v4984
    %vm4986 = vweird.f32 %v4980
    %vm4987 = vweird.f32 %v4981
    %vm4988 = vmor %vm4986, %vm4987
    %v4989 = vsel %vm4988, %v4981, %v4985
    %v4990 = vand.u32 2147483647, %v4980
    %vm4991 = vcmp.eq.f32.partialorder %v4990, 8.507059e+37
    %v4992 = vand.u32 %v4980, 2147483648
    %v4993 = vor.u32 1.1754944e-38, %v4992
    %v4994 = vsel %vm4991, %v4993, %v4989
    %v4995 = vmul.f32 1.0, %v4994
    %v4996 = vtanh.pop %v4976
    %v4997 = vmul.f32 %v4995, %v4947
    %4999 = vrot.lane.b32.xlu0 %v4996, 64
    %v5000 = vpop.permute.xlu0 %4999
    %v5002 = vmul.f32 %v4995, %v5000
    %5004 = vrot.lane.b32.xlu0 %v5002, 32
    %v5005 = vpop.permute.xlu0 %5004
    %v5007 = vadd.f32 %v4997, %v5005
    %v5008 = vtanh.pop %v5007
    %5010 = vrot.lane.b32.xlu0 %v5008, 64
    %v5011 = vpop.permute.xlu0 %5010
    %v5013 = vmul.f32 %v4995, %v5011
    %v5014 = vld [vmem:[#allocation2 + $0x1e] sm:$0x3]
    %v5015 = vpack.c.bf16 %v5013, %v5013
    %5017 = vrot.lane.b32.xlu0 %v5015, 32
    %v5018 = vpop.permute.xlu0 %5017
    %v5020 = vsel %vm4115, %v5018, 0
    %5022 = vmatpush.bf16.msra.mxu0 0
    %5023 = vmatpush.bf16.msra.mxu0 0
    %5024 = vmatpush.bf16.msra.mxu0 0
    %5025 = vmatpush.bf16.msra.mxu0 0
    %5026 = vmatpush.bf16.msra.mxu0 0
    %5027 = vmatpush.bf16.msra.mxu0 0
    %5028 = vmatpush.bf16.msra.mxu0 %v4112
    %5029 = vmatpush.bf16.msra.mxu0 %v4111
    %5030 = vmatmul.bf16.gmra.mxu0 %v5020
    %v5031 = vpop.f32.mrf.mxu0
    %v5032 = vadd.f32 0.0, %v5031
    %v5033 = vpop.f32.mrf.mxu0
    %5034 = vdwg.mxu0
    %v5035 = vadd.f32 %v5014, %v5032
    %v5036 = vadd.f32 %v5035, %v4134
    %v5037 = vxor.u32 %v5036, 2147483648
    %v5038 = vmul.f32 %v5037, 1.442695
    %v5039 = vpow.pop %v5038
    %v5040 = vadd.f32 %v5039, 1.0
    %v5041 = vrcp.pop %v5040
    %v5042 = vmul.f32 %v5040, %v5041
    %v5043 = vsub.f32 1.0, %v5042
    %v5044 = vmul.f32 %v5041, %v5043
    %v5045 = vadd.f32 %v5041, %v5044
    %vm5046 = vweird.f32 %v5040
    %vm5047 = vweird.f32 %v5041
    %vm5048 = vmor %vm5046, %vm5047
    %v5049 = vsel %vm5048, %v5041, %v5045
    %v5050 = vand.u32 2147483647, %v5040
    %vm5051 = vcmp.eq.f32.partialorder %v5050, 8.507059e+37
    %v5052 = vand.u32 %v5040, 2147483648
    %v5053 = vor.u32 1.1754944e-38, %v5052
    %v5054 = vsel %vm5051, %v5053, %v5049
    %v5055 = vmul.f32 1.0, %v5054
    %v5056 = vtanh.pop %v5036
    %v5057 = vmul.f32 %v5055, %v5007
    %5059 = vrot.lane.b32.xlu0 %v5056, 64
    %v5060 = vpop.permute.xlu0 %5059
    %v5062 = vmul.f32 %v5055, %v5060
    %5064 = vrot.lane.b32.xlu0 %v5062, 32
    %v5065 = vpop.permute.xlu0 %5064
    %v5067 = vadd.f32 %v5057, %v5065
    %v5068 = vtanh.pop %v5067
    %5070 = vrot.lane.b32.xlu0 %v5068, 64
    %v5071 = vpop.permute.xlu0 %5070
    %v5073 = vmul.f32 %v5055, %v5071
    %v5074 = vld [vmem:[#allocation2 + $0x20] sm:$0x3]
    %v5075 = vpack.c.bf16 %v5073, %v5073
    %5077 = vrot.lane.b32.xlu0 %v5075, 32
    %v5078 = vpop.permute.xlu0 %5077
    %v5080 = vsel %vm4115, %v5078, 0
    %5082 = vmatpush.bf16.msra.mxu0 0
    %5083 = vmatpush.bf16.msra.mxu0 0
    %5084 = vmatpush.bf16.msra.mxu0 0
    %5085 = vmatpush.bf16.msra.mxu0 0
    %5086 = vmatpush.bf16.msra.mxu0 0
    %5087 = vmatpush.bf16.msra.mxu0 0
    %5088 = vmatpush.bf16.msra.mxu0 %v4112
    %5089 = vmatpush.bf16.msra.mxu0 %v4111
    %5090 = vmatmul.bf16.gmra.mxu0 %v5080
    %v5091 = vpop.f32.mrf.mxu0
    %v5092 = vadd.f32 0.0, %v5091
    %v5093 = vpop.f32.mrf.mxu0
    %5094 = vdwg.mxu0
    %v5095 = vadd.f32 %v5074, %v5092
    %v5096 = vadd.f32 %v5095, %v4134
    %v5097 = vxor.u32 %v5096, 2147483648
    %v5098 = vmul.f32 %v5097, 1.442695
    %v5099 = vpow.pop %v5098
    %v5100 = vadd.f32 %v5099, 1.0
    %v5101 = vrcp.pop %v5100
    %v5102 = vmul.f32 %v5100, %v5101
    %v5103 = vsub.f32 1.0, %v5102
    %v5104 = vmul.f32 %v5101, %v5103
    %v5105 = vadd.f32 %v5101, %v5104
    %vm5106 = vweird.f32 %v5100
    %vm5107 = vweird.f32 %v5101
    %vm5108 = vmor %vm5106, %vm5107
    %v5109 = vsel %vm5108, %v5101, %v5105
    %v5110 = vand.u32 2147483647, %v5100
    %vm5111 = vcmp.eq.f32.partialorder %v5110, 8.507059e+37
    %v5112 = vand.u32 %v5100, 2147483648
    %v5113 = vor.u32 1.1754944e-38, %v5112
    %v5114 = vsel %vm5111, %v5113, %v5109
    %v5115 = vmul.f32 1.0, %v5114
    %v5116 = vtanh.pop %v5096
    %v5117 = vmul.f32 %v5115, %v5067
    %5119 = vrot.lane.b32.xlu0 %v5116, 64
    %v5120 = vpop.permute.xlu0 %5119
    %v5122 = vmul.f32 %v5115, %v5120
    %5124 = vrot.lane.b32.xlu0 %v5122, 32
    %v5125 = vpop.permute.xlu0 %5124
    %v5127 = vadd.f32 %v5117, %v5125
    %v5128 = vtanh.pop %v5127
    %5130 = vrot.lane.b32.xlu0 %v5128, 64
    %v5131 = vpop.permute.xlu0 %5130
    %v5133 = vmul.f32 %v5115, %v5131
    %v5134 = vld [vmem:[#allocation2 + $0x22] sm:$0x3]
    %v5135 = vpack.c.bf16 %v5133, %v5133
    %5137 = vrot.lane.b32.xlu0 %v5135, 32
    %v5138 = vpop.permute.xlu0 %5137
    %v5140 = vsel %vm4115, %v5138, 0
    %5142 = vmatpush.bf16.msra.mxu0 0
    %5143 = vmatpush.bf16.msra.mxu0 0
    %5144 = vmatpush.bf16.msra.mxu0 0
    %5145 = vmatpush.bf16.msra.mxu0 0
    %5146 = vmatpush.bf16.msra.mxu0 0
    %5147 = vmatpush.bf16.msra.mxu0 0
    %5148 = vmatpush.bf16.msra.mxu0 %v4112
    %5149 = vmatpush.bf16.msra.mxu0 %v4111
    %5150 = vmatmul.bf16.gmra.mxu0 %v5140
    %v5151 = vpop.f32.mrf.mxu0
    %v5152 = vadd.f32 0.0, %v5151
    %v5153 = vpop.f32.mrf.mxu0
    %5154 = vdwg.mxu0
    %v5155 = vadd.f32 %v5134, %v5152
    %v5156 = vadd.f32 %v5155, %v4134
    %v5157 = vxor.u32 %v5156, 2147483648
    %v5158 = vmul.f32 %v5157, 1.442695
    %v5159 = vpow.pop %v5158
    %v5160 = vadd.f32 %v5159, 1.0
    %v5161 = vrcp.pop %v5160
    %v5162 = vmul.f32 %v5160, %v5161
    %v5163 = vsub.f32 1.0, %v5162
    %v5164 = vmul.f32 %v5161, %v5163
    %v5165 = vadd.f32 %v5161, %v5164
    %vm5166 = vweird.f32 %v5160
    %vm5167 = vweird.f32 %v5161
    %vm5168 = vmor %vm5166, %vm5167
    %v5169 = vsel %vm5168, %v5161, %v5165
    %v5170 = vand.u32 2147483647, %v5160
    %vm5171 = vcmp.eq.f32.partialorder %v5170, 8.507059e+37
    %v5172 = vand.u32 %v5160, 2147483648
    %v5173 = vor.u32 1.1754944e-38, %v5172
    %v5174 = vsel %vm5171, %v5173, %v5169
    %v5175 = vmul.f32 1.0, %v5174
    %v5176 = vtanh.pop %v5156
    %v5177 = vmul.f32 %v5175, %v5127
    %5179 = vrot.lane.b32.xlu0 %v5176, 64
    %v5180 = vpop.permute.xlu0 %5179
    %v5182 = vmul.f32 %v5175, %v5180
    %5184 = vrot.lane.b32.xlu0 %v5182, 32
    %v5185 = vpop.permute.xlu0 %5184
    %v5187 = vadd.f32 %v5177, %v5185
    %v5188 = vtanh.pop %v5187
    %5190 = vrot.lane.b32.xlu0 %v5188, 64
    %v5191 = vpop.permute.xlu0 %5190
    %v5193 = vmul.f32 %v5175, %v5191
    %v5194 = vld [vmem:[#allocation2 + $0x24] sm:$0x3]
    %v5195 = vpack.c.bf16 %v5193, %v5193
    %5197 = vrot.lane.b32.xlu0 %v5195, 32
    %v5198 = vpop.permute.xlu0 %5197
    %v5200 = vsel %vm4115, %v5198, 0
    %5202 = vmatpush.bf16.msra.mxu0 0
    %5203 = vmatpush.bf16.msra.mxu0 0
    %5204 = vmatpush.bf16.msra.mxu0 0
    %5205 = vmatpush.bf16.msra.mxu0 0
    %5206 = vmatpush.bf16.msra.mxu0 0
    %5207 = vmatpush.bf16.msra.mxu0 0
    %5208 = vmatpush.bf16.msra.mxu0 %v4112
    %5209 = vmatpush.bf16.msra.mxu0 %v4111
    %5210 = vmatmul.bf16.gmra.mxu0 %v5200
    %v5211 = vpop.f32.mrf.mxu0
    %v5212 = vadd.f32 0.0, %v5211
    %v5213 = vpop.f32.mrf.mxu0
    %5214 = vdwg.mxu0
    %v5215 = vadd.f32 %v5194, %v5212
    %v5216 = vadd.f32 %v5215, %v4134
    %v5217 = vxor.u32 %v5216, 2147483648
    %v5218 = vmul.f32 %v5217, 1.442695
    %v5219 = vpow.pop %v5218
    %v5220 = vadd.f32 %v5219, 1.0
    %v5221 = vrcp.pop %v5220
    %v5222 = vmul.f32 %v5220, %v5221
    %v5223 = vsub.f32 1.0, %v5222
    %v5224 = vmul.f32 %v5221, %v5223
    %v5225 = vadd.f32 %v5221, %v5224
    %vm5226 = vweird.f32 %v5220
    %vm5227 = vweird.f32 %v5221
    %vm5228 = vmor %vm5226, %vm5227
    %v5229 = vsel %vm5228, %v5221, %v5225
    %v5230 = vand.u32 2147483647, %v5220
    %vm5231 = vcmp.eq.f32.partialorder %v5230, 8.507059e+37
    %v5232 = vand.u32 %v5220, 2147483648
    %v5233 = vor.u32 1.1754944e-38, %v5232
    %v5234 = vsel %vm5231, %v5233, %v5229
    %v5235 = vmul.f32 1.0, %v5234
    %v5236 = vtanh.pop %v5216
    %v5237 = vmul.f32 %v5235, %v5187
    %5239 = vrot.lane.b32.xlu0 %v5236, 64
    %v5240 = vpop.permute.xlu0 %5239
    %v5242 = vmul.f32 %v5235, %v5240
    %5244 = vrot.lane.b32.xlu0 %v5242, 32
    %v5245 = vpop.permute.xlu0 %5244
    %v5247 = vadd.f32 %v5237, %v5245
    %v5248 = vtanh.pop %v5247
    %5250 = vrot.lane.b32.xlu0 %v5248, 64
    %v5251 = vpop.permute.xlu0 %5250
    %v5253 = vmul.f32 %v5235, %v5251
    %v5254 = vld [vmem:[#allocation2 + $0x26] sm:$0x3]
    %v5255 = vpack.c.bf16 %v5253, %v5253
    %5257 = vrot.lane.b32.xlu0 %v5255, 32
    %v5258 = vpop.permute.xlu0 %5257
    %v5260 = vsel %vm4115, %v5258, 0
    %5262 = vmatpush.bf16.msra.mxu0 0
    %5263 = vmatpush.bf16.msra.mxu0 0
    %5264 = vmatpush.bf16.msra.mxu0 0
    %5265 = vmatpush.bf16.msra.mxu0 0
    %5266 = vmatpush.bf16.msra.mxu0 0
    %5267 = vmatpush.bf16.msra.mxu0 0
    %5268 = vmatpush.bf16.msra.mxu0 %v4112
    %5269 = vmatpush.bf16.msra.mxu0 %v4111
    %5270 = vmatmul.bf16.gmra.mxu0 %v5260
    %v5271 = vpop.f32.mrf.mxu0
    %v5272 = vadd.f32 0.0, %v5271
    %v5273 = vpop.f32.mrf.mxu0
    %5274 = vdwg.mxu0
    %v5275 = vadd.f32 %v5254, %v5272
    %v5276 = vadd.f32 %v5275, %v4134
    %v5277 = vxor.u32 %v5276, 2147483648
    %v5278 = vmul.f32 %v5277, 1.442695
    %v5279 = vpow.pop %v5278
    %v5280 = vadd.f32 %v5279, 1.0
    %v5281 = vrcp.pop %v5280
    %v5282 = vmul.f32 %v5280, %v5281
    %v5283 = vsub.f32 1.0, %v5282
    %v5284 = vmul.f32 %v5281, %v5283
    %v5285 = vadd.f32 %v5281, %v5284
    %vm5286 = vweird.f32 %v5280
    %vm5287 = vweird.f32 %v5281
    %vm5288 = vmor %vm5286, %vm5287
    %v5289 = vsel %vm5288, %v5281, %v5285
    %v5290 = vand.u32 2147483647, %v5280
    %vm5291 = vcmp.eq.f32.partialorder %v5290, 8.507059e+37
    %v5292 = vand.u32 %v5280, 2147483648
    %v5293 = vor.u32 1.1754944e-38, %v5292
    %v5294 = vsel %vm5291, %v5293, %v5289
    %v5295 = vmul.f32 1.0, %v5294
    %v5296 = vtanh.pop %v5276
    %v5297 = vmul.f32 %v5295, %v5247
    %5299 = vrot.lane.b32.xlu0 %v5296, 64
    %v5300 = vpop.permute.xlu0 %5299
    %v5302 = vmul.f32 %v5295, %v5300
    %5304 = vrot.lane.b32.xlu0 %v5302, 32
    %v5305 = vpop.permute.xlu0 %5304
    %v5307 = vadd.f32 %v5297, %v5305
    %v5308 = vtanh.pop %v5307
    %5310 = vrot.lane.b32.xlu0 %v5308, 64
    %v5311 = vpop.permute.xlu0 %5310
    %v5313 = vmul.f32 %v5295, %v5311
    %v5314 = vld [vmem:[#allocation2 + $0x28] sm:$0x3]
    %v5315 = vpack.c.bf16 %v5313, %v5313
    %5317 = vrot.lane.b32.xlu0 %v5315, 32
    %v5318 = vpop.permute.xlu0 %5317
    %v5320 = vsel %vm4115, %v5318, 0
    %5322 = vmatpush.bf16.msra.mxu0 0
    %5323 = vmatpush.bf16.msra.mxu0 0
    %5324 = vmatpush.bf16.msra.mxu0 0
    %5325 = vmatpush.bf16.msra.mxu0 0
    %5326 = vmatpush.bf16.msra.mxu0 0
    %5327 = vmatpush.bf16.msra.mxu0 0
    %5328 = vmatpush.bf16.msra.mxu0 %v4112
    %5329 = vmatpush.bf16.msra.mxu0 %v4111
    %5330 = vmatmul.bf16.gmra.mxu0 %v5320
    %v5331 = vpop.f32.mrf.mxu0
    %v5332 = vadd.f32 0.0, %v5331
    %v5333 = vpop.f32.mrf.mxu0
    %5334 = vdwg.mxu0
    %v5335 = vadd.f32 %v5314, %v5332
    %v5336 = vadd.f32 %v5335, %v4134
    %v5337 = vxor.u32 %v5336, 2147483648
    %v5338 = vmul.f32 %v5337, 1.442695
    %v5339 = vpow.pop %v5338
    %v5340 = vadd.f32 %v5339, 1.0
    %v5341 = vrcp.pop %v5340
    %v5342 = vmul.f32 %v5340, %v5341
    %v5343 = vsub.f32 1.0, %v5342
    %v5344 = vmul.f32 %v5341, %v5343
    %v5345 = vadd.f32 %v5341, %v5344
    %vm5346 = vweird.f32 %v5340
    %vm5347 = vweird.f32 %v5341
    %vm5348 = vmor %vm5346, %vm5347
    %v5349 = vsel %vm5348, %v5341, %v5345
    %v5350 = vand.u32 2147483647, %v5340
    %vm5351 = vcmp.eq.f32.partialorder %v5350, 8.507059e+37
    %v5352 = vand.u32 %v5340, 2147483648
    %v5353 = vor.u32 1.1754944e-38, %v5352
    %v5354 = vsel %vm5351, %v5353, %v5349
    %v5355 = vmul.f32 1.0, %v5354
    %v5356 = vtanh.pop %v5336
    %v5357 = vmul.f32 %v5355, %v5307
    %5359 = vrot.lane.b32.xlu0 %v5356, 64
    %v5360 = vpop.permute.xlu0 %5359
    %v5362 = vmul.f32 %v5355, %v5360
    %5364 = vrot.lane.b32.xlu0 %v5362, 32
    %v5365 = vpop.permute.xlu0 %5364
    %v5367 = vadd.f32 %v5357, %v5365
    %v5368 = vtanh.pop %v5367
    %5370 = vrot.lane.b32.xlu0 %v5368, 64
    %v5371 = vpop.permute.xlu0 %5370
    %v5373 = vmul.f32 %v5355, %v5371
    %v5374 = vld [vmem:[#allocation2 + $0x2a] sm:$0x3]
    %v5375 = vpack.c.bf16 %v5373, %v5373
    %5377 = vrot.lane.b32.xlu0 %v5375, 32
    %v5378 = vpop.permute.xlu0 %5377
    %v5380 = vsel %vm4115, %v5378, 0
    %5382 = vmatpush.bf16.msra.mxu0 0
    %5383 = vmatpush.bf16.msra.mxu0 0
    %5384 = vmatpush.bf16.msra.mxu0 0
    %5385 = vmatpush.bf16.msra.mxu0 0
    %5386 = vmatpush.bf16.msra.mxu0 0
    %5387 = vmatpush.bf16.msra.mxu0 0
    %5388 = vmatpush.bf16.msra.mxu0 %v4112
    %5389 = vmatpush.bf16.msra.mxu0 %v4111
    %5390 = vmatmul.bf16.gmra.mxu0 %v5380
    %v5391 = vpop.f32.mrf.mxu0
    %v5392 = vadd.f32 0.0, %v5391
    %v5393 = vpop.f32.mrf.mxu0
    %5394 = vdwg.mxu0
    %v5395 = vadd.f32 %v5374, %v5392
    %v5396 = vadd.f32 %v5395, %v4134
    %v5397 = vxor.u32 %v5396, 2147483648
    %v5398 = vmul.f32 %v5397, 1.442695
    %v5399 = vpow.pop %v5398
    %v5400 = vadd.f32 %v5399, 1.0
    %v5401 = vrcp.pop %v5400
    %v5402 = vmul.f32 %v5400, %v5401
    %v5403 = vsub.f32 1.0, %v5402
    %v5404 = vmul.f32 %v5401, %v5403
    %v5405 = vadd.f32 %v5401, %v5404
    %vm5406 = vweird.f32 %v5400
    %vm5407 = vweird.f32 %v5401
    %vm5408 = vmor %vm5406, %vm5407
    %v5409 = vsel %vm5408, %v5401, %v5405
    %v5410 = vand.u32 2147483647, %v5400
    %vm5411 = vcmp.eq.f32.partialorder %v5410, 8.507059e+37
    %v5412 = vand.u32 %v5400, 2147483648
    %v5413 = vor.u32 1.1754944e-38, %v5412
    %v5414 = vsel %vm5411, %v5413, %v5409
    %v5415 = vmul.f32 1.0, %v5414
    %v5416 = vtanh.pop %v5396
    %v5417 = vmul.f32 %v5415, %v5367
    %5419 = vrot.lane.b32.xlu0 %v5416, 64
    %v5420 = vpop.permute.xlu0 %5419
    %v5422 = vmul.f32 %v5415, %v5420
    %5424 = vrot.lane.b32.xlu0 %v5422, 32
    %v5425 = vpop.permute.xlu0 %5424
    %v5427 = vadd.f32 %v5417, %v5425
    %v5428 = vtanh.pop %v5427
    %5430 = vrot.lane.b32.xlu0 %v5428, 64
    %v5431 = vpop.permute.xlu0 %5430
    %v5433 = vmul.f32 %v5415, %v5431
    %v5434 = vld [vmem:[#allocation2 + $0x2c] sm:$0x3]
    %v5435 = vpack.c.bf16 %v5433, %v5433
    %5437 = vrot.lane.b32.xlu0 %v5435, 32
    %v5438 = vpop.permute.xlu0 %5437
    %v5440 = vsel %vm4115, %v5438, 0
    %5442 = vmatpush.bf16.msra.mxu0 0
    %5443 = vmatpush.bf16.msra.mxu0 0
    %5444 = vmatpush.bf16.msra.mxu0 0
    %5445 = vmatpush.bf16.msra.mxu0 0
    %5446 = vmatpush.bf16.msra.mxu0 0
    %5447 = vmatpush.bf16.msra.mxu0 0
    %5448 = vmatpush.bf16.msra.mxu0 %v4112
    %5449 = vmatpush.bf16.msra.mxu0 %v4111
    %5450 = vmatmul.bf16.gmra.mxu0 %v5440
    %v5451 = vpop.f32.mrf.mxu0
    %v5452 = vadd.f32 0.0, %v5451
    %v5453 = vpop.f32.mrf.mxu0
    %5454 = vdwg.mxu0
    %v5455 = vadd.f32 %v5434, %v5452
    %v5456 = vadd.f32 %v5455, %v4134
    %v5457 = vxor.u32 %v5456, 2147483648
    %v5458 = vmul.f32 %v5457, 1.442695
    %v5459 = vpow.pop %v5458
    %v5460 = vadd.f32 %v5459, 1.0
    %v5461 = vrcp.pop %v5460
    %v5462 = vmul.f32 %v5460, %v5461
    %v5463 = vsub.f32 1.0, %v5462
    %v5464 = vmul.f32 %v5461, %v5463
    %v5465 = vadd.f32 %v5461, %v5464
    %vm5466 = vweird.f32 %v5460
    %vm5467 = vweird.f32 %v5461
    %vm5468 = vmor %vm5466, %vm5467
    %v5469 = vsel %vm5468, %v5461, %v5465
    %v5470 = vand.u32 2147483647, %v5460
    %vm5471 = vcmp.eq.f32.partialorder %v5470, 8.507059e+37
    %v5472 = vand.u32 %v5460, 2147483648
    %v5473 = vor.u32 1.1754944e-38, %v5472
    %v5474 = vsel %vm5471, %v5473, %v5469
    %v5475 = vmul.f32 1.0, %v5474
    %v5476 = vtanh.pop %v5456
    %v5477 = vmul.f32 %v5475, %v5427
    %5479 = vrot.lane.b32.xlu0 %v5476, 64
    %v5480 = vpop.permute.xlu0 %5479
    %v5482 = vmul.f32 %v5475, %v5480
    %5484 = vrot.lane.b32.xlu0 %v5482, 32
    %v5485 = vpop.permute.xlu0 %5484
    %v5487 = vadd.f32 %v5477, %v5485
    %v5488 = vtanh.pop %v5487
    %5490 = vrot.lane.b32.xlu0 %v5488, 64
    %v5491 = vpop.permute.xlu0 %5490
    %v5493 = vmul.f32 %v5475, %v5491
    %v5494 = vld [vmem:[#allocation2 + $0x2e] sm:$0x3]
    %v5495 = vpack.c.bf16 %v5493, %v5493
    %5497 = vrot.lane.b32.xlu0 %v5495, 32
    %v5498 = vpop.permute.xlu0 %5497
    %v5500 = vsel %vm4115, %v5498, 0
    %5502 = vmatpush.bf16.msra.mxu0 0
    %5503 = vmatpush.bf16.msra.mxu0 0
    %5504 = vmatpush.bf16.msra.mxu0 0
    %5505 = vmatpush.bf16.msra.mxu0 0
    %5506 = vmatpush.bf16.msra.mxu0 0
    %5507 = vmatpush.bf16.msra.mxu0 0
    %5508 = vmatpush.bf16.msra.mxu0 %v4112
    %5509 = vmatpush.bf16.msra.mxu0 %v4111
    %5510 = vmatmul.bf16.gmra.mxu0 %v5500
    %v5511 = vpop.f32.mrf.mxu0
    %v5512 = vadd.f32 0.0, %v5511
    %v5513 = vpop.f32.mrf.mxu0
    %5514 = vdwg.mxu0
    %v5515 = vadd.f32 %v5494, %v5512
    %v5516 = vadd.f32 %v5515, %v4134
    %v5517 = vxor.u32 %v5516, 2147483648
    %v5518 = vmul.f32 %v5517, 1.442695
    %v5519 = vpow.pop %v5518
    %v5520 = vadd.f32 %v5519, 1.0
    %v5521 = vrcp.pop %v5520
    %v5522 = vmul.f32 %v5520, %v5521
    %v5523 = vsub.f32 1.0, %v5522
    %v5524 = vmul.f32 %v5521, %v5523
    %v5525 = vadd.f32 %v5521, %v5524
    %vm5526 = vweird.f32 %v5520
    %vm5527 = vweird.f32 %v5521
    %vm5528 = vmor %vm5526, %vm5527
    %v5529 = vsel %vm5528, %v5521, %v5525
    %v5530 = vand.u32 2147483647, %v5520
    %vm5531 = vcmp.eq.f32.partialorder %v5530, 8.507059e+37
    %v5532 = vand.u32 %v5520, 2147483648
    %v5533 = vor.u32 1.1754944e-38, %v5532
    %v5534 = vsel %vm5531, %v5533, %v5529
    %v5535 = vmul.f32 1.0, %v5534
    %v5536 = vtanh.pop %v5516
    %v5537 = vmul.f32 %v5535, %v5487
    %5539 = vrot.lane.b32.xlu0 %v5536, 64
    %v5540 = vpop.permute.xlu0 %5539
    %v5542 = vmul.f32 %v5535, %v5540
    %5544 = vrot.lane.b32.xlu0 %v5542, 32
    %v5545 = vpop.permute.xlu0 %5544
    %v5547 = vadd.f32 %v5537, %v5545
    %v5548 = vtanh.pop %v5547
    %5550 = vrot.lane.b32.xlu0 %v5548, 64
    %v5551 = vpop.permute.xlu0 %5550
    %v5553 = vmul.f32 %v5535, %v5551
    %v5554 = vld [vmem:[#allocation2 + $0x30] sm:$0x3]
    %v5555 = vpack.c.bf16 %v5553, %v5553
    %5557 = vrot.lane.b32.xlu0 %v5555, 32
    %v5558 = vpop.permute.xlu0 %5557
    %v5560 = vsel %vm4115, %v5558, 0
    %5562 = vmatpush.bf16.msra.mxu0 0
    %5563 = vmatpush.bf16.msra.mxu0 0
    %5564 = vmatpush.bf16.msra.mxu0 0
    %5565 = vmatpush.bf16.msra.mxu0 0
    %5566 = vmatpush.bf16.msra.mxu0 0
    %5567 = vmatpush.bf16.msra.mxu0 0
    %5568 = vmatpush.bf16.msra.mxu0 %v4112
    %5569 = vmatpush.bf16.msra.mxu0 %v4111
    %5570 = vmatmul.bf16.gmra.mxu0 %v5560
    %v5571 = vpop.f32.mrf.mxu0
    %v5572 = vadd.f32 0.0, %v5571
    %v5573 = vpop.f32.mrf.mxu0
    %5574 = vdwg.mxu0
    %v5575 = vadd.f32 %v5554, %v5572
    %v5576 = vadd.f32 %v5575, %v4134
    %v5577 = vxor.u32 %v5576, 2147483648
    %v5578 = vmul.f32 %v5577, 1.442695
    %v5579 = vpow.pop %v5578
    %v5580 = vadd.f32 %v5579, 1.0
    %v5581 = vrcp.pop %v5580
    %v5582 = vmul.f32 %v5580, %v5581
    %v5583 = vsub.f32 1.0, %v5582
    %v5584 = vmul.f32 %v5581, %v5583
    %v5585 = vadd.f32 %v5581, %v5584
    %vm5586 = vweird.f32 %v5580
    %vm5587 = vweird.f32 %v5581
    %vm5588 = vmor %vm5586, %vm5587
    %v5589 = vsel %vm5588, %v5581, %v5585
    %v5590 = vand.u32 2147483647, %v5580
    %vm5591 = vcmp.eq.f32.partialorder %v5590, 8.507059e+37
    %v5592 = vand.u32 %v5580, 2147483648
    %v5593 = vor.u32 1.1754944e-38, %v5592
    %v5594 = vsel %vm5591, %v5593, %v5589
    %v5595 = vmul.f32 1.0, %v5594
    %v5596 = vtanh.pop %v5576
    %v5597 = vmul.f32 %v5595, %v5547
    %5599 = vrot.lane.b32.xlu0 %v5596, 64
    %v5600 = vpop.permute.xlu0 %5599
    %v5602 = vmul.f32 %v5595, %v5600
    %5604 = vrot.lane.b32.xlu0 %v5602, 32
    %v5605 = vpop.permute.xlu0 %5604
    %v5607 = vadd.f32 %v5597, %v5605
    %v5608 = vtanh.pop %v5607
    %5610 = vrot.lane.b32.xlu0 %v5608, 64
    %v5611 = vpop.permute.xlu0 %5610
    %v5613 = vmul.f32 %v5595, %v5611
    %v5614 = vld [vmem:[#allocation2 + $0x32] sm:$0x3]
    %v5615 = vpack.c.bf16 %v5613, %v5613
    %5617 = vrot.lane.b32.xlu0 %v5615, 32
    %v5618 = vpop.permute.xlu0 %5617
    %v5620 = vsel %vm4115, %v5618, 0
    %5622 = vmatpush.bf16.msra.mxu0 0
    %5623 = vmatpush.bf16.msra.mxu0 0
    %5624 = vmatpush.bf16.msra.mxu0 0
    %5625 = vmatpush.bf16.msra.mxu0 0
    %5626 = vmatpush.bf16.msra.mxu0 0
    %5627 = vmatpush.bf16.msra.mxu0 0
    %5628 = vmatpush.bf16.msra.mxu0 %v4112
    %5629 = vmatpush.bf16.msra.mxu0 %v4111
    %5630 = vmatmul.bf16.gmra.mxu0 %v5620
    %v5631 = vpop.f32.mrf.mxu0
    %v5632 = vadd.f32 0.0, %v5631
    %v5633 = vpop.f32.mrf.mxu0
    %5634 = vdwg.mxu0
    %v5635 = vadd.f32 %v5614, %v5632
    %v5636 = vadd.f32 %v5635, %v4134
    %v5637 = vxor.u32 %v5636, 2147483648
    %v5638 = vmul.f32 %v5637, 1.442695
    %v5639 = vpow.pop %v5638
    %v5640 = vadd.f32 %v5639, 1.0
    %v5641 = vrcp.pop %v5640
    %v5642 = vmul.f32 %v5640, %v5641
    %v5643 = vsub.f32 1.0, %v5642
    %v5644 = vmul.f32 %v5641, %v5643
    %v5645 = vadd.f32 %v5641, %v5644
    %vm5646 = vweird.f32 %v5640
    %vm5647 = vweird.f32 %v5641
    %vm5648 = vmor %vm5646, %vm5647
    %v5649 = vsel %vm5648, %v5641, %v5645
    %v5650 = vand.u32 2147483647, %v5640
    %vm5651 = vcmp.eq.f32.partialorder %v5650, 8.507059e+37
    %v5652 = vand.u32 %v5640, 2147483648
    %v5653 = vor.u32 1.1754944e-38, %v5652
    %v5654 = vsel %vm5651, %v5653, %v5649
    %v5655 = vmul.f32 1.0, %v5654
    %v5656 = vtanh.pop %v5636
    %v5657 = vmul.f32 %v5655, %v5607
    %5659 = vrot.lane.b32.xlu0 %v5656, 64
    %v5660 = vpop.permute.xlu0 %5659
    %v5662 = vmul.f32 %v5655, %v5660
    %5664 = vrot.lane.b32.xlu0 %v5662, 32
    %v5665 = vpop.permute.xlu0 %5664
    %v5667 = vadd.f32 %v5657, %v5665
    %v5668 = vtanh.pop %v5667
    %5670 = vrot.lane.b32.xlu0 %v5668, 64
    %v5671 = vpop.permute.xlu0 %5670
    %v5673 = vmul.f32 %v5655, %v5671
    %v5674 = vld [vmem:[#allocation2 + $0x34] sm:$0x3]
    %v5675 = vpack.c.bf16 %v5673, %v5673
    %5677 = vrot.lane.b32.xlu0 %v5675, 32
    %v5678 = vpop.permute.xlu0 %5677
    %v5680 = vsel %vm4115, %v5678, 0
    %5682 = vmatpush.bf16.msra.mxu0 0
    %5683 = vmatpush.bf16.msra.mxu0 0
    %5684 = vmatpush.bf16.msra.mxu0 0
    %5685 = vmatpush.bf16.msra.mxu0 0
    %5686 = vmatpush.bf16.msra.mxu0 0
    %5687 = vmatpush.bf16.msra.mxu0 0
    %5688 = vmatpush.bf16.msra.mxu0 %v4112
    %5689 = vmatpush.bf16.msra.mxu0 %v4111
    %5690 = vmatmul.bf16.gmra.mxu0 %v5680
    %v5691 = vpop.f32.mrf.mxu0
    %v5692 = vadd.f32 0.0, %v5691
    %v5693 = vpop.f32.mrf.mxu0
    %5694 = vdwg.mxu0
    %v5695 = vadd.f32 %v5674, %v5692
    %v5696 = vadd.f32 %v5695, %v4134
    %v5697 = vxor.u32 %v5696, 2147483648
    %v5698 = vmul.f32 %v5697, 1.442695
    %v5699 = vpow.pop %v5698
    %v5700 = vadd.f32 %v5699, 1.0
    %v5701 = vrcp.pop %v5700
    %v5702 = vmul.f32 %v5700, %v5701
    %v5703 = vsub.f32 1.0, %v5702
    %v5704 = vmul.f32 %v5701, %v5703
    %v5705 = vadd.f32 %v5701, %v5704
    %vm5706 = vweird.f32 %v5700
    %vm5707 = vweird.f32 %v5701
    %vm5708 = vmor %vm5706, %vm5707
    %v5709 = vsel %vm5708, %v5701, %v5705
    %v5710 = vand.u32 2147483647, %v5700
    %vm5711 = vcmp.eq.f32.partialorder %v5710, 8.507059e+37
    %v5712 = vand.u32 %v5700, 2147483648
    %v5713 = vor.u32 1.1754944e-38, %v5712
    %v5714 = vsel %vm5711, %v5713, %v5709
    %v5715 = vmul.f32 1.0, %v5714
    %v5716 = vtanh.pop %v5696
    %v5717 = vmul.f32 %v5715, %v5667
    %5719 = vrot.lane.b32.xlu0 %v5716, 64
    %v5720 = vpop.permute.xlu0 %5719
    %v5722 = vmul.f32 %v5715, %v5720
    %5724 = vrot.lane.b32.xlu0 %v5722, 32
    %v5725 = vpop.permute.xlu0 %5724
    %v5727 = vadd.f32 %v5717, %v5725
    %v5728 = vtanh.pop %v5727
    %5730 = vrot.lane.b32.xlu0 %v5728, 64
    %v5731 = vpop.permute.xlu0 %5730
    %v5733 = vmul.f32 %v5715, %v5731
    %v5734 = vld [vmem:[#allocation2 + $0x36] sm:$0x3]
    %v5735 = vpack.c.bf16 %v5733, %v5733
    %5737 = vrot.lane.b32.xlu0 %v5735, 32
    %v5738 = vpop.permute.xlu0 %5737
    %v5740 = vsel %vm4115, %v5738, 0
    %5742 = vmatpush.bf16.msra.mxu0 0
    %5743 = vmatpush.bf16.msra.mxu0 0
    %5744 = vmatpush.bf16.msra.mxu0 0
    %5745 = vmatpush.bf16.msra.mxu0 0
    %5746 = vmatpush.bf16.msra.mxu0 0
    %5747 = vmatpush.bf16.msra.mxu0 0
    %5748 = vmatpush.bf16.msra.mxu0 %v4112
    %5749 = vmatpush.bf16.msra.mxu0 %v4111
    %5750 = vmatmul.bf16.gmra.mxu0 %v5740
    %v5751 = vpop.f32.mrf.mxu0
    %v5752 = vadd.f32 0.0, %v5751
    %v5753 = vpop.f32.mrf.mxu0
    %5754 = vdwg.mxu0
    %v5755 = vadd.f32 %v5734, %v5752
    %v5756 = vadd.f32 %v5755, %v4134
    %v5757 = vxor.u32 %v5756, 2147483648
    %v5758 = vmul.f32 %v5757, 1.442695
    %v5759 = vpow.pop %v5758
    %v5760 = vadd.f32 %v5759, 1.0
    %v5761 = vrcp.pop %v5760
    %v5762 = vmul.f32 %v5760, %v5761
    %v5763 = vsub.f32 1.0, %v5762
    %v5764 = vmul.f32 %v5761, %v5763
    %v5765 = vadd.f32 %v5761, %v5764
    %vm5766 = vweird.f32 %v5760
    %vm5767 = vweird.f32 %v5761
    %vm5768 = vmor %vm5766, %vm5767
    %v5769 = vsel %vm5768, %v5761, %v5765
    %v5770 = vand.u32 2147483647, %v5760
    %vm5771 = vcmp.eq.f32.partialorder %v5770, 8.507059e+37
    %v5772 = vand.u32 %v5760, 2147483648
    %v5773 = vor.u32 1.1754944e-38, %v5772
    %v5774 = vsel %vm5771, %v5773, %v5769
    %v5775 = vmul.f32 1.0, %v5774
    %v5776 = vtanh.pop %v5756
    %v5777 = vmul.f32 %v5775, %v5727
    %5779 = vrot.lane.b32.xlu0 %v5776, 64
    %v5780 = vpop.permute.xlu0 %5779
    %v5782 = vmul.f32 %v5775, %v5780
    %5784 = vrot.lane.b32.xlu0 %v5782, 32
    %v5785 = vpop.permute.xlu0 %5784
    %v5787 = vadd.f32 %v5777, %v5785
    %v5788 = vtanh.pop %v5787
    %5790 = vrot.lane.b32.xlu0 %v5788, 64
    %v5791 = vpop.permute.xlu0 %5790
    %v5793 = vmul.f32 %v5775, %v5791
    %v5794 = vld [vmem:[#allocation2 + $0x38] sm:$0x3]
    %v5795 = vpack.c.bf16 %v5793, %v5793
    %5797 = vrot.lane.b32.xlu0 %v5795, 32
    %v5798 = vpop.permute.xlu0 %5797
    %v5800 = vsel %vm4115, %v5798, 0
    %5802 = vmatpush.bf16.msra.mxu0 0
    %5803 = vmatpush.bf16.msra.mxu0 0
    %5804 = vmatpush.bf16.msra.mxu0 0
    %5805 = vmatpush.bf16.msra.mxu0 0
    %5806 = vmatpush.bf16.msra.mxu0 0
    %5807 = vmatpush.bf16.msra.mxu0 0
    %5808 = vmatpush.bf16.msra.mxu0 %v4112
    %5809 = vmatpush.bf16.msra.mxu0 %v4111
    %5810 = vmatmul.bf16.gmra.mxu0 %v5800
    %v5811 = vpop.f32.mrf.mxu0
    %v5812 = vadd.f32 0.0, %v5811
    %v5813 = vpop.f32.mrf.mxu0
    %5814 = vdwg.mxu0
    %v5815 = vadd.f32 %v5794, %v5812
    %v5816 = vadd.f32 %v5815, %v4134
    %v5817 = vxor.u32 %v5816, 2147483648
    %v5818 = vmul.f32 %v5817, 1.442695
    %v5819 = vpow.pop %v5818
    %v5820 = vadd.f32 %v5819, 1.0
    %v5821 = vrcp.pop %v5820
    %v5822 = vmul.f32 %v5820, %v5821
    %v5823 = vsub.f32 1.0, %v5822
    %v5824 = vmul.f32 %v5821, %v5823
    %v5825 = vadd.f32 %v5821, %v5824
    %vm5826 = vweird.f32 %v5820
    %vm5827 = vweird.f32 %v5821
    %vm5828 = vmor %vm5826, %vm5827
    %v5829 = vsel %vm5828, %v5821, %v5825
    %v5830 = vand.u32 2147483647, %v5820
    %vm5831 = vcmp.eq.f32.partialorder %v5830, 8.507059e+37
    %v5832 = vand.u32 %v5820, 2147483648
    %v5833 = vor.u32 1.1754944e-38, %v5832
    %v5834 = vsel %vm5831, %v5833, %v5829
    %v5835 = vmul.f32 1.0, %v5834
    %v5836 = vtanh.pop %v5816
    %v5837 = vmul.f32 %v5835, %v5787
    %5839 = vrot.lane.b32.xlu0 %v5836, 64
    %v5840 = vpop.permute.xlu0 %5839
    %v5842 = vmul.f32 %v5835, %v5840
    %5844 = vrot.lane.b32.xlu0 %v5842, 32
    %v5845 = vpop.permute.xlu0 %5844
    %v5847 = vadd.f32 %v5837, %v5845
    %v5848 = vtanh.pop %v5847
    %5850 = vrot.lane.b32.xlu0 %v5848, 64
    %v5851 = vpop.permute.xlu0 %5850
    %v5853 = vmul.f32 %v5835, %v5851
    %v5854 = vld [vmem:[#allocation2 + $0x3a] sm:$0x3]
    %v5855 = vpack.c.bf16 %v5853, %v5853
    %5857 = vrot.lane.b32.xlu0 %v5855, 32
    %v5858 = vpop.permute.xlu0 %5857
    %v5860 = vsel %vm4115, %v5858, 0
    %5862 = vmatpush.bf16.msra.mxu0 0
    %5863 = vmatpush.bf16.msra.mxu0 0
    %5864 = vmatpush.bf16.msra.mxu0 0
    %5865 = vmatpush.bf16.msra.mxu0 0
    %5866 = vmatpush.bf16.msra.mxu0 0
    %5867 = vmatpush.bf16.msra.mxu0 0
    %5868 = vmatpush.bf16.msra.mxu0 %v4112
    %5869 = vmatpush.bf16.msra.mxu0 %v4111
    %5870 = vmatmul.bf16.gmra.mxu0 %v5860
    %v5871 = vpop.f32.mrf.mxu0
    %v5872 = vadd.f32 0.0, %v5871
    %v5873 = vpop.f32.mrf.mxu0
    %5874 = vdwg.mxu0
    %v5875 = vadd.f32 %v5854, %v5872
    %v5876 = vadd.f32 %v5875, %v4134
    %v5877 = vxor.u32 %v5876, 2147483648
    %v5878 = vmul.f32 %v5877, 1.442695
    %v5879 = vpow.pop %v5878
    %v5880 = vadd.f32 %v5879, 1.0
    %v5881 = vrcp.pop %v5880
    %v5882 = vmul.f32 %v5880, %v5881
    %v5883 = vsub.f32 1.0, %v5882
    %v5884 = vmul.f32 %v5881, %v5883
    %v5885 = vadd.f32 %v5881, %v5884
    %vm5886 = vweird.f32 %v5880
    %vm5887 = vweird.f32 %v5881
    %vm5888 = vmor %vm5886, %vm5887
    %v5889 = vsel %vm5888, %v5881, %v5885
    %v5890 = vand.u32 2147483647, %v5880
    %vm5891 = vcmp.eq.f32.partialorder %v5890, 8.507059e+37
    %v5892 = vand.u32 %v5880, 2147483648
    %v5893 = vor.u32 1.1754944e-38, %v5892
    %v5894 = vsel %vm5891, %v5893, %v5889
    %v5895 = vmul.f32 1.0, %v5894
    %v5896 = vtanh.pop %v5876
    %v5897 = vmul.f32 %v5895, %v5847
    %5899 = vrot.lane.b32.xlu0 %v5896, 64
    %v5900 = vpop.permute.xlu0 %5899
    %v5902 = vmul.f32 %v5895, %v5900
    %5904 = vrot.lane.b32.xlu0 %v5902, 32
    %v5905 = vpop.permute.xlu0 %5904
    %v5907 = vadd.f32 %v5897, %v5905
    %v5908 = vtanh.pop %v5907
    %5910 = vrot.lane.b32.xlu0 %v5908, 64
    %v5911 = vpop.permute.xlu0 %5910
    %v5913 = vmul.f32 %v5895, %v5911
    %v5914 = vld [vmem:[#allocation2 + $0x3c] sm:$0x3]
    %v5915 = vpack.c.bf16 %v5913, %v5913
    %5917 = vrot.lane.b32.xlu0 %v5915, 32
    %v5918 = vpop.permute.xlu0 %5917
    %v5920 = vsel %vm4115, %v5918, 0
    %5922 = vmatpush.bf16.msra.mxu0 0
    %5923 = vmatpush.bf16.msra.mxu0 0
    %5924 = vmatpush.bf16.msra.mxu0 0
    %5925 = vmatpush.bf16.msra.mxu0 0
    %5926 = vmatpush.bf16.msra.mxu0 0
    %5927 = vmatpush.bf16.msra.mxu0 0
    %5928 = vmatpush.bf16.msra.mxu0 %v4112
    %5929 = vmatpush.bf16.msra.mxu0 %v4111
    %5930 = vmatmul.bf16.gmra.mxu0 %v5920
    %v5931 = vpop.f32.mrf.mxu0
    %v5932 = vadd.f32 0.0, %v5931
    %v5933 = vpop.f32.mrf.mxu0
    %5934 = vdwg.mxu0
    %v5935 = vadd.f32 %v5914, %v5932
    %v5936 = vadd.f32 %v5935, %v4134
    %v5937 = vxor.u32 %v5936, 2147483648
    %v5938 = vmul.f32 %v5937, 1.442695
    %v5939 = vpow.pop %v5938
    %v5940 = vadd.f32 %v5939, 1.0
    %v5941 = vrcp.pop %v5940
    %v5942 = vmul.f32 %v5940, %v5941
    %v5943 = vsub.f32 1.0, %v5942
    %v5944 = vmul.f32 %v5941, %v5943
    %v5945 = vadd.f32 %v5941, %v5944
    %vm5946 = vweird.f32 %v5940
    %vm5947 = vweird.f32 %v5941
    %vm5948 = vmor %vm5946, %vm5947
    %v5949 = vsel %vm5948, %v5941, %v5945
    %v5950 = vand.u32 2147483647, %v5940
    %vm5951 = vcmp.eq.f32.partialorder %v5950, 8.507059e+37
    %v5952 = vand.u32 %v5940, 2147483648
    %v5953 = vor.u32 1.1754944e-38, %v5952
    %v5954 = vsel %vm5951, %v5953, %v5949
    %v5955 = vmul.f32 1.0, %v5954
    %v5956 = vtanh.pop %v5936
    %v5957 = vmul.f32 %v5955, %v5907
    %5959 = vrot.lane.b32.xlu0 %v5956, 64
    %v5960 = vpop.permute.xlu0 %5959
    %v5962 = vmul.f32 %v5955, %v5960
    %5964 = vrot.lane.b32.xlu0 %v5962, 32
    %v5965 = vpop.permute.xlu0 %5964
    %v5967 = vadd.f32 %v5957, %v5965
    %v5968 = vtanh.pop %v5967
    %5970 = vrot.lane.b32.xlu0 %v5968, 64
    %v5971 = vpop.permute.xlu0 %5970
    %v5973 = vmul.f32 %v5955, %v5971
    %v5974 = vld [vmem:[#allocation2 + $0x3e] sm:$0x3]
    %v5975 = vpack.c.bf16 %v5973, %v5973
    %5977 = vrot.lane.b32.xlu0 %v5975, 32
    %v5978 = vpop.permute.xlu0 %5977
    %v5980 = vsel %vm4115, %v5978, 0
    %5982 = vmatpush.bf16.msra.mxu0 0
    %5983 = vmatpush.bf16.msra.mxu0 0
    %5984 = vmatpush.bf16.msra.mxu0 0
    %5985 = vmatpush.bf16.msra.mxu0 0
    %5986 = vmatpush.bf16.msra.mxu0 0
    %5987 = vmatpush.bf16.msra.mxu0 0
    %5988 = vmatpush.bf16.msra.mxu0 %v4112
    %5989 = vmatpush.bf16.msra.mxu0 %v4111
    %5990 = vmatmul.bf16.gmra.mxu0 %v5980
    %v5991 = vpop.f32.mrf.mxu0
    %v5992 = vadd.f32 0.0, %v5991
    %v5993 = vpop.f32.mrf.mxu0
    %5994 = vdwg.mxu0
    %v5995 = vadd.f32 %v5974, %v5992
    %v5996 = vadd.f32 %v5995, %v4134
    %v5997 = vxor.u32 %v5996, 2147483648
    %v5998 = vmul.f32 %v5997, 1.442695
    %v5999 = vpow.pop %v5998
    %v6000 = vadd.f32 %v5999, 1.0
    %v6001 = vrcp.pop %v6000
    %v6002 = vmul.f32 %v6000, %v6001
    %v6003 = vsub.f32 1.0, %v6002
    %v6004 = vmul.f32 %v6001, %v6003
    %v6005 = vadd.f32 %v6001, %v6004
    %vm6006 = vweird.f32 %v6000
    %vm6007 = vweird.f32 %v6001
    %vm6008 = vmor %vm6006, %vm6007
    %v6009 = vsel %vm6008, %v6001, %v6005
    %v6010 = vand.u32 2147483647, %v6000
    %vm6011 = vcmp.eq.f32.partialorder %v6010, 8.507059e+37
    %v6012 = vand.u32 %v6000, 2147483648
    %v6013 = vor.u32 1.1754944e-38, %v6012
    %v6014 = vsel %vm6011, %v6013, %v6009
    %v6015 = vmul.f32 1.0, %v6014
    %v6016 = vtanh.pop %v5996
    %v6017 = vmul.f32 %v6015, %v5967
    %6019 = vrot.lane.b32.xlu0 %v6016, 64
    %v6020 = vpop.permute.xlu0 %6019
    %v6022 = vmul.f32 %v6015, %v6020
    %6024 = vrot.lane.b32.xlu0 %v6022, 32
    %v6025 = vpop.permute.xlu0 %6024
    %v6027 = vadd.f32 %v6017, %v6025
    %v6028 = vtanh.pop %v6027
    %6030 = vrot.lane.b32.xlu0 %v6028, 64
    %v6031 = vpop.permute.xlu0 %6030
    %v6033 = vmul.f32 %v6015, %v6031
    %v6034 = vld [vmem:[#allocation2 + $0x40] sm:$0x3]
    %v6035 = vpack.c.bf16 %v6033, %v6033
    %6037 = vrot.lane.b32.xlu0 %v6035, 32
    %v6038 = vpop.permute.xlu0 %6037
    %v6040 = vsel %vm4115, %v6038, 0
    %6042 = vmatpush.bf16.msra.mxu0 0
    %6043 = vmatpush.bf16.msra.mxu0 0
    %6044 = vmatpush.bf16.msra.mxu0 0
    %6045 = vmatpush.bf16.msra.mxu0 0
    %6046 = vmatpush.bf16.msra.mxu0 0
    %6047 = vmatpush.bf16.msra.mxu0 0
    %6048 = vmatpush.bf16.msra.mxu0 %v4112
    %6049 = vmatpush.bf16.msra.mxu0 %v4111
    %6050 = vmatmul.bf16.gmra.mxu0 %v6040
    %v6051 = vpop.f32.mrf.mxu0
    %v6052 = vadd.f32 0.0, %v6051
    %v6053 = vpop.f32.mrf.mxu0
    %6054 = vdwg.mxu0
    %v6055 = vadd.f32 %v6034, %v6052
    %v6056 = vadd.f32 %v6055, %v4134
    %v6057 = vxor.u32 %v6056, 2147483648
    %v6058 = vmul.f32 %v6057, 1.442695
    %v6059 = vpow.pop %v6058
    %v6060 = vadd.f32 %v6059, 1.0
    %v6061 = vrcp.pop %v6060
    %v6062 = vmul.f32 %v6060, %v6061
    %v6063 = vsub.f32 1.0, %v6062
    %v6064 = vmul.f32 %v6061, %v6063
    %v6065 = vadd.f32 %v6061, %v6064
    %vm6066 = vweird.f32 %v6060
    %vm6067 = vweird.f32 %v6061
    %vm6068 = vmor %vm6066, %vm6067
    %v6069 = vsel %vm6068, %v6061, %v6065
    %v6070 = vand.u32 2147483647, %v6060
    %vm6071 = vcmp.eq.f32.partialorder %v6070, 8.507059e+37
    %v6072 = vand.u32 %v6060, 2147483648
    %v6073 = vor.u32 1.1754944e-38, %v6072
    %v6074 = vsel %vm6071, %v6073, %v6069
    %v6075 = vmul.f32 1.0, %v6074
    %v6076 = vtanh.pop %v6056
    %v6077 = vmul.f32 %v6075, %v6027
    %6079 = vrot.lane.b32.xlu0 %v6076, 64
    %v6080 = vpop.permute.xlu0 %6079
    %v6082 = vmul.f32 %v6075, %v6080
    %6084 = vrot.lane.b32.xlu0 %v6082, 32
    %v6085 = vpop.permute.xlu0 %6084
    %v6087 = vadd.f32 %v6077, %v6085
    %v6088 = vtanh.pop %v6087
    %6090 = vrot.lane.b32.xlu0 %v6088, 64
    %v6091 = vpop.permute.xlu0 %6090
    %v6093 = vmul.f32 %v6075, %v6091
    %v6094 = vld [vmem:[#allocation2 + $0x42] sm:$0x3]
    %v6095 = vpack.c.bf16 %v6093, %v6093
    %6097 = vrot.lane.b32.xlu0 %v6095, 32
    %v6098 = vpop.permute.xlu0 %6097
    %v6100 = vsel %vm4115, %v6098, 0
    %6102 = vmatpush.bf16.msra.mxu0 0
    %6103 = vmatpush.bf16.msra.mxu0 0
    %6104 = vmatpush.bf16.msra.mxu0 0
    %6105 = vmatpush.bf16.msra.mxu0 0
    %6106 = vmatpush.bf16.msra.mxu0 0
    %6107 = vmatpush.bf16.msra.mxu0 0
    %6108 = vmatpush.bf16.msra.mxu0 %v4112
    %6109 = vmatpush.bf16.msra.mxu0 %v4111
    %6110 = vmatmul.bf16.gmra.mxu0 %v6100
    %v6111 = vpop.f32.mrf.mxu0
    %v6112 = vadd.f32 0.0, %v6111
    %v6113 = vpop.f32.mrf.mxu0
    %6114 = vdwg.mxu0
    %v6115 = vadd.f32 %v6094, %v6112
    %v6116 = vadd.f32 %v6115, %v4134
    %v6117 = vxor.u32 %v6116, 2147483648
    %v6118 = vmul.f32 %v6117, 1.442695
    %v6119 = vpow.pop %v6118
    %v6120 = vadd.f32 %v6119, 1.0
    %v6121 = vrcp.pop %v6120
    %v6122 = vmul.f32 %v6120, %v6121
    %v6123 = vsub.f32 1.0, %v6122
    %v6124 = vmul.f32 %v6121, %v6123
    %v6125 = vadd.f32 %v6121, %v6124
    %vm6126 = vweird.f32 %v6120
    %vm6127 = vweird.f32 %v6121
    %vm6128 = vmor %vm6126, %vm6127
    %v6129 = vsel %vm6128, %v6121, %v6125
    %v6130 = vand.u32 2147483647, %v6120
    %vm6131 = vcmp.eq.f32.partialorder %v6130, 8.507059e+37
    %v6132 = vand.u32 %v6120, 2147483648
    %v6133 = vor.u32 1.1754944e-38, %v6132
    %v6134 = vsel %vm6131, %v6133, %v6129
    %v6135 = vmul.f32 1.0, %v6134
    %v6136 = vtanh.pop %v6116
    %v6137 = vmul.f32 %v6135, %v6087
    %6139 = vrot.lane.b32.xlu0 %v6136, 64
    %v6140 = vpop.permute.xlu0 %6139
    %v6142 = vmul.f32 %v6135, %v6140
    %6144 = vrot.lane.b32.xlu0 %v6142, 32
    %v6145 = vpop.permute.xlu0 %6144
    %v6147 = vadd.f32 %v6137, %v6145
    %v6148 = vtanh.pop %v6147
    %6150 = vrot.lane.b32.xlu0 %v6148, 64
    %v6151 = vpop.permute.xlu0 %6150
    %v6153 = vmul.f32 %v6135, %v6151
    %v6154 = vld [vmem:[#allocation2 + $0x44] sm:$0x3]
    %v6155 = vpack.c.bf16 %v6153, %v6153
    %6157 = vrot.lane.b32.xlu0 %v6155, 32
    %v6158 = vpop.permute.xlu0 %6157
    %v6160 = vsel %vm4115, %v6158, 0
    %6162 = vmatpush.bf16.msra.mxu0 0
    %6163 = vmatpush.bf16.msra.mxu0 0
    %6164 = vmatpush.bf16.msra.mxu0 0
    %6165 = vmatpush.bf16.msra.mxu0 0
    %6166 = vmatpush.bf16.msra.mxu0 0
    %6167 = vmatpush.bf16.msra.mxu0 0
    %6168 = vmatpush.bf16.msra.mxu0 %v4112
    %6169 = vmatpush.bf16.msra.mxu0 %v4111
    %6170 = vmatmul.bf16.gmra.mxu0 %v6160
    %v6171 = vpop.f32.mrf.mxu0
    %v6172 = vadd.f32 0.0, %v6171
    %v6173 = vpop.f32.mrf.mxu0
    %6174 = vdwg.mxu0
    %v6175 = vadd.f32 %v6154, %v6172
    %v6176 = vadd.f32 %v6175, %v4134
    %v6177 = vxor.u32 %v6176, 2147483648
    %v6178 = vmul.f32 %v6177, 1.442695
    %v6179 = vpow.pop %v6178
    %v6180 = vadd.f32 %v6179, 1.0
    %v6181 = vrcp.pop %v6180
    %v6182 = vmul.f32 %v6180, %v6181
    %v6183 = vsub.f32 1.0, %v6182
    %v6184 = vmul.f32 %v6181, %v6183
    %v6185 = vadd.f32 %v6181, %v6184
    %vm6186 = vweird.f32 %v6180
    %vm6187 = vweird.f32 %v6181
    %vm6188 = vmor %vm6186, %vm6187
    %v6189 = vsel %vm6188, %v6181, %v6185
    %v6190 = vand.u32 2147483647, %v6180
    %vm6191 = vcmp.eq.f32.partialorder %v6190, 8.507059e+37
    %v6192 = vand.u32 %v6180, 2147483648
    %v6193 = vor.u32 1.1754944e-38, %v6192
    %v6194 = vsel %vm6191, %v6193, %v6189
    %v6195 = vmul.f32 1.0, %v6194
    %v6196 = vtanh.pop %v6176
    %v6197 = vmul.f32 %v6195, %v6147
    %6199 = vrot.lane.b32.xlu0 %v6196, 64
    %v6200 = vpop.permute.xlu0 %6199
    %v6202 = vmul.f32 %v6195, %v6200
    %6204 = vrot.lane.b32.xlu0 %v6202, 32
    %v6205 = vpop.permute.xlu0 %6204
    %v6207 = vadd.f32 %v6197, %v6205
    %v6208 = vtanh.pop %v6207
    %6210 = vrot.lane.b32.xlu0 %v6208, 64
    %v6211 = vpop.permute.xlu0 %6210
    %v6213 = vmul.f32 %v6195, %v6211
    %v6214 = vld [vmem:[#allocation2 + $0x46] sm:$0x3]
    %v6215 = vpack.c.bf16 %v6213, %v6213
    %6217 = vrot.lane.b32.xlu0 %v6215, 32
    %v6218 = vpop.permute.xlu0 %6217
    %v6220 = vsel %vm4115, %v6218, 0
    %6222 = vmatpush.bf16.msra.mxu0 0
    %6223 = vmatpush.bf16.msra.mxu0 0
    %6224 = vmatpush.bf16.msra.mxu0 0
    %6225 = vmatpush.bf16.msra.mxu0 0
    %6226 = vmatpush.bf16.msra.mxu0 0
    %6227 = vmatpush.bf16.msra.mxu0 0
    %6228 = vmatpush.bf16.msra.mxu0 %v4112
    %6229 = vmatpush.bf16.msra.mxu0 %v4111
    %6230 = vmatmul.bf16.gmra.mxu0 %v6220
    %v6231 = vpop.f32.mrf.mxu0
    %v6232 = vadd.f32 0.0, %v6231
    %v6233 = vpop.f32.mrf.mxu0
    %6234 = vdwg.mxu0
    %v6235 = vadd.f32 %v6214, %v6232
    %v6236 = vadd.f32 %v6235, %v4134
    %v6237 = vxor.u32 %v6236, 2147483648
    %v6238 = vmul.f32 %v6237, 1.442695
    %v6239 = vpow.pop %v6238
    %v6240 = vadd.f32 %v6239, 1.0
    %v6241 = vrcp.pop %v6240
    %v6242 = vmul.f32 %v6240, %v6241
    %v6243 = vsub.f32 1.0, %v6242
    %v6244 = vmul.f32 %v6241, %v6243
    %v6245 = vadd.f32 %v6241, %v6244
    %vm6246 = vweird.f32 %v6240
    %vm6247 = vweird.f32 %v6241
    %vm6248 = vmor %vm6246, %vm6247
    %v6249 = vsel %vm6248, %v6241, %v6245
    %v6250 = vand.u32 2147483647, %v6240
    %vm6251 = vcmp.eq.f32.partialorder %v6250, 8.507059e+37
    %v6252 = vand.u32 %v6240, 2147483648
    %v6253 = vor.u32 1.1754944e-38, %v6252
    %v6254 = vsel %vm6251, %v6253, %v6249
    %v6255 = vmul.f32 1.0, %v6254
    %v6256 = vtanh.pop %v6236
    %v6257 = vmul.f32 %v6255, %v6207
    %6259 = vrot.lane.b32.xlu0 %v6256, 64
    %v6260 = vpop.permute.xlu0 %6259
    %v6262 = vmul.f32 %v6255, %v6260
    %6264 = vrot.lane.b32.xlu0 %v6262, 32
    %v6265 = vpop.permute.xlu0 %6264
    %v6267 = vadd.f32 %v6257, %v6265
    %v6268 = vtanh.pop %v6267
    %6270 = vrot.lane.b32.xlu0 %v6268, 64
    %v6271 = vpop.permute.xlu0 %6270
    %v6273 = vmul.f32 %v6255, %v6271
    %v6274 = vld [vmem:[#allocation2 + $0x48] sm:$0x3]
    %v6275 = vpack.c.bf16 %v6273, %v6273
    %6277 = vrot.lane.b32.xlu0 %v6275, 32
    %v6278 = vpop.permute.xlu0 %6277
    %v6280 = vsel %vm4115, %v6278, 0
    %6282 = vmatpush.bf16.msra.mxu0 0
    %6283 = vmatpush.bf16.msra.mxu0 0
    %6284 = vmatpush.bf16.msra.mxu0 0
    %6285 = vmatpush.bf16.msra.mxu0 0
    %6286 = vmatpush.bf16.msra.mxu0 0
    %6287 = vmatpush.bf16.msra.mxu0 0
    %6288 = vmatpush.bf16.msra.mxu0 %v4112
    %6289 = vmatpush.bf16.msra.mxu0 %v4111
    %6290 = vmatmul.bf16.gmra.mxu0 %v6280
    %v6291 = vpop.f32.mrf.mxu0
    %v6292 = vadd.f32 0.0, %v6291
    %v6293 = vpop.f32.mrf.mxu0
    %6294 = vdwg.mxu0
    %v6295 = vadd.f32 %v6274, %v6292
    %v6296 = vadd.f32 %v6295, %v4134
    %v6297 = vxor.u32 %v6296, 2147483648
    %v6298 = vmul.f32 %v6297, 1.442695
    %v6299 = vpow.pop %v6298
    %v6300 = vadd.f32 %v6299, 1.0
    %v6301 = vrcp.pop %v6300
    %v6302 = vmul.f32 %v6300, %v6301
    %v6303 = vsub.f32 1.0, %v6302
    %v6304 = vmul.f32 %v6301, %v6303
    %v6305 = vadd.f32 %v6301, %v6304
    %vm6306 = vweird.f32 %v6300
    %vm6307 = vweird.f32 %v6301
    %vm6308 = vmor %vm6306, %vm6307
    %v6309 = vsel %vm6308, %v6301, %v6305
    %v6310 = vand.u32 2147483647, %v6300
    %vm6311 = vcmp.eq.f32.partialorder %v6310, 8.507059e+37
    %v6312 = vand.u32 %v6300, 2147483648
    %v6313 = vor.u32 1.1754944e-38, %v6312
    %v6314 = vsel %vm6311, %v6313, %v6309
    %v6315 = vmul.f32 1.0, %v6314
    %v6316 = vtanh.pop %v6296
    %v6317 = vmul.f32 %v6315, %v6267
    %6319 = vrot.lane.b32.xlu0 %v6316, 64
    %v6320 = vpop.permute.xlu0 %6319
    %v6322 = vmul.f32 %v6315, %v6320
    %6324 = vrot.lane.b32.xlu0 %v6322, 32
    %v6325 = vpop.permute.xlu0 %6324
    %v6327 = vadd.f32 %v6317, %v6325
    %v6328 = vtanh.pop %v6327
    %6330 = vrot.lane.b32.xlu0 %v6328, 64
    %v6331 = vpop.permute.xlu0 %6330
    %v6333 = vmul.f32 %v6315, %v6331
    %v6334 = vld [vmem:[#allocation2 + $0x4a] sm:$0x3]
    %v6335 = vpack.c.bf16 %v6333, %v6333
    %6337 = vrot.lane.b32.xlu0 %v6335, 32
    %v6338 = vpop.permute.xlu0 %6337
    %v6340 = vsel %vm4115, %v6338, 0
    %6342 = vmatpush.bf16.msra.mxu0 0
    %6343 = vmatpush.bf16.msra.mxu0 0
    %6344 = vmatpush.bf16.msra.mxu0 0
    %6345 = vmatpush.bf16.msra.mxu0 0
    %6346 = vmatpush.bf16.msra.mxu0 0
    %6347 = vmatpush.bf16.msra.mxu0 0
    %6348 = vmatpush.bf16.msra.mxu0 %v4112
    %6349 = vmatpush.bf16.msra.mxu0 %v4111
    %6350 = vmatmul.bf16.gmra.mxu0 %v6340
    %v6351 = vpop.f32.mrf.mxu0
    %v6352 = vadd.f32 0.0, %v6351
    %v6353 = vpop.f32.mrf.mxu0
    %6354 = vdwg.mxu0
    %v6355 = vadd.f32 %v6334, %v6352
    %v6356 = vadd.f32 %v6355, %v4134
    %v6357 = vxor.u32 %v6356, 2147483648
    %v6358 = vmul.f32 %v6357, 1.442695
    %v6359 = vpow.pop %v6358
    %v6360 = vadd.f32 %v6359, 1.0
    %v6361 = vrcp.pop %v6360
    %v6362 = vmul.f32 %v6360, %v6361
    %v6363 = vsub.f32 1.0, %v6362
    %v6364 = vmul.f32 %v6361, %v6363
    %v6365 = vadd.f32 %v6361, %v6364
    %vm6366 = vweird.f32 %v6360
    %vm6367 = vweird.f32 %v6361
    %vm6368 = vmor %vm6366, %vm6367
    %v6369 = vsel %vm6368, %v6361, %v6365
    %v6370 = vand.u32 2147483647, %v6360
    %vm6371 = vcmp.eq.f32.partialorder %v6370, 8.507059e+37
    %v6372 = vand.u32 %v6360, 2147483648
    %v6373 = vor.u32 1.1754944e-38, %v6372
    %v6374 = vsel %vm6371, %v6373, %v6369
    %v6375 = vmul.f32 1.0, %v6374
    %v6376 = vtanh.pop %v6356
    %v6377 = vmul.f32 %v6375, %v6327
    %6379 = vrot.lane.b32.xlu0 %v6376, 64
    %v6380 = vpop.permute.xlu0 %6379
    %v6382 = vmul.f32 %v6375, %v6380
    %6384 = vrot.lane.b32.xlu0 %v6382, 32
    %v6385 = vpop.permute.xlu0 %6384
    %v6387 = vadd.f32 %v6377, %v6385
    %v6388 = vtanh.pop %v6387
    %6390 = vrot.lane.b32.xlu0 %v6388, 64
    %v6391 = vpop.permute.xlu0 %6390
    %v6393 = vmul.f32 %v6375, %v6391
    %v6394 = vld [vmem:[#allocation2 + $0x4c] sm:$0x3]
    %v6395 = vpack.c.bf16 %v6393, %v6393
    %6397 = vrot.lane.b32.xlu0 %v6395, 32
    %v6398 = vpop.permute.xlu0 %6397
    %v6400 = vsel %vm4115, %v6398, 0
    %6402 = vmatpush.bf16.msra.mxu0 0
    %6403 = vmatpush.bf16.msra.mxu0 0
    %6404 = vmatpush.bf16.msra.mxu0 0
    %6405 = vmatpush.bf16.msra.mxu0 0
    %6406 = vmatpush.bf16.msra.mxu0 0
    %6407 = vmatpush.bf16.msra.mxu0 0
    %6408 = vmatpush.bf16.msra.mxu0 %v4112
    %6409 = vmatpush.bf16.msra.mxu0 %v4111
    %6410 = vmatmul.bf16.gmra.mxu0 %v6400
    %v6411 = vpop.f32.mrf.mxu0
    %v6412 = vadd.f32 0.0, %v6411
    %v6413 = vpop.f32.mrf.mxu0
    %6414 = vdwg.mxu0
    %v6415 = vadd.f32 %v6394, %v6412
    %v6416 = vadd.f32 %v6415, %v4134
    %v6417 = vxor.u32 %v6416, 2147483648
    %v6418 = vmul.f32 %v6417, 1.442695
    %v6419 = vpow.pop %v6418
    %v6420 = vadd.f32 %v6419, 1.0
    %v6421 = vrcp.pop %v6420
    %v6422 = vmul.f32 %v6420, %v6421
    %v6423 = vsub.f32 1.0, %v6422
    %v6424 = vmul.f32 %v6421, %v6423
    %v6425 = vadd.f32 %v6421, %v6424
    %vm6426 = vweird.f32 %v6420
    %vm6427 = vweird.f32 %v6421
    %vm6428 = vmor %vm6426, %vm6427
    %v6429 = vsel %vm6428, %v6421, %v6425
    %v6430 = vand.u32 2147483647, %v6420
    %vm6431 = vcmp.eq.f32.partialorder %v6430, 8.507059e+37
    %v6432 = vand.u32 %v6420, 2147483648
    %v6433 = vor.u32 1.1754944e-38, %v6432
    %v6434 = vsel %vm6431, %v6433, %v6429
    %v6435 = vmul.f32 1.0, %v6434
    %v6436 = vtanh.pop %v6416
    %v6437 = vmul.f32 %v6435, %v6387
    %6439 = vrot.lane.b32.xlu0 %v6436, 64
    %v6440 = vpop.permute.xlu0 %6439
    %v6442 = vmul.f32 %v6435, %v6440
    %6444 = vrot.lane.b32.xlu0 %v6442, 32
    %v6445 = vpop.permute.xlu0 %6444
    %v6447 = vadd.f32 %v6437, %v6445
    %v6448 = vtanh.pop %v6447
    %6450 = vrot.lane.b32.xlu0 %v6448, 64
    %v6451 = vpop.permute.xlu0 %6450
    %v6453 = vmul.f32 %v6435, %v6451
    %v6454 = vld [vmem:[#allocation2 + $0x4e] sm:$0x3]
    %v6455 = vpack.c.bf16 %v6453, %v6453
    %6457 = vrot.lane.b32.xlu0 %v6455, 32
    %v6458 = vpop.permute.xlu0 %6457
    %v6460 = vsel %vm4115, %v6458, 0
    %6462 = vmatpush.bf16.msra.mxu0 0
    %6463 = vmatpush.bf16.msra.mxu0 0
    %6464 = vmatpush.bf16.msra.mxu0 0
    %6465 = vmatpush.bf16.msra.mxu0 0
    %6466 = vmatpush.bf16.msra.mxu0 0
    %6467 = vmatpush.bf16.msra.mxu0 0
    %6468 = vmatpush.bf16.msra.mxu0 %v4112
    %6469 = vmatpush.bf16.msra.mxu0 %v4111
    %6470 = vmatmul.bf16.gmra.mxu0 %v6460
    %v6471 = vpop.f32.mrf.mxu0
    %v6472 = vadd.f32 0.0, %v6471
    %v6473 = vpop.f32.mrf.mxu0
    %6474 = vdwg.mxu0
    %v6475 = vadd.f32 %v6454, %v6472
    %v6476 = vadd.f32 %v6475, %v4134
    %v6477 = vxor.u32 %v6476, 2147483648
    %v6478 = vmul.f32 %v6477, 1.442695
    %v6479 = vpow.pop %v6478
    %v6480 = vadd.f32 %v6479, 1.0
    %v6481 = vrcp.pop %v6480
    %v6482 = vmul.f32 %v6480, %v6481
    %v6483 = vsub.f32 1.0, %v6482
    %v6484 = vmul.f32 %v6481, %v6483
    %v6485 = vadd.f32 %v6481, %v6484
    %vm6486 = vweird.f32 %v6480
    %vm6487 = vweird.f32 %v6481
    %vm6488 = vmor %vm6486, %vm6487
    %v6489 = vsel %vm6488, %v6481, %v6485
    %v6490 = vand.u32 2147483647, %v6480
    %vm6491 = vcmp.eq.f32.partialorder %v6490, 8.507059e+37
    %v6492 = vand.u32 %v6480, 2147483648
    %v6493 = vor.u32 1.1754944e-38, %v6492
    %v6494 = vsel %vm6491, %v6493, %v6489
    %v6495 = vmul.f32 1.0, %v6494
    %v6496 = vtanh.pop %v6476
    %v6497 = vmul.f32 %v6495, %v6447
    %6499 = vrot.lane.b32.xlu0 %v6496, 64
    %v6500 = vpop.permute.xlu0 %6499
    %v6502 = vmul.f32 %v6495, %v6500
    %6504 = vrot.lane.b32.xlu0 %v6502, 32
    %v6505 = vpop.permute.xlu0 %6504
    %v6507 = vadd.f32 %v6497, %v6505
    %v6508 = vtanh.pop %v6507
    %6510 = vrot.lane.b32.xlu0 %v6508, 64
    %v6511 = vpop.permute.xlu0 %6510
    %v6513 = vmul.f32 %v6495, %v6511
    %v6514 = vld [vmem:[#allocation2 + $0x50] sm:$0x3]
    %v6515 = vpack.c.bf16 %v6513, %v6513
    %6517 = vrot.lane.b32.xlu0 %v6515, 32
    %v6518 = vpop.permute.xlu0 %6517
    %v6520 = vsel %vm4115, %v6518, 0
    %6522 = vmatpush.bf16.msra.mxu0 0
    %6523 = vmatpush.bf16.msra.mxu0 0
    %6524 = vmatpush.bf16.msra.mxu0 0
    %6525 = vmatpush.bf16.msra.mxu0 0
    %6526 = vmatpush.bf16.msra.mxu0 0
    %6527 = vmatpush.bf16.msra.mxu0 0
    %6528 = vmatpush.bf16.msra.mxu0 %v4112
    %6529 = vmatpush.bf16.msra.mxu0 %v4111
    %6530 = vmatmul.bf16.gmra.mxu0 %v6520
    %v6531 = vpop.f32.mrf.mxu0
    %v6532 = vadd.f32 0.0, %v6531
    %v6533 = vpop.f32.mrf.mxu0
    %6534 = vdwg.mxu0
    %v6535 = vadd.f32 %v6514, %v6532
    %v6536 = vadd.f32 %v6535, %v4134
    %v6537 = vxor.u32 %v6536, 2147483648
    %v6538 = vmul.f32 %v6537, 1.442695
    %v6539 = vpow.pop %v6538
    %v6540 = vadd.f32 %v6539, 1.0
    %v6541 = vrcp.pop %v6540
    %v6542 = vmul.f32 %v6540, %v6541
    %v6543 = vsub.f32 1.0, %v6542
    %v6544 = vmul.f32 %v6541, %v6543
    %v6545 = vadd.f32 %v6541, %v6544
    %vm6546 = vweird.f32 %v6540
    %vm6547 = vweird.f32 %v6541
    %vm6548 = vmor %vm6546, %vm6547
    %v6549 = vsel %vm6548, %v6541, %v6545
    %v6550 = vand.u32 2147483647, %v6540
    %vm6551 = vcmp.eq.f32.partialorder %v6550, 8.507059e+37
    %v6552 = vand.u32 %v6540, 2147483648
    %v6553 = vor.u32 1.1754944e-38, %v6552
    %v6554 = vsel %vm6551, %v6553, %v6549
    %v6555 = vmul.f32 1.0, %v6554
    %v6556 = vtanh.pop %v6536
    %v6557 = vmul.f32 %v6555, %v6507
    %6559 = vrot.lane.b32.xlu0 %v6556, 64
    %v6560 = vpop.permute.xlu0 %6559
    %v6562 = vmul.f32 %v6555, %v6560
    %6564 = vrot.lane.b32.xlu0 %v6562, 32
    %v6565 = vpop.permute.xlu0 %6564
    %v6567 = vadd.f32 %v6557, %v6565
    %v6568 = vtanh.pop %v6567
    %6570 = vrot.lane.b32.xlu0 %v6568, 64
    %v6571 = vpop.permute.xlu0 %6570
    %v6573 = vmul.f32 %v6555, %v6571
    %v6574 = vld [vmem:[#allocation2 + $0x52] sm:$0x3]
    %v6575 = vpack.c.bf16 %v6573, %v6573
    %6577 = vrot.lane.b32.xlu0 %v6575, 32
    %v6578 = vpop.permute.xlu0 %6577
    %v6580 = vsel %vm4115, %v6578, 0
    %6582 = vmatpush.bf16.msra.mxu0 0
    %6583 = vmatpush.bf16.msra.mxu0 0
    %6584 = vmatpush.bf16.msra.mxu0 0
    %6585 = vmatpush.bf16.msra.mxu0 0
    %6586 = vmatpush.bf16.msra.mxu0 0
    %6587 = vmatpush.bf16.msra.mxu0 0
    %6588 = vmatpush.bf16.msra.mxu0 %v4112
    %6589 = vmatpush.bf16.msra.mxu0 %v4111
    %6590 = vmatmul.bf16.gmra.mxu0 %v6580
    %v6591 = vpop.f32.mrf.mxu0
    %v6592 = vadd.f32 0.0, %v6591
    %v6593 = vpop.f32.mrf.mxu0
    %6594 = vdwg.mxu0
    %v6595 = vadd.f32 %v6574, %v6592
    %v6596 = vadd.f32 %v6595, %v4134
    %v6597 = vxor.u32 %v6596, 2147483648
    %v6598 = vmul.f32 %v6597, 1.442695
    %v6599 = vpow.pop %v6598
    %v6600 = vadd.f32 %v6599, 1.0
    %v6601 = vrcp.pop %v6600
    %v6602 = vmul.f32 %v6600, %v6601
    %v6603 = vsub.f32 1.0, %v6602
    %v6604 = vmul.f32 %v6601, %v6603
    %v6605 = vadd.f32 %v6601, %v6604
    %vm6606 = vweird.f32 %v6600
    %vm6607 = vweird.f32 %v6601
    %vm6608 = vmor %vm6606, %vm6607
    %v6609 = vsel %vm6608, %v6601, %v6605
    %v6610 = vand.u32 2147483647, %v6600
    %vm6611 = vcmp.eq.f32.partialorder %v6610, 8.507059e+37
    %v6612 = vand.u32 %v6600, 2147483648
    %v6613 = vor.u32 1.1754944e-38, %v6612
    %v6614 = vsel %vm6611, %v6613, %v6609
    %v6615 = vmul.f32 1.0, %v6614
    %v6616 = vtanh.pop %v6596
    %v6617 = vmul.f32 %v6615, %v6567
    %6619 = vrot.lane.b32.xlu0 %v6616, 64
    %v6620 = vpop.permute.xlu0 %6619
    %v6622 = vmul.f32 %v6615, %v6620
    %6624 = vrot.lane.b32.xlu0 %v6622, 32
    %v6625 = vpop.permute.xlu0 %6624
    %v6627 = vadd.f32 %v6617, %v6625
    %v6628 = vtanh.pop %v6627
    %6630 = vrot.lane.b32.xlu0 %v6628, 64
    %v6631 = vpop.permute.xlu0 %6630
    %v6633 = vmul.f32 %v6615, %v6631
    %v6634 = vld [vmem:[#allocation2 + $0x54] sm:$0x3]
    %v6635 = vpack.c.bf16 %v6633, %v6633
    %6637 = vrot.lane.b32.xlu0 %v6635, 32
    %v6638 = vpop.permute.xlu0 %6637
    %v6640 = vsel %vm4115, %v6638, 0
    %6642 = vmatpush.bf16.msra.mxu0 0
    %6643 = vmatpush.bf16.msra.mxu0 0
    %6644 = vmatpush.bf16.msra.mxu0 0
    %6645 = vmatpush.bf16.msra.mxu0 0
    %6646 = vmatpush.bf16.msra.mxu0 0
    %6647 = vmatpush.bf16.msra.mxu0 0
    %6648 = vmatpush.bf16.msra.mxu0 %v4112
    %6649 = vmatpush.bf16.msra.mxu0 %v4111
    %6650 = vmatmul.bf16.gmra.mxu0 %v6640
    %v6651 = vpop.f32.mrf.mxu0
    %v6652 = vadd.f32 0.0, %v6651
    %v6653 = vpop.f32.mrf.mxu0
    %6654 = vdwg.mxu0
    %v6655 = vadd.f32 %v6634, %v6652
    %v6656 = vadd.f32 %v6655, %v4134
    %v6657 = vxor.u32 %v6656, 2147483648
    %v6658 = vmul.f32 %v6657, 1.442695
    %v6659 = vpow.pop %v6658
    %v6660 = vadd.f32 %v6659, 1.0
    %v6661 = vrcp.pop %v6660
    %v6662 = vmul.f32 %v6660, %v6661
    %v6663 = vsub.f32 1.0, %v6662
    %v6664 = vmul.f32 %v6661, %v6663
    %v6665 = vadd.f32 %v6661, %v6664
    %vm6666 = vweird.f32 %v6660
    %vm6667 = vweird.f32 %v6661
    %vm6668 = vmor %vm6666, %vm6667
    %v6669 = vsel %vm6668, %v6661, %v6665
    %v6670 = vand.u32 2147483647, %v6660
    %vm6671 = vcmp.eq.f32.partialorder %v6670, 8.507059e+37
    %v6672 = vand.u32 %v6660, 2147483648
    %v6673 = vor.u32 1.1754944e-38, %v6672
    %v6674 = vsel %vm6671, %v6673, %v6669
    %v6675 = vmul.f32 1.0, %v6674
    %v6676 = vtanh.pop %v6656
    %v6677 = vmul.f32 %v6675, %v6627
    %6679 = vrot.lane.b32.xlu0 %v6676, 64
    %v6680 = vpop.permute.xlu0 %6679
    %v6682 = vmul.f32 %v6675, %v6680
    %6684 = vrot.lane.b32.xlu0 %v6682, 32
    %v6685 = vpop.permute.xlu0 %6684
    %v6687 = vadd.f32 %v6677, %v6685
    %v6688 = vtanh.pop %v6687
    %6690 = vrot.lane.b32.xlu0 %v6688, 64
    %v6691 = vpop.permute.xlu0 %6690
    %v6693 = vmul.f32 %v6675, %v6691
    %v6694 = vld [vmem:[#allocation2 + $0x56] sm:$0x3]
    %v6695 = vpack.c.bf16 %v6693, %v6693
    %6697 = vrot.lane.b32.xlu0 %v6695, 32
    %v6698 = vpop.permute.xlu0 %6697
    %v6700 = vsel %vm4115, %v6698, 0
    %6702 = vmatpush.bf16.msra.mxu0 0
    %6703 = vmatpush.bf16.msra.mxu0 0
    %6704 = vmatpush.bf16.msra.mxu0 0
    %6705 = vmatpush.bf16.msra.mxu0 0
    %6706 = vmatpush.bf16.msra.mxu0 0
    %6707 = vmatpush.bf16.msra.mxu0 0
    %6708 = vmatpush.bf16.msra.mxu0 %v4112
    %6709 = vmatpush.bf16.msra.mxu0 %v4111
    %6710 = vmatmul.bf16.gmra.mxu0 %v6700
    %v6711 = vpop.f32.mrf.mxu0
    %v6712 = vadd.f32 0.0, %v6711
    %v6713 = vpop.f32.mrf.mxu0
    %6714 = vdwg.mxu0
    %v6715 = vadd.f32 %v6694, %v6712
    %v6716 = vadd.f32 %v6715, %v4134
    %v6717 = vxor.u32 %v6716, 2147483648
    %v6718 = vmul.f32 %v6717, 1.442695
    %v6719 = vpow.pop %v6718
    %v6720 = vadd.f32 %v6719, 1.0
    %v6721 = vrcp.pop %v6720
    %v6722 = vmul.f32 %v6720, %v6721
    %v6723 = vsub.f32 1.0, %v6722
    %v6724 = vmul.f32 %v6721, %v6723
    %v6725 = vadd.f32 %v6721, %v6724
    %vm6726 = vweird.f32 %v6720
    %vm6727 = vweird.f32 %v6721
    %vm6728 = vmor %vm6726, %vm6727
    %v6729 = vsel %vm6728, %v6721, %v6725
    %v6730 = vand.u32 2147483647, %v6720
    %vm6731 = vcmp.eq.f32.partialorder %v6730, 8.507059e+37
    %v6732 = vand.u32 %v6720, 2147483648
    %v6733 = vor.u32 1.1754944e-38, %v6732
    %v6734 = vsel %vm6731, %v6733, %v6729
    %v6735 = vmul.f32 1.0, %v6734
    %v6736 = vtanh.pop %v6716
    %v6737 = vmul.f32 %v6735, %v6687
    %6739 = vrot.lane.b32.xlu0 %v6736, 64
    %v6740 = vpop.permute.xlu0 %6739
    %v6742 = vmul.f32 %v6735, %v6740
    %6744 = vrot.lane.b32.xlu0 %v6742, 32
    %v6745 = vpop.permute.xlu0 %6744
    %v6747 = vadd.f32 %v6737, %v6745
    %v6748 = vtanh.pop %v6747
    %6750 = vrot.lane.b32.xlu0 %v6748, 64
    %v6751 = vpop.permute.xlu0 %6750
    %v6753 = vmul.f32 %v6735, %v6751
    %v6754 = vld [vmem:[#allocation2 + $0x58] sm:$0x3]
    %v6755 = vpack.c.bf16 %v6753, %v6753
    %6757 = vrot.lane.b32.xlu0 %v6755, 32
    %v6758 = vpop.permute.xlu0 %6757
    %v6760 = vsel %vm4115, %v6758, 0
    %6762 = vmatpush.bf16.msra.mxu0 0
    %6763 = vmatpush.bf16.msra.mxu0 0
    %6764 = vmatpush.bf16.msra.mxu0 0
    %6765 = vmatpush.bf16.msra.mxu0 0
    %6766 = vmatpush.bf16.msra.mxu0 0
    %6767 = vmatpush.bf16.msra.mxu0 0
    %6768 = vmatpush.bf16.msra.mxu0 %v4112
    %6769 = vmatpush.bf16.msra.mxu0 %v4111
    %6770 = vmatmul.bf16.gmra.mxu0 %v6760
    %v6771 = vpop.f32.mrf.mxu0
    %v6772 = vadd.f32 0.0, %v6771
    %v6773 = vpop.f32.mrf.mxu0
    %6774 = vdwg.mxu0
    %v6775 = vadd.f32 %v6754, %v6772
    %v6776 = vadd.f32 %v6775, %v4134
    %v6777 = vxor.u32 %v6776, 2147483648
    %v6778 = vmul.f32 %v6777, 1.442695
    %v6779 = vpow.pop %v6778
    %v6780 = vadd.f32 %v6779, 1.0
    %v6781 = vrcp.pop %v6780
    %v6782 = vmul.f32 %v6780, %v6781
    %v6783 = vsub.f32 1.0, %v6782
    %v6784 = vmul.f32 %v6781, %v6783
    %v6785 = vadd.f32 %v6781, %v6784
    %vm6786 = vweird.f32 %v6780
    %vm6787 = vweird.f32 %v6781
    %vm6788 = vmor %vm6786, %vm6787
    %v6789 = vsel %vm6788, %v6781, %v6785
    %v6790 = vand.u32 2147483647, %v6780
    %vm6791 = vcmp.eq.f32.partialorder %v6790, 8.507059e+37
    %v6792 = vand.u32 %v6780, 2147483648
    %v6793 = vor.u32 1.1754944e-38, %v6792
    %v6794 = vsel %vm6791, %v6793, %v6789
    %v6795 = vmul.f32 1.0, %v6794
    %v6796 = vtanh.pop %v6776
    %v6797 = vmul.f32 %v6795, %v6747
    %6799 = vrot.lane.b32.xlu0 %v6796, 64
    %v6800 = vpop.permute.xlu0 %6799
    %v6802 = vmul.f32 %v6795, %v6800
    %6804 = vrot.lane.b32.xlu0 %v6802, 32
    %v6805 = vpop.permute.xlu0 %6804
    %v6807 = vadd.f32 %v6797, %v6805
    %v6808 = vtanh.pop %v6807
    %6810 = vrot.lane.b32.xlu0 %v6808, 64
    %v6811 = vpop.permute.xlu0 %6810
    %v6813 = vmul.f32 %v6795, %v6811
    %v6814 = vld [vmem:[#allocation2 + $0x5a] sm:$0x3]
    %v6815 = vpack.c.bf16 %v6813, %v6813
    %6817 = vrot.lane.b32.xlu0 %v6815, 32
    %v6818 = vpop.permute.xlu0 %6817
    %v6820 = vsel %vm4115, %v6818, 0
    %6822 = vmatpush.bf16.msra.mxu0 0
    %6823 = vmatpush.bf16.msra.mxu0 0
    %6824 = vmatpush.bf16.msra.mxu0 0
    %6825 = vmatpush.bf16.msra.mxu0 0
    %6826 = vmatpush.bf16.msra.mxu0 0
    %6827 = vmatpush.bf16.msra.mxu0 0
    %6828 = vmatpush.bf16.msra.mxu0 %v4112
    %6829 = vmatpush.bf16.msra.mxu0 %v4111
    %6830 = vmatmul.bf16.gmra.mxu0 %v6820
    %v6831 = vpop.f32.mrf.mxu0
    %v6832 = vadd.f32 0.0, %v6831
    %v6833 = vpop.f32.mrf.mxu0
    %6834 = vdwg.mxu0
    %v6835 = vadd.f32 %v6814, %v6832
    %v6836 = vadd.f32 %v6835, %v4134
    %v6837 = vxor.u32 %v6836, 2147483648
    %v6838 = vmul.f32 %v6837, 1.442695
    %v6839 = vpow.pop %v6838
    %v6840 = vadd.f32 %v6839, 1.0
    %v6841 = vrcp.pop %v6840
    %v6842 = vmul.f32 %v6840, %v6841
    %v6843 = vsub.f32 1.0, %v6842
    %v6844 = vmul.f32 %v6841, %v6843
    %v6845 = vadd.f32 %v6841, %v6844
    %vm6846 = vweird.f32 %v6840
    %vm6847 = vweird.f32 %v6841
    %vm6848 = vmor %vm6846, %vm6847
    %v6849 = vsel %vm6848, %v6841, %v6845
    %v6850 = vand.u32 2147483647, %v6840
    %vm6851 = vcmp.eq.f32.partialorder %v6850, 8.507059e+37
    %v6852 = vand.u32 %v6840, 2147483648
    %v6853 = vor.u32 1.1754944e-38, %v6852
    %v6854 = vsel %vm6851, %v6853, %v6849
    %v6855 = vmul.f32 1.0, %v6854
    %v6856 = vtanh.pop %v6836
    %v6857 = vmul.f32 %v6855, %v6807
    %6859 = vrot.lane.b32.xlu0 %v6856, 64
    %v6860 = vpop.permute.xlu0 %6859
    %v6862 = vmul.f32 %v6855, %v6860
    %6864 = vrot.lane.b32.xlu0 %v6862, 32
    %v6865 = vpop.permute.xlu0 %6864
    %v6867 = vadd.f32 %v6857, %v6865
    %v6868 = vtanh.pop %v6867
    %6870 = vrot.lane.b32.xlu0 %v6868, 64
    %v6871 = vpop.permute.xlu0 %6870
    %v6873 = vmul.f32 %v6855, %v6871
    %v6874 = vld [vmem:[#allocation2 + $0x5c] sm:$0x3]
    %v6875 = vpack.c.bf16 %v6873, %v6873
    %6877 = vrot.lane.b32.xlu0 %v6875, 32
    %v6878 = vpop.permute.xlu0 %6877
    %v6880 = vsel %vm4115, %v6878, 0
    %6882 = vmatpush.bf16.msra.mxu0 0
    %6883 = vmatpush.bf16.msra.mxu0 0
    %6884 = vmatpush.bf16.msra.mxu0 0
    %6885 = vmatpush.bf16.msra.mxu0 0
    %6886 = vmatpush.bf16.msra.mxu0 0
    %6887 = vmatpush.bf16.msra.mxu0 0
    %6888 = vmatpush.bf16.msra.mxu0 %v4112
    %6889 = vmatpush.bf16.msra.mxu0 %v4111
    %6890 = vmatmul.bf16.gmra.mxu0 %v6880
    %v6891 = vpop.f32.mrf.mxu0
    %v6892 = vadd.f32 0.0, %v6891
    %v6893 = vpop.f32.mrf.mxu0
    %6894 = vdwg.mxu0
    %v6895 = vadd.f32 %v6874, %v6892
    %v6896 = vadd.f32 %v6895, %v4134
    %v6897 = vxor.u32 %v6896, 2147483648
    %v6898 = vmul.f32 %v6897, 1.442695
    %v6899 = vpow.pop %v6898
    %v6900 = vadd.f32 %v6899, 1.0
    %v6901 = vrcp.pop %v6900
    %v6902 = vmul.f32 %v6900, %v6901
    %v6903 = vsub.f32 1.0, %v6902
    %v6904 = vmul.f32 %v6901, %v6903
    %v6905 = vadd.f32 %v6901, %v6904
    %vm6906 = vweird.f32 %v6900
    %vm6907 = vweird.f32 %v6901
    %vm6908 = vmor %vm6906, %vm6907
    %v6909 = vsel %vm6908, %v6901, %v6905
    %v6910 = vand.u32 2147483647, %v6900
    %vm6911 = vcmp.eq.f32.partialorder %v6910, 8.507059e+37
    %v6912 = vand.u32 %v6900, 2147483648
    %v6913 = vor.u32 1.1754944e-38, %v6912
    %v6914 = vsel %vm6911, %v6913, %v6909
    %v6915 = vmul.f32 1.0, %v6914
    %v6916 = vtanh.pop %v6896
    %v6917 = vmul.f32 %v6915, %v6867
    %6919 = vrot.lane.b32.xlu0 %v6916, 64
    %v6920 = vpop.permute.xlu0 %6919
    %v6922 = vmul.f32 %v6915, %v6920
    %6924 = vrot.lane.b32.xlu0 %v6922, 32
    %v6925 = vpop.permute.xlu0 %6924
    %v6927 = vadd.f32 %v6917, %v6925
    %v6928 = vtanh.pop %v6927
    %6930 = vrot.lane.b32.xlu0 %v6928, 64
    %v6931 = vpop.permute.xlu0 %6930
    %v6933 = vmul.f32 %v6915, %v6931
    %v6934 = vld [vmem:[#allocation2 + $0x5e] sm:$0x3]
    %v6935 = vpack.c.bf16 %v6933, %v6933
    %6937 = vrot.lane.b32.xlu0 %v6935, 32
    %v6938 = vpop.permute.xlu0 %6937
    %v6940 = vsel %vm4115, %v6938, 0
    %6942 = vmatpush.bf16.msra.mxu0 0
    %6943 = vmatpush.bf16.msra.mxu0 0
    %6944 = vmatpush.bf16.msra.mxu0 0
    %6945 = vmatpush.bf16.msra.mxu0 0
    %6946 = vmatpush.bf16.msra.mxu0 0
    %6947 = vmatpush.bf16.msra.mxu0 0
    %6948 = vmatpush.bf16.msra.mxu0 %v4112
    %6949 = vmatpush.bf16.msra.mxu0 %v4111
    %6950 = vmatmul.bf16.gmra.mxu0 %v6940
    %v6951 = vpop.f32.mrf.mxu0
    %v6952 = vadd.f32 0.0, %v6951
    %v6953 = vpop.f32.mrf.mxu0
    %6954 = vdwg.mxu0
    %v6955 = vadd.f32 %v6934, %v6952
    %v6956 = vadd.f32 %v6955, %v4134
    %v6957 = vxor.u32 %v6956, 2147483648
    %v6958 = vmul.f32 %v6957, 1.442695
    %v6959 = vpow.pop %v6958
    %v6960 = vadd.f32 %v6959, 1.0
    %v6961 = vrcp.pop %v6960
    %v6962 = vmul.f32 %v6960, %v6961
    %v6963 = vsub.f32 1.0, %v6962
    %v6964 = vmul.f32 %v6961, %v6963
    %v6965 = vadd.f32 %v6961, %v6964
    %vm6966 = vweird.f32 %v6960
    %vm6967 = vweird.f32 %v6961
    %vm6968 = vmor %vm6966, %vm6967
    %v6969 = vsel %vm6968, %v6961, %v6965
    %v6970 = vand.u32 2147483647, %v6960
    %vm6971 = vcmp.eq.f32.partialorder %v6970, 8.507059e+37
    %v6972 = vand.u32 %v6960, 2147483648
    %v6973 = vor.u32 1.1754944e-38, %v6972
    %v6974 = vsel %vm6971, %v6973, %v6969
    %v6975 = vmul.f32 1.0, %v6974
    %v6976 = vtanh.pop %v6956
    %v6977 = vmul.f32 %v6975, %v6927
    %6979 = vrot.lane.b32.xlu0 %v6976, 64
    %v6980 = vpop.permute.xlu0 %6979
    %v6982 = vmul.f32 %v6975, %v6980
    %6984 = vrot.lane.b32.xlu0 %v6982, 32
    %v6985 = vpop.permute.xlu0 %6984
    %v6987 = vadd.f32 %v6977, %v6985
    %v6988 = vtanh.pop %v6987
    %6990 = vrot.lane.b32.xlu0 %v6988, 64
    %v6991 = vpop.permute.xlu0 %6990
    %v6993 = vmul.f32 %v6975, %v6991
    %v6994 = vld [vmem:[#allocation2 + $0x60] sm:$0x3]
    %v6995 = vpack.c.bf16 %v6993, %v6993
    %6997 = vrot.lane.b32.xlu0 %v6995, 32
    %v6998 = vpop.permute.xlu0 %6997
    %v7000 = vsel %vm4115, %v6998, 0
    %7002 = vmatpush.bf16.msra.mxu0 0
    %7003 = vmatpush.bf16.msra.mxu0 0
    %7004 = vmatpush.bf16.msra.mxu0 0
    %7005 = vmatpush.bf16.msra.mxu0 0
    %7006 = vmatpush.bf16.msra.mxu0 0
    %7007 = vmatpush.bf16.msra.mxu0 0
    %7008 = vmatpush.bf16.msra.mxu0 %v4112
    %7009 = vmatpush.bf16.msra.mxu0 %v4111
    %7010 = vmatmul.bf16.gmra.mxu0 %v7000
    %v7011 = vpop.f32.mrf.mxu0
    %v7012 = vadd.f32 0.0, %v7011
    %v7013 = vpop.f32.mrf.mxu0
    %7014 = vdwg.mxu0
    %v7015 = vadd.f32 %v6994, %v7012
    %v7016 = vadd.f32 %v7015, %v4134
    %v7017 = vxor.u32 %v7016, 2147483648
    %v7018 = vmul.f32 %v7017, 1.442695
    %v7019 = vpow.pop %v7018
    %v7020 = vadd.f32 %v7019, 1.0
    %v7021 = vrcp.pop %v7020
    %v7022 = vmul.f32 %v7020, %v7021
    %v7023 = vsub.f32 1.0, %v7022
    %v7024 = vmul.f32 %v7021, %v7023
    %v7025 = vadd.f32 %v7021, %v7024
    %vm7026 = vweird.f32 %v7020
    %vm7027 = vweird.f32 %v7021
    %vm7028 = vmor %vm7026, %vm7027
    %v7029 = vsel %vm7028, %v7021, %v7025
    %v7030 = vand.u32 2147483647, %v7020
    %vm7031 = vcmp.eq.f32.partialorder %v7030, 8.507059e+37
    %v7032 = vand.u32 %v7020, 2147483648
    %v7033 = vor.u32 1.1754944e-38, %v7032
    %v7034 = vsel %vm7031, %v7033, %v7029
    %v7035 = vmul.f32 1.0, %v7034
    %v7036 = vtanh.pop %v7016
    %v7037 = vmul.f32 %v7035, %v6987
    %7039 = vrot.lane.b32.xlu0 %v7036, 64
    %v7040 = vpop.permute.xlu0 %7039
    %v7042 = vmul.f32 %v7035, %v7040
    %7044 = vrot.lane.b32.xlu0 %v7042, 32
    %v7045 = vpop.permute.xlu0 %7044
    %v7047 = vadd.f32 %v7037, %v7045
    %v7048 = vtanh.pop %v7047
    %7050 = vrot.lane.b32.xlu0 %v7048, 64
    %v7051 = vpop.permute.xlu0 %7050
    %v7053 = vmul.f32 %v7035, %v7051
    %v7054 = vld [vmem:[#allocation2 + $0x62] sm:$0x3]
    %v7055 = vpack.c.bf16 %v7053, %v7053
    %7057 = vrot.lane.b32.xlu0 %v7055, 32
    %v7058 = vpop.permute.xlu0 %7057
    %v7060 = vsel %vm4115, %v7058, 0
    %7062 = vmatpush.bf16.msra.mxu0 0
    %7063 = vmatpush.bf16.msra.mxu0 0
    %7064 = vmatpush.bf16.msra.mxu0 0
    %7065 = vmatpush.bf16.msra.mxu0 0
    %7066 = vmatpush.bf16.msra.mxu0 0
    %7067 = vmatpush.bf16.msra.mxu0 0
    %7068 = vmatpush.bf16.msra.mxu0 %v4112
    %7069 = vmatpush.bf16.msra.mxu0 %v4111
    %7070 = vmatmul.bf16.gmra.mxu0 %v7060
    %v7071 = vpop.f32.mrf.mxu0
    %v7072 = vadd.f32 0.0, %v7071
    %v7073 = vpop.f32.mrf.mxu0
    %7074 = vdwg.mxu0
    %v7075 = vadd.f32 %v7054, %v7072
    %v7076 = vadd.f32 %v7075, %v4134
    %v7077 = vxor.u32 %v7076, 2147483648
    %v7078 = vmul.f32 %v7077, 1.442695
    %v7079 = vpow.pop %v7078
    %v7080 = vadd.f32 %v7079, 1.0
    %v7081 = vrcp.pop %v7080
    %v7082 = vmul.f32 %v7080, %v7081
    %v7083 = vsub.f32 1.0, %v7082
    %v7084 = vmul.f32 %v7081, %v7083
    %v7085 = vadd.f32 %v7081, %v7084
    %vm7086 = vweird.f32 %v7080
    %vm7087 = vweird.f32 %v7081
    %vm7088 = vmor %vm7086, %vm7087
    %v7089 = vsel %vm7088, %v7081, %v7085
    %v7090 = vand.u32 2147483647, %v7080
    %vm7091 = vcmp.eq.f32.partialorder %v7090, 8.507059e+37
    %v7092 = vand.u32 %v7080, 2147483648
    %v7093 = vor.u32 1.1754944e-38, %v7092
    %v7094 = vsel %vm7091, %v7093, %v7089
    %v7095 = vmul.f32 1.0, %v7094
    %v7096 = vtanh.pop %v7076
    %v7097 = vmul.f32 %v7095, %v7047
    %7099 = vrot.lane.b32.xlu0 %v7096, 64
    %v7100 = vpop.permute.xlu0 %7099
    %v7102 = vmul.f32 %v7095, %v7100
    %7104 = vrot.lane.b32.xlu0 %v7102, 32
    %v7105 = vpop.permute.xlu0 %7104
    %v7107 = vadd.f32 %v7097, %v7105
    %v7108 = vtanh.pop %v7107
    %7110 = vrot.lane.b32.xlu0 %v7108, 64
    %v7111 = vpop.permute.xlu0 %7110
    %v7113 = vmul.f32 %v7095, %v7111
    %v7114 = vld [vmem:[#allocation2 + $0x64] sm:$0x3]
    %v7115 = vpack.c.bf16 %v7113, %v7113
    %7117 = vrot.lane.b32.xlu0 %v7115, 32
    %v7118 = vpop.permute.xlu0 %7117
    %v7120 = vsel %vm4115, %v7118, 0
    %7122 = vmatpush.bf16.msra.mxu0 0
    %7123 = vmatpush.bf16.msra.mxu0 0
    %7124 = vmatpush.bf16.msra.mxu0 0
    %7125 = vmatpush.bf16.msra.mxu0 0
    %7126 = vmatpush.bf16.msra.mxu0 0
    %7127 = vmatpush.bf16.msra.mxu0 0
    %7128 = vmatpush.bf16.msra.mxu0 %v4112
    %7129 = vmatpush.bf16.msra.mxu0 %v4111
    %7130 = vmatmul.bf16.gmra.mxu0 %v7120
    %v7131 = vpop.f32.mrf.mxu0
    %v7132 = vadd.f32 0.0, %v7131
    %v7133 = vpop.f32.mrf.mxu0
    %7134 = vdwg.mxu0
    %v7135 = vadd.f32 %v7114, %v7132
    %v7136 = vadd.f32 %v7135, %v4134
    %v7137 = vxor.u32 %v7136, 2147483648
    %v7138 = vmul.f32 %v7137, 1.442695
    %v7139 = vpow.pop %v7138
    %v7140 = vadd.f32 %v7139, 1.0
    %v7141 = vrcp.pop %v7140
    %v7142 = vmul.f32 %v7140, %v7141
    %v7143 = vsub.f32 1.0, %v7142
    %v7144 = vmul.f32 %v7141, %v7143
    %v7145 = vadd.f32 %v7141, %v7144
    %vm7146 = vweird.f32 %v7140
    %vm7147 = vweird.f32 %v7141
    %vm7148 = vmor %vm7146, %vm7147
    %v7149 = vsel %vm7148, %v7141, %v7145
    %v7150 = vand.u32 2147483647, %v7140
    %vm7151 = vcmp.eq.f32.partialorder %v7150, 8.507059e+37
    %v7152 = vand.u32 %v7140, 2147483648
    %v7153 = vor.u32 1.1754944e-38, %v7152
    %v7154 = vsel %vm7151, %v7153, %v7149
    %v7155 = vmul.f32 1.0, %v7154
    %v7156 = vtanh.pop %v7136
    %v7157 = vmul.f32 %v7155, %v7107
    %7159 = vrot.lane.b32.xlu0 %v7156, 64
    %v7160 = vpop.permute.xlu0 %7159
    %v7162 = vmul.f32 %v7155, %v7160
    %7164 = vrot.lane.b32.xlu0 %v7162, 32
    %v7165 = vpop.permute.xlu0 %7164
    %v7167 = vadd.f32 %v7157, %v7165
    %v7168 = vtanh.pop %v7167
    %7170 = vrot.lane.b32.xlu0 %v7168, 64
    %v7171 = vpop.permute.xlu0 %7170
    %v7173 = vmul.f32 %v7155, %v7171
    %v7174 = vld [vmem:[#allocation2 + $0x66] sm:$0x3]
    %v7175 = vpack.c.bf16 %v7173, %v7173
    %7177 = vrot.lane.b32.xlu0 %v7175, 32
    %v7178 = vpop.permute.xlu0 %7177
    %v7180 = vsel %vm4115, %v7178, 0
    %7182 = vmatpush.bf16.msra.mxu0 0
    %7183 = vmatpush.bf16.msra.mxu0 0
    %7184 = vmatpush.bf16.msra.mxu0 0
    %7185 = vmatpush.bf16.msra.mxu0 0
    %7186 = vmatpush.bf16.msra.mxu0 0
    %7187 = vmatpush.bf16.msra.mxu0 0
    %7188 = vmatpush.bf16.msra.mxu0 %v4112
    %7189 = vmatpush.bf16.msra.mxu0 %v4111
    %7190 = vmatmul.bf16.gmra.mxu0 %v7180
    %v7191 = vpop.f32.mrf.mxu0
    %v7192 = vadd.f32 0.0, %v7191
    %v7193 = vpop.f32.mrf.mxu0
    %7194 = vdwg.mxu0
    %v7195 = vadd.f32 %v7174, %v7192
    %v7196 = vadd.f32 %v7195, %v4134
    %v7197 = vxor.u32 %v7196, 2147483648
    %v7198 = vmul.f32 %v7197, 1.442695
    %v7199 = vpow.pop %v7198
    %v7200 = vadd.f32 %v7199, 1.0
    %v7201 = vrcp.pop %v7200
    %v7202 = vmul.f32 %v7200, %v7201
    %v7203 = vsub.f32 1.0, %v7202
    %v7204 = vmul.f32 %v7201, %v7203
    %v7205 = vadd.f32 %v7201, %v7204
    %vm7206 = vweird.f32 %v7200
    %vm7207 = vweird.f32 %v7201
    %vm7208 = vmor %vm7206, %vm7207
    %v7209 = vsel %vm7208, %v7201, %v7205
    %v7210 = vand.u32 2147483647, %v7200
    %vm7211 = vcmp.eq.f32.partialorder %v7210, 8.507059e+37
    %v7212 = vand.u32 %v7200, 2147483648
    %v7213 = vor.u32 1.1754944e-38, %v7212
    %v7214 = vsel %vm7211, %v7213, %v7209
    %v7215 = vmul.f32 1.0, %v7214
    %v7216 = vtanh.pop %v7196
    %v7217 = vmul.f32 %v7215, %v7167
    %7219 = vrot.lane.b32.xlu0 %v7216, 64
    %v7220 = vpop.permute.xlu0 %7219
    %v7222 = vmul.f32 %v7215, %v7220
    %7224 = vrot.lane.b32.xlu0 %v7222, 32
    %v7225 = vpop.permute.xlu0 %7224
    %v7227 = vadd.f32 %v7217, %v7225
    %v7228 = vtanh.pop %v7227
    %7230 = vrot.lane.b32.xlu0 %v7228, 64
    %v7231 = vpop.permute.xlu0 %7230
    %v7233 = vmul.f32 %v7215, %v7231
    %v7234 = vld [vmem:[#allocation2 + $0x68] sm:$0x3]
    %v7235 = vpack.c.bf16 %v7233, %v7233
    %7237 = vrot.lane.b32.xlu0 %v7235, 32
    %v7238 = vpop.permute.xlu0 %7237
    %v7240 = vsel %vm4115, %v7238, 0
    %7242 = vmatpush.bf16.msra.mxu0 0
    %7243 = vmatpush.bf16.msra.mxu0 0
    %7244 = vmatpush.bf16.msra.mxu0 0
    %7245 = vmatpush.bf16.msra.mxu0 0
    %7246 = vmatpush.bf16.msra.mxu0 0
    %7247 = vmatpush.bf16.msra.mxu0 0
    %7248 = vmatpush.bf16.msra.mxu0 %v4112
    %7249 = vmatpush.bf16.msra.mxu0 %v4111
    %7250 = vmatmul.bf16.gmra.mxu0 %v7240
    %v7251 = vpop.f32.mrf.mxu0
    %v7252 = vadd.f32 0.0, %v7251
    %v7253 = vpop.f32.mrf.mxu0
    %7254 = vdwg.mxu0
    %v7255 = vadd.f32 %v7234, %v7252
    %v7256 = vadd.f32 %v7255, %v4134
    %v7257 = vxor.u32 %v7256, 2147483648
    %v7258 = vmul.f32 %v7257, 1.442695
    %v7259 = vpow.pop %v7258
    %v7260 = vadd.f32 %v7259, 1.0
    %v7261 = vrcp.pop %v7260
    %v7262 = vmul.f32 %v7260, %v7261
    %v7263 = vsub.f32 1.0, %v7262
    %v7264 = vmul.f32 %v7261, %v7263
    %v7265 = vadd.f32 %v7261, %v7264
    %vm7266 = vweird.f32 %v7260
    %vm7267 = vweird.f32 %v7261
    %vm7268 = vmor %vm7266, %vm7267
    %v7269 = vsel %vm7268, %v7261, %v7265
    %v7270 = vand.u32 2147483647, %v7260
    %vm7271 = vcmp.eq.f32.partialorder %v7270, 8.507059e+37
    %v7272 = vand.u32 %v7260, 2147483648
    %v7273 = vor.u32 1.1754944e-38, %v7272
    %v7274 = vsel %vm7271, %v7273, %v7269
    %v7275 = vmul.f32 1.0, %v7274
    %v7276 = vtanh.pop %v7256
    %v7277 = vmul.f32 %v7275, %v7227
    %7279 = vrot.lane.b32.xlu0 %v7276, 64
    %v7280 = vpop.permute.xlu0 %7279
    %v7282 = vmul.f32 %v7275, %v7280
    %7284 = vrot.lane.b32.xlu0 %v7282, 32
    %v7285 = vpop.permute.xlu0 %7284
    %v7287 = vadd.f32 %v7277, %v7285
    %v7288 = vtanh.pop %v7287
    %7290 = vrot.lane.b32.xlu0 %v7288, 64
    %v7291 = vpop.permute.xlu0 %7290
    %v7293 = vmul.f32 %v7275, %v7291
    %v7294 = vld [vmem:[#allocation2 + $0x6a] sm:$0x3]
    %v7295 = vpack.c.bf16 %v7293, %v7293
    %7297 = vrot.lane.b32.xlu0 %v7295, 32
    %v7298 = vpop.permute.xlu0 %7297
    %v7300 = vsel %vm4115, %v7298, 0
    %7302 = vmatpush.bf16.msra.mxu0 0
    %7303 = vmatpush.bf16.msra.mxu0 0
    %7304 = vmatpush.bf16.msra.mxu0 0
    %7305 = vmatpush.bf16.msra.mxu0 0
    %7306 = vmatpush.bf16.msra.mxu0 0
    %7307 = vmatpush.bf16.msra.mxu0 0
    %7308 = vmatpush.bf16.msra.mxu0 %v4112
    %7309 = vmatpush.bf16.msra.mxu0 %v4111
    %7310 = vmatmul.bf16.gmra.mxu0 %v7300
    %v7311 = vpop.f32.mrf.mxu0
    %v7312 = vadd.f32 0.0, %v7311
    %v7313 = vpop.f32.mrf.mxu0
    %7314 = vdwg.mxu0
    %v7315 = vadd.f32 %v7294, %v7312
    %v7316 = vadd.f32 %v7315, %v4134
    %v7317 = vxor.u32 %v7316, 2147483648
    %v7318 = vmul.f32 %v7317, 1.442695
    %v7319 = vpow.pop %v7318
    %v7320 = vadd.f32 %v7319, 1.0
    %v7321 = vrcp.pop %v7320
    %v7322 = vmul.f32 %v7320, %v7321
    %v7323 = vsub.f32 1.0, %v7322
    %v7324 = vmul.f32 %v7321, %v7323
    %v7325 = vadd.f32 %v7321, %v7324
    %vm7326 = vweird.f32 %v7320
    %vm7327 = vweird.f32 %v7321
    %vm7328 = vmor %vm7326, %vm7327
    %v7329 = vsel %vm7328, %v7321, %v7325
    %v7330 = vand.u32 2147483647, %v7320
    %vm7331 = vcmp.eq.f32.partialorder %v7330, 8.507059e+37
    %v7332 = vand.u32 %v7320, 2147483648
    %v7333 = vor.u32 1.1754944e-38, %v7332
    %v7334 = vsel %vm7331, %v7333, %v7329
    %v7335 = vmul.f32 1.0, %v7334
    %v7336 = vtanh.pop %v7316
    %v7337 = vmul.f32 %v7335, %v7287
    %7339 = vrot.lane.b32.xlu0 %v7336, 64
    %v7340 = vpop.permute.xlu0 %7339
    %v7342 = vmul.f32 %v7335, %v7340
    %7344 = vrot.lane.b32.xlu0 %v7342, 32
    %v7345 = vpop.permute.xlu0 %7344
    %v7347 = vadd.f32 %v7337, %v7345
    %v7348 = vtanh.pop %v7347
    %7350 = vrot.lane.b32.xlu0 %v7348, 64
    %v7351 = vpop.permute.xlu0 %7350
    %v7353 = vmul.f32 %v7335, %v7351
    %v7354 = vld [vmem:[#allocation2 + $0x6c] sm:$0x3]
    %v7355 = vpack.c.bf16 %v7353, %v7353
    %7357 = vrot.lane.b32.xlu0 %v7355, 32
    %v7358 = vpop.permute.xlu0 %7357
    %v7360 = vsel %vm4115, %v7358, 0
    %7362 = vmatpush.bf16.msra.mxu0 0
    %7363 = vmatpush.bf16.msra.mxu0 0
    %7364 = vmatpush.bf16.msra.mxu0 0
    %7365 = vmatpush.bf16.msra.mxu0 0
    %7366 = vmatpush.bf16.msra.mxu0 0
    %7367 = vmatpush.bf16.msra.mxu0 0
    %7368 = vmatpush.bf16.msra.mxu0 %v4112
    %7369 = vmatpush.bf16.msra.mxu0 %v4111
    %7370 = vmatmul.bf16.gmra.mxu0 %v7360
    %v7371 = vpop.f32.mrf.mxu0
    %v7372 = vadd.f32 0.0, %v7371
    %v7373 = vpop.f32.mrf.mxu0
    %7374 = vdwg.mxu0
    %v7375 = vadd.f32 %v7354, %v7372
    %v7376 = vadd.f32 %v7375, %v4134
    %v7377 = vxor.u32 %v7376, 2147483648
    %v7378 = vmul.f32 %v7377, 1.442695
    %v7379 = vpow.pop %v7378
    %v7380 = vadd.f32 %v7379, 1.0
    %v7381 = vrcp.pop %v7380
    %v7382 = vmul.f32 %v7380, %v7381
    %v7383 = vsub.f32 1.0, %v7382
    %v7384 = vmul.f32 %v7381, %v7383
    %v7385 = vadd.f32 %v7381, %v7384
    %vm7386 = vweird.f32 %v7380
    %vm7387 = vweird.f32 %v7381
    %vm7388 = vmor %vm7386, %vm7387
    %v7389 = vsel %vm7388, %v7381, %v7385
    %v7390 = vand.u32 2147483647, %v7380
    %vm7391 = vcmp.eq.f32.partialorder %v7390, 8.507059e+37
    %v7392 = vand.u32 %v7380, 2147483648
    %v7393 = vor.u32 1.1754944e-38, %v7392
    %v7394 = vsel %vm7391, %v7393, %v7389
    %v7395 = vmul.f32 1.0, %v7394
    %v7396 = vtanh.pop %v7376
    %v7397 = vmul.f32 %v7395, %v7347
    %7399 = vrot.lane.b32.xlu0 %v7396, 64
    %v7400 = vpop.permute.xlu0 %7399
    %v7402 = vmul.f32 %v7395, %v7400
    %7404 = vrot.lane.b32.xlu0 %v7402, 32
    %v7405 = vpop.permute.xlu0 %7404
    %v7407 = vadd.f32 %v7397, %v7405
    %v7408 = vtanh.pop %v7407
    %7410 = vrot.lane.b32.xlu0 %v7408, 64
    %v7411 = vpop.permute.xlu0 %7410
    %v7413 = vmul.f32 %v7395, %v7411
    %v7414 = vld [vmem:[#allocation2 + $0x6e] sm:$0x3]
    %v7415 = vpack.c.bf16 %v7413, %v7413
    %7417 = vrot.lane.b32.xlu0 %v7415, 32
    %v7418 = vpop.permute.xlu0 %7417
    %v7420 = vsel %vm4115, %v7418, 0
    %7422 = vmatpush.bf16.msra.mxu0 0
    %7423 = vmatpush.bf16.msra.mxu0 0
    %7424 = vmatpush.bf16.msra.mxu0 0
    %7425 = vmatpush.bf16.msra.mxu0 0
    %7426 = vmatpush.bf16.msra.mxu0 0
    %7427 = vmatpush.bf16.msra.mxu0 0
    %7428 = vmatpush.bf16.msra.mxu0 %v4112
    %7429 = vmatpush.bf16.msra.mxu0 %v4111
    %7430 = vmatmul.bf16.gmra.mxu0 %v7420
    %v7431 = vpop.f32.mrf.mxu0
    %v7432 = vadd.f32 0.0, %v7431
    %v7433 = vpop.f32.mrf.mxu0
    %7434 = vdwg.mxu0
    %v7435 = vadd.f32 %v7414, %v7432
    %v7436 = vadd.f32 %v7435, %v4134
    %v7437 = vxor.u32 %v7436, 2147483648
    %v7438 = vmul.f32 %v7437, 1.442695
    %v7439 = vpow.pop %v7438
    %v7440 = vadd.f32 %v7439, 1.0
    %v7441 = vrcp.pop %v7440
    %v7442 = vmul.f32 %v7440, %v7441
    %v7443 = vsub.f32 1.0, %v7442
    %v7444 = vmul.f32 %v7441, %v7443
    %v7445 = vadd.f32 %v7441, %v7444
    %vm7446 = vweird.f32 %v7440
    %vm7447 = vweird.f32 %v7441
    %vm7448 = vmor %vm7446, %vm7447
    %v7449 = vsel %vm7448, %v7441, %v7445
    %v7450 = vand.u32 2147483647, %v7440
    %vm7451 = vcmp.eq.f32.partialorder %v7450, 8.507059e+37
    %v7452 = vand.u32 %v7440, 2147483648
    %v7453 = vor.u32 1.1754944e-38, %v7452
    %v7454 = vsel %vm7451, %v7453, %v7449
    %v7455 = vmul.f32 1.0, %v7454
    %v7456 = vtanh.pop %v7436
    %v7457 = vmul.f32 %v7455, %v7407
    %7459 = vrot.lane.b32.xlu0 %v7456, 64
    %v7460 = vpop.permute.xlu0 %7459
    %v7462 = vmul.f32 %v7455, %v7460
    %7464 = vrot.lane.b32.xlu0 %v7462, 32
    %v7465 = vpop.permute.xlu0 %7464
    %v7467 = vadd.f32 %v7457, %v7465
    %v7468 = vtanh.pop %v7467
    %7470 = vrot.lane.b32.xlu0 %v7468, 64
    %v7471 = vpop.permute.xlu0 %7470
    %v7473 = vmul.f32 %v7455, %v7471
    %v7474 = vld [vmem:[#allocation2 + $0x70] sm:$0x3]
    %v7475 = vpack.c.bf16 %v7473, %v7473
    %7477 = vrot.lane.b32.xlu0 %v7475, 32
    %v7478 = vpop.permute.xlu0 %7477
    %v7480 = vsel %vm4115, %v7478, 0
    %7482 = vmatpush.bf16.msra.mxu0 0
    %7483 = vmatpush.bf16.msra.mxu0 0
    %7484 = vmatpush.bf16.msra.mxu0 0
    %7485 = vmatpush.bf16.msra.mxu0 0
    %7486 = vmatpush.bf16.msra.mxu0 0
    %7487 = vmatpush.bf16.msra.mxu0 0
    %7488 = vmatpush.bf16.msra.mxu0 %v4112
    %7489 = vmatpush.bf16.msra.mxu0 %v4111
    %7490 = vmatmul.bf16.gmra.mxu0 %v7480
    %v7491 = vpop.f32.mrf.mxu0
    %v7492 = vadd.f32 0.0, %v7491
    %v7493 = vpop.f32.mrf.mxu0
    %7494 = vdwg.mxu0
    %v7495 = vadd.f32 %v7474, %v7492
    %v7496 = vadd.f32 %v7495, %v4134
    %v7497 = vxor.u32 %v7496, 2147483648
    %v7498 = vmul.f32 %v7497, 1.442695
    %v7499 = vpow.pop %v7498
    %v7500 = vadd.f32 %v7499, 1.0
    %v7501 = vrcp.pop %v7500
    %v7502 = vmul.f32 %v7500, %v7501
    %v7503 = vsub.f32 1.0, %v7502
    %v7504 = vmul.f32 %v7501, %v7503
    %v7505 = vadd.f32 %v7501, %v7504
    %vm7506 = vweird.f32 %v7500
    %vm7507 = vweird.f32 %v7501
    %vm7508 = vmor %vm7506, %vm7507
    %v7509 = vsel %vm7508, %v7501, %v7505
    %v7510 = vand.u32 2147483647, %v7500
    %vm7511 = vcmp.eq.f32.partialorder %v7510, 8.507059e+37
    %v7512 = vand.u32 %v7500, 2147483648
    %v7513 = vor.u32 1.1754944e-38, %v7512
    %v7514 = vsel %vm7511, %v7513, %v7509
    %v7515 = vmul.f32 1.0, %v7514
    %v7516 = vtanh.pop %v7496
    %v7517 = vmul.f32 %v7515, %v7467
    %7519 = vrot.lane.b32.xlu0 %v7516, 64
    %v7520 = vpop.permute.xlu0 %7519
    %v7522 = vmul.f32 %v7515, %v7520
    %7524 = vrot.lane.b32.xlu0 %v7522, 32
    %v7525 = vpop.permute.xlu0 %7524
    %v7527 = vadd.f32 %v7517, %v7525
    %v7528 = vtanh.pop %v7527
    %7530 = vrot.lane.b32.xlu0 %v7528, 64
    %v7531 = vpop.permute.xlu0 %7530
    %v7533 = vmul.f32 %v7515, %v7531
    %v7534 = vld [vmem:[#allocation2 + $0x72] sm:$0x3]
    %v7535 = vpack.c.bf16 %v7533, %v7533
    %7537 = vrot.lane.b32.xlu0 %v7535, 32
    %v7538 = vpop.permute.xlu0 %7537
    %v7540 = vsel %vm4115, %v7538, 0
    %7542 = vmatpush.bf16.msra.mxu0 0
    %7543 = vmatpush.bf16.msra.mxu0 0
    %7544 = vmatpush.bf16.msra.mxu0 0
    %7545 = vmatpush.bf16.msra.mxu0 0
    %7546 = vmatpush.bf16.msra.mxu0 0
    %7547 = vmatpush.bf16.msra.mxu0 0
    %7548 = vmatpush.bf16.msra.mxu0 %v4112
    %7549 = vmatpush.bf16.msra.mxu0 %v4111
    %7550 = vmatmul.bf16.gmra.mxu0 %v7540
    %v7551 = vpop.f32.mrf.mxu0
    %v7552 = vadd.f32 0.0, %v7551
    %v7553 = vpop.f32.mrf.mxu0
    %7554 = vdwg.mxu0
    %v7555 = vadd.f32 %v7534, %v7552
    %v7556 = vadd.f32 %v7555, %v4134
    %v7557 = vxor.u32 %v7556, 2147483648
    %v7558 = vmul.f32 %v7557, 1.442695
    %v7559 = vpow.pop %v7558
    %v7560 = vadd.f32 %v7559, 1.0
    %v7561 = vrcp.pop %v7560
    %v7562 = vmul.f32 %v7560, %v7561
    %v7563 = vsub.f32 1.0, %v7562
    %v7564 = vmul.f32 %v7561, %v7563
    %v7565 = vadd.f32 %v7561, %v7564
    %vm7566 = vweird.f32 %v7560
    %vm7567 = vweird.f32 %v7561
    %vm7568 = vmor %vm7566, %vm7567
    %v7569 = vsel %vm7568, %v7561, %v7565
    %v7570 = vand.u32 2147483647, %v7560
    %vm7571 = vcmp.eq.f32.partialorder %v7570, 8.507059e+37
    %v7572 = vand.u32 %v7560, 2147483648
    %v7573 = vor.u32 1.1754944e-38, %v7572
    %v7574 = vsel %vm7571, %v7573, %v7569
    %v7575 = vmul.f32 1.0, %v7574
    %v7576 = vtanh.pop %v7556
    %v7577 = vmul.f32 %v7575, %v7527
    %7579 = vrot.lane.b32.xlu0 %v7576, 64
    %v7580 = vpop.permute.xlu0 %7579
    %v7582 = vmul.f32 %v7575, %v7580
    %7584 = vrot.lane.b32.xlu0 %v7582, 32
    %v7585 = vpop.permute.xlu0 %7584
    %v7587 = vadd.f32 %v7577, %v7585
    %v7588 = vtanh.pop %v7587
    %7590 = vrot.lane.b32.xlu0 %v7588, 64
    %v7591 = vpop.permute.xlu0 %7590
    %v7593 = vmul.f32 %v7575, %v7591
    %v7594 = vld [vmem:[#allocation2 + $0x74] sm:$0x3]
    %v7595 = vpack.c.bf16 %v7593, %v7593
    %7597 = vrot.lane.b32.xlu0 %v7595, 32
    %v7598 = vpop.permute.xlu0 %7597
    %v7600 = vsel %vm4115, %v7598, 0
    %7602 = vmatpush.bf16.msra.mxu0 0
    %7603 = vmatpush.bf16.msra.mxu0 0
    %7604 = vmatpush.bf16.msra.mxu0 0
    %7605 = vmatpush.bf16.msra.mxu0 0
    %7606 = vmatpush.bf16.msra.mxu0 0
    %7607 = vmatpush.bf16.msra.mxu0 0
    %7608 = vmatpush.bf16.msra.mxu0 %v4112
    %7609 = vmatpush.bf16.msra.mxu0 %v4111
    %7610 = vmatmul.bf16.gmra.mxu0 %v7600
    %v7611 = vpop.f32.mrf.mxu0
    %v7612 = vadd.f32 0.0, %v7611
    %v7613 = vpop.f32.mrf.mxu0
    %7614 = vdwg.mxu0
    %v7615 = vadd.f32 %v7594, %v7612
    %v7616 = vadd.f32 %v7615, %v4134
    %v7617 = vxor.u32 %v7616, 2147483648
    %v7618 = vmul.f32 %v7617, 1.442695
    %v7619 = vpow.pop %v7618
    %v7620 = vadd.f32 %v7619, 1.0
    %v7621 = vrcp.pop %v7620
    %v7622 = vmul.f32 %v7620, %v7621
    %v7623 = vsub.f32 1.0, %v7622
    %v7624 = vmul.f32 %v7621, %v7623
    %v7625 = vadd.f32 %v7621, %v7624
    %vm7626 = vweird.f32 %v7620
    %vm7627 = vweird.f32 %v7621
    %vm7628 = vmor %vm7626, %vm7627
    %v7629 = vsel %vm7628, %v7621, %v7625
    %v7630 = vand.u32 2147483647, %v7620
    %vm7631 = vcmp.eq.f32.partialorder %v7630, 8.507059e+37
    %v7632 = vand.u32 %v7620, 2147483648
    %v7633 = vor.u32 1.1754944e-38, %v7632
    %v7634 = vsel %vm7631, %v7633, %v7629
    %v7635 = vmul.f32 1.0, %v7634
    %v7636 = vtanh.pop %v7616
    %v7637 = vmul.f32 %v7635, %v7587
    %7639 = vrot.lane.b32.xlu0 %v7636, 64
    %v7640 = vpop.permute.xlu0 %7639
    %v7642 = vmul.f32 %v7635, %v7640
    %7644 = vrot.lane.b32.xlu0 %v7642, 32
    %v7645 = vpop.permute.xlu0 %7644
    %v7647 = vadd.f32 %v7637, %v7645
    %v7648 = vtanh.pop %v7647
    %7650 = vrot.lane.b32.xlu0 %v7648, 64
    %v7651 = vpop.permute.xlu0 %7650
    %v7653 = vmul.f32 %v7635, %v7651
    %v7654 = vld [vmem:[#allocation2 + $0x76] sm:$0x3]
    %v7655 = vpack.c.bf16 %v7653, %v7653
    %7657 = vrot.lane.b32.xlu0 %v7655, 32
    %v7658 = vpop.permute.xlu0 %7657
    %v7660 = vsel %vm4115, %v7658, 0
    %7662 = vmatpush.bf16.msra.mxu0 0
    %7663 = vmatpush.bf16.msra.mxu0 0
    %7664 = vmatpush.bf16.msra.mxu0 0
    %7665 = vmatpush.bf16.msra.mxu0 0
    %7666 = vmatpush.bf16.msra.mxu0 0
    %7667 = vmatpush.bf16.msra.mxu0 0
    %7668 = vmatpush.bf16.msra.mxu0 %v4112
    %7669 = vmatpush.bf16.msra.mxu0 %v4111
    %7670 = vmatmul.bf16.gmra.mxu0 %v7660
    %v7671 = vpop.f32.mrf.mxu0
    %v7672 = vadd.f32 0.0, %v7671
    %v7673 = vpop.f32.mrf.mxu0
    %7674 = vdwg.mxu0
    %v7675 = vadd.f32 %v7654, %v7672
    %v7676 = vadd.f32 %v7675, %v4134
    %v7677 = vxor.u32 %v7676, 2147483648
    %v7678 = vmul.f32 %v7677, 1.442695
    %v7679 = vpow.pop %v7678
    %v7680 = vadd.f32 %v7679, 1.0
    %v7681 = vrcp.pop %v7680
    %v7682 = vmul.f32 %v7680, %v7681
    %v7683 = vsub.f32 1.0, %v7682
    %v7684 = vmul.f32 %v7681, %v7683
    %v7685 = vadd.f32 %v7681, %v7684
    %vm7686 = vweird.f32 %v7680
    %vm7687 = vweird.f32 %v7681
    %vm7688 = vmor %vm7686, %vm7687
    %v7689 = vsel %vm7688, %v7681, %v7685
    %v7690 = vand.u32 2147483647, %v7680
    %vm7691 = vcmp.eq.f32.partialorder %v7690, 8.507059e+37
    %v7692 = vand.u32 %v7680, 2147483648
    %v7693 = vor.u32 1.1754944e-38, %v7692
    %v7694 = vsel %vm7691, %v7693, %v7689
    %v7695 = vmul.f32 1.0, %v7694
    %v7696 = vtanh.pop %v7676
    %v7697 = vmul.f32 %v7695, %v7647
    %7699 = vrot.lane.b32.xlu0 %v7696, 64
    %v7700 = vpop.permute.xlu0 %7699
    %v7702 = vmul.f32 %v7695, %v7700
    %7704 = vrot.lane.b32.xlu0 %v7702, 32
    %v7705 = vpop.permute.xlu0 %7704
    %v7707 = vadd.f32 %v7697, %v7705
    %v7708 = vtanh.pop %v7707
    %7710 = vrot.lane.b32.xlu0 %v7708, 64
    %v7711 = vpop.permute.xlu0 %7710
    %v7713 = vmul.f32 %v7695, %v7711
    %v7714 = vld [vmem:[#allocation2 + $0x78] sm:$0x3]
    %v7715 = vpack.c.bf16 %v7713, %v7713
    %7717 = vrot.lane.b32.xlu0 %v7715, 32
    %v7718 = vpop.permute.xlu0 %7717
    %v7720 = vsel %vm4115, %v7718, 0
    %7722 = vmatpush.bf16.msra.mxu0 0
    %7723 = vmatpush.bf16.msra.mxu0 0
    %7724 = vmatpush.bf16.msra.mxu0 0
    %7725 = vmatpush.bf16.msra.mxu0 0
    %7726 = vmatpush.bf16.msra.mxu0 0
    %7727 = vmatpush.bf16.msra.mxu0 0
    %7728 = vmatpush.bf16.msra.mxu0 %v4112
    %7729 = vmatpush.bf16.msra.mxu0 %v4111
    %7730 = vmatmul.bf16.gmra.mxu0 %v7720
    %v7731 = vpop.f32.mrf.mxu0
    %v7732 = vadd.f32 0.0, %v7731
    %v7733 = vpop.f32.mrf.mxu0
    %7734 = vdwg.mxu0
    %v7735 = vadd.f32 %v7714, %v7732
    %v7736 = vadd.f32 %v7735, %v4134
    %v7737 = vxor.u32 %v7736, 2147483648
    %v7738 = vmul.f32 %v7737, 1.442695
    %v7739 = vpow.pop %v7738
    %v7740 = vadd.f32 %v7739, 1.0
    %v7741 = vrcp.pop %v7740
    %v7742 = vmul.f32 %v7740, %v7741
    %v7743 = vsub.f32 1.0, %v7742
    %v7744 = vmul.f32 %v7741, %v7743
    %v7745 = vadd.f32 %v7741, %v7744
    %vm7746 = vweird.f32 %v7740
    %vm7747 = vweird.f32 %v7741
    %vm7748 = vmor %vm7746, %vm7747
    %v7749 = vsel %vm7748, %v7741, %v7745
    %v7750 = vand.u32 2147483647, %v7740
    %vm7751 = vcmp.eq.f32.partialorder %v7750, 8.507059e+37
    %v7752 = vand.u32 %v7740, 2147483648
    %v7753 = vor.u32 1.1754944e-38, %v7752
    %v7754 = vsel %vm7751, %v7753, %v7749
    %v7755 = vmul.f32 1.0, %v7754
    %v7756 = vtanh.pop %v7736
    %v7757 = vmul.f32 %v7755, %v7707
    %7759 = vrot.lane.b32.xlu0 %v7756, 64
    %v7760 = vpop.permute.xlu0 %7759
    %v7762 = vmul.f32 %v7755, %v7760
    %7764 = vrot.lane.b32.xlu0 %v7762, 32
    %v7765 = vpop.permute.xlu0 %7764
    %v7767 = vadd.f32 %v7757, %v7765
    %v7768 = vtanh.pop %v7767
    %7770 = vrot.lane.b32.xlu0 %v7768, 64
    %v7771 = vpop.permute.xlu0 %7770
    %v7773 = vmul.f32 %v7755, %v7771
    %v7774 = vld [vmem:[#allocation2 + $0x7a] sm:$0x3]
    %v7775 = vpack.c.bf16 %v7773, %v7773
    %7777 = vrot.lane.b32.xlu0 %v7775, 32
    %v7778 = vpop.permute.xlu0 %7777
    %v7780 = vsel %vm4115, %v7778, 0
    %7782 = vmatpush.bf16.msra.mxu0 0
    %7783 = vmatpush.bf16.msra.mxu0 0
    %7784 = vmatpush.bf16.msra.mxu0 0
    %7785 = vmatpush.bf16.msra.mxu0 0
    %7786 = vmatpush.bf16.msra.mxu0 0
    %7787 = vmatpush.bf16.msra.mxu0 0
    %7788 = vmatpush.bf16.msra.mxu0 %v4112
    %7789 = vmatpush.bf16.msra.mxu0 %v4111
    %7790 = vmatmul.bf16.gmra.mxu0 %v7780
    %v7791 = vpop.f32.mrf.mxu0
    %v7792 = vadd.f32 0.0, %v7791
    %v7793 = vpop.f32.mrf.mxu0
    %7794 = vdwg.mxu0
    %v7795 = vadd.f32 %v7774, %v7792
    %v7796 = vadd.f32 %v7795, %v4134
    %v7797 = vxor.u32 %v7796, 2147483648
    %v7798 = vmul.f32 %v7797, 1.442695
    %v7799 = vpow.pop %v7798
    %v7800 = vadd.f32 %v7799, 1.0
    %v7801 = vrcp.pop %v7800
    %v7802 = vmul.f32 %v7800, %v7801
    %v7803 = vsub.f32 1.0, %v7802
    %v7804 = vmul.f32 %v7801, %v7803
    %v7805 = vadd.f32 %v7801, %v7804
    %vm7806 = vweird.f32 %v7800
    %vm7807 = vweird.f32 %v7801
    %vm7808 = vmor %vm7806, %vm7807
    %v7809 = vsel %vm7808, %v7801, %v7805
    %v7810 = vand.u32 2147483647, %v7800
    %vm7811 = vcmp.eq.f32.partialorder %v7810, 8.507059e+37
    %v7812 = vand.u32 %v7800, 2147483648
    %v7813 = vor.u32 1.1754944e-38, %v7812
    %v7814 = vsel %vm7811, %v7813, %v7809
    %v7815 = vmul.f32 1.0, %v7814
    %v7816 = vtanh.pop %v7796
    %v7817 = vmul.f32 %v7815, %v7767
    %7819 = vrot.lane.b32.xlu0 %v7816, 64
    %v7820 = vpop.permute.xlu0 %7819
    %v7822 = vmul.f32 %v7815, %v7820
    %7824 = vrot.lane.b32.xlu0 %v7822, 32
    %v7825 = vpop.permute.xlu0 %7824
    %v7827 = vadd.f32 %v7817, %v7825
    %v7828 = vtanh.pop %v7827
    %7830 = vrot.lane.b32.xlu0 %v7828, 64
    %v7831 = vpop.permute.xlu0 %7830
    %v7833 = vmul.f32 %v7815, %v7831
    %v7834 = vld [vmem:[#allocation2 + $0x7c] sm:$0x3]
    %v7835 = vpack.c.bf16 %v7833, %v7833
    %7837 = vrot.lane.b32.xlu0 %v7835, 32
    %v7838 = vpop.permute.xlu0 %7837
    %v7840 = vsel %vm4115, %v7838, 0
    %7842 = vmatpush.bf16.msra.mxu0 0
    %7843 = vmatpush.bf16.msra.mxu0 0
    %7844 = vmatpush.bf16.msra.mxu0 0
    %7845 = vmatpush.bf16.msra.mxu0 0
    %7846 = vmatpush.bf16.msra.mxu0 0
    %7847 = vmatpush.bf16.msra.mxu0 0
    %7848 = vmatpush.bf16.msra.mxu0 %v4112
    %7849 = vmatpush.bf16.msra.mxu0 %v4111
    %7850 = vmatmul.bf16.gmra.mxu0 %v7840
    %v7851 = vpop.f32.mrf.mxu0
    %v7852 = vadd.f32 0.0, %v7851
    %v7853 = vpop.f32.mrf.mxu0
    %7854 = vdwg.mxu0
    %v7855 = vadd.f32 %v7834, %v7852
    %v7856 = vadd.f32 %v7855, %v4134
    %v7857 = vxor.u32 %v7856, 2147483648
    %v7858 = vmul.f32 %v7857, 1.442695
    %v7859 = vpow.pop %v7858
    %v7860 = vadd.f32 %v7859, 1.0
    %v7861 = vrcp.pop %v7860
    %v7862 = vmul.f32 %v7860, %v7861
    %v7863 = vsub.f32 1.0, %v7862
    %v7864 = vmul.f32 %v7861, %v7863
    %v7865 = vadd.f32 %v7861, %v7864
    %vm7866 = vweird.f32 %v7860
    %vm7867 = vweird.f32 %v7861
    %vm7868 = vmor %vm7866, %vm7867
    %v7869 = vsel %vm7868, %v7861, %v7865
    %v7870 = vand.u32 2147483647, %v7860
    %vm7871 = vcmp.eq.f32.partialorder %v7870, 8.507059e+37
    %v7872 = vand.u32 %v7860, 2147483648
    %v7873 = vor.u32 1.1754944e-38, %v7872
    %v7874 = vsel %vm7871, %v7873, %v7869
    %v7875 = vmul.f32 1.0, %v7874
    %v7876 = vtanh.pop %v7856
    %v7877 = vmul.f32 %v7875, %v7827
    %7879 = vrot.lane.b32.xlu0 %v7876, 64
    %v7880 = vpop.permute.xlu0 %7879
    %v7882 = vmul.f32 %v7875, %v7880
    %7884 = vrot.lane.b32.xlu0 %v7882, 32
    %v7885 = vpop.permute.xlu0 %7884
    %v7887 = vadd.f32 %v7877, %v7885
    %v7888 = vtanh.pop %v7887
    %7890 = vrot.lane.b32.xlu0 %v7888, 64
    %v7891 = vpop.permute.xlu0 %7890
    %v7893 = vmul.f32 %v7875, %v7891
    %v7894 = vld [vmem:[#allocation2 + $0x7e] sm:$0x3]
    %v7895 = vpack.c.bf16 %v7893, %v7893
    %7897 = vrot.lane.b32.xlu0 %v7895, 32
    %v7898 = vpop.permute.xlu0 %7897
    %v7900 = vsel %vm4115, %v7898, 0
    %7902 = vmatpush.bf16.msra.mxu0 0
    %7903 = vmatpush.bf16.msra.mxu0 0
    %7904 = vmatpush.bf16.msra.mxu0 0
    %7905 = vmatpush.bf16.msra.mxu0 0
    %7906 = vmatpush.bf16.msra.mxu0 0
    %7907 = vmatpush.bf16.msra.mxu0 0
    %7908 = vmatpush.bf16.msra.mxu0 %v4112
    %7909 = vmatpush.bf16.msra.mxu0 %v4111
    %7910 = vmatmul.bf16.gmra.mxu0 %v7900
    %v7911 = vpop.f32.mrf.mxu0
    %v7912 = vadd.f32 0.0, %v7911
    %v7913 = vpop.f32.mrf.mxu0
    %7914 = vdwg.mxu0
    %v7915 = vadd.f32 %v7894, %v7912
    %v7916 = vadd.f32 %v7915, %v4134
    %v7917 = vxor.u32 %v7916, 2147483648
    %v7918 = vmul.f32 %v7917, 1.442695
    %v7919 = vpow.pop %v7918
    %v7920 = vadd.f32 %v7919, 1.0
    %v7921 = vrcp.pop %v7920
    %v7922 = vmul.f32 %v7920, %v7921
    %v7923 = vsub.f32 1.0, %v7922
    %v7924 = vmul.f32 %v7921, %v7923
    %v7925 = vadd.f32 %v7921, %v7924
    %vm7926 = vweird.f32 %v7920
    %vm7927 = vweird.f32 %v7921
    %vm7928 = vmor %vm7926, %vm7927
    %v7929 = vsel %vm7928, %v7921, %v7925
    %v7930 = vand.u32 2147483647, %v7920
    %vm7931 = vcmp.eq.f32.partialorder %v7930, 8.507059e+37
    %v7932 = vand.u32 %v7920, 2147483648
    %v7933 = vor.u32 1.1754944e-38, %v7932
    %v7934 = vsel %vm7931, %v7933, %v7929
    %v7935 = vmul.f32 1.0, %v7934
    %v7936 = vtanh.pop %v7916
    %v7937 = vmul.f32 %v7935, %v7887
    %7939 = vrot.lane.b32.xlu0 %v7936, 64
    %v7940 = vpop.permute.xlu0 %7939
    %v7942 = vmul.f32 %v7935, %v7940
    %7944 = vrot.lane.b32.xlu0 %v7942, 32
    %v7945 = vpop.permute.xlu0 %7944
    %v7947 = vadd.f32 %v7937, %v7945
    %v7948 = vtanh.pop %v7947
    %7950 = vrot.lane.b32.xlu0 %v7948, 64
    %v7951 = vpop.permute.xlu0 %7950
    %v7953 = vmul.f32 %v7935, %v7951
    %v7954 = vld [vmem:[%s7] sm:$0x3]
    %v7955 = vld [vmem:[%s8] sm:$0x1]
    %v7957 = vperm.slane %v7955, 0
    %7959 = vrot.lane.b32.xlu0 %v3583, 4
    %v7960 = vpop.permute.xlu0 %7959
    %v7962 = vsel %vm112, %v7960, 0
    %v7965 = vsel %vm116, %v7954, 0
    %7967 = vmatpush.bf16.msra.mxu0 0
    %7968 = vmatpush.bf16.msra.mxu0 0
    %7969 = vmatpush.bf16.msra.mxu0 0
    %7970 = vmatpush.bf16.msra.mxu0 0
    %7971 = vmatpush.bf16.msra.mxu0 0
    %7972 = vmatpush.bf16.msra.mxu0 0
    %7973 = vmatpush.bf16.msra.mxu0 0
    %7974 = vmatpush.bf16.msra.mxu0 %v7965
    %7975 = vmatmul.bf16.gmra.mxu0 %v7962
    %v7976 = vpop.f32.mrf.mxu0
    %v7977 = vadd.f32 %v7957, %v7976
    %v7978 = vpop.f32.mrf.mxu0
    %7979 = vdwg.mxu0
    %v7980 = vxor.u32 %v7977, 2147483648
    %v7981 = vmul.f32 %v7980, 1.442695
    %v7982 = vpow.pop %v7981
    %v7983 = vadd.f32 %v7982, 1.0
    %v7984 = vrcp.pop %v7983
    %v7985 = vmul.f32 %v7983, %v7984
    %v7986 = vsub.f32 1.0, %v7985
    %v7987 = vmul.f32 %v7984, %v7986
    %v7988 = vadd.f32 %v7984, %v7987
    %vm7989 = vweird.f32 %v7983
    %vm7990 = vweird.f32 %v7984
    %vm7991 = vmor %vm7989, %vm7990
    %v7992 = vsel %vm7991, %v7984, %v7988
    %v7993 = vand.u32 2147483647, %v7983
    %vm7994 = vcmp.eq.f32.partialorder %v7993, 8.507059e+37
    %v7995 = vand.u32 %v7983, 2147483648
    %v7996 = vor.u32 1.1754944e-38, %v7995
    %v7997 = vsel %vm7994, %v7996, %v7992
    %v7998 = vmul.f32 1.0, %v7997
    %v7999 = vtanh.pop %v7977
    %8001 = vrot.lane.b32.xlu0 %v7999, 64
    %v8002 = vpop.permute.xlu0 %8001
    %v8004 = vmul.f32 %v7998, %v8002
    %v8005 = vtanh.pop %v8004
    %8007 = vrot.lane.b32.xlu0 %v8005, 96
    %v8008 = vpop.permute.xlu0 %8007
    %v8010 = vmul.f32 %v7998, %v8008
    %v8011 = vpack.c.bf16 %v7953, %v7953
    %v8012 = vld [vmem:[%s9] sm:$0xf]
    %v8013 = vld [vmem:[%s9 + $0x4] sm:$0xf]
    %v8014 = vld [vmem:[%s9 + $0x8] sm:$0xf]
    %v8015 = vld [vmem:[%s9 + $0xc] sm:$0xf]
    %v8016 = vpack.c.bf16 %v8010, %v8010
    %v8017 = vld [vmem:[%s10] sm:$0xf]
    %v8018 = vld [vmem:[%s10 + $0x4] sm:$0xf]
    %v8019 = vld [vmem:[%s10 + $0x8] sm:$0xf]
    %v8020 = vld [vmem:[%s10 + $0xc] sm:$0xf]
    %8022 = vrot.lane.b32.xlu0 %v8016, 32
    %v8023 = vpop.permute.xlu0 %8022
    %v8028 = vunpack.c.l.b16 %v8017
    %v8029 = vunpack.c.l.b16 %v8018
    %v8030 = vunpack.c.l.b16 %v8019
    %v8031 = vunpack.c.l.b16 %v8020
    %v8032 = vpack.c.b16 %v8029, %v8028
    %v8033 = vpack.c.b16 %v8031, %v8030
    %v8037 = vsel %vm4115, %v8023, 0
    %8039 = vmatpush.bf16.msra.mxu0 0
    %8040 = vmatpush.bf16.msra.mxu0 0
    %8041 = vmatpush.bf16.msra.mxu0 0
    %8042 = vmatpush.bf16.msra.mxu0 0
    %8043 = vmatpush.bf16.msra.mxu0 0
    %8044 = vmatpush.bf16.msra.mxu0 0
    %8045 = vmatpush.bf16.msra.mxu0 %v8033
    %8046 = vmatpush.bf16.msra.mxu0 %v8032
    %8047 = vmatmul.bf16.gmra.mxu0 %v8037
    %v8048 = vpop.f32.mrf.mxu0
    %v8049 = vadd.f32 0.0, %v8048
    %v8050 = vpop.f32.mrf.mxu0
    %8051 = vdwg.mxu0
    %8053 = vrot.lane.b32.xlu0 %v8011, 32
    %v8054 = vpop.permute.xlu0 %8053
    %v8059 = vunpack.c.l.b16 %v8012
    %v8060 = vunpack.c.l.b16 %v8013
    %v8061 = vunpack.c.l.b16 %v8014
    %v8062 = vunpack.c.l.b16 %v8015
    %v8063 = vpack.c.b16 %v8060, %v8059
    %v8064 = vpack.c.b16 %v8062, %v8061
    %v8068 = vsel %vm4115, %v8054, 0
    %8070 = vmatpush.bf16.msra.mxu0 0
    %8071 = vmatpush.bf16.msra.mxu0 0
    %8072 = vmatpush.bf16.msra.mxu0 0
    %8073 = vmatpush.bf16.msra.mxu0 0
    %8074 = vmatpush.bf16.msra.mxu0 0
    %8075 = vmatpush.bf16.msra.mxu0 0
    %8076 = vmatpush.bf16.msra.mxu0 %v8064
    %8077 = vmatpush.bf16.msra.mxu0 %v8063
    %8078 = vmatmul.bf16.gmra.mxu0 %v8068
    %v8079 = vpop.f32.mrf.mxu0
    %v8080 = vadd.f32 %v8049, %v8079
    %v8081 = vpop.f32.mrf.mxu0
    %8082 = vdwg.mxu0
    %v8083 = vld [vmem:[%s11] sm:$0x1]
    %v8085 = vperm.slane %v8083, 0
    %v8087 = vadd.f32 %v8080, %v8085
    %v8088 = vxor.u32 %v8087, 2147483648
    %v8089 = vmul.f32 %v8088, 1.442695
    %v8090 = vpow.pop %v8089
    %v8091 = vadd.f32 %v8090, 1.0
    %v8092 = vrcp.pop %v8091
    %v8093 = vmul.f32 %v8091, %v8092
    %v8094 = vsub.f32 1.0, %v8093
    %v8095 = vmul.f32 %v8092, %v8094
    %v8096 = vadd.f32 %v8092, %v8095
    %vm8097 = vweird.f32 %v8091
    %vm8098 = vweird.f32 %v8092
    %vm8099 = vmor %vm8097, %vm8098
    %v8100 = vsel %vm8099, %v8092, %v8096
    %v8101 = vand.u32 2147483647, %v8091
    %vm8102 = vcmp.eq.f32.partialorder %v8101, 8.507059e+37
    %v8103 = vand.u32 %v8091, 2147483648
    %v8104 = vor.u32 1.1754944e-38, %v8103
    %v8105 = vsel %vm8102, %v8104, %v8100
    %v8106 = vmul.f32 1.0, %v8105
    %vm8107 = vcmask 74752
    %8108 = vst.msk [vmem:[#allocation8] sm:$0x3] %vm8107, %v8106
    // Predicated region
    $region58: #{channelwise_lstm_forward.1} parent=1 // pred_check
      _
    $region59: #{channelwise_lstm_forward.1} parent=1 // pred_check_branch
      %8110 = sbr.rel (0) target = $region61
    $region60: #{channelwise_lstm_forward.1} parent=1 // pred_region
      %8112 = vsyncadd [#allocation5], 0
      %s8114 = sshll.u32 [#allocation8], 4
      %s8115 = int_to_ptr.vmem [resolvable:$true] %s8114
      %s8116 = sshll.u32 %s12, 4
      %s8117 = int_to_ptr.hbm [resolvable:$true] %s8116
      %8119 = dma.vmem_to_hbm [thread:$0]  %s8115, 32, %s8117, [#allocation5]
    $region61: #{channelwise_lstm_forward.1} parent=1 // pred_fallthru
      _
    // Predicated region
    $region62: #{channelwise_lstm_forward.1} parent=1 // pred_check
      _
    $region63: #{channelwise_lstm_forward.1} parent=1 // pred_check_branch
      %8121 = sbr.rel (0) target = $region65
    $region64: #{channelwise_lstm_forward.1} parent=1 // pred_region
      %8123 = dma.done [#allocation5], 32
    $region65: #{channelwise_lstm_forward.1} parent=1 // pred_fallthru
      _
    %8124 = vsyncpa [#allocation4], 1
    %8125 = vsyncpa [#allocation7], 1
    %8126 = vsyncpa [#allocation5], 1

</llo_original>
